<compile_context>
chip_gen: v7x
topology: tpu7x:2x2x1
jax: 0.10.0
libtpu: 0.0.40
codegen_flags: <defaults>
</compile_context>

<pallas_src>
import functools

import jax
import jax.numpy as jnp
from jax import lax
from jax.experimental import pallas as pl
from jax.experimental.pallas import tpu as pltpu

LRELU_SLOPE = 0.2
IN_EPS = 1e-5
STRIDES = (2, 2, 2, 1, 1)
VMEM_LIMIT = 40 * 1024 * 1024  # covers layer 4's (4096,512) f32 weight, double-buffered


# ------------- fused Conv(+bias) [+InstanceNorm] +LeakyReLU kernel ------------- #
def _conv_fused_kernel(a_ref, b_ref, bias_ref, o_ref, *, apply_norm):
    """One sample, whole layer in one shot.

    a: (M, K) im2col rows (M = Ho*Wo, K ordered (kh, kw, cin))
    b: (K, Cout), bias: (1, Cout), o: (M, Cout)
    acc = A @ B + bias; optional InstanceNorm (biased variance over the spatial
    rows, eps=1e-5, affine=False); LeakyReLU(0.2).  Dropout(0.3) sits between
    norm and LeakyReLU in the PyTorch module and is the identity in eval mode.
    """
    acc = jnp.dot(a_ref[...], b_ref[...], preferred_element_type=jnp.float32)
    acc = acc + bias_ref[...]
    if apply_norm:
        mean = jnp.mean(acc, axis=0, keepdims=True)       # per-channel, per-sample
        cent = acc - mean
        var = jnp.mean(cent * cent, axis=0, keepdims=True)
        acc = cent * lax.rsqrt(var + IN_EPS)
    acc = jnp.where(acc >= 0, acc, LRELU_SLOPE * acc)
    o_ref[...] = acc


def _conv_head_kernel(a_ref, w_ref, bias_ref, o_ref):
    """Final Cout=1 conv as a VPU multiply + lane reduction (keeps the single
    output column off the MXU and avoids padding N from 1 to 128)."""
    a = a_ref[...]                                        # (M, K)
    w = w_ref[...]                                        # (1, K) broadcasts over rows
    o_ref[...] = jnp.sum(a * w, axis=1, keepdims=True) + bias_ref[...]


# ----------------------------------- glue ----------------------------------- #
def _im2col(x_nhwc, k, stride, pad):
    """(N, H, W, C) -> (N, Ho*Wo, k*k*C) patches; K ordered (kh, kw, cin).
    Thin XLA glue (single fused pad/slice/stack chain per layer)."""
    x = jnp.pad(x_nhwc, ((0, 0), (pad, pad), (pad, pad), (0, 0)))
    N, H, W, C = x.shape
    Ho = (H - k) // stride + 1
    Wo = (W - k) // stride + 1
    cols = []
    for di in range(k):
        for dj in range(k):
            cols.append(x[:, di:di + stride * Ho:stride, dj:dj + stride * Wo:stride, :])
    p = jnp.stack(cols, axis=3)                           # (N, Ho, Wo, k*k, C)
    return p.reshape(N, Ho * Wo, k * k * C), Ho, Wo


def conv_block(x_nhwc, w, b, stride, apply_norm):
    """Conv2d(4x4, pad=1) [+ InstanceNorm] + LeakyReLU, one pallas_call."""
    k, _, cin, cout = w.shape
    cols, Ho, Wo = _im2col(x_nhwc, k, stride, pad=1)      # (N, M, K)
    N, M, K = cols.shape
    w2 = w.reshape(k * k * cin, cout)                     # matches im2col K ordering
    bias = b.reshape(1, cout)

    out = pl.pallas_call(
        functools.partial(_conv_fused_kernel, apply_norm=apply_norm),
        out_shape=jax.ShapeDtypeStruct((N, M, cout), jnp.float32),
        grid=(N,),
        in_specs=[
            pl.BlockSpec((None, M, K), lambda n: (n, 0, 0)),   # per-sample rows
            pl.BlockSpec((K, cout), lambda n: (0, 0)),         # full weight, grid-invariant
            pl.BlockSpec((1, cout), lambda n: (0, 0)),
        ],
        out_specs=pl.BlockSpec((None, M, cout), lambda n: (n, 0, 0)),
        compiler_params=pltpu.CompilerParams(
            dimension_semantics=("parallel",),
            vmem_limit_bytes=VMEM_LIMIT),
    )(cols, w2, bias)
    return out.reshape(N, Ho, Wo, cout)


def conv_head(x_nhwc, w, b):
    """Final Conv2d(512 -> 1, 4x4, stride 1, pad 1), VPU matvec kernel."""
    k, _, cin, cout = w.shape                             # cout == 1
    cols, Ho, Wo = _im2col(x_nhwc, k, stride=1, pad=1)    # (N, M, K)
    N, M, K = cols.shape
    w_row = w.reshape(k * k * cin, cout).T                # (1, K)
    bias = b.reshape(1, 1)

    out = pl.pallas_call(
        _conv_head_kernel,
        out_shape=jax.ShapeDtypeStruct((N, M, 1), jnp.float32),
        grid=(N,),
        in_specs=[
            pl.BlockSpec((None, M, K), lambda n: (n, 0, 0)),
            pl.BlockSpec((1, K), lambda n: (0, 0)),
            pl.BlockSpec((1, 1), lambda n: (0, 0)),
        ],
        out_specs=pl.BlockSpec((None, M, 1), lambda n: (n, 0, 0)),
        compiler_params=pltpu.CompilerParams(dimension_semantics=("parallel",)),
    )(cols, w_row, bias)
    return out.reshape(N, Ho, Wo, 1)


# -------------------------------- parameters -------------------------------- #
def init_discriminator_params(key, input_nc):
    layer_defs = [(input_nc, 64), (64, 128), (128, 256), (256, 512), (512, 1)]
    params = []
    for cin, cout in layer_defs:
        key, kw, kb = jax.random.split(key, 3)
        fan_in = cin * 4 * 4
        bound = 1.0 / (fan_in ** 0.5)
        w = jax.random.uniform(kw, (4, 4, cin, cout), jnp.float32, -bound, bound)
        b = jax.random.uniform(kb, (cout,), jnp.float32, -bound, bound)
        params.append((w, b))
    return params


# --------------------------------- forward ---------------------------------- #
@jax.jit
def discriminator_forward(params, x_nchw):
    # NCHW -> NHWC (channels on the 128-lane axis), f32 end-to-end.
    x = jnp.transpose(x_nchw, (0, 2, 3, 1))

    # Layer 1: Conv -> Dropout -> LeakyReLU
    # Layers 2-4: Conv -> InstanceNorm -> Dropout -> LeakyReLU
    # TODO(synk): Dropout(0.3) is the identity here (eval/inference semantics);
    #             train-mode stochastic masking is not implemented.
    for idx in range(4):
        w, b = params[idx]
        x = conv_block(x, w, b, STRIDES[idx], apply_norm=(idx > 0))

    # Layer 5: Conv only (Cout = 1).
    w, b = params[4]
    x = conv_head(x, w, b)

    return jnp.transpose(x, (0, 3, 1, 2))                 # NHWC -> NCHW


if __name__ == "__main__":
    # input_nc=3, batch=2, spatial=32: 32 -> 16 -> 8 -> 4 -> 3 -> 2 under the stack.
    key = jax.random.PRNGKey(0)
    pkey, xkey = jax.random.split(key)
    params = init_discriminator_params(pkey, input_nc=3)
    x = jax.random.normal(xkey, (2, 3, 32, 32), dtype=jnp.float32)

    out = jax.block_until_ready(discriminator_forward(params, x))
    assert out.shape == (2, 1, 2, 2), out.shape
    assert bool(jnp.all(jnp.isfinite(out))), "non-finite output"
    print("KERNEL_OK")
</pallas_src>

<mosaic_0001>
module attributes {stable_mosaic.version = 11 : i64} {
  func.func @_conv_fused_kernel(%arg0: i32, %arg1: memref<1x256x48xf32, #tpu.memory_space<vmem>>, %arg2: memref<48x64xf32, #tpu.memory_space<vmem>>, %arg3: memref<1x64xf32, #tpu.memory_space<vmem>>, %arg4: memref<1x256x64xf32, #tpu.memory_space<vmem>>) attributes {dimension_semantics = [#tpu.dimension_semantics<parallel>], iteration_bounds = array<i64: 2>, scalar_prefetch = 0 : i64, scratch_operands = 0 : i64, tpu.core_type = #tpu.core_type<tc>, window_params = [{transform_indices = @transform_0, window_bounds = array<i64: 1, 256, 48>}, {pipeline_mode = #tpu.pipeline_mode<synchronous>, transform_indices = @transform_1, window_bounds = array<i64: 48, 64>}, {pipeline_mode = #tpu.pipeline_mode<synchronous>, transform_indices = @transform_2, window_bounds = array<i64: 1, 64>}, {transform_indices = @transform_3, window_bounds = array<i64: 1, 256, 64>}]} {
    %c0 = arith.constant 0 : index
    %c0_0 = arith.constant 0 : index
    %c0_1 = arith.constant 0 : index
    %0 = vector.load %arg1[%c0, %c0_0, %c0_1] : memref<1x256x48xf32, #tpu.memory_space<vmem>>, vector<1x256x48xf32>
    %1 = vector.shape_cast %0 : vector<1x256x48xf32> to vector<256x48xf32>
    %c0_2 = arith.constant 0 : index
    %c0_3 = arith.constant 0 : index
    %2 = vector.load %arg2[%c0_2, %c0_3] : memref<48x64xf32, #tpu.memory_space<vmem>>, vector<48x64xf32>
    %cst = arith.constant dense<0.000000e+00> : vector<256x64xf32>
    %3 = tpu.matmul %1, %2, %cst {dimension_numbers = #tpu.dot_dimension_numbers<[1], [0], [0], [1], [0, 0, 1, 1], [], []>} : vector<256x48xf32>, vector<48x64xf32>, vector<256x64xf32> -> vector<256x64xf32>
    %c0_4 = arith.constant 0 : index
    %c0_5 = arith.constant 0 : index
    %4 = vector.load %arg3[%c0_4, %c0_5] : memref<1x64xf32, #tpu.memory_space<vmem>>, vector<1x64xf32>
    %5 = vector.broadcast %4 : vector<1x64xf32> to vector<256x64xf32>
    %6 = arith.addf %3, %5 : vector<256x64xf32>
    %cst_6 = arith.constant 0.000000e+00 : f32
    %7 = vector.broadcast %cst_6 : f32 to vector<256x64xf32>
    %8 = arith.cmpf oge, %6, %7 : vector<256x64xf32>
    %cst_7 = arith.constant 2.000000e-01 : f32
    %9 = vector.broadcast %cst_7 : f32 to vector<256x64xf32>
    %10 = arith.mulf %9, %6 : vector<256x64xf32>
    %11 = arith.select %8, %6, %10 : vector<256x64xi1>, vector<256x64xf32>
    %c0_8 = arith.constant 0 : index
    %c0_9 = arith.constant 0 : index
    %c0_10 = arith.constant 0 : index
    %12 = vector.load %arg4[%c0_8, %c0_9, %c0_10] : memref<1x256x64xf32, #tpu.memory_space<vmem>>, vector<1x256x64xf32>
    %13 = vector.shape_cast %12 : vector<1x256x64xf32> to vector<256x64xf32>
    %14 = vector.shape_cast %11 : vector<256x64xf32> to vector<1x256x64xf32>
    tpu.vector_store %arg4[%c0_8, %c0_9, %c0_10], %14 {strides = array<i32>} : memref<1x256x64xf32, #tpu.memory_space<vmem>>, vector<1x256x64xf32>,
    return
  }
  func.func @transform_0(%arg0: i32) -> (i32, i32, i32) {
    %c0_i32 = arith.constant 0 : i32
    %c0_i32_0 = arith.constant 0 : i32
    %c0_i32_1 = arith.constant 0 : i32
    return %arg0, %c0_i32, %c0_i32_0 : i32, i32, i32
  }
  func.func @transform_1(%arg0: i32) -> (i32, i32) {
    %c0_i32 = arith.constant 0 : i32
    %c0_i32_0 = arith.constant 0 : i32
    %c0_i32_1 = arith.constant 0 : i32
    return %c0_i32, %c0_i32_0 : i32, i32
  }
  func.func @transform_2(%arg0: i32) -> (i32, i32) {
    %c0_i32 = arith.constant 0 : i32
    %c0_i32_0 = arith.constant 0 : i32
    %c0_i32_1 = arith.constant 0 : i32
    return %c0_i32, %c0_i32_0 : i32, i32
  }
  func.func @transform_3(%arg0: i32) -> (i32, i32, i32) {
    %c0_i32 = arith.constant 0 : i32
    %c0_i32_0 = arith.constant 0 : i32
    %c0_i32_1 = arith.constant 0 : i32
    return %arg0, %c0_i32, %c0_i32_0 : i32, i32, i32
  }
}

module attributes {stable_mosaic.version = 11 : i64} {
  func.func @_conv_fused_kernel(%arg0: i32, %arg1: memref<1x64x1024xf32, #tpu.memory_space<vmem>>, %arg2: memref<1024x128xf32, #tpu.memory_space<vmem>>, %arg3: memref<1x128xf32, #tpu.memory_space<vmem>>, %arg4: memref<1x64x128xf32, #tpu.memory_space<vmem>>) attributes {dimension_semantics = [#tpu.dimension_semantics<parallel>], iteration_bounds = array<i64: 2>, scalar_prefetch = 0 : i64, scratch_operands = 0 : i64, tpu.core_type = #tpu.core_type<tc>, window_params = [{transform_indices = @transform_0, window_bounds = array<i64: 1, 64, 1024>}, {pipeline_mode = #tpu.pipeline_mode<synchronous>, transform_indices = @transform_1, window_bounds = array<i64: 1024, 128>}, {pipeline_mode = #tpu.pipeline_mode<synchronous>, transform_indices = @transform_2, window_bounds = array<i64: 1, 128>}, {transform_indices = @transform_3, window_bounds = array<i64: 1, 64, 128>}]} {
    %c0 = arith.constant 0 : index
    %c0_0 = arith.constant 0 : index
    %c0_1 = arith.constant 0 : index
    %0 = vector.load %arg1[%c0, %c0_0, %c0_1] : memref<1x64x1024xf32, #tpu.memory_space<vmem>>, vector<1x64x1024xf32>
    %1 = vector.shape_cast %0 : vector<1x64x1024xf32> to vector<64x1024xf32>
    %c0_2 = arith.constant 0 : index
    %c0_3 = arith.constant 0 : index
    %2 = vector.load %arg2[%c0_2, %c0_3] : memref<1024x128xf32, #tpu.memory_space<vmem>>, vector<1024x128xf32>
    %cst = arith.constant dense<0.000000e+00> : vector<64x128xf32>
    %3 = tpu.matmul %1, %2, %cst {dimension_numbers = #tpu.dot_dimension_numbers<[1], [0], [0], [1], [0, 0, 1, 1], [], []>} : vector<64x1024xf32>, vector<1024x128xf32>, vector<64x128xf32> -> vector<64x128xf32>
    %c0_4 = arith.constant 0 : index
    %c0_5 = arith.constant 0 : index
    %4 = vector.load %arg3[%c0_4, %c0_5] : memref<1x128xf32, #tpu.memory_space<vmem>>, vector<1x128xf32>
    %5 = vector.broadcast %4 : vector<1x128xf32> to vector<64x128xf32>
    %6 = arith.addf %3, %5 : vector<64x128xf32>
    %cst_6 = arith.constant dense<0.000000e+00> : vector<128xf32>
    %7 = vector.multi_reduction <add>, %6, %cst_6 [0] : vector<64x128xf32> to vector<128xf32>
    %8 = vector.shape_cast %7 : vector<128xf32> to vector<1x128xf32>
    %cst_7 = arith.constant 6.400000e+01 : f32
    %9 = vector.broadcast %cst_7 : f32 to vector<1x128xf32>
    %10 = arith.divf %8, %9 : vector<1x128xf32>
    %11 = vector.broadcast %10 : vector<1x128xf32> to vector<64x128xf32>
    %12 = arith.subf %6, %11 : vector<64x128xf32>
    %13 = arith.mulf %12, %12 : vector<64x128xf32>
    %cst_8 = arith.constant dense<0.000000e+00> : vector<128xf32>
    %14 = vector.multi_reduction <add>, %13, %cst_8 [0] : vector<64x128xf32> to vector<128xf32>
    %15 = vector.shape_cast %14 : vector<128xf32> to vector<1x128xf32>
    %cst_9 = arith.constant 6.400000e+01 : f32
    %16 = vector.broadcast %cst_9 : f32 to vector<1x128xf32>
    %17 = arith.divf %15, %16 : vector<1x128xf32>
    %cst_10 = arith.constant 9.99999974E-6 : f32
    %18 = vector.broadcast %cst_10 : f32 to vector<1x128xf32>
    %19 = arith.addf %17, %18 : vector<1x128xf32>
    %20 = math.rsqrt %19 : vector<1x128xf32>
    %21 = vector.broadcast %20 : vector<1x128xf32> to vector<64x128xf32>
    %22 = arith.mulf %12, %21 : vector<64x128xf32>
    %cst_11 = arith.constant 0.000000e+00 : f32
    %23 = vector.broadcast %cst_11 : f32 to vector<64x128xf32>
    %24 = arith.cmpf oge, %22, %23 : vector<64x128xf32>
    %cst_12 = arith.constant 2.000000e-01 : f32
    %25 = vector.broadcast %cst_12 : f32 to vector<64x128xf32>
    %26 = arith.mulf %25, %22 : vector<64x128xf32>
    %27 = arith.select %24, %22, %26 : vector<64x128xi1>, vector<64x128xf32>
    %c0_13 = arith.constant 0 : index
    %c0_14 = arith.constant 0 : index
    %c0_15 = arith.constant 0 : index
    %28 = vector.load %arg4[%c0_13, %c0_14, %c0_15] : memref<1x64x128xf32, #tpu.memory_space<vmem>>, vector<1x64x128xf32>
    %29 = vector.shape_cast %28 : vector<1x64x128xf32> to vector<64x128xf32>
    %30 = vector.shape_cast %27 : vector<64x128xf32> to vector<1x64x128xf32>
    tpu.vector_store %arg4[%c0_13, %c0_14, %c0_15], %30 {strides = array<i32>} : memref<1x64x128xf32, #tpu.memory_space<vmem>>, vector<1x64x128xf32>,
    return
  }
  func.func @transform_0(%arg0: i32) -> (i32, i32, i32) {
    %c0_i32 = arith.constant 0 : i32
    %c0_i32_0 = arith.constant 0 : i32
    %c0_i32_1 = arith.constant 0 : i32
    return %arg0, %c0_i32, %c0_i32_0 : i32, i32, i32
  }
  func.func @transform_1(%arg0: i32) -> (i32, i32) {
    %c0_i32 = arith.constant 0 : i32
    %c0_i32_0 = arith.constant 0 : i32
    %c0_i32_1 = arith.constant 0 : i32
    return %c0_i32, %c0_i32_0 : i32, i32
  }
  func.func @transform_2(%arg0: i32) -> (i32, i32) {
    %c0_i32 = arith.constant 0 : i32
    %c0_i32_0 = arith.constant 0 : i32
    %c0_i32_1 = arith.constant 0 : i32
    return %c0_i32, %c0_i32_0 : i32, i32
  }
  func.func @transform_3(%arg0: i32) -> (i32, i32, i32) {
    %c0_i32 = arith.constant 0 : i32
    %c0_i32_0 = arith.constant 0 : i32
    %c0_i32_1 = arith.constant 0 : i32
    return %arg0, %c0_i32, %c0_i32_0 : i32, i32, i32
  }
}

module attributes {stable_mosaic.version = 11 : i64} {
  func.func @_conv_fused_kernel(%arg0: i32, %arg1: memref<1x16x2048xf32, #tpu.memory_space<vmem>>, %arg2: memref<2048x256xf32, #tpu.memory_space<vmem>>, %arg3: memref<1x256xf32, #tpu.memory_space<vmem>>, %arg4: memref<1x16x256xf32, #tpu.memory_space<vmem>>) attributes {dimension_semantics = [#tpu.dimension_semantics<parallel>], iteration_bounds = array<i64: 2>, scalar_prefetch = 0 : i64, scratch_operands = 0 : i64, tpu.core_type = #tpu.core_type<tc>, window_params = [{transform_indices = @transform_0, window_bounds = array<i64: 1, 16, 2048>}, {pipeline_mode = #tpu.pipeline_mode<synchronous>, transform_indices = @transform_1, window_bounds = array<i64: 2048, 256>}, {pipeline_mode = #tpu.pipeline_mode<synchronous>, transform_indices = @transform_2, window_bounds = array<i64: 1, 256>}, {transform_indices = @transform_3, window_bounds = array<i64: 1, 16, 256>}]} {
    %c0 = arith.constant 0 : index
    %c0_0 = arith.constant 0 : index
    %c0_1 = arith.constant 0 : index
    %0 = vector.load %arg1[%c0, %c0_0, %c0_1] : memref<1x16x2048xf32, #tpu.memory_space<vmem>>, vector<1x16x2048xf32>
    %1 = vector.shape_cast %0 : vector<1x16x2048xf32> to vector<16x2048xf32>
    %c0_2 = arith.constant 0 : index
    %c0_3 = arith.constant 0 : index
    %2 = vector.load %arg2[%c0_2, %c0_3] : memref<2048x256xf32, #tpu.memory_space<vmem>>, vector<2048x256xf32>
    %cst = arith.constant dense<0.000000e+00> : vector<16x256xf32>
    %3 = tpu.matmul %1, %2, %cst {dimension_numbers = #tpu.dot_dimension_numbers<[1], [0], [0], [1], [0, 0, 1, 1], [], []>} : vector<16x2048xf32>, vector<2048x256xf32>, vector<16x256xf32> -> vector<16x256xf32>
    %c0_4 = arith.constant 0 : index
    %c0_5 = arith.constant 0 : index
    %4 = vector.load %arg3[%c0_4, %c0_5] : memref<1x256xf32, #tpu.memory_space<vmem>>, vector<1x256xf32>
    %5 = vector.broadcast %4 : vector<1x256xf32> to vector<16x256xf32>
    %6 = arith.addf %3, %5 : vector<16x256xf32>
    %cst_6 = arith.constant dense<0.000000e+00> : vector<256xf32>
    %7 = vector.multi_reduction <add>, %6, %cst_6 [0] : vector<16x256xf32> to vector<256xf32>
    %8 = vector.shape_cast %7 : vector<256xf32> to vector<1x256xf32>
    %cst_7 = arith.constant 1.600000e+01 : f32
    %9 = vector.broadcast %cst_7 : f32 to vector<1x256xf32>
    %10 = arith.divf %8, %9 : vector<1x256xf32>
    %11 = vector.broadcast %10 : vector<1x256xf32> to vector<16x256xf32>
    %12 = arith.subf %6, %11 : vector<16x256xf32>
    %13 = arith.mulf %12, %12 : vector<16x256xf32>
    %cst_8 = arith.constant dense<0.000000e+00> : vector<256xf32>
    %14 = vector.multi_reduction <add>, %13, %cst_8 [0] : vector<16x256xf32> to vector<256xf32>
    %15 = vector.shape_cast %14 : vector<256xf32> to vector<1x256xf32>
    %cst_9 = arith.constant 1.600000e+01 : f32
    %16 = vector.broadcast %cst_9 : f32 to vector<1x256xf32>
    %17 = arith.divf %15, %16 : vector<1x256xf32>
    %cst_10 = arith.constant 9.99999974E-6 : f32
    %18 = vector.broadcast %cst_10 : f32 to vector<1x256xf32>
    %19 = arith.addf %17, %18 : vector<1x256xf32>
    %20 = math.rsqrt %19 : vector<1x256xf32>
    %21 = vector.broadcast %20 : vector<1x256xf32> to vector<16x256xf32>
    %22 = arith.mulf %12, %21 : vector<16x256xf32>
    %cst_11 = arith.constant 0.000000e+00 : f32
    %23 = vector.broadcast %cst_11 : f32 to vector<16x256xf32>
    %24 = arith.cmpf oge, %22, %23 : vector<16x256xf32>
    %cst_12 = arith.constant 2.000000e-01 : f32
    %25 = vector.broadcast %cst_12 : f32 to vector<16x256xf32>
    %26 = arith.mulf %25, %22 : vector<16x256xf32>
    %27 = arith.select %24, %22, %26 : vector<16x256xi1>, vector<16x256xf32>
    %c0_13 = arith.constant 0 : index
    %c0_14 = arith.constant 0 : index
    %c0_15 = arith.constant 0 : index
    %28 = vector.load %arg4[%c0_13, %c0_14, %c0_15] : memref<1x16x256xf32, #tpu.memory_space<vmem>>, vector<1x16x256xf32>
    %29 = vector.shape_cast %28 : vector<1x16x256xf32> to vector<16x256xf32>
    %30 = vector.shape_cast %27 : vector<16x256xf32> to vector<1x16x256xf32>
    tpu.vector_store %arg4[%c0_13, %c0_14, %c0_15], %30 {strides = array<i32>} : memref<1x16x256xf32, #tpu.memory_space<vmem>>, vector<1x16x256xf32>,
    return
  }
  func.func @transform_0(%arg0: i32) -> (i32, i32, i32) {
    %c0_i32 = arith.constant 0 : i32
    %c0_i32_0 = arith.constant 0 : i32
    %c0_i32_1 = arith.constant 0 : i32
    return %arg0, %c0_i32, %c0_i32_0 : i32, i32, i32
  }
  func.func @transform_1(%arg0: i32) -> (i32, i32) {
    %c0_i32 = arith.constant 0 : i32
    %c0_i32_0 = arith.constant 0 : i32
    %c0_i32_1 = arith.constant 0 : i32
    return %c0_i32, %c0_i32_0 : i32, i32
  }
  func.func @transform_2(%arg0: i32) -> (i32, i32) {
    %c0_i32 = arith.constant 0 : i32
    %c0_i32_0 = arith.constant 0 : i32
    %c0_i32_1 = arith.constant 0 : i32
    return %c0_i32, %c0_i32_0 : i32, i32
  }
  func.func @transform_3(%arg0: i32) -> (i32, i32, i32) {
    %c0_i32 = arith.constant 0 : i32
    %c0_i32_0 = arith.constant 0 : i32
    %c0_i32_1 = arith.constant 0 : i32
    return %arg0, %c0_i32, %c0_i32_0 : i32, i32, i32
  }
}

module attributes {stable_mosaic.version = 11 : i64} {
  func.func @_conv_fused_kernel(%arg0: i32, %arg1: memref<1x9x4096xf32, #tpu.memory_space<vmem>>, %arg2: memref<4096x512xf32, #tpu.memory_space<vmem>>, %arg3: memref<1x512xf32, #tpu.memory_space<vmem>>, %arg4: memref<1x9x512xf32, #tpu.memory_space<vmem>>) attributes {dimension_semantics = [#tpu.dimension_semantics<parallel>], iteration_bounds = array<i64: 2>, scalar_prefetch = 0 : i64, scratch_operands = 0 : i64, tpu.core_type = #tpu.core_type<tc>, window_params = [{transform_indices = @transform_0, window_bounds = array<i64: 1, 9, 4096>}, {pipeline_mode = #tpu.pipeline_mode<synchronous>, transform_indices = @transform_1, window_bounds = array<i64: 4096, 512>}, {pipeline_mode = #tpu.pipeline_mode<synchronous>, transform_indices = @transform_2, window_bounds = array<i64: 1, 512>}, {transform_indices = @transform_3, window_bounds = array<i64: 1, 9, 512>}]} {
    %c0 = arith.constant 0 : index
    %c0_0 = arith.constant 0 : index
    %c0_1 = arith.constant 0 : index
    %0 = vector.load %arg1[%c0, %c0_0, %c0_1] : memref<1x9x4096xf32, #tpu.memory_space<vmem>>, vector<1x9x4096xf32>
    %1 = vector.shape_cast %0 : vector<1x9x4096xf32> to vector<9x4096xf32>
    %c0_2 = arith.constant 0 : index
    %c0_3 = arith.constant 0 : index
    %2 = vector.load %arg2[%c0_2, %c0_3] : memref<4096x512xf32, #tpu.memory_space<vmem>>, vector<4096x512xf32>
    %cst = arith.constant dense<0.000000e+00> : vector<9x512xf32>
    %3 = tpu.matmul %1, %2, %cst {dimension_numbers = #tpu.dot_dimension_numbers<[1], [0], [0], [1], [0, 0, 1, 1], [], []>} : vector<9x4096xf32>, vector<4096x512xf32>, vector<9x512xf32> -> vector<9x512xf32>
    %c0_4 = arith.constant 0 : index
    %c0_5 = arith.constant 0 : index
    %4 = vector.load %arg3[%c0_4, %c0_5] : memref<1x512xf32, #tpu.memory_space<vmem>>, vector<1x512xf32>
    %5 = vector.broadcast %4 : vector<1x512xf32> to vector<9x512xf32>
    %6 = arith.addf %3, %5 : vector<9x512xf32>
    %cst_6 = arith.constant dense<0.000000e+00> : vector<512xf32>
    %7 = vector.multi_reduction <add>, %6, %cst_6 [0] : vector<9x512xf32> to vector<512xf32>
    %8 = vector.shape_cast %7 : vector<512xf32> to vector<1x512xf32>
    %cst_7 = arith.constant 9.000000e+00 : f32
    %9 = vector.broadcast %cst_7 : f32 to vector<1x512xf32>
    %10 = arith.divf %8, %9 : vector<1x512xf32>
    %11 = vector.broadcast %10 : vector<1x512xf32> to vector<9x512xf32>
    %12 = arith.subf %6, %11 : vector<9x512xf32>
    %13 = arith.mulf %12, %12 : vector<9x512xf32>
    %cst_8 = arith.constant dense<0.000000e+00> : vector<512xf32>
    %14 = vector.multi_reduction <add>, %13, %cst_8 [0] : vector<9x512xf32> to vector<512xf32>
    %15 = vector.shape_cast %14 : vector<512xf32> to vector<1x512xf32>
    %cst_9 = arith.constant 9.000000e+00 : f32
    %16 = vector.broadcast %cst_9 : f32 to vector<1x512xf32>
    %17 = arith.divf %15, %16 : vector<1x512xf32>
    %cst_10 = arith.constant 9.99999974E-6 : f32
    %18 = vector.broadcast %cst_10 : f32 to vector<1x512xf32>
    %19 = arith.addf %17, %18 : vector<1x512xf32>
    %20 = math.rsqrt %19 : vector<1x512xf32>
    %21 = vector.broadcast %20 : vector<1x512xf32> to vector<9x512xf32>
    %22 = arith.mulf %12, %21 : vector<9x512xf32>
    %cst_11 = arith.constant 0.000000e+00 : f32
    %23 = vector.broadcast %cst_11 : f32 to vector<9x512xf32>
    %24 = arith.cmpf oge, %22, %23 : vector<9x512xf32>
    %cst_12 = arith.constant 2.000000e-01 : f32
    %25 = vector.broadcast %cst_12 : f32 to vector<9x512xf32>
    %26 = arith.mulf %25, %22 : vector<9x512xf32>
    %27 = arith.select %24, %22, %26 : vector<9x512xi1>, vector<9x512xf32>
    %c0_13 = arith.constant 0 : index
    %c0_14 = arith.constant 0 : index
    %c0_15 = arith.constant 0 : index
    %28 = vector.load %arg4[%c0_13, %c0_14, %c0_15] : memref<1x9x512xf32, #tpu.memory_space<vmem>>, vector<1x9x512xf32>
    %29 = vector.shape_cast %28 : vector<1x9x512xf32> to vector<9x512xf32>
    %30 = vector.shape_cast %27 : vector<9x512xf32> to vector<1x9x512xf32>
    tpu.vector_store %arg4[%c0_13, %c0_14, %c0_15], %30 {strides = array<i32>} : memref<1x9x512xf32, #tpu.memory_space<vmem>>, vector<1x9x512xf32>,
    return
  }
  func.func @transform_0(%arg0: i32) -> (i32, i32, i32) {
    %c0_i32 = arith.constant 0 : i32
    %c0_i32_0 = arith.constant 0 : i32
    %c0_i32_1 = arith.constant 0 : i32
    return %arg0, %c0_i32, %c0_i32_0 : i32, i32, i32
  }
  func.func @transform_1(%arg0: i32) -> (i32, i32) {
    %c0_i32 = arith.constant 0 : i32
    %c0_i32_0 = arith.constant 0 : i32
    %c0_i32_1 = arith.constant 0 : i32
    return %c0_i32, %c0_i32_0 : i32, i32
  }
  func.func @transform_2(%arg0: i32) -> (i32, i32) {
    %c0_i32 = arith.constant 0 : i32
    %c0_i32_0 = arith.constant 0 : i32
    %c0_i32_1 = arith.constant 0 : i32
    return %c0_i32, %c0_i32_0 : i32, i32
  }
  func.func @transform_3(%arg0: i32) -> (i32, i32, i32) {
    %c0_i32 = arith.constant 0 : i32
    %c0_i32_0 = arith.constant 0 : i32
    %c0_i32_1 = arith.constant 0 : i32
    return %arg0, %c0_i32, %c0_i32_0 : i32, i32, i32
  }
}

module attributes {stable_mosaic.version = 11 : i64} {
  func.func @_conv_head_kernel(%arg0: i32, %arg1: memref<1x4x8192xf32, #tpu.memory_space<vmem>>, %arg2: memref<1x8192xf32, #tpu.memory_space<vmem>>, %arg3: memref<1x1xf32, #tpu.memory_space<vmem>>, %arg4: memref<1x4x1xf32, #tpu.memory_space<vmem>>) attributes {dimension_semantics = [#tpu.dimension_semantics<parallel>], iteration_bounds = array<i64: 2>, scalar_prefetch = 0 : i64, scratch_operands = 0 : i64, tpu.core_type = #tpu.core_type<tc>, window_params = [{transform_indices = @transform_0, window_bounds = array<i64: 1, 4, 8192>}, {pipeline_mode = #tpu.pipeline_mode<synchronous>, transform_indices = @transform_1, window_bounds = array<i64: 1, 8192>}, {pipeline_mode = #tpu.pipeline_mode<synchronous>, transform_indices = @transform_2, window_bounds = array<i64: 1, 1>}, {transform_indices = @transform_3, window_bounds = array<i64: 1, 4, 1>}]} {
    %c0 = arith.constant 0 : index
    %c0_0 = arith.constant 0 : index
    %c0_1 = arith.constant 0 : index
    %0 = vector.load %arg1[%c0, %c0_0, %c0_1] : memref<1x4x8192xf32, #tpu.memory_space<vmem>>, vector<1x4x8192xf32>
    %1 = vector.shape_cast %0 : vector<1x4x8192xf32> to vector<4x8192xf32>
    %c0_2 = arith.constant 0 : index
    %c0_3 = arith.constant 0 : index
    %2 = vector.load %arg2[%c0_2, %c0_3] : memref<1x8192xf32, #tpu.memory_space<vmem>>, vector<1x8192xf32>
    %3 = vector.broadcast %2 : vector<1x8192xf32> to vector<4x8192xf32>
    %4 = arith.mulf %1, %3 : vector<4x8192xf32>
    %cst = arith.constant dense<0.000000e+00> : vector<4xf32>
    %5 = vector.multi_reduction <add>, %4, %cst [1] : vector<4x8192xf32> to vector<4xf32>
    %6 = vector.shape_cast %5 : vector<4xf32> to vector<4x1xf32>
    %c0_4 = arith.constant 0 : index
    %c0_5 = arith.constant 0 : index
    %7 = vector.load %arg3[%c0_4, %c0_5] : memref<1x1xf32, #tpu.memory_space<vmem>>, vector<1x1xf32>
    %8 = vector.broadcast %7 : vector<1x1xf32> to vector<4x1xf32>
    %9 = arith.addf %6, %8 : vector<4x1xf32>
    %c0_6 = arith.constant 0 : index
    %c0_7 = arith.constant 0 : index
    %c0_8 = arith.constant 0 : index
    %10 = vector.load %arg4[%c0_6, %c0_7, %c0_8] : memref<1x4x1xf32, #tpu.memory_space<vmem>>, vector<1x4x1xf32>
    %11 = vector.shape_cast %10 : vector<1x4x1xf32> to vector<4x1xf32>
    %12 = vector.shape_cast %9 : vector<4x1xf32> to vector<1x4x1xf32>
    tpu.vector_store %arg4[%c0_6, %c0_7, %c0_8], %12 {strides = array<i32>} : memref<1x4x1xf32, #tpu.memory_space<vmem>>, vector<1x4x1xf32>,
    return
  }
  func.func @transform_0(%arg0: i32) -> (i32, i32, i32) {
    %c0_i32 = arith.constant 0 : i32
    %c0_i32_0 = arith.constant 0 : i32
    %c0_i32_1 = arith.constant 0 : i32
    return %arg0, %c0_i32, %c0_i32_0 : i32, i32, i32
  }
  func.func @transform_1(%arg0: i32) -> (i32, i32) {
    %c0_i32 = arith.constant 0 : i32
    %c0_i32_0 = arith.constant 0 : i32
    %c0_i32_1 = arith.constant 0 : i32
    return %c0_i32, %c0_i32_0 : i32, i32
  }
  func.func @transform_2(%arg0: i32) -> (i32, i32) {
    %c0_i32 = arith.constant 0 : i32
    %c0_i32_0 = arith.constant 0 : i32
    %c0_i32_1 = arith.constant 0 : i32
    return %c0_i32, %c0_i32_0 : i32, i32
  }
  func.func @transform_3(%arg0: i32) -> (i32, i32, i32) {
    %c0_i32 = arith.constant 0 : i32
    %c0_i32_0 = arith.constant 0 : i32
    %c0_i32_1 = arith.constant 0 : i32
    return %arg0, %c0_i32, %c0_i32_0 : i32, i32, i32
  }
}

</mosaic_0001>

<llo_original>
// kernel: discriminator_forward.5
$region0: #{discriminator_forward.5}
  #allocation0 [shape = 'u32[]', space=smem, size = 0x4, offset = 0x4, fixed_abs, tag = 'smem constant byte address 0x4 - core index']
  #allocation1 [shape = 'u32[144,128]{1,0:T(1,128)}', space=vmem, size = 0x12000, scoped, tag = 'internal scratch']
  %s0 = inlined_call_operand.vmem [shape: f32[2,256,48], index: 0, kind: input, shape index: {}]
  %s1 = inlined_call_operand.vmem [shape: f32[48,64], index: 1, kind: input, shape index: {}]
  %s2 = inlined_call_operand.hbm [shape: f32[1,64], index: 2, kind: input, shape index: {}]
  %s3 = inlined_call_operand.vmem [shape: f32[2,256,64], index: 3, kind: output, shape index: {}]
  %s4 = sld [smem:[#allocation0]]
  $region49: #{discriminator_forward.5} parent=0
    _
  %s6 = ssub.s32 1, %s4
  %s7 = scalar_select 0, %s6, %s4
  $region1: #{discriminator_forward.5} parent=0
    #allocation2 [shape = 'u8[512]{0}', space=vmem, size = 0x400, scoped, tag = 'input window, operand 2, single buffered']
    #allocation3 [shape = 's32[2]{0}', space=sflag, size = 0x8, scoped, tag = 'scoped memory for discriminator_forward.5']
    %8 = vsyncpa [#allocation3], 0
    loop: start=0, step=1, limit=4
    $region2: #{discriminator_forward.5} parent=1 // loop_pre_header
      _
    $region3: #{discriminator_forward.5} parent=1 // loop_header
      %s10 = sphi 0, %s14
      %p11 = scmp.ge.s32.totalorder %s10, 4
      %s20 = sphi 0, %s22
      %s23 = sphi 0, %s20
      %s24 = sphi 0, %s23
      %s40 = sphi 0, %s24
      %s44 = sphi 0, %s44
      %s46 = sphi 0, %s44
      %s47 = sphi 0, %s46
      %s61 = sphi 0, %s47
      %s65 = sphi 0, %s65
      %s67 = sphi 0, %s65
      %s68 = sphi 0, %s67
      %s82 = sphi 0, %s68
      %s88 = sphi 0, %s90
      %s91 = sphi 0, %s88
      %s92 = sphi 0, %s91
      %s108 = sphi 0, %s92
    $region4: #{discriminator_forward.5} parent=1 // loop_header_branch
      %13 = sbr.rel (%p11) target = $region8
    $region5: #{discriminator_forward.5} parent=1 // loop_body
      %s15 = ssub.s32 %s10, 1
      %s16 = ssub.s32 %s10, 2
      %s17 = sadd.s32 %s10, 1
      %s18 = ssub.s32 %s10, %s17
      %p19 = scmp.eq.s32.totalorder %s18, 0
      %s21 = sadd.s32 %s20, 1
      %s22 = scalar_select %p19, %s20, %s21
      %p25 = pneg %p19
      %p26 = scmp.eq.s32.totalorder %s10, 1
      %p27 = por %p25, %p26
      %p28 = scmp.ne.s32.totalorder %s20, %s23
      %p29 = scmp.eq.s32.totalorder %s10, 0
      %p30 = por %p28, %p29
      %p31 = scmp.ne.s32.totalorder %s20, %s23
      %p32 = scmp.eq.s32.totalorder %s15, 1
      %p33 = por %p31, %p32
      %p34 = scmp.ne.s32.totalorder %s23, %s24
      %p35 = scmp.eq.s32.totalorder %s15, 0
      %p36 = por %p34, %p35
      %p37 = scmp.ne.s32.totalorder %s23, %s24
      %p38 = scmp.eq.s32.totalorder %s16, 1
      %p39 = por %p37, %p38
      %p41 = scmp.ne.s32.totalorder %s24, %s40
      %p42 = scmp.eq.s32.totalorder %s16, 0
      %p43 = por %p41, %p42
      %s45 = sadd.s32 %s44, 1
      %p48 = scmp.eq.s32.totalorder %s10, 1
      %p49 = scmp.ne.s32.totalorder %s44, %s46
      %p50 = scmp.eq.s32.totalorder %s10, 0
      %p51 = por %p49, %p50
      %p52 = scmp.ne.s32.totalorder %s44, %s46
      %p53 = scmp.eq.s32.totalorder %s15, 1
      %p54 = por %p52, %p53
      %p55 = scmp.ne.s32.totalorder %s46, %s47
      %p56 = scmp.eq.s32.totalorder %s15, 0
      %p57 = por %p55, %p56
      %p58 = scmp.ne.s32.totalorder %s46, %s47
      %p59 = scmp.eq.s32.totalorder %s16, 1
      %p60 = por %p58, %p59
      %p62 = scmp.ne.s32.totalorder %s47, %s61
      %p63 = scmp.eq.s32.totalorder %s16, 0
      %p64 = por %p62, %p63
      %s66 = sadd.s32 %s65, 1
      %p69 = scmp.eq.s32.totalorder %s10, 1
      %p70 = scmp.ne.s32.totalorder %s65, %s67
      %p71 = scmp.eq.s32.totalorder %s10, 0
      %p72 = por %p70, %p71
      %p73 = scmp.ne.s32.totalorder %s65, %s67
      %p74 = scmp.eq.s32.totalorder %s15, 1
      %p75 = por %p73, %p74
      %p76 = scmp.ne.s32.totalorder %s67, %s68
      %p77 = scmp.eq.s32.totalorder %s15, 0
      %p78 = por %p76, %p77
      %p79 = scmp.ne.s32.totalorder %s67, %s68
      %p80 = scmp.eq.s32.totalorder %s16, 1
      %p81 = por %p79, %p80
      %p83 = scmp.ne.s32.totalorder %s68, %s82
      %p84 = scmp.eq.s32.totalorder %s16, 0
      %p85 = por %p83, %p84
      %s86 = ssub.s32 %s10, %s17
      %p87 = scmp.eq.s32.totalorder %s86, 0
      %s89 = sadd.s32 %s88, 1
      %s90 = scalar_select %p87, %s88, %s89
      %p93 = pneg %p87
      %p94 = scmp.eq.s32.totalorder %s10, 1
      %p95 = por %p93, %p94
      %p96 = scmp.ne.s32.totalorder %s88, %s91
      %p97 = scmp.eq.s32.totalorder %s10, 0
      %p98 = por %p96, %p97
      %p99 = scmp.ne.s32.totalorder %s88, %s91
      %p100 = scmp.eq.s32.totalorder %s15, 1
      %p101 = por %p99, %p100
      %p102 = scmp.ne.s32.totalorder %s91, %s92
      %p103 = scmp.eq.s32.totalorder %s15, 0
      %p104 = por %p102, %p103
      %p105 = scmp.ne.s32.totalorder %s91, %s92
      %p106 = scmp.eq.s32.totalorder %s16, 1
      %p107 = por %p105, %p106
      %p109 = scmp.ne.s32.totalorder %s92, %s108
      %p110 = scmp.eq.s32.totalorder %s16, 0
      %p111 = por %p109, %p110
      %p112 = scmp.le.s32.totalorder 1, %s10
      %p113 = scmp.lt.s32.totalorder %s10, 3
      %p114 = pnand %p112, %p113
      %p115 = pneg %p114
      // Predicated region
      $region9: #{discriminator_forward.5} parent=5 // pred_check
        _
      $region10: #{discriminator_forward.5} parent=5 // pred_check_branch
        %117 = sbr.rel (%p114) target = $region12
      $region11: #{discriminator_forward.5} parent=5 // pred_region
        %s118 = ssub.s32 %s10, 1
        // Predicated region
        $region13: #{discriminator_forward.5} parent=11 // pred_check
          %p119 = pneg %p57
        $region14: #{discriminator_forward.5} parent=11 // pred_check_branch
          %121 = sbr.rel (%p119) target = $region16
        $region15: #{discriminator_forward.5} parent=11 // pred_region
          _
        $region16: #{discriminator_forward.5} parent=11 // pred_fallthru
          _
        // Predicated region
        $region17: #{discriminator_forward.5} parent=11 // pred_check
          %p122 = pneg %p78
        $region18: #{discriminator_forward.5} parent=11 // pred_check_branch
          %124 = sbr.rel (%p122) target = $region20
        $region19: #{discriminator_forward.5} parent=11 // pred_region
          %s126 = ssub.s32 16, 16
          %127 = vsyncadd [#allocation3], %s126
          %s129 = sshll.u32 [#allocation2], 4
          %s130 = int_to_ptr.vmem [resolvable:$true] %s129
          %132 = dma.hbm_to_vmem [thread:$0]  %s2, 16, %s130, [#allocation3]
        $region20: #{discriminator_forward.5} parent=11 // pred_fallthru
          _
      $region12: #{discriminator_forward.5} parent=5 // pred_fallthru
        _
      %p133 = scmp.lt.s32.totalorder %s10, 2
      // Predicated region
      $region21: #{discriminator_forward.5} parent=5 // pred_check
        %p134 = pneg %p133
      $region22: #{discriminator_forward.5} parent=5 // pred_check_branch
        %136 = sbr.rel (%p134) target = $region24
      $region23: #{discriminator_forward.5} parent=5 // pred_region
        // Predicated region
        $region25: #{discriminator_forward.5} parent=23 // pred_check
          %p137 = pneg %p30
        $region26: #{discriminator_forward.5} parent=23 // pred_check_branch
          %139 = sbr.rel (%p137) target = $region28
        $region27: #{discriminator_forward.5} parent=23 // pred_region
          %p140 = scmp.lt.s32.totalorder %s10, 1
          %s141 = scalar_select %p140, %s10, 1
          %s142 = smul.addr %s141, 32
          %s143 = smul.addr %s142, 8
          %s144 = scalar_lea.vmem %s0, %s143
        $region28: #{discriminator_forward.5} parent=23 // pred_fallthru
          _
      $region24: #{discriminator_forward.5} parent=5 // pred_fallthru
        _
      %p145 = scmp.le.s32.totalorder 1, %s10
      %p146 = scmp.lt.s32.totalorder %s10, 3
      %p147 = pnand %p145, %p146
      %p148 = pneg %p147
      // Predicated region
      $region29: #{discriminator_forward.5} parent=5 // pred_check
        _
      $region30: #{discriminator_forward.5} parent=5 // pred_check_branch
        %150 = sbr.rel (%p147) target = $region32
      $region31: #{discriminator_forward.5} parent=5 // pred_region
        %s151 = ssub.s32 %s10, 1
        // Predicated region
        $region33: #{discriminator_forward.5} parent=31 // pred_check
          %p152 = pneg %p78
        $region34: #{discriminator_forward.5} parent=31 // pred_check_branch
          %154 = sbr.rel (%p152) target = $region36
        $region35: #{discriminator_forward.5} parent=31 // pred_region
          %155 = dma.done [#allocation3], 16
        $region36: #{discriminator_forward.5} parent=31 // pred_fallthru
          _
        %p156 = scmp.lt.s32.totalorder %s15, 1
        %s157 = scalar_select %p156, %s15, 1
        %s158 = smul.addr %s157, 32
        %s159 = smul.addr %s158, 8
        %s160 = scalar_lea.vmem %s0, %s159
        %p161 = pneg %p36
        %p162 = pneg %p33
        %p163 = pneg %p57
        %p164 = pneg %p54
        %p165 = pneg %p78
        %p166 = pneg %p75
        %p167 = pneg %p104
        %p168 = pneg %p101
        %p169 = scmp.lt.s32.totalorder %s15, 1
        %s170 = scalar_select %p169, %s15, 1
        %s171 = smul.addr %s170, 32
        %s172 = smul.addr %s171, 8
        %s173 = scalar_lea.vmem %s3, %s172
        %p174 = scmp.lt.s32.totalorder %s15, 1
        %s175 = scalar_select %p174, %s15, 1
        %s176 = smul.addr %s175, 32
        %s177 = smul.addr %s176, 8
        %s178 = scalar_lea.vmem %s0, %s177
        %p179 = scmp.lt.s32.totalorder %s15, 1
        %s180 = scalar_select %p179, %s15, 1
        %s181 = smul.addr %s180, 32
        %s182 = smul.addr %s181, 8
        %s183 = scalar_lea.vmem %s3, %s182
        %v184 = vld [vmem:[%s178] sm:$0xff]
        %v185 = vld [vmem:[%s178 + $0x8] sm:$0xff]
        %v186 = vld [vmem:[%s178 + $0x10] sm:$0xff]
        %v187 = vld [vmem:[%s178 + $0x18] sm:$0xff]
        %v188 = vld [vmem:[%s178 + $0x20] sm:$0xff]
        %v189 = vld [vmem:[%s178 + $0x28] sm:$0xff]
        %v190 = vld [vmem:[%s178 + $0x30] sm:$0xff]
        %v191 = vld [vmem:[%s178 + $0x38] sm:$0xff]
        %v192 = vld [vmem:[%s178 + $0x40] sm:$0xff]
        %v193 = vld [vmem:[%s178 + $0x48] sm:$0xff]
        %v194 = vld [vmem:[%s178 + $0x50] sm:$0xff]
        %v195 = vld [vmem:[%s178 + $0x58] sm:$0xff]
        %v196 = vld [vmem:[%s178 + $0x60] sm:$0xff]
        %v197 = vld [vmem:[%s178 + $0x68] sm:$0xff]
        %v198 = vld [vmem:[%s178 + $0x70] sm:$0xff]
        %v199 = vld [vmem:[%s178 + $0x78] sm:$0xff]
        %v200 = vld [vmem:[%s178 + $0x80] sm:$0xff]
        %v201 = vld [vmem:[%s178 + $0x88] sm:$0xff]
        %v202 = vld [vmem:[%s178 + $0x90] sm:$0xff]
        %v203 = vld [vmem:[%s178 + $0x98] sm:$0xff]
        %v204 = vld [vmem:[%s178 + $0xa0] sm:$0xff]
        %v205 = vld [vmem:[%s178 + $0xa8] sm:$0xff]
        %v206 = vld [vmem:[%s178 + $0xb0] sm:$0xff]
        %v207 = vld [vmem:[%s178 + $0xb8] sm:$0xff]
        %v208 = vld [vmem:[%s178 + $0xc0] sm:$0xff]
        %v209 = vld [vmem:[%s178 + $0xc8] sm:$0xff]
        %v210 = vld [vmem:[%s178 + $0xd0] sm:$0xff]
        %v211 = vld [vmem:[%s178 + $0xd8] sm:$0xff]
        %v212 = vld [vmem:[%s178 + $0xe0] sm:$0xff]
        %v213 = vld [vmem:[%s178 + $0xe8] sm:$0xff]
        %v214 = vld [vmem:[%s178 + $0xf0] sm:$0xff]
        %v215 = vld [vmem:[%s178 + $0xf8] sm:$0xff]
        %v216 = vld [vmem:[%s1] sm:$0xff]
        %v217 = vld [vmem:[%s1 + $0x8] sm:$0xff]
        %v218 = vld [vmem:[%s1 + $0x10] sm:$0xff]
        %v219 = vld [vmem:[%s1 + $0x18] sm:$0xff]
        %v220 = vld [vmem:[%s1 + $0x20] sm:$0xff]
        %v221 = vld [vmem:[%s1 + $0x28] sm:$0xff]
        %v222 = vld [vmem:[#allocation2] sm:$0x1]
        %v224 = vlaneseq
        %v225 = vshrl.u32 %v224, 7
        %v226 = vsub.s32 0, %v225
        %v227 = vrot.slane %v222, %v226
        %vm229 = vcmask 392192
        %v231 = vsel %vm229, %v184, 0
        %v234 = vsel %vm229, %v185, 0
        %v237 = vsel %vm229, %v186, 0
        %v240 = vsel %vm229, %v187, 0
        %v243 = vsel %vm229, %v188, 0
        %v246 = vsel %vm229, %v189, 0
        %v249 = vsel %vm229, %v190, 0
        %v252 = vsel %vm229, %v191, 0
        %v255 = vsel %vm229, %v192, 0
        %v258 = vsel %vm229, %v193, 0
        %v261 = vsel %vm229, %v194, 0
        %v264 = vsel %vm229, %v195, 0
        %v267 = vsel %vm229, %v196, 0
        %v270 = vsel %vm229, %v197, 0
        %v273 = vsel %vm229, %v198, 0
        %v276 = vsel %vm229, %v199, 0
        %v279 = vsel %vm229, %v200, 0
        %v282 = vsel %vm229, %v201, 0
        %v285 = vsel %vm229, %v202, 0
        %v288 = vsel %vm229, %v203, 0
        %v291 = vsel %vm229, %v204, 0
        %v294 = vsel %vm229, %v205, 0
        %v297 = vsel %vm229, %v206, 0
        %v300 = vsel %vm229, %v207, 0
        %v303 = vsel %vm229, %v208, 0
        %v306 = vsel %vm229, %v209, 0
        %v309 = vsel %vm229, %v210, 0
        %v312 = vsel %vm229, %v211, 0
        %v315 = vsel %vm229, %v212, 0
        %v318 = vsel %vm229, %v213, 0
        %v321 = vsel %vm229, %v214, 0
        %v324 = vsel %vm229, %v215, 0
        %326 = vmatprep.subr.mxu0 0.0
        %327 = vmatpush1.msra.mxu0 %v216
        %328 = vmatprep.subr.mxu0 0.0
        %329 = vmatpush1.msra.mxu0 %v217
        %330 = vmatprep.subr.mxu0 0.0
        %331 = vmatpush1.msra.mxu0 %v218
        %332 = vmatprep.subr.mxu0 0.0
        %333 = vmatpush1.msra.mxu0 %v219
        %334 = vmatprep.subr.mxu0 0.0
        %335 = vmatpush1.msra.mxu0 %v220
        %336 = vmatprep.subr.mxu0 0.0
        %337 = vmatpush1.msra.mxu0 %v221
        %338 = vmatprep.subr.mxu0 0.0
        %339 = vmatpush1.msra.mxu0 0.0
        %340 = vmatprep.subr.mxu0 0.0
        %341 = vmatpush1.msra.mxu0 0.0
        %342 = vmatprep.subr.mxu0 0.0
        %343 = vmatpush1.msra.mxu0 0.0
        %344 = vmatprep.subr.mxu0 0.0
        %345 = vmatpush1.msra.mxu0 0.0
        %346 = vmatprep.subr.mxu0 0.0
        %347 = vmatpush1.msra.mxu0 0.0
        %348 = vmatprep.subr.mxu0 0.0
        %349 = vmatpush1.msra.mxu0 0.0
        %350 = vmatprep.subr.mxu0 0.0
        %351 = vmatpush1.msra.mxu0 0.0
        %352 = vmatprep.subr.mxu0 0.0
        %353 = vmatpush1.msra.mxu0 0.0
        %354 = vmatprep.subr.mxu0 0.0
        %355 = vmatpush1.msra.mxu0 0.0
        %356 = vmatprep.subr.mxu0 0.0
        %357 = vmatpush1.msra.mxu0 0.0
        %358 = vmatprep.subr.mxu0 0.0
        %359 = vmatpush1.msra.mxu0 0.0
        %360 = vmatprep.subr.mxu0 0.0
        %361 = vmatpush1.msra.mxu0 0.0
        %362 = vmatprep.subr.mxu0 0.0
        %363 = vmatpush1.msra.mxu0 0.0
        %364 = vmatprep.subr.mxu0 0.0
        %365 = vmatpush1.msra.mxu0 0.0
        %366 = vmatprep.subr.mxu0 0.0
        %367 = vmatpush1.msra.mxu0 0.0
        %368 = vmatprep.subr.mxu0 0.0
        %369 = vmatpush1.msra.mxu0 0.0
        %370 = vmatprep.subr.mxu0 0.0
        %371 = vmatpush1.msra.mxu0 0.0
        %372 = vmatprep.subr.mxu0 0.0
        %373 = vmatpush1.msra.mxu0 0.0
        %374 = vmatprep.subr.mxu0 0.0
        %375 = vmatpush1.msra.mxu0 0.0
        %376 = vmatprep.subr.mxu0 0.0
        %377 = vmatpush1.msra.mxu0 0.0
        %378 = vmatprep.subr.mxu0 0.0
        %379 = vmatpush1.msra.mxu0 0.0
        %380 = vmatprep.subr.mxu0 0.0
        %381 = vmatpush1.msra.mxu0 0.0
        %382 = vmatprep.subr.mxu0 0.0
        %383 = vmatpush1.msra.mxu0 0.0
        %384 = vmatprep.subr.mxu0 0.0
        %385 = vmatpush1.msra.mxu0 0.0
        %386 = vmatprep.subr.mxu0 0.0
        %387 = vmatpush1.msra.mxu0 0.0
        %388 = vmatprep.subr.mxu0 0.0
        %389 = vmatpush1.msra.mxu0 0.0
        %390 = vmatprep.mubr.f32.mxu0 0.0
        %391 = vmatmul.mubr.f32.gmra.mrb[0].mxu0 %v231
        %v392 = vpop.f32.mrb[0].mxu0
        %v393 = vadd.f32 %v227, %v392
        %v394 = vpop.f32.mrb[0].mxu0
        %395 = vmatprep.mubr.f32.mxu0 0.0
        %396 = vmatmul.mubr.f32.gmra.mrb[0].mxu0 %v234
        %v397 = vpop.f32.mrb[0].mxu0
        %v398 = vadd.f32 %v227, %v397
        %v399 = vpop.f32.mrb[0].mxu0
        %400 = vmatprep.mubr.f32.mxu0 0.0
        %401 = vmatmul.mubr.f32.gmra.mrb[0].mxu0 %v237
        %v402 = vpop.f32.mrb[0].mxu0
        %v403 = vadd.f32 %v227, %v402
        %v404 = vpop.f32.mrb[0].mxu0
        %405 = vmatprep.mubr.f32.mxu0 0.0
        %406 = vmatmul.mubr.f32.gmra.mrb[0].mxu0 %v240
        %v407 = vpop.f32.mrb[0].mxu0
        %v408 = vadd.f32 %v227, %v407
        %v409 = vpop.f32.mrb[0].mxu0
        %410 = vmatprep.mubr.f32.mxu0 0.0
        %411 = vmatmul.mubr.f32.gmra.mrb[0].mxu0 %v243
        %v412 = vpop.f32.mrb[0].mxu0
        %v413 = vadd.f32 %v227, %v412
        %v414 = vpop.f32.mrb[0].mxu0
        %415 = vmatprep.mubr.f32.mxu0 0.0
        %416 = vmatmul.mubr.f32.gmra.mrb[0].mxu0 %v246
        %v417 = vpop.f32.mrb[0].mxu0
        %v418 = vadd.f32 %v227, %v417
        %v419 = vpop.f32.mrb[0].mxu0
        %420 = vmatprep.mubr.f32.mxu0 0.0
        %421 = vmatmul.mubr.f32.gmra.mrb[0].mxu0 %v249
        %v422 = vpop.f32.mrb[0].mxu0
        %v423 = vadd.f32 %v227, %v422
        %v424 = vpop.f32.mrb[0].mxu0
        %425 = vmatprep.mubr.f32.mxu0 0.0
        %426 = vmatmul.mubr.f32.gmra.mrb[0].mxu0 %v252
        %v427 = vpop.f32.mrb[0].mxu0
        %v428 = vadd.f32 %v227, %v427
        %v429 = vpop.f32.mrb[0].mxu0
        %430 = vmatprep.mubr.f32.mxu0 0.0
        %431 = vmatmul.mubr.f32.gmra.mrb[0].mxu0 %v255
        %v432 = vpop.f32.mrb[0].mxu0
        %v433 = vadd.f32 %v227, %v432
        %v434 = vpop.f32.mrb[0].mxu0
        %435 = vmatprep.mubr.f32.mxu0 0.0
        %436 = vmatmul.mubr.f32.gmra.mrb[0].mxu0 %v258
        %v437 = vpop.f32.mrb[0].mxu0
        %v438 = vadd.f32 %v227, %v437
        %v439 = vpop.f32.mrb[0].mxu0
        %440 = vmatprep.mubr.f32.mxu0 0.0
        %441 = vmatmul.mubr.f32.gmra.mrb[0].mxu0 %v261
        %v442 = vpop.f32.mrb[0].mxu0
        %v443 = vadd.f32 %v227, %v442
        %v444 = vpop.f32.mrb[0].mxu0
        %445 = vmatprep.mubr.f32.mxu0 0.0
        %446 = vmatmul.mubr.f32.gmra.mrb[0].mxu0 %v264
        %v447 = vpop.f32.mrb[0].mxu0
        %v448 = vadd.f32 %v227, %v447
        %v449 = vpop.f32.mrb[0].mxu0
        %450 = vmatprep.mubr.f32.mxu0 0.0
        %451 = vmatmul.mubr.f32.gmra.mrb[0].mxu0 %v267
        %v452 = vpop.f32.mrb[0].mxu0
        %v453 = vadd.f32 %v227, %v452
        %v454 = vpop.f32.mrb[0].mxu0
        %455 = vmatprep.mubr.f32.mxu0 0.0
        %456 = vmatmul.mubr.f32.gmra.mrb[0].mxu0 %v270
        %v457 = vpop.f32.mrb[0].mxu0
        %v458 = vadd.f32 %v227, %v457
        %v459 = vpop.f32.mrb[0].mxu0
        %460 = vmatprep.mubr.f32.mxu0 0.0
        %461 = vmatmul.mubr.f32.gmra.mrb[0].mxu0 %v273
        %v462 = vpop.f32.mrb[0].mxu0
        %v463 = vadd.f32 %v227, %v462
        %v464 = vpop.f32.mrb[0].mxu0
        %465 = vmatprep.mubr.f32.mxu0 0.0
        %466 = vmatmul.mubr.f32.gmra.mrb[0].mxu0 %v276
        %v467 = vpop.f32.mrb[0].mxu0
        %v468 = vadd.f32 %v227, %v467
        %v469 = vpop.f32.mrb[0].mxu0
        %470 = vmatprep.mubr.f32.mxu0 0.0
        %471 = vmatmul.mubr.f32.gmra.mrb[0].mxu0 %v279
        %v472 = vpop.f32.mrb[0].mxu0
        %v473 = vadd.f32 %v227, %v472
        %v474 = vpop.f32.mrb[0].mxu0
        %475 = vmatprep.mubr.f32.mxu0 0.0
        %476 = vmatmul.mubr.f32.gmra.mrb[0].mxu0 %v282
        %v477 = vpop.f32.mrb[0].mxu0
        %v478 = vadd.f32 %v227, %v477
        %v479 = vpop.f32.mrb[0].mxu0
        %480 = vmatprep.mubr.f32.mxu0 0.0
        %481 = vmatmul.mubr.f32.gmra.mrb[0].mxu0 %v285
        %v482 = vpop.f32.mrb[0].mxu0
        %v483 = vadd.f32 %v227, %v482
        %v484 = vpop.f32.mrb[0].mxu0
        %485 = vmatprep.mubr.f32.mxu0 0.0
        %486 = vmatmul.mubr.f32.gmra.mrb[0].mxu0 %v288
        %v487 = vpop.f32.mrb[0].mxu0
        %v488 = vadd.f32 %v227, %v487
        %v489 = vpop.f32.mrb[0].mxu0
        %490 = vmatprep.mubr.f32.mxu0 0.0
        %491 = vmatmul.mubr.f32.gmra.mrb[0].mxu0 %v291
        %v492 = vpop.f32.mrb[0].mxu0
        %v493 = vadd.f32 %v227, %v492
        %v494 = vpop.f32.mrb[0].mxu0
        %495 = vmatprep.mubr.f32.mxu0 0.0
        %496 = vmatmul.mubr.f32.gmra.mrb[0].mxu0 %v294
        %v497 = vpop.f32.mrb[0].mxu0
        %v498 = vadd.f32 %v227, %v497
        %v499 = vpop.f32.mrb[0].mxu0
        %500 = vmatprep.mubr.f32.mxu0 0.0
        %501 = vmatmul.mubr.f32.gmra.mrb[0].mxu0 %v297
        %v502 = vpop.f32.mrb[0].mxu0
        %v503 = vadd.f32 %v227, %v502
        %v504 = vpop.f32.mrb[0].mxu0
        %505 = vmatprep.mubr.f32.mxu0 0.0
        %506 = vmatmul.mubr.f32.gmra.mrb[0].mxu0 %v300
        %v507 = vpop.f32.mrb[0].mxu0
        %v508 = vadd.f32 %v227, %v507
        %v509 = vpop.f32.mrb[0].mxu0
        %510 = vmatprep.mubr.f32.mxu0 0.0
        %511 = vmatmul.mubr.f32.gmra.mrb[0].mxu0 %v303
        %v512 = vpop.f32.mrb[0].mxu0
        %v513 = vadd.f32 %v227, %v512
        %v514 = vpop.f32.mrb[0].mxu0
        %515 = vmatprep.mubr.f32.mxu0 0.0
        %516 = vmatmul.mubr.f32.gmra.mrb[0].mxu0 %v306
        %v517 = vpop.f32.mrb[0].mxu0
        %v518 = vadd.f32 %v227, %v517
        %v519 = vpop.f32.mrb[0].mxu0
        %520 = vmatprep.mubr.f32.mxu0 0.0
        %521 = vmatmul.mubr.f32.gmra.mrb[0].mxu0 %v309
        %v522 = vpop.f32.mrb[0].mxu0
        %v523 = vadd.f32 %v227, %v522
        %v524 = vpop.f32.mrb[0].mxu0
        %525 = vmatprep.mubr.f32.mxu0 0.0
        %526 = vmatmul.mubr.f32.gmra.mrb[0].mxu0 %v312
        %v527 = vpop.f32.mrb[0].mxu0
        %v528 = vadd.f32 %v227, %v527
        %v529 = vpop.f32.mrb[0].mxu0
        %530 = vmatprep.mubr.f32.mxu0 0.0
        %531 = vmatmul.mubr.f32.gmra.mrb[0].mxu0 %v315
        %v532 = vpop.f32.mrb[0].mxu0
        %v533 = vadd.f32 %v227, %v532
        %v534 = vpop.f32.mrb[0].mxu0
        %535 = vmatprep.mubr.f32.mxu0 0.0
        %536 = vmatmul.mubr.f32.gmra.mrb[0].mxu0 %v318
        %v537 = vpop.f32.mrb[0].mxu0
        %v538 = vadd.f32 %v227, %v537
        %v539 = vpop.f32.mrb[0].mxu0
        %540 = vmatprep.mubr.f32.mxu0 0.0
        %541 = vmatmul.mubr.f32.gmra.mrb[0].mxu0 %v321
        %v542 = vpop.f32.mrb[0].mxu0
        %v543 = vadd.f32 %v227, %v542
        %v544 = vpop.f32.mrb[0].mxu0
        %545 = vmatprep.mubr.f32.mxu0 0.0
        %546 = vmatmul.mubr.f32.gmra.mrb[0].mxu0 %v324
        %v547 = vpop.f32.mrb[0].mxu0
        %v548 = vadd.f32 %v227, %v547
        %v549 = vpop.f32.mrb[0].mxu0
        %550 = vdwg.mxu0
        %vm551 = vcmp.ge.f32.partialorder %v393, 0.0
        %vm552 = vcmp.ge.f32.partialorder %v398, 0.0
        %vm553 = vcmp.ge.f32.partialorder %v403, 0.0
        %vm554 = vcmp.ge.f32.partialorder %v408, 0.0
        %vm555 = vcmp.ge.f32.partialorder %v413, 0.0
        %vm556 = vcmp.ge.f32.partialorder %v418, 0.0
        %vm557 = vcmp.ge.f32.partialorder %v423, 0.0
        %vm558 = vcmp.ge.f32.partialorder %v428, 0.0
        %vm559 = vcmp.ge.f32.partialorder %v433, 0.0
        %vm560 = vcmp.ge.f32.partialorder %v438, 0.0
        %vm561 = vcmp.ge.f32.partialorder %v443, 0.0
        %vm562 = vcmp.ge.f32.partialorder %v448, 0.0
        %vm563 = vcmp.ge.f32.partialorder %v453, 0.0
        %vm564 = vcmp.ge.f32.partialorder %v458, 0.0
        %vm565 = vcmp.ge.f32.partialorder %v463, 0.0
        %vm566 = vcmp.ge.f32.partialorder %v468, 0.0
        %vm567 = vcmp.ge.f32.partialorder %v473, 0.0
        %vm568 = vcmp.ge.f32.partialorder %v478, 0.0
        %vm569 = vcmp.ge.f32.partialorder %v483, 0.0
        %vm570 = vcmp.ge.f32.partialorder %v488, 0.0
        %vm571 = vcmp.ge.f32.partialorder %v493, 0.0
        %vm572 = vcmp.ge.f32.partialorder %v498, 0.0
        %vm573 = vcmp.ge.f32.partialorder %v503, 0.0
        %vm574 = vcmp.ge.f32.partialorder %v508, 0.0
        %vm575 = vcmp.ge.f32.partialorder %v513, 0.0
        %vm576 = vcmp.ge.f32.partialorder %v518, 0.0
        %vm577 = vcmp.ge.f32.partialorder %v523, 0.0
        %vm578 = vcmp.ge.f32.partialorder %v528, 0.0
        %vm579 = vcmp.ge.f32.partialorder %v533, 0.0
        %vm580 = vcmp.ge.f32.partialorder %v538, 0.0
        %vm581 = vcmp.ge.f32.partialorder %v543, 0.0
        %vm582 = vcmp.ge.f32.partialorder %v548, 0.0
        %v583 = vmul.f32 %v393, 0.2
        %v584 = vmul.f32 %v398, 0.2
        %v585 = vmul.f32 %v403, 0.2
        %v586 = vmul.f32 %v408, 0.2
        %v587 = vmul.f32 %v413, 0.2
        %v588 = vmul.f32 %v418, 0.2
        %v589 = vmul.f32 %v423, 0.2
        %v590 = vmul.f32 %v428, 0.2
        %v591 = vmul.f32 %v433, 0.2
        %v592 = vmul.f32 %v438, 0.2
        %v593 = vmul.f32 %v443, 0.2
        %v594 = vmul.f32 %v448, 0.2
        %v595 = vmul.f32 %v453, 0.2
        %v596 = vmul.f32 %v458, 0.2
        %v597 = vmul.f32 %v463, 0.2
        %v598 = vmul.f32 %v468, 0.2
        %v599 = vmul.f32 %v473, 0.2
        %v600 = vmul.f32 %v478, 0.2
        %v601 = vmul.f32 %v483, 0.2
        %v602 = vmul.f32 %v488, 0.2
        %v603 = vmul.f32 %v493, 0.2
        %v604 = vmul.f32 %v498, 0.2
        %v605 = vmul.f32 %v503, 0.2
        %v606 = vmul.f32 %v508, 0.2
        %v607 = vmul.f32 %v513, 0.2
        %v608 = vmul.f32 %v518, 0.2
        %v609 = vmul.f32 %v523, 0.2
        %v610 = vmul.f32 %v528, 0.2
        %v611 = vmul.f32 %v533, 0.2
        %v612 = vmul.f32 %v538, 0.2
        %v613 = vmul.f32 %v543, 0.2
        %v614 = vmul.f32 %v548, 0.2
        %v615 = vsel %vm551, %v393, %v583
        %v616 = vsel %vm552, %v398, %v584
        %v617 = vsel %vm553, %v403, %v585
        %v618 = vsel %vm554, %v408, %v586
        %v619 = vsel %vm555, %v413, %v587
        %v620 = vsel %vm556, %v418, %v588
        %v621 = vsel %vm557, %v423, %v589
        %v622 = vsel %vm558, %v428, %v590
        %v623 = vsel %vm559, %v433, %v591
        %v624 = vsel %vm560, %v438, %v592
        %v625 = vsel %vm561, %v443, %v593
        %v626 = vsel %vm562, %v448, %v594
        %v627 = vsel %vm563, %v453, %v595
        %v628 = vsel %vm564, %v458, %v596
        %v629 = vsel %vm565, %v463, %v597
        %v630 = vsel %vm566, %v468, %v598
        %v631 = vsel %vm567, %v473, %v599
        %v632 = vsel %vm568, %v478, %v600
        %v633 = vsel %vm569, %v483, %v601
        %v634 = vsel %vm570, %v488, %v602
        %v635 = vsel %vm571, %v493, %v603
        %v636 = vsel %vm572, %v498, %v604
        %v637 = vsel %vm573, %v503, %v605
        %v638 = vsel %vm574, %v508, %v606
        %v639 = vsel %vm575, %v513, %v607
        %v640 = vsel %vm576, %v518, %v608
        %v641 = vsel %vm577, %v523, %v609
        %v642 = vsel %vm578, %v528, %v610
        %v643 = vsel %vm579, %v533, %v611
        %v644 = vsel %vm580, %v538, %v612
        %v645 = vsel %vm581, %v543, %v613
        %v646 = vsel %vm582, %v548, %v614
        %vm647 = vcmask 523264
        %648 = vst.msk [vmem:[%s183] sm:$0xff] %vm647, %v615
        %649 = vst.msk [vmem:[%s183 + $0x8] sm:$0xff] %vm647, %v616
        %650 = vst.msk [vmem:[%s183 + $0x10] sm:$0xff] %vm647, %v617
        %651 = vst.msk [vmem:[%s183 + $0x18] sm:$0xff] %vm647, %v618
        %652 = vst.msk [vmem:[%s183 + $0x20] sm:$0xff] %vm647, %v619
        %653 = vst.msk [vmem:[%s183 + $0x28] sm:$0xff] %vm647, %v620
        %654 = vst.msk [vmem:[%s183 + $0x30] sm:$0xff] %vm647, %v621
        %655 = vst.msk [vmem:[%s183 + $0x38] sm:$0xff] %vm647, %v622
        %656 = vst.msk [vmem:[%s183 + $0x40] sm:$0xff] %vm647, %v623
        %657 = vst.msk [vmem:[%s183 + $0x48] sm:$0xff] %vm647, %v624
        %658 = vst.msk [vmem:[%s183 + $0x50] sm:$0xff] %vm647, %v625
        %659 = vst.msk [vmem:[%s183 + $0x58] sm:$0xff] %vm647, %v626
        %660 = vst.msk [vmem:[%s183 + $0x60] sm:$0xff] %vm647, %v627
        %661 = vst.msk [vmem:[%s183 + $0x68] sm:$0xff] %vm647, %v628
        %662 = vst.msk [vmem:[%s183 + $0x70] sm:$0xff] %vm647, %v629
        %663 = vst.msk [vmem:[%s183 + $0x78] sm:$0xff] %vm647, %v630
        %664 = vst.msk [vmem:[%s183 + $0x80] sm:$0xff] %vm647, %v631
        %665 = vst.msk [vmem:[%s183 + $0x88] sm:$0xff] %vm647, %v632
        %666 = vst.msk [vmem:[%s183 + $0x90] sm:$0xff] %vm647, %v633
        %667 = vst.msk [vmem:[%s183 + $0x98] sm:$0xff] %vm647, %v634
        %668 = vst.msk [vmem:[%s183 + $0xa0] sm:$0xff] %vm647, %v635
        %669 = vst.msk [vmem:[%s183 + $0xa8] sm:$0xff] %vm647, %v636
        %670 = vst.msk [vmem:[%s183 + $0xb0] sm:$0xff] %vm647, %v637
        %671 = vst.msk [vmem:[%s183 + $0xb8] sm:$0xff] %vm647, %v638
        %672 = vst.msk [vmem:[%s183 + $0xc0] sm:$0xff] %vm647, %v639
        %673 = vst.msk [vmem:[%s183 + $0xc8] sm:$0xff] %vm647, %v640
        %674 = vst.msk [vmem:[%s183 + $0xd0] sm:$0xff] %vm647, %v641
        %675 = vst.msk [vmem:[%s183 + $0xd8] sm:$0xff] %vm647, %v642
        %676 = vst.msk [vmem:[%s183 + $0xe0] sm:$0xff] %vm647, %v643
        %677 = vst.msk [vmem:[%s183 + $0xe8] sm:$0xff] %vm647, %v644
        %678 = vst.msk [vmem:[%s183 + $0xf0] sm:$0xff] %vm647, %v645
        %679 = vst.msk [vmem:[%s183 + $0xf8] sm:$0xff] %vm647, %v646
        %p680 = scmp.lt.s32.totalorder %s15, 1
        %s681 = scalar_select %p680, %s15, 1
        %s682 = smul.addr %s681, 32
        %s683 = smul.addr %s682, 8
        %s684 = scalar_lea.vmem %s3, %s683
        // Predicated region
        $region37: #{discriminator_forward.5} parent=31 // pred_check
          %p685 = pneg %p101
        $region38: #{discriminator_forward.5} parent=31 // pred_check_branch
          %687 = sbr.rel (%p685) target = $region40
        $region39: #{discriminator_forward.5} parent=31 // pred_region
          _
        $region40: #{discriminator_forward.5} parent=31 // pred_fallthru
          _
      $region32: #{discriminator_forward.5} parent=5 // pred_fallthru
        _
      %p688 = scmp.le.s32.totalorder 2, %s10
      // Predicated region
      $region41: #{discriminator_forward.5} parent=5 // pred_check
        %p689 = pneg %p688
      $region42: #{discriminator_forward.5} parent=5 // pred_check_branch
        %691 = sbr.rel (%p689) target = $region44
      $region43: #{discriminator_forward.5} parent=5 // pred_region
        %s692 = ssub.s32 %s10, 2
        // Predicated region
        $region45: #{discriminator_forward.5} parent=43 // pred_check
          %p693 = pneg %p107
        $region46: #{discriminator_forward.5} parent=43 // pred_check_branch
          %695 = sbr.rel (%p693) target = $region48
        $region47: #{discriminator_forward.5} parent=43 // pred_region
          %p696 = scmp.lt.s32.totalorder %s16, 1
          %s697 = scalar_select %p696, %s16, 1
          %s698 = smul.addr %s697, 32
          %s699 = smul.addr %s698, 8
          %s700 = scalar_lea.vmem %s3, %s699
        $region48: #{discriminator_forward.5} parent=43 // pred_fallthru
          _
      $region44: #{discriminator_forward.5} parent=5 // pred_fallthru
        _
    $region6: #{discriminator_forward.5} parent=1 // loop_footer
      %s14 = sadd.s32 1, %s10
    $region7: #{discriminator_forward.5} parent=1 // loop_footer_branch
      %9 = sbr.rel target = $region3
    $region8: #{discriminator_forward.5} parent=1 // loop_exit
      _
    %701 = vsyncpa [#allocation3], 1
    %s702 = scalar_lea.sflag [#allocation3], 1
    %703 = vsyncpa %s702, 1

// kernel: discriminator_forward.6
$region0: #{discriminator_forward.6}
  #allocation0 [shape = 'u32[]', space=smem, size = 0x4, offset = 0x4, fixed_abs, tag = 'smem constant byte address 0x4 - core index']
  #allocation1 [shape = 'u32[144,128]{1,0:T(1,128)}', space=vmem, size = 0x12000, scoped, tag = 'internal scratch']
  %s0 = inlined_call_operand.vmem [shape: f32[2,64,1024], index: 0, kind: input, shape index: {}]
  %s1 = inlined_call_operand.vmem [shape: f32[1024,128], index: 1, kind: input, shape index: {}]
  %s2 = inlined_call_operand.vmem [shape: f32[1,128], index: 2, kind: input, shape index: {}]
  %s3 = inlined_call_operand.vmem [shape: f32[2,64,128], index: 3, kind: output, shape index: {}]
  %s4 = sld [smem:[#allocation0]]
  $region45: #{discriminator_forward.6} parent=0
    _
  %s6 = ssub.s32 1, %s4
  %s7 = scalar_select 0, %s6, %s4
  loop: start=0, step=1, limit=4
  $region2: #{discriminator_forward.6} parent=0 // loop_pre_header
    _
  $region3: #{discriminator_forward.6} parent=0 // loop_header
    %s9 = sphi 0, %s13
    %p10 = scmp.ge.s32.totalorder %s9, 4
    %s19 = sphi 0, %s21
    %s22 = sphi 0, %s19
    %s23 = sphi 0, %s22
    %s39 = sphi 0, %s23
    %s43 = sphi 0, %s43
    %s45 = sphi 0, %s43
    %s46 = sphi 0, %s45
    %s60 = sphi 0, %s46
    %s64 = sphi 0, %s64
    %s66 = sphi 0, %s64
    %s67 = sphi 0, %s66
    %s81 = sphi 0, %s67
    %s87 = sphi 0, %s89
    %s90 = sphi 0, %s87
    %s91 = sphi 0, %s90
    %s107 = sphi 0, %s91
  $region4: #{discriminator_forward.6} parent=0 // loop_header_branch
    %12 = sbr.rel (%p10) target = $region8
  $region5: #{discriminator_forward.6} parent=0 // loop_body
    %s14 = ssub.s32 %s9, 1
    %s15 = ssub.s32 %s9, 2
    %s16 = sadd.s32 %s9, 1
    %s17 = ssub.s32 %s9, %s16
    %p18 = scmp.eq.s32.totalorder %s17, 0
    %s20 = sadd.s32 %s19, 1
    %s21 = scalar_select %p18, %s19, %s20
    %p24 = pneg %p18
    %p25 = scmp.eq.s32.totalorder %s9, 1
    %p26 = por %p24, %p25
    %p27 = scmp.ne.s32.totalorder %s19, %s22
    %p28 = scmp.eq.s32.totalorder %s9, 0
    %p29 = por %p27, %p28
    %p30 = scmp.ne.s32.totalorder %s19, %s22
    %p31 = scmp.eq.s32.totalorder %s14, 1
    %p32 = por %p30, %p31
    %p33 = scmp.ne.s32.totalorder %s22, %s23
    %p34 = scmp.eq.s32.totalorder %s14, 0
    %p35 = por %p33, %p34
    %p36 = scmp.ne.s32.totalorder %s22, %s23
    %p37 = scmp.eq.s32.totalorder %s15, 1
    %p38 = por %p36, %p37
    %p40 = scmp.ne.s32.totalorder %s23, %s39
    %p41 = scmp.eq.s32.totalorder %s15, 0
    %p42 = por %p40, %p41
    %s44 = sadd.s32 %s43, 1
    %p47 = scmp.eq.s32.totalorder %s9, 1
    %p48 = scmp.ne.s32.totalorder %s43, %s45
    %p49 = scmp.eq.s32.totalorder %s9, 0
    %p50 = por %p48, %p49
    %p51 = scmp.ne.s32.totalorder %s43, %s45
    %p52 = scmp.eq.s32.totalorder %s14, 1
    %p53 = por %p51, %p52
    %p54 = scmp.ne.s32.totalorder %s45, %s46
    %p55 = scmp.eq.s32.totalorder %s14, 0
    %p56 = por %p54, %p55
    %p57 = scmp.ne.s32.totalorder %s45, %s46
    %p58 = scmp.eq.s32.totalorder %s15, 1
    %p59 = por %p57, %p58
    %p61 = scmp.ne.s32.totalorder %s46, %s60
    %p62 = scmp.eq.s32.totalorder %s15, 0
    %p63 = por %p61, %p62
    %s65 = sadd.s32 %s64, 1
    %p68 = scmp.eq.s32.totalorder %s9, 1
    %p69 = scmp.ne.s32.totalorder %s64, %s66
    %p70 = scmp.eq.s32.totalorder %s9, 0
    %p71 = por %p69, %p70
    %p72 = scmp.ne.s32.totalorder %s64, %s66
    %p73 = scmp.eq.s32.totalorder %s14, 1
    %p74 = por %p72, %p73
    %p75 = scmp.ne.s32.totalorder %s66, %s67
    %p76 = scmp.eq.s32.totalorder %s14, 0
    %p77 = por %p75, %p76
    %p78 = scmp.ne.s32.totalorder %s66, %s67
    %p79 = scmp.eq.s32.totalorder %s15, 1
    %p80 = por %p78, %p79
    %p82 = scmp.ne.s32.totalorder %s67, %s81
    %p83 = scmp.eq.s32.totalorder %s15, 0
    %p84 = por %p82, %p83
    %s85 = ssub.s32 %s9, %s16
    %p86 = scmp.eq.s32.totalorder %s85, 0
    %s88 = sadd.s32 %s87, 1
    %s89 = scalar_select %p86, %s87, %s88
    %p92 = pneg %p86
    %p93 = scmp.eq.s32.totalorder %s9, 1
    %p94 = por %p92, %p93
    %p95 = scmp.ne.s32.totalorder %s87, %s90
    %p96 = scmp.eq.s32.totalorder %s9, 0
    %p97 = por %p95, %p96
    %p98 = scmp.ne.s32.totalorder %s87, %s90
    %p99 = scmp.eq.s32.totalorder %s14, 1
    %p100 = por %p98, %p99
    %p101 = scmp.ne.s32.totalorder %s90, %s91
    %p102 = scmp.eq.s32.totalorder %s14, 0
    %p103 = por %p101, %p102
    %p104 = scmp.ne.s32.totalorder %s90, %s91
    %p105 = scmp.eq.s32.totalorder %s15, 1
    %p106 = por %p104, %p105
    %p108 = scmp.ne.s32.totalorder %s91, %s107
    %p109 = scmp.eq.s32.totalorder %s15, 0
    %p110 = por %p108, %p109
    %p111 = scmp.le.s32.totalorder 1, %s9
    %p112 = scmp.lt.s32.totalorder %s9, 3
    %p113 = pnand %p111, %p112
    %p114 = pneg %p113
    // Predicated region
    $region9: #{discriminator_forward.6} parent=5 // pred_check
      _
    $region10: #{discriminator_forward.6} parent=5 // pred_check_branch
      %116 = sbr.rel (%p113) target = $region12
    $region11: #{discriminator_forward.6} parent=5 // pred_region
      %s117 = ssub.s32 %s9, 1
      // Predicated region
      $region13: #{discriminator_forward.6} parent=11 // pred_check
        %p118 = pneg %p56
      $region14: #{discriminator_forward.6} parent=11 // pred_check_branch
        %120 = sbr.rel (%p118) target = $region16
      $region15: #{discriminator_forward.6} parent=11 // pred_region
        _
      $region16: #{discriminator_forward.6} parent=11 // pred_fallthru
        _
      // Predicated region
      $region17: #{discriminator_forward.6} parent=11 // pred_check
        %p121 = pneg %p77
      $region18: #{discriminator_forward.6} parent=11 // pred_check_branch
        %123 = sbr.rel (%p121) target = $region20
      $region19: #{discriminator_forward.6} parent=11 // pred_region
        _
      $region20: #{discriminator_forward.6} parent=11 // pred_fallthru
        _
    $region12: #{discriminator_forward.6} parent=5 // pred_fallthru
      _
    %p124 = scmp.lt.s32.totalorder %s9, 2
    // Predicated region
    $region21: #{discriminator_forward.6} parent=5 // pred_check
      %p125 = pneg %p124
    $region22: #{discriminator_forward.6} parent=5 // pred_check_branch
      %127 = sbr.rel (%p125) target = $region24
    $region23: #{discriminator_forward.6} parent=5 // pred_region
      // Predicated region
      $region25: #{discriminator_forward.6} parent=23 // pred_check
        %p128 = pneg %p29
      $region26: #{discriminator_forward.6} parent=23 // pred_check_branch
        %130 = sbr.rel (%p128) target = $region28
      $region27: #{discriminator_forward.6} parent=23 // pred_region
        %p131 = scmp.lt.s32.totalorder %s9, 1
        %s132 = scalar_select %p131, %s9, 1
        %s133 = smul.addr %s132, 64
        %s134 = smul.addr %s133, 8
        %s135 = scalar_lea.vmem %s0, %s134
      $region28: #{discriminator_forward.6} parent=23 // pred_fallthru
        _
    $region24: #{discriminator_forward.6} parent=5 // pred_fallthru
      _
    %p136 = scmp.le.s32.totalorder 1, %s9
    %p137 = scmp.lt.s32.totalorder %s9, 3
    %p138 = pnand %p136, %p137
    %p139 = pneg %p138
    // Predicated region
    $region29: #{discriminator_forward.6} parent=5 // pred_check
      _
    $region30: #{discriminator_forward.6} parent=5 // pred_check_branch
      %141 = sbr.rel (%p138) target = $region32
    $region31: #{discriminator_forward.6} parent=5 // pred_region
      %s142 = ssub.s32 %s9, 1
      %p143 = scmp.lt.s32.totalorder %s14, 1
      %s144 = scalar_select %p143, %s14, 1
      %s145 = smul.addr %s144, 64
      %s146 = smul.addr %s145, 8
      %s147 = scalar_lea.vmem %s0, %s146
      %p148 = pneg %p35
      %p149 = pneg %p32
      %p150 = pneg %p56
      %p151 = pneg %p53
      %p152 = pneg %p77
      %p153 = pneg %p74
      %p154 = pneg %p103
      %p155 = pneg %p100
      %p156 = scmp.lt.s32.totalorder %s14, 1
      %s157 = scalar_select %p156, %s14, 1
      %s158 = smul.addr %s157, 8
      %s159 = smul.addr %s158, 8
      %s160 = scalar_lea.vmem %s3, %s159
      %p161 = scmp.lt.s32.totalorder %s14, 1
      %s162 = scalar_select %p161, %s14, 1
      %s163 = smul.addr %s162, 64
      %s164 = smul.addr %s163, 8
      %s165 = scalar_lea.vmem %s0, %s164
      %p166 = scmp.lt.s32.totalorder %s14, 1
      %s167 = scalar_select %p166, %s14, 1
      %s168 = smul.addr %s167, 8
      %s169 = smul.addr %s168, 8
      %s170 = scalar_lea.vmem %s3, %s169
      %v171 = vld [vmem:[%s165] sm:$0xff]
      %v172 = vld [vmem:[%s165 + $0x8] sm:$0xff]
      %v173 = vld [vmem:[%s165 + $0x10] sm:$0xff]
      %v174 = vld [vmem:[%s165 + $0x18] sm:$0xff]
      %v175 = vld [vmem:[%s165 + $0x20] sm:$0xff]
      %v176 = vld [vmem:[%s165 + $0x28] sm:$0xff]
      %v177 = vld [vmem:[%s165 + $0x30] sm:$0xff]
      %v178 = vld [vmem:[%s165 + $0x38] sm:$0xff]
      %v179 = vld [vmem:[%s165 + $0x40] sm:$0xff]
      %v180 = vld [vmem:[%s165 + $0x48] sm:$0xff]
      %v181 = vld [vmem:[%s165 + $0x50] sm:$0xff]
      %v182 = vld [vmem:[%s165 + $0x58] sm:$0xff]
      %v183 = vld [vmem:[%s165 + $0x60] sm:$0xff]
      %v184 = vld [vmem:[%s165 + $0x68] sm:$0xff]
      %v185 = vld [vmem:[%s165 + $0x70] sm:$0xff]
      %v186 = vld [vmem:[%s165 + $0x78] sm:$0xff]
      %v187 = vld [vmem:[%s165 + $0x80] sm:$0xff]
      %v188 = vld [vmem:[%s165 + $0x88] sm:$0xff]
      %v189 = vld [vmem:[%s165 + $0x90] sm:$0xff]
      %v190 = vld [vmem:[%s165 + $0x98] sm:$0xff]
      %v191 = vld [vmem:[%s165 + $0xa0] sm:$0xff]
      %v192 = vld [vmem:[%s165 + $0xa8] sm:$0xff]
      %v193 = vld [vmem:[%s165 + $0xb0] sm:$0xff]
      %v194 = vld [vmem:[%s165 + $0xb8] sm:$0xff]
      %v195 = vld [vmem:[%s165 + $0xc0] sm:$0xff]
      %v196 = vld [vmem:[%s165 + $0xc8] sm:$0xff]
      %v197 = vld [vmem:[%s165 + $0xd0] sm:$0xff]
      %v198 = vld [vmem:[%s165 + $0xd8] sm:$0xff]
      %v199 = vld [vmem:[%s165 + $0xe0] sm:$0xff]
      %v200 = vld [vmem:[%s165 + $0xe8] sm:$0xff]
      %v201 = vld [vmem:[%s165 + $0xf0] sm:$0xff]
      %v202 = vld [vmem:[%s165 + $0xf8] sm:$0xff]
      %v203 = vld [vmem:[%s165 + $0x100] sm:$0xff]
      %v204 = vld [vmem:[%s165 + $0x108] sm:$0xff]
      %v205 = vld [vmem:[%s165 + $0x110] sm:$0xff]
      %v206 = vld [vmem:[%s165 + $0x118] sm:$0xff]
      %v207 = vld [vmem:[%s165 + $0x120] sm:$0xff]
      %v208 = vld [vmem:[%s165 + $0x128] sm:$0xff]
      %v209 = vld [vmem:[%s165 + $0x130] sm:$0xff]
      %v210 = vld [vmem:[%s165 + $0x138] sm:$0xff]
      %v211 = vld [vmem:[%s165 + $0x140] sm:$0xff]
      %v212 = vld [vmem:[%s165 + $0x148] sm:$0xff]
      %v213 = vld [vmem:[%s165 + $0x150] sm:$0xff]
      %v214 = vld [vmem:[%s165 + $0x158] sm:$0xff]
      %v215 = vld [vmem:[%s165 + $0x160] sm:$0xff]
      %v216 = vld [vmem:[%s165 + $0x168] sm:$0xff]
      %v217 = vld [vmem:[%s165 + $0x170] sm:$0xff]
      %v218 = vld [vmem:[%s165 + $0x178] sm:$0xff]
      %v219 = vld [vmem:[%s165 + $0x180] sm:$0xff]
      %v220 = vld [vmem:[%s165 + $0x188] sm:$0xff]
      %v221 = vld [vmem:[%s165 + $0x190] sm:$0xff]
      %v222 = vld [vmem:[%s165 + $0x198] sm:$0xff]
      %v223 = vld [vmem:[%s165 + $0x1a0] sm:$0xff]
      %v224 = vld [vmem:[%s165 + $0x1a8] sm:$0xff]
      %v225 = vld [vmem:[%s165 + $0x1b0] sm:$0xff]
      %v226 = vld [vmem:[%s165 + $0x1b8] sm:$0xff]
      %v227 = vld [vmem:[%s165 + $0x1c0] sm:$0xff]
      %v228 = vld [vmem:[%s165 + $0x1c8] sm:$0xff]
      %v229 = vld [vmem:[%s165 + $0x1d0] sm:$0xff]
      %v230 = vld [vmem:[%s165 + $0x1d8] sm:$0xff]
      %v231 = vld [vmem:[%s165 + $0x1e0] sm:$0xff]
      %v232 = vld [vmem:[%s165 + $0x1e8] sm:$0xff]
      %v233 = vld [vmem:[%s165 + $0x1f0] sm:$0xff]
      %v234 = vld [vmem:[%s165 + $0x1f8] sm:$0xff]
      %v235 = vld [vmem:[%s1] sm:$0xff]
      %v236 = vld [vmem:[%s1 + $0x8] sm:$0xff]
      %v237 = vld [vmem:[%s1 + $0x10] sm:$0xff]
      %v238 = vld [vmem:[%s1 + $0x18] sm:$0xff]
      %v239 = vld [vmem:[%s1 + $0x20] sm:$0xff]
      %v240 = vld [vmem:[%s1 + $0x28] sm:$0xff]
      %v241 = vld [vmem:[%s1 + $0x30] sm:$0xff]
      %v242 = vld [vmem:[%s1 + $0x38] sm:$0xff]
      %v243 = vld [vmem:[%s1 + $0x40] sm:$0xff]
      %v244 = vld [vmem:[%s1 + $0x48] sm:$0xff]
      %v245 = vld [vmem:[%s1 + $0x50] sm:$0xff]
      %v246 = vld [vmem:[%s1 + $0x58] sm:$0xff]
      %v247 = vld [vmem:[%s1 + $0x60] sm:$0xff]
      %v248 = vld [vmem:[%s1 + $0x68] sm:$0xff]
      %v249 = vld [vmem:[%s1 + $0x70] sm:$0xff]
      %v250 = vld [vmem:[%s1 + $0x78] sm:$0xff]
      %v251 = vld [vmem:[%s1 + $0x80] sm:$0xff]
      %v252 = vld [vmem:[%s1 + $0x88] sm:$0xff]
      %v253 = vld [vmem:[%s1 + $0x90] sm:$0xff]
      %v254 = vld [vmem:[%s1 + $0x98] sm:$0xff]
      %v255 = vld [vmem:[%s1 + $0xa0] sm:$0xff]
      %v256 = vld [vmem:[%s1 + $0xa8] sm:$0xff]
      %v257 = vld [vmem:[%s1 + $0xb0] sm:$0xff]
      %v258 = vld [vmem:[%s1 + $0xb8] sm:$0xff]
      %v259 = vld [vmem:[%s1 + $0xc0] sm:$0xff]
      %v260 = vld [vmem:[%s1 + $0xc8] sm:$0xff]
      %v261 = vld [vmem:[%s1 + $0xd0] sm:$0xff]
      %v262 = vld [vmem:[%s1 + $0xd8] sm:$0xff]
      %v263 = vld [vmem:[%s1 + $0xe0] sm:$0xff]
      %v264 = vld [vmem:[%s1 + $0xe8] sm:$0xff]
      %v265 = vld [vmem:[%s1 + $0xf0] sm:$0xff]
      %v266 = vld [vmem:[%s1 + $0xf8] sm:$0xff]
      %v267 = vld [vmem:[%s1 + $0x100] sm:$0xff]
      %v268 = vld [vmem:[%s1 + $0x108] sm:$0xff]
      %v269 = vld [vmem:[%s1 + $0x110] sm:$0xff]
      %v270 = vld [vmem:[%s1 + $0x118] sm:$0xff]
      %v271 = vld [vmem:[%s1 + $0x120] sm:$0xff]
      %v272 = vld [vmem:[%s1 + $0x128] sm:$0xff]
      %v273 = vld [vmem:[%s1 + $0x130] sm:$0xff]
      %v274 = vld [vmem:[%s1 + $0x138] sm:$0xff]
      %v275 = vld [vmem:[%s1 + $0x140] sm:$0xff]
      %v276 = vld [vmem:[%s1 + $0x148] sm:$0xff]
      %v277 = vld [vmem:[%s1 + $0x150] sm:$0xff]
      %v278 = vld [vmem:[%s1 + $0x158] sm:$0xff]
      %v279 = vld [vmem:[%s1 + $0x160] sm:$0xff]
      %v280 = vld [vmem:[%s1 + $0x168] sm:$0xff]
      %v281 = vld [vmem:[%s1 + $0x170] sm:$0xff]
      %v282 = vld [vmem:[%s1 + $0x178] sm:$0xff]
      %v283 = vld [vmem:[%s1 + $0x180] sm:$0xff]
      %v284 = vld [vmem:[%s1 + $0x188] sm:$0xff]
      %v285 = vld [vmem:[%s1 + $0x190] sm:$0xff]
      %v286 = vld [vmem:[%s1 + $0x198] sm:$0xff]
      %v287 = vld [vmem:[%s1 + $0x1a0] sm:$0xff]
      %v288 = vld [vmem:[%s1 + $0x1a8] sm:$0xff]
      %v289 = vld [vmem:[%s1 + $0x1b0] sm:$0xff]
      %v290 = vld [vmem:[%s1 + $0x1b8] sm:$0xff]
      %v291 = vld [vmem:[%s1 + $0x1c0] sm:$0xff]
      %v292 = vld [vmem:[%s1 + $0x1c8] sm:$0xff]
      %v293 = vld [vmem:[%s1 + $0x1d0] sm:$0xff]
      %v294 = vld [vmem:[%s1 + $0x1d8] sm:$0xff]
      %v295 = vld [vmem:[%s1 + $0x1e0] sm:$0xff]
      %v296 = vld [vmem:[%s1 + $0x1e8] sm:$0xff]
      %v297 = vld [vmem:[%s1 + $0x1f0] sm:$0xff]
      %v298 = vld [vmem:[%s1 + $0x1f8] sm:$0xff]
      %v299 = vld [vmem:[%s1 + $0x200] sm:$0xff]
      %v300 = vld [vmem:[%s1 + $0x208] sm:$0xff]
      %v301 = vld [vmem:[%s1 + $0x210] sm:$0xff]
      %v302 = vld [vmem:[%s1 + $0x218] sm:$0xff]
      %v303 = vld [vmem:[%s1 + $0x220] sm:$0xff]
      %v304 = vld [vmem:[%s1 + $0x228] sm:$0xff]
      %v305 = vld [vmem:[%s1 + $0x230] sm:$0xff]
      %v306 = vld [vmem:[%s1 + $0x238] sm:$0xff]
      %v307 = vld [vmem:[%s1 + $0x240] sm:$0xff]
      %v308 = vld [vmem:[%s1 + $0x248] sm:$0xff]
      %v309 = vld [vmem:[%s1 + $0x250] sm:$0xff]
      %v310 = vld [vmem:[%s1 + $0x258] sm:$0xff]
      %v311 = vld [vmem:[%s1 + $0x260] sm:$0xff]
      %v312 = vld [vmem:[%s1 + $0x268] sm:$0xff]
      %v313 = vld [vmem:[%s1 + $0x270] sm:$0xff]
      %v314 = vld [vmem:[%s1 + $0x278] sm:$0xff]
      %v315 = vld [vmem:[%s1 + $0x280] sm:$0xff]
      %v316 = vld [vmem:[%s1 + $0x288] sm:$0xff]
      %v317 = vld [vmem:[%s1 + $0x290] sm:$0xff]
      %v318 = vld [vmem:[%s1 + $0x298] sm:$0xff]
      %v319 = vld [vmem:[%s1 + $0x2a0] sm:$0xff]
      %v320 = vld [vmem:[%s1 + $0x2a8] sm:$0xff]
      %v321 = vld [vmem:[%s1 + $0x2b0] sm:$0xff]
      %v322 = vld [vmem:[%s1 + $0x2b8] sm:$0xff]
      %v323 = vld [vmem:[%s1 + $0x2c0] sm:$0xff]
      %v324 = vld [vmem:[%s1 + $0x2c8] sm:$0xff]
      %v325 = vld [vmem:[%s1 + $0x2d0] sm:$0xff]
      %v326 = vld [vmem:[%s1 + $0x2d8] sm:$0xff]
      %v327 = vld [vmem:[%s1 + $0x2e0] sm:$0xff]
      %v328 = vld [vmem:[%s1 + $0x2e8] sm:$0xff]
      %v329 = vld [vmem:[%s1 + $0x2f0] sm:$0xff]
      %v330 = vld [vmem:[%s1 + $0x2f8] sm:$0xff]
      %v331 = vld [vmem:[%s1 + $0x300] sm:$0xff]
      %v332 = vld [vmem:[%s1 + $0x308] sm:$0xff]
      %v333 = vld [vmem:[%s1 + $0x310] sm:$0xff]
      %v334 = vld [vmem:[%s1 + $0x318] sm:$0xff]
      %v335 = vld [vmem:[%s1 + $0x320] sm:$0xff]
      %v336 = vld [vmem:[%s1 + $0x328] sm:$0xff]
      %v337 = vld [vmem:[%s1 + $0x330] sm:$0xff]
      %v338 = vld [vmem:[%s1 + $0x338] sm:$0xff]
      %v339 = vld [vmem:[%s1 + $0x340] sm:$0xff]
      %v340 = vld [vmem:[%s1 + $0x348] sm:$0xff]
      %v341 = vld [vmem:[%s1 + $0x350] sm:$0xff]
      %v342 = vld [vmem:[%s1 + $0x358] sm:$0xff]
      %v343 = vld [vmem:[%s1 + $0x360] sm:$0xff]
      %v344 = vld [vmem:[%s1 + $0x368] sm:$0xff]
      %v345 = vld [vmem:[%s1 + $0x370] sm:$0xff]
      %v346 = vld [vmem:[%s1 + $0x378] sm:$0xff]
      %v347 = vld [vmem:[%s1 + $0x380] sm:$0xff]
      %v348 = vld [vmem:[%s1 + $0x388] sm:$0xff]
      %v349 = vld [vmem:[%s1 + $0x390] sm:$0xff]
      %v350 = vld [vmem:[%s1 + $0x398] sm:$0xff]
      %v351 = vld [vmem:[%s1 + $0x3a0] sm:$0xff]
      %v352 = vld [vmem:[%s1 + $0x3a8] sm:$0xff]
      %v353 = vld [vmem:[%s1 + $0x3b0] sm:$0xff]
      %v354 = vld [vmem:[%s1 + $0x3b8] sm:$0xff]
      %v355 = vld [vmem:[%s1 + $0x3c0] sm:$0xff]
      %v356 = vld [vmem:[%s1 + $0x3c8] sm:$0xff]
      %v357 = vld [vmem:[%s1 + $0x3d0] sm:$0xff]
      %v358 = vld [vmem:[%s1 + $0x3d8] sm:$0xff]
      %v359 = vld [vmem:[%s1 + $0x3e0] sm:$0xff]
      %v360 = vld [vmem:[%s1 + $0x3e8] sm:$0xff]
      %v361 = vld [vmem:[%s1 + $0x3f0] sm:$0xff]
      %v362 = vld [vmem:[%s1 + $0x3f8] sm:$0xff]
      %v363 = vld [vmem:[%s2] sm:$0x1]
      %v365 = vlaneseq
      %v366 = vshrl.u32 %v365, 7
      %v367 = vsub.s32 0, %v366
      %v368 = vrot.slane %v363, %v367
      %370 = vmatprep.subr.mxu0 0.0
      %371 = vmatpush1.msra.mxu0 %v235
      %372 = vmatprep.subr.mxu0 0.0
      %373 = vmatpush1.msra.mxu0 %v236
      %374 = vmatprep.subr.mxu0 0.0
      %375 = vmatpush1.msra.mxu0 %v237
      %376 = vmatprep.subr.mxu0 0.0
      %377 = vmatpush1.msra.mxu0 %v238
      %378 = vmatprep.subr.mxu0 0.0
      %379 = vmatpush1.msra.mxu0 %v239
      %380 = vmatprep.subr.mxu0 0.0
      %381 = vmatpush1.msra.mxu0 %v240
      %382 = vmatprep.subr.mxu0 0.0
      %383 = vmatpush1.msra.mxu0 %v241
      %384 = vmatprep.subr.mxu0 0.0
      %385 = vmatpush1.msra.mxu0 %v242
      %386 = vmatprep.subr.mxu0 0.0
      %387 = vmatpush1.msra.mxu0 %v243
      %388 = vmatprep.subr.mxu0 0.0
      %389 = vmatpush1.msra.mxu0 %v244
      %390 = vmatprep.subr.mxu0 0.0
      %391 = vmatpush1.msra.mxu0 %v245
      %392 = vmatprep.subr.mxu0 0.0
      %393 = vmatpush1.msra.mxu0 %v246
      %394 = vmatprep.subr.mxu0 0.0
      %395 = vmatpush1.msra.mxu0 %v247
      %396 = vmatprep.subr.mxu0 0.0
      %397 = vmatpush1.msra.mxu0 %v248
      %398 = vmatprep.subr.mxu0 0.0
      %399 = vmatpush1.msra.mxu0 %v249
      %400 = vmatprep.subr.mxu0 0.0
      %401 = vmatpush1.msra.mxu0 %v250
      %402 = vmatprep.subr.mxu0 0.0
      %403 = vmatpush1.msra.mxu0 %v251
      %404 = vmatprep.subr.mxu0 0.0
      %405 = vmatpush1.msra.mxu0 %v252
      %406 = vmatprep.subr.mxu0 0.0
      %407 = vmatpush1.msra.mxu0 %v253
      %408 = vmatprep.subr.mxu0 0.0
      %409 = vmatpush1.msra.mxu0 %v254
      %410 = vmatprep.subr.mxu0 0.0
      %411 = vmatpush1.msra.mxu0 %v255
      %412 = vmatprep.subr.mxu0 0.0
      %413 = vmatpush1.msra.mxu0 %v256
      %414 = vmatprep.subr.mxu0 0.0
      %415 = vmatpush1.msra.mxu0 %v257
      %416 = vmatprep.subr.mxu0 0.0
      %417 = vmatpush1.msra.mxu0 %v258
      %418 = vmatprep.subr.mxu0 0.0
      %419 = vmatpush1.msra.mxu0 %v259
      %420 = vmatprep.subr.mxu0 0.0
      %421 = vmatpush1.msra.mxu0 %v260
      %422 = vmatprep.subr.mxu0 0.0
      %423 = vmatpush1.msra.mxu0 %v261
      %424 = vmatprep.subr.mxu0 0.0
      %425 = vmatpush1.msra.mxu0 %v262
      %426 = vmatprep.subr.mxu0 0.0
      %427 = vmatpush1.msra.mxu0 %v263
      %428 = vmatprep.subr.mxu0 0.0
      %429 = vmatpush1.msra.mxu0 %v264
      %430 = vmatprep.subr.mxu0 0.0
      %431 = vmatpush1.msra.mxu0 %v265
      %432 = vmatprep.subr.mxu0 0.0
      %433 = vmatpush1.msra.mxu0 %v266
      %434 = vmatprep.mubr.f32.mxu0 %v172
      %435 = vmatmul.mubr.f32.gmra.mrb[0].mxu0 %v171
      %v436 = vpop.f32.mrb[0].mxu0
      %v437 = vadd.f32 %v368, %v436
      %v438 = vpop.f32.mrb[0].mxu0
      %439 = vmatprep.mubr.f32.mxu0 %v180
      %440 = vmatmul.mubr.f32.gmra.mrb[0].mxu0 %v179
      %v441 = vpop.f32.mrb[0].mxu0
      %v442 = vadd.f32 %v368, %v441
      %v443 = vpop.f32.mrb[0].mxu0
      %444 = vmatprep.mubr.f32.mxu0 %v188
      %445 = vmatmul.mubr.f32.gmra.mrb[0].mxu0 %v187
      %v446 = vpop.f32.mrb[0].mxu0
      %v447 = vadd.f32 %v368, %v446
      %v448 = vpop.f32.mrb[0].mxu0
      %449 = vmatprep.mubr.f32.mxu0 %v196
      %450 = vmatmul.mubr.f32.gmra.mrb[0].mxu0 %v195
      %v451 = vpop.f32.mrb[0].mxu0
      %v452 = vadd.f32 %v368, %v451
      %v453 = vpop.f32.mrb[0].mxu0
      %454 = vmatprep.mubr.f32.mxu0 %v204
      %455 = vmatmul.mubr.f32.gmra.mrb[0].mxu0 %v203
      %v456 = vpop.f32.mrb[0].mxu0
      %v457 = vadd.f32 %v368, %v456
      %v458 = vpop.f32.mrb[0].mxu0
      %459 = vmatprep.mubr.f32.mxu0 %v212
      %460 = vmatmul.mubr.f32.gmra.mrb[0].mxu0 %v211
      %v461 = vpop.f32.mrb[0].mxu0
      %v462 = vadd.f32 %v368, %v461
      %v463 = vpop.f32.mrb[0].mxu0
      %464 = vmatprep.mubr.f32.mxu0 %v220
      %465 = vmatmul.mubr.f32.gmra.mrb[0].mxu0 %v219
      %v466 = vpop.f32.mrb[0].mxu0
      %v467 = vadd.f32 %v368, %v466
      %v468 = vpop.f32.mrb[0].mxu0
      %469 = vmatprep.mubr.f32.mxu0 %v228
      %470 = vmatmul.mubr.f32.gmra.mrb[0].mxu0 %v227
      %v471 = vpop.f32.mrb[0].mxu0
      %v472 = vadd.f32 %v368, %v471
      %v473 = vpop.f32.mrb[0].mxu0
      %474 = vdwg.mxu0
      %475 = vmatprep.subr.mxu0 0.0
      %476 = vmatpush1.msra.mxu0 %v267
      %477 = vmatprep.subr.mxu0 0.0
      %478 = vmatpush1.msra.mxu0 %v268
      %479 = vmatprep.subr.mxu0 0.0
      %480 = vmatpush1.msra.mxu0 %v269
      %481 = vmatprep.subr.mxu0 0.0
      %482 = vmatpush1.msra.mxu0 %v270
      %483 = vmatprep.subr.mxu0 0.0
      %484 = vmatpush1.msra.mxu0 %v271
      %485 = vmatprep.subr.mxu0 0.0
      %486 = vmatpush1.msra.mxu0 %v272
      %487 = vmatprep.subr.mxu0 0.0
      %488 = vmatpush1.msra.mxu0 %v273
      %489 = vmatprep.subr.mxu0 0.0
      %490 = vmatpush1.msra.mxu0 %v274
      %491 = vmatprep.subr.mxu0 0.0
      %492 = vmatpush1.msra.mxu0 %v275
      %493 = vmatprep.subr.mxu0 0.0
      %494 = vmatpush1.msra.mxu0 %v276
      %495 = vmatprep.subr.mxu0 0.0
      %496 = vmatpush1.msra.mxu0 %v277
      %497 = vmatprep.subr.mxu0 0.0
      %498 = vmatpush1.msra.mxu0 %v278
      %499 = vmatprep.subr.mxu0 0.0
      %500 = vmatpush1.msra.mxu0 %v279
      %501 = vmatprep.subr.mxu0 0.0
      %502 = vmatpush1.msra.mxu0 %v280
      %503 = vmatprep.subr.mxu0 0.0
      %504 = vmatpush1.msra.mxu0 %v281
      %505 = vmatprep.subr.mxu0 0.0
      %506 = vmatpush1.msra.mxu0 %v282
      %507 = vmatprep.subr.mxu0 0.0
      %508 = vmatpush1.msra.mxu0 %v283
      %509 = vmatprep.subr.mxu0 0.0
      %510 = vmatpush1.msra.mxu0 %v284
      %511 = vmatprep.subr.mxu0 0.0
      %512 = vmatpush1.msra.mxu0 %v285
      %513 = vmatprep.subr.mxu0 0.0
      %514 = vmatpush1.msra.mxu0 %v286
      %515 = vmatprep.subr.mxu0 0.0
      %516 = vmatpush1.msra.mxu0 %v287
      %517 = vmatprep.subr.mxu0 0.0
      %518 = vmatpush1.msra.mxu0 %v288
      %519 = vmatprep.subr.mxu0 0.0
      %520 = vmatpush1.msra.mxu0 %v289
      %521 = vmatprep.subr.mxu0 0.0
      %522 = vmatpush1.msra.mxu0 %v290
      %523 = vmatprep.subr.mxu0 0.0
      %524 = vmatpush1.msra.mxu0 %v291
      %525 = vmatprep.subr.mxu0 0.0
      %526 = vmatpush1.msra.mxu0 %v292
      %527 = vmatprep.subr.mxu0 0.0
      %528 = vmatpush1.msra.mxu0 %v293
      %529 = vmatprep.subr.mxu0 0.0
      %530 = vmatpush1.msra.mxu0 %v294
      %531 = vmatprep.subr.mxu0 0.0
      %532 = vmatpush1.msra.mxu0 %v295
      %533 = vmatprep.subr.mxu0 0.0
      %534 = vmatpush1.msra.mxu0 %v296
      %535 = vmatprep.subr.mxu0 0.0
      %536 = vmatpush1.msra.mxu0 %v297
      %537 = vmatprep.subr.mxu0 0.0
      %538 = vmatpush1.msra.mxu0 %v298
      %539 = vmatprep.mubr.f32.mxu0 %v174
      %540 = vmatmul.mubr.f32.gmra.mrb[0].mxu0 %v173
      %v541 = vpop.f32.mrb[0].mxu0
      %v542 = vadd.f32 %v437, %v541
      %v543 = vpop.f32.mrb[0].mxu0
      %544 = vmatprep.mubr.f32.mxu0 %v182
      %545 = vmatmul.mubr.f32.gmra.mrb[0].mxu0 %v181
      %v546 = vpop.f32.mrb[0].mxu0
      %v547 = vadd.f32 %v442, %v546
      %v548 = vpop.f32.mrb[0].mxu0
      %549 = vmatprep.mubr.f32.mxu0 %v190
      %550 = vmatmul.mubr.f32.gmra.mrb[0].mxu0 %v189
      %v551 = vpop.f32.mrb[0].mxu0
      %v552 = vadd.f32 %v447, %v551
      %v553 = vpop.f32.mrb[0].mxu0
      %554 = vmatprep.mubr.f32.mxu0 %v198
      %555 = vmatmul.mubr.f32.gmra.mrb[0].mxu0 %v197
      %v556 = vpop.f32.mrb[0].mxu0
      %v557 = vadd.f32 %v452, %v556
      %v558 = vpop.f32.mrb[0].mxu0
      %559 = vmatprep.mubr.f32.mxu0 %v206
      %560 = vmatmul.mubr.f32.gmra.mrb[0].mxu0 %v205
      %v561 = vpop.f32.mrb[0].mxu0
      %v562 = vadd.f32 %v457, %v561
      %v563 = vpop.f32.mrb[0].mxu0
      %564 = vmatprep.mubr.f32.mxu0 %v214
      %565 = vmatmul.mubr.f32.gmra.mrb[0].mxu0 %v213
      %v566 = vpop.f32.mrb[0].mxu0
      %v567 = vadd.f32 %v462, %v566
      %v568 = vpop.f32.mrb[0].mxu0
      %569 = vmatprep.mubr.f32.mxu0 %v222
      %570 = vmatmul.mubr.f32.gmra.mrb[0].mxu0 %v221
      %v571 = vpop.f32.mrb[0].mxu0
      %v572 = vadd.f32 %v467, %v571
      %v573 = vpop.f32.mrb[0].mxu0
      %574 = vmatprep.mubr.f32.mxu0 %v230
      %575 = vmatmul.mubr.f32.gmra.mrb[0].mxu0 %v229
      %v576 = vpop.f32.mrb[0].mxu0
      %v577 = vadd.f32 %v472, %v576
      %v578 = vpop.f32.mrb[0].mxu0
      %579 = vdwg.mxu0
      %580 = vmatprep.subr.mxu0 0.0
      %581 = vmatpush1.msra.mxu0 %v299
      %582 = vmatprep.subr.mxu0 0.0
      %583 = vmatpush1.msra.mxu0 %v300
      %584 = vmatprep.subr.mxu0 0.0
      %585 = vmatpush1.msra.mxu0 %v301
      %586 = vmatprep.subr.mxu0 0.0
      %587 = vmatpush1.msra.mxu0 %v302
      %588 = vmatprep.subr.mxu0 0.0
      %589 = vmatpush1.msra.mxu0 %v303
      %590 = vmatprep.subr.mxu0 0.0
      %591 = vmatpush1.msra.mxu0 %v304
      %592 = vmatprep.subr.mxu0 0.0
      %593 = vmatpush1.msra.mxu0 %v305
      %594 = vmatprep.subr.mxu0 0.0
      %595 = vmatpush1.msra.mxu0 %v306
      %596 = vmatprep.subr.mxu0 0.0
      %597 = vmatpush1.msra.mxu0 %v307
      %598 = vmatprep.subr.mxu0 0.0
      %599 = vmatpush1.msra.mxu0 %v308
      %600 = vmatprep.subr.mxu0 0.0
      %601 = vmatpush1.msra.mxu0 %v309
      %602 = vmatprep.subr.mxu0 0.0
      %603 = vmatpush1.msra.mxu0 %v310
      %604 = vmatprep.subr.mxu0 0.0
      %605 = vmatpush1.msra.mxu0 %v311
      %606 = vmatprep.subr.mxu0 0.0
      %607 = vmatpush1.msra.mxu0 %v312
      %608 = vmatprep.subr.mxu0 0.0
      %609 = vmatpush1.msra.mxu0 %v313
      %610 = vmatprep.subr.mxu0 0.0
      %611 = vmatpush1.msra.mxu0 %v314
      %612 = vmatprep.subr.mxu0 0.0
      %613 = vmatpush1.msra.mxu0 %v315
      %614 = vmatprep.subr.mxu0 0.0
      %615 = vmatpush1.msra.mxu0 %v316
      %616 = vmatprep.subr.mxu0 0.0
      %617 = vmatpush1.msra.mxu0 %v317
      %618 = vmatprep.subr.mxu0 0.0
      %619 = vmatpush1.msra.mxu0 %v318
      %620 = vmatprep.subr.mxu0 0.0
      %621 = vmatpush1.msra.mxu0 %v319
      %622 = vmatprep.subr.mxu0 0.0
      %623 = vmatpush1.msra.mxu0 %v320
      %624 = vmatprep.subr.mxu0 0.0
      %625 = vmatpush1.msra.mxu0 %v321
      %626 = vmatprep.subr.mxu0 0.0
      %627 = vmatpush1.msra.mxu0 %v322
      %628 = vmatprep.subr.mxu0 0.0
      %629 = vmatpush1.msra.mxu0 %v323
      %630 = vmatprep.subr.mxu0 0.0
      %631 = vmatpush1.msra.mxu0 %v324
      %632 = vmatprep.subr.mxu0 0.0
      %633 = vmatpush1.msra.mxu0 %v325
      %634 = vmatprep.subr.mxu0 0.0
      %635 = vmatpush1.msra.mxu0 %v326
      %636 = vmatprep.subr.mxu0 0.0
      %637 = vmatpush1.msra.mxu0 %v327
      %638 = vmatprep.subr.mxu0 0.0
      %639 = vmatpush1.msra.mxu0 %v328
      %640 = vmatprep.subr.mxu0 0.0
      %641 = vmatpush1.msra.mxu0 %v329
      %642 = vmatprep.subr.mxu0 0.0
      %643 = vmatpush1.msra.mxu0 %v330
      %644 = vmatprep.mubr.f32.mxu0 %v176
      %645 = vmatmul.mubr.f32.gmra.mrb[0].mxu0 %v175
      %v646 = vpop.f32.mrb[0].mxu0
      %v647 = vadd.f32 %v542, %v646
      %v648 = vpop.f32.mrb[0].mxu0
      %649 = vmatprep.mubr.f32.mxu0 %v184
      %650 = vmatmul.mubr.f32.gmra.mrb[0].mxu0 %v183
      %v651 = vpop.f32.mrb[0].mxu0
      %v652 = vadd.f32 %v547, %v651
      %v653 = vpop.f32.mrb[0].mxu0
      %654 = vmatprep.mubr.f32.mxu0 %v192
      %655 = vmatmul.mubr.f32.gmra.mrb[0].mxu0 %v191
      %v656 = vpop.f32.mrb[0].mxu0
      %v657 = vadd.f32 %v552, %v656
      %v658 = vpop.f32.mrb[0].mxu0
      %659 = vmatprep.mubr.f32.mxu0 %v200
      %660 = vmatmul.mubr.f32.gmra.mrb[0].mxu0 %v199
      %v661 = vpop.f32.mrb[0].mxu0
      %v662 = vadd.f32 %v557, %v661
      %v663 = vpop.f32.mrb[0].mxu0
      %664 = vmatprep.mubr.f32.mxu0 %v208
      %665 = vmatmul.mubr.f32.gmra.mrb[0].mxu0 %v207
      %v666 = vpop.f32.mrb[0].mxu0
      %v667 = vadd.f32 %v562, %v666
      %v668 = vpop.f32.mrb[0].mxu0
      %669 = vmatprep.mubr.f32.mxu0 %v216
      %670 = vmatmul.mubr.f32.gmra.mrb[0].mxu0 %v215
      %v671 = vpop.f32.mrb[0].mxu0
      %v672 = vadd.f32 %v567, %v671
      %v673 = vpop.f32.mrb[0].mxu0
      %674 = vmatprep.mubr.f32.mxu0 %v224
      %675 = vmatmul.mubr.f32.gmra.mrb[0].mxu0 %v223
      %v676 = vpop.f32.mrb[0].mxu0
      %v677 = vadd.f32 %v572, %v676
      %v678 = vpop.f32.mrb[0].mxu0
      %679 = vmatprep.mubr.f32.mxu0 %v232
      %680 = vmatmul.mubr.f32.gmra.mrb[0].mxu0 %v231
      %v681 = vpop.f32.mrb[0].mxu0
      %v682 = vadd.f32 %v577, %v681
      %v683 = vpop.f32.mrb[0].mxu0
      %684 = vdwg.mxu0
      %685 = vmatprep.subr.mxu0 0.0
      %686 = vmatpush1.msra.mxu0 %v331
      %687 = vmatprep.subr.mxu0 0.0
      %688 = vmatpush1.msra.mxu0 %v332
      %689 = vmatprep.subr.mxu0 0.0
      %690 = vmatpush1.msra.mxu0 %v333
      %691 = vmatprep.subr.mxu0 0.0
      %692 = vmatpush1.msra.mxu0 %v334
      %693 = vmatprep.subr.mxu0 0.0
      %694 = vmatpush1.msra.mxu0 %v335
      %695 = vmatprep.subr.mxu0 0.0
      %696 = vmatpush1.msra.mxu0 %v336
      %697 = vmatprep.subr.mxu0 0.0
      %698 = vmatpush1.msra.mxu0 %v337
      %699 = vmatprep.subr.mxu0 0.0
      %700 = vmatpush1.msra.mxu0 %v338
      %701 = vmatprep.subr.mxu0 0.0
      %702 = vmatpush1.msra.mxu0 %v339
      %703 = vmatprep.subr.mxu0 0.0
      %704 = vmatpush1.msra.mxu0 %v340
      %705 = vmatprep.subr.mxu0 0.0
      %706 = vmatpush1.msra.mxu0 %v341
      %707 = vmatprep.subr.mxu0 0.0
      %708 = vmatpush1.msra.mxu0 %v342
      %709 = vmatprep.subr.mxu0 0.0
      %710 = vmatpush1.msra.mxu0 %v343
      %711 = vmatprep.subr.mxu0 0.0
      %712 = vmatpush1.msra.mxu0 %v344
      %713 = vmatprep.subr.mxu0 0.0
      %714 = vmatpush1.msra.mxu0 %v345
      %715 = vmatprep.subr.mxu0 0.0
      %716 = vmatpush1.msra.mxu0 %v346
      %717 = vmatprep.subr.mxu0 0.0
      %718 = vmatpush1.msra.mxu0 %v347
      %719 = vmatprep.subr.mxu0 0.0
      %720 = vmatpush1.msra.mxu0 %v348
      %721 = vmatprep.subr.mxu0 0.0
      %722 = vmatpush1.msra.mxu0 %v349
      %723 = vmatprep.subr.mxu0 0.0
      %724 = vmatpush1.msra.mxu0 %v350
      %725 = vmatprep.subr.mxu0 0.0
      %726 = vmatpush1.msra.mxu0 %v351
      %727 = vmatprep.subr.mxu0 0.0
      %728 = vmatpush1.msra.mxu0 %v352
      %729 = vmatprep.subr.mxu0 0.0
      %730 = vmatpush1.msra.mxu0 %v353
      %731 = vmatprep.subr.mxu0 0.0
      %732 = vmatpush1.msra.mxu0 %v354
      %733 = vmatprep.subr.mxu0 0.0
      %734 = vmatpush1.msra.mxu0 %v355
      %735 = vmatprep.subr.mxu0 0.0
      %736 = vmatpush1.msra.mxu0 %v356
      %737 = vmatprep.subr.mxu0 0.0
      %738 = vmatpush1.msra.mxu0 %v357
      %739 = vmatprep.subr.mxu0 0.0
      %740 = vmatpush1.msra.mxu0 %v358
      %741 = vmatprep.subr.mxu0 0.0
      %742 = vmatpush1.msra.mxu0 %v359
      %743 = vmatprep.subr.mxu0 0.0
      %744 = vmatpush1.msra.mxu0 %v360
      %745 = vmatprep.subr.mxu0 0.0
      %746 = vmatpush1.msra.mxu0 %v361
      %747 = vmatprep.subr.mxu0 0.0
      %748 = vmatpush1.msra.mxu0 %v362
      %749 = vmatprep.mubr.f32.mxu0 %v178
      %750 = vmatmul.mubr.f32.gmra.mrb[0].mxu0 %v177
      %v751 = vpop.f32.mrb[0].mxu0
      %v752 = vadd.f32 %v647, %v751
      %v753 = vpop.f32.mrb[0].mxu0
      %754 = vmatprep.mubr.f32.mxu0 %v186
      %755 = vmatmul.mubr.f32.gmra.mrb[0].mxu0 %v185
      %v756 = vpop.f32.mrb[0].mxu0
      %v757 = vadd.f32 %v652, %v756
      %v758 = vpop.f32.mrb[0].mxu0
      %759 = vmatprep.mubr.f32.mxu0 %v194
      %760 = vmatmul.mubr.f32.gmra.mrb[0].mxu0 %v193
      %v761 = vpop.f32.mrb[0].mxu0
      %v762 = vadd.f32 %v657, %v761
      %v763 = vpop.f32.mrb[0].mxu0
      %764 = vmatprep.mubr.f32.mxu0 %v202
      %765 = vmatmul.mubr.f32.gmra.mrb[0].mxu0 %v201
      %v766 = vpop.f32.mrb[0].mxu0
      %v767 = vadd.f32 %v662, %v766
      %v768 = vpop.f32.mrb[0].mxu0
      %769 = vmatprep.mubr.f32.mxu0 %v210
      %770 = vmatmul.mubr.f32.gmra.mrb[0].mxu0 %v209
      %v771 = vpop.f32.mrb[0].mxu0
      %v772 = vadd.f32 %v667, %v771
      %v773 = vpop.f32.mrb[0].mxu0
      %774 = vmatprep.mubr.f32.mxu0 %v218
      %775 = vmatmul.mubr.f32.gmra.mrb[0].mxu0 %v217
      %v776 = vpop.f32.mrb[0].mxu0
      %v777 = vadd.f32 %v672, %v776
      %v778 = vpop.f32.mrb[0].mxu0
      %779 = vmatprep.mubr.f32.mxu0 %v226
      %780 = vmatmul.mubr.f32.gmra.mrb[0].mxu0 %v225
      %v781 = vpop.f32.mrb[0].mxu0
      %v782 = vadd.f32 %v677, %v781
      %v783 = vpop.f32.mrb[0].mxu0
      %784 = vmatprep.mubr.f32.mxu0 %v234
      %785 = vmatmul.mubr.f32.gmra.mrb[0].mxu0 %v233
      %v786 = vpop.f32.mrb[0].mxu0
      %v787 = vadd.f32 %v682, %v786
      %v788 = vpop.f32.mrb[0].mxu0
      %789 = vdwg.mxu0
      %v790 = vadd.f32 %v752, %v757
      %v791 = vadd.f32 %v790, %v762
      %v792 = vadd.f32 %v791, %v767
      %v793 = vadd.f32 %v792, %v772
      %v794 = vadd.f32 %v793, %v777
      %v795 = vadd.f32 %v794, %v782
      %v796 = vadd.f32 %v795, %v787
      %v797 = vrot.slane %v796, 4
      %v798 = vadd.f32 %v796, %v797
      %v799 = vrot.slane %v798, 2
      %v800 = vadd.f32 %v798, %v799
      %v801 = vrot.slane %v800, 1
      %v802 = vadd.f32 %v800, %v801
      %v803 = vrcp.pop 64.0
      %v804 = vmul.f32 %v802, %v803
      %v805 = vsub.f32 %v752, %v804
      %v806 = vsub.f32 %v757, %v804
      %v807 = vsub.f32 %v762, %v804
      %v808 = vsub.f32 %v767, %v804
      %v809 = vsub.f32 %v772, %v804
      %v810 = vsub.f32 %v777, %v804
      %v811 = vsub.f32 %v782, %v804
      %v812 = vsub.f32 %v787, %v804
      %v813 = vmul.f32 %v805, %v805
      %v814 = vmul.f32 %v806, %v806
      %v815 = vmul.f32 %v807, %v807
      %v816 = vmul.f32 %v808, %v808
      %v817 = vmul.f32 %v809, %v809
      %v818 = vmul.f32 %v810, %v810
      %v819 = vmul.f32 %v811, %v811
      %v820 = vmul.f32 %v812, %v812
      %v821 = vadd.f32 %v813, %v814
      %v822 = vadd.f32 %v821, %v815
      %v823 = vadd.f32 %v822, %v816
      %v824 = vadd.f32 %v823, %v817
      %v825 = vadd.f32 %v824, %v818
      %v826 = vadd.f32 %v825, %v819
      %v827 = vadd.f32 %v826, %v820
      %v828 = vrot.slane %v827, 4
      %v829 = vadd.f32 %v827, %v828
      %v830 = vrot.slane %v829, 2
      %v831 = vadd.f32 %v829, %v830
      %v832 = vrot.slane %v831, 1
      %v833 = vadd.f32 %v831, %v832
      %v834 = vmul.f32 %v833, %v803
      %v835 = vadd.f32 %v834, 1e-05
      %v836 = vrsqrt.pop %v835
      %v837 = vmul.f32 %v805, %v836
      %v838 = vmul.f32 %v806, %v836
      %v839 = vmul.f32 %v807, %v836
      %v840 = vmul.f32 %v808, %v836
      %v841 = vmul.f32 %v809, %v836
      %v842 = vmul.f32 %v810, %v836
      %v843 = vmul.f32 %v811, %v836
      %v844 = vmul.f32 %v812, %v836
      %vm845 = vcmp.ge.f32.partialorder %v837, 0.0
      %vm846 = vcmp.ge.f32.partialorder %v838, 0.0
      %vm847 = vcmp.ge.f32.partialorder %v839, 0.0
      %vm848 = vcmp.ge.f32.partialorder %v840, 0.0
      %vm849 = vcmp.ge.f32.partialorder %v841, 0.0
      %vm850 = vcmp.ge.f32.partialorder %v842, 0.0
      %vm851 = vcmp.ge.f32.partialorder %v843, 0.0
      %vm852 = vcmp.ge.f32.partialorder %v844, 0.0
      %v853 = vmul.f32 %v837, 0.2
      %v854 = vmul.f32 %v838, 0.2
      %v855 = vmul.f32 %v839, 0.2
      %v856 = vmul.f32 %v840, 0.2
      %v857 = vmul.f32 %v841, 0.2
      %v858 = vmul.f32 %v842, 0.2
      %v859 = vmul.f32 %v843, 0.2
      %v860 = vmul.f32 %v844, 0.2
      %v861 = vsel %vm845, %v837, %v853
      %v862 = vsel %vm846, %v838, %v854
      %v863 = vsel %vm847, %v839, %v855
      %v864 = vsel %vm848, %v840, %v856
      %v865 = vsel %vm849, %v841, %v857
      %v866 = vsel %vm850, %v842, %v858
      %v867 = vsel %vm851, %v843, %v859
      %v868 = vsel %vm852, %v844, %v860
      %869 = vst [vmem:[%s170] sm:$0xff] %v861
      %870 = vst [vmem:[%s170 + $0x8] sm:$0xff] %v862
      %871 = vst [vmem:[%s170 + $0x10] sm:$0xff] %v863
      %872 = vst [vmem:[%s170 + $0x18] sm:$0xff] %v864
      %873 = vst [vmem:[%s170 + $0x20] sm:$0xff] %v865
      %874 = vst [vmem:[%s170 + $0x28] sm:$0xff] %v866
      %875 = vst [vmem:[%s170 + $0x30] sm:$0xff] %v867
      %876 = vst [vmem:[%s170 + $0x38] sm:$0xff] %v868
      %p877 = scmp.lt.s32.totalorder %s14, 1
      %s878 = scalar_select %p877, %s14, 1
      %s879 = smul.addr %s878, 8
      %s880 = smul.addr %s879, 8
      %s881 = scalar_lea.vmem %s3, %s880
      // Predicated region
      $region33: #{discriminator_forward.6} parent=31 // pred_check
        %p882 = pneg %p100
      $region34: #{discriminator_forward.6} parent=31 // pred_check_branch
        %884 = sbr.rel (%p882) target = $region36
      $region35: #{discriminator_forward.6} parent=31 // pred_region
        _
      $region36: #{discriminator_forward.6} parent=31 // pred_fallthru
        _
    $region32: #{discriminator_forward.6} parent=5 // pred_fallthru
      _
    %p885 = scmp.le.s32.totalorder 2, %s9
    // Predicated region
    $region37: #{discriminator_forward.6} parent=5 // pred_check
      %p886 = pneg %p885
    $region38: #{discriminator_forward.6} parent=5 // pred_check_branch
      %888 = sbr.rel (%p886) target = $region40
    $region39: #{discriminator_forward.6} parent=5 // pred_region
      %s889 = ssub.s32 %s9, 2
      // Predicated region
      $region41: #{discriminator_forward.6} parent=39 // pred_check
        %p890 = pneg %p106
      $region42: #{discriminator_forward.6} parent=39 // pred_check_branch
        %892 = sbr.rel (%p890) target = $region44
      $region43: #{discriminator_forward.6} parent=39 // pred_region
        %p893 = scmp.lt.s32.totalorder %s15, 1
        %s894 = scalar_select %p893, %s15, 1
        %s895 = smul.addr %s894, 8
        %s896 = smul.addr %s895, 8
        %s897 = scalar_lea.vmem %s3, %s896
      $region44: #{discriminator_forward.6} parent=39 // pred_fallthru
        _
    $region40: #{discriminator_forward.6} parent=5 // pred_fallthru
      _
  $region6: #{discriminator_forward.6} parent=0 // loop_footer
    %s13 = sadd.s32 1, %s9
  $region7: #{discriminator_forward.6} parent=0 // loop_footer_branch
    %8 = sbr.rel target = $region3
  $region8: #{discriminator_forward.6} parent=0 // loop_exit
    _

// kernel: discriminator_forward.7
$region0: #{discriminator_forward.7}
  #allocation0 [shape = 'u32[]', space=smem, size = 0x4, offset = 0x4, fixed_abs, tag = 'smem constant byte address 0x4 - core index']
  #allocation1 [shape = 'u32[144,128]{1,0:T(1,128)}', space=vmem, size = 0x12000, scoped, tag = 'internal scratch']
  %s0 = inlined_call_operand.vmem [shape: f32[2,16,2048], index: 0, kind: input, shape index: {}]
  %s1 = inlined_call_operand.vmem [shape: f32[2048,256], index: 1, kind: input, shape index: {}]
  %s2 = inlined_call_operand.vmem [shape: f32[1,256], index: 2, kind: input, shape index: {}]
  %s3 = inlined_call_operand.vmem [shape: f32[2,16,256], index: 3, kind: output, shape index: {}]
  %s4 = sld [smem:[#allocation0]]
  $region45: #{discriminator_forward.7} parent=0
    _
  %s6 = ssub.s32 1, %s4
  %s7 = scalar_select 0, %s6, %s4
  loop: start=0, step=1, limit=4
  $region2: #{discriminator_forward.7} parent=0 // loop_pre_header
    _
  $region3: #{discriminator_forward.7} parent=0 // loop_header
    %s9 = sphi 0, %s13
    %p10 = scmp.ge.s32.totalorder %s9, 4
    %s19 = sphi 0, %s21
    %s22 = sphi 0, %s19
    %s23 = sphi 0, %s22
    %s39 = sphi 0, %s23
    %s43 = sphi 0, %s43
    %s45 = sphi 0, %s43
    %s46 = sphi 0, %s45
    %s60 = sphi 0, %s46
    %s64 = sphi 0, %s64
    %s66 = sphi 0, %s64
    %s67 = sphi 0, %s66
    %s81 = sphi 0, %s67
    %s87 = sphi 0, %s89
    %s90 = sphi 0, %s87
    %s91 = sphi 0, %s90
    %s107 = sphi 0, %s91
  $region4: #{discriminator_forward.7} parent=0 // loop_header_branch
    %12 = sbr.rel (%p10) target = $region8
  $region5: #{discriminator_forward.7} parent=0 // loop_body
    %s14 = ssub.s32 %s9, 1
    %s15 = ssub.s32 %s9, 2
    %s16 = sadd.s32 %s9, 1
    %s17 = ssub.s32 %s9, %s16
    %p18 = scmp.eq.s32.totalorder %s17, 0
    %s20 = sadd.s32 %s19, 1
    %s21 = scalar_select %p18, %s19, %s20
    %p24 = pneg %p18
    %p25 = scmp.eq.s32.totalorder %s9, 1
    %p26 = por %p24, %p25
    %p27 = scmp.ne.s32.totalorder %s19, %s22
    %p28 = scmp.eq.s32.totalorder %s9, 0
    %p29 = por %p27, %p28
    %p30 = scmp.ne.s32.totalorder %s19, %s22
    %p31 = scmp.eq.s32.totalorder %s14, 1
    %p32 = por %p30, %p31
    %p33 = scmp.ne.s32.totalorder %s22, %s23
    %p34 = scmp.eq.s32.totalorder %s14, 0
    %p35 = por %p33, %p34
    %p36 = scmp.ne.s32.totalorder %s22, %s23
    %p37 = scmp.eq.s32.totalorder %s15, 1
    %p38 = por %p36, %p37
    %p40 = scmp.ne.s32.totalorder %s23, %s39
    %p41 = scmp.eq.s32.totalorder %s15, 0
    %p42 = por %p40, %p41
    %s44 = sadd.s32 %s43, 1
    %p47 = scmp.eq.s32.totalorder %s9, 1
    %p48 = scmp.ne.s32.totalorder %s43, %s45
    %p49 = scmp.eq.s32.totalorder %s9, 0
    %p50 = por %p48, %p49
    %p51 = scmp.ne.s32.totalorder %s43, %s45
    %p52 = scmp.eq.s32.totalorder %s14, 1
    %p53 = por %p51, %p52
    %p54 = scmp.ne.s32.totalorder %s45, %s46
    %p55 = scmp.eq.s32.totalorder %s14, 0
    %p56 = por %p54, %p55
    %p57 = scmp.ne.s32.totalorder %s45, %s46
    %p58 = scmp.eq.s32.totalorder %s15, 1
    %p59 = por %p57, %p58
    %p61 = scmp.ne.s32.totalorder %s46, %s60
    %p62 = scmp.eq.s32.totalorder %s15, 0
    %p63 = por %p61, %p62
    %s65 = sadd.s32 %s64, 1
    %p68 = scmp.eq.s32.totalorder %s9, 1
    %p69 = scmp.ne.s32.totalorder %s64, %s66
    %p70 = scmp.eq.s32.totalorder %s9, 0
    %p71 = por %p69, %p70
    %p72 = scmp.ne.s32.totalorder %s64, %s66
    %p73 = scmp.eq.s32.totalorder %s14, 1
    %p74 = por %p72, %p73
    %p75 = scmp.ne.s32.totalorder %s66, %s67
    %p76 = scmp.eq.s32.totalorder %s14, 0
    %p77 = por %p75, %p76
    %p78 = scmp.ne.s32.totalorder %s66, %s67
    %p79 = scmp.eq.s32.totalorder %s15, 1
    %p80 = por %p78, %p79
    %p82 = scmp.ne.s32.totalorder %s67, %s81
    %p83 = scmp.eq.s32.totalorder %s15, 0
    %p84 = por %p82, %p83
    %s85 = ssub.s32 %s9, %s16
    %p86 = scmp.eq.s32.totalorder %s85, 0
    %s88 = sadd.s32 %s87, 1
    %s89 = scalar_select %p86, %s87, %s88
    %p92 = pneg %p86
    %p93 = scmp.eq.s32.totalorder %s9, 1
    %p94 = por %p92, %p93
    %p95 = scmp.ne.s32.totalorder %s87, %s90
    %p96 = scmp.eq.s32.totalorder %s9, 0
    %p97 = por %p95, %p96
    %p98 = scmp.ne.s32.totalorder %s87, %s90
    %p99 = scmp.eq.s32.totalorder %s14, 1
    %p100 = por %p98, %p99
    %p101 = scmp.ne.s32.totalorder %s90, %s91
    %p102 = scmp.eq.s32.totalorder %s14, 0
    %p103 = por %p101, %p102
    %p104 = scmp.ne.s32.totalorder %s90, %s91
    %p105 = scmp.eq.s32.totalorder %s15, 1
    %p106 = por %p104, %p105
    %p108 = scmp.ne.s32.totalorder %s91, %s107
    %p109 = scmp.eq.s32.totalorder %s15, 0
    %p110 = por %p108, %p109
    %p111 = scmp.le.s32.totalorder 1, %s9
    %p112 = scmp.lt.s32.totalorder %s9, 3
    %p113 = pnand %p111, %p112
    %p114 = pneg %p113
    // Predicated region
    $region9: #{discriminator_forward.7} parent=5 // pred_check
      _
    $region10: #{discriminator_forward.7} parent=5 // pred_check_branch
      %116 = sbr.rel (%p113) target = $region12
    $region11: #{discriminator_forward.7} parent=5 // pred_region
      %s117 = ssub.s32 %s9, 1
      // Predicated region
      $region13: #{discriminator_forward.7} parent=11 // pred_check
        %p118 = pneg %p56
      $region14: #{discriminator_forward.7} parent=11 // pred_check_branch
        %120 = sbr.rel (%p118) target = $region16
      $region15: #{discriminator_forward.7} parent=11 // pred_region
        _
      $region16: #{discriminator_forward.7} parent=11 // pred_fallthru
        _
      // Predicated region
      $region17: #{discriminator_forward.7} parent=11 // pred_check
        %p121 = pneg %p77
      $region18: #{discriminator_forward.7} parent=11 // pred_check_branch
        %123 = sbr.rel (%p121) target = $region20
      $region19: #{discriminator_forward.7} parent=11 // pred_region
        _
      $region20: #{discriminator_forward.7} parent=11 // pred_fallthru
        _
    $region12: #{discriminator_forward.7} parent=5 // pred_fallthru
      _
    %p124 = scmp.lt.s32.totalorder %s9, 2
    // Predicated region
    $region21: #{discriminator_forward.7} parent=5 // pred_check
      %p125 = pneg %p124
    $region22: #{discriminator_forward.7} parent=5 // pred_check_branch
      %127 = sbr.rel (%p125) target = $region24
    $region23: #{discriminator_forward.7} parent=5 // pred_region
      // Predicated region
      $region25: #{discriminator_forward.7} parent=23 // pred_check
        %p128 = pneg %p29
      $region26: #{discriminator_forward.7} parent=23 // pred_check_branch
        %130 = sbr.rel (%p128) target = $region28
      $region27: #{discriminator_forward.7} parent=23 // pred_region
        %p131 = scmp.lt.s32.totalorder %s9, 1
        %s132 = scalar_select %p131, %s9, 1
        %s133 = smul.addr %s132, 32
        %s134 = smul.addr %s133, 8
        %s135 = scalar_lea.vmem %s0, %s134
      $region28: #{discriminator_forward.7} parent=23 // pred_fallthru
        _
    $region24: #{discriminator_forward.7} parent=5 // pred_fallthru
      _
    %p136 = scmp.le.s32.totalorder 1, %s9
    %p137 = scmp.lt.s32.totalorder %s9, 3
    %p138 = pnand %p136, %p137
    %p139 = pneg %p138
    // Predicated region
    $region29: #{discriminator_forward.7} parent=5 // pred_check
      _
    $region30: #{discriminator_forward.7} parent=5 // pred_check_branch
      %141 = sbr.rel (%p138) target = $region32
    $region31: #{discriminator_forward.7} parent=5 // pred_region
      %s142 = ssub.s32 %s9, 1
      %p143 = scmp.lt.s32.totalorder %s14, 1
      %s144 = scalar_select %p143, %s14, 1
      %s145 = smul.addr %s144, 32
      %s146 = smul.addr %s145, 8
      %s147 = scalar_lea.vmem %s0, %s146
      %p148 = pneg %p35
      %p149 = pneg %p32
      %p150 = pneg %p56
      %p151 = pneg %p53
      %p152 = pneg %p77
      %p153 = pneg %p74
      %p154 = pneg %p103
      %p155 = pneg %p100
      %p156 = scmp.lt.s32.totalorder %s14, 1
      %s157 = scalar_select %p156, %s14, 1
      %s158 = smul.addr %s157, 4
      %s159 = smul.addr %s158, 8
      %s160 = scalar_lea.vmem %s3, %s159
      %p161 = scmp.lt.s32.totalorder %s14, 1
      %s162 = scalar_select %p161, %s14, 1
      %s163 = smul.addr %s162, 32
      %s164 = smul.addr %s163, 8
      %s165 = scalar_lea.vmem %s0, %s164
      %p166 = scmp.lt.s32.totalorder %s14, 1
      %s167 = scalar_select %p166, %s14, 1
      %s168 = smul.addr %s167, 4
      %s169 = smul.addr %s168, 8
      %s170 = scalar_lea.vmem %s3, %s169
      %v171 = vld [vmem:[%s165] sm:$0xff]
      %v172 = vld [vmem:[%s165 + $0x8] sm:$0xff]
      %v173 = vld [vmem:[%s165 + $0x10] sm:$0xff]
      %v174 = vld [vmem:[%s165 + $0x18] sm:$0xff]
      %v175 = vld [vmem:[%s165 + $0x20] sm:$0xff]
      %v176 = vld [vmem:[%s165 + $0x28] sm:$0xff]
      %v177 = vld [vmem:[%s165 + $0x30] sm:$0xff]
      %v178 = vld [vmem:[%s165 + $0x38] sm:$0xff]
      %v179 = vld [vmem:[%s165 + $0x40] sm:$0xff]
      %v180 = vld [vmem:[%s165 + $0x48] sm:$0xff]
      %v181 = vld [vmem:[%s165 + $0x50] sm:$0xff]
      %v182 = vld [vmem:[%s165 + $0x58] sm:$0xff]
      %v183 = vld [vmem:[%s165 + $0x60] sm:$0xff]
      %v184 = vld [vmem:[%s165 + $0x68] sm:$0xff]
      %v185 = vld [vmem:[%s165 + $0x70] sm:$0xff]
      %v186 = vld [vmem:[%s165 + $0x78] sm:$0xff]
      %v187 = vld [vmem:[%s165 + $0x80] sm:$0xff]
      %v188 = vld [vmem:[%s165 + $0x88] sm:$0xff]
      %v189 = vld [vmem:[%s165 + $0x90] sm:$0xff]
      %v190 = vld [vmem:[%s165 + $0x98] sm:$0xff]
      %v191 = vld [vmem:[%s165 + $0xa0] sm:$0xff]
      %v192 = vld [vmem:[%s165 + $0xa8] sm:$0xff]
      %v193 = vld [vmem:[%s165 + $0xb0] sm:$0xff]
      %v194 = vld [vmem:[%s165 + $0xb8] sm:$0xff]
      %v195 = vld [vmem:[%s165 + $0xc0] sm:$0xff]
      %v196 = vld [vmem:[%s165 + $0xc8] sm:$0xff]
      %v197 = vld [vmem:[%s165 + $0xd0] sm:$0xff]
      %v198 = vld [vmem:[%s165 + $0xd8] sm:$0xff]
      %v199 = vld [vmem:[%s165 + $0xe0] sm:$0xff]
      %v200 = vld [vmem:[%s165 + $0xe8] sm:$0xff]
      %v201 = vld [vmem:[%s165 + $0xf0] sm:$0xff]
      %v202 = vld [vmem:[%s165 + $0xf8] sm:$0xff]
      %v203 = vld [vmem:[%s1] sm:$0xff]
      %v204 = vld [vmem:[%s1 + $0x8] sm:$0xff]
      %v205 = vld [vmem:[%s1 + $0x10] sm:$0xff]
      %v206 = vld [vmem:[%s1 + $0x18] sm:$0xff]
      %v207 = vld [vmem:[%s1 + $0x20] sm:$0xff]
      %v208 = vld [vmem:[%s1 + $0x28] sm:$0xff]
      %v209 = vld [vmem:[%s1 + $0x30] sm:$0xff]
      %v210 = vld [vmem:[%s1 + $0x38] sm:$0xff]
      %v211 = vld [vmem:[%s1 + $0x40] sm:$0xff]
      %v212 = vld [vmem:[%s1 + $0x48] sm:$0xff]
      %v213 = vld [vmem:[%s1 + $0x50] sm:$0xff]
      %v214 = vld [vmem:[%s1 + $0x58] sm:$0xff]
      %v215 = vld [vmem:[%s1 + $0x60] sm:$0xff]
      %v216 = vld [vmem:[%s1 + $0x68] sm:$0xff]
      %v217 = vld [vmem:[%s1 + $0x70] sm:$0xff]
      %v218 = vld [vmem:[%s1 + $0x78] sm:$0xff]
      %v219 = vld [vmem:[%s1 + $0x80] sm:$0xff]
      %v220 = vld [vmem:[%s1 + $0x88] sm:$0xff]
      %v221 = vld [vmem:[%s1 + $0x90] sm:$0xff]
      %v222 = vld [vmem:[%s1 + $0x98] sm:$0xff]
      %v223 = vld [vmem:[%s1 + $0xa0] sm:$0xff]
      %v224 = vld [vmem:[%s1 + $0xa8] sm:$0xff]
      %v225 = vld [vmem:[%s1 + $0xb0] sm:$0xff]
      %v226 = vld [vmem:[%s1 + $0xb8] sm:$0xff]
      %v227 = vld [vmem:[%s1 + $0xc0] sm:$0xff]
      %v228 = vld [vmem:[%s1 + $0xc8] sm:$0xff]
      %v229 = vld [vmem:[%s1 + $0xd0] sm:$0xff]
      %v230 = vld [vmem:[%s1 + $0xd8] sm:$0xff]
      %v231 = vld [vmem:[%s1 + $0xe0] sm:$0xff]
      %v232 = vld [vmem:[%s1 + $0xe8] sm:$0xff]
      %v233 = vld [vmem:[%s1 + $0xf0] sm:$0xff]
      %v234 = vld [vmem:[%s1 + $0xf8] sm:$0xff]
      %v235 = vld [vmem:[%s1 + $0x100] sm:$0xff]
      %v236 = vld [vmem:[%s1 + $0x108] sm:$0xff]
      %v237 = vld [vmem:[%s1 + $0x110] sm:$0xff]
      %v238 = vld [vmem:[%s1 + $0x118] sm:$0xff]
      %v239 = vld [vmem:[%s1 + $0x120] sm:$0xff]
      %v240 = vld [vmem:[%s1 + $0x128] sm:$0xff]
      %v241 = vld [vmem:[%s1 + $0x130] sm:$0xff]
      %v242 = vld [vmem:[%s1 + $0x138] sm:$0xff]
      %v243 = vld [vmem:[%s1 + $0x140] sm:$0xff]
      %v244 = vld [vmem:[%s1 + $0x148] sm:$0xff]
      %v245 = vld [vmem:[%s1 + $0x150] sm:$0xff]
      %v246 = vld [vmem:[%s1 + $0x158] sm:$0xff]
      %v247 = vld [vmem:[%s1 + $0x160] sm:$0xff]
      %v248 = vld [vmem:[%s1 + $0x168] sm:$0xff]
      %v249 = vld [vmem:[%s1 + $0x170] sm:$0xff]
      %v250 = vld [vmem:[%s1 + $0x178] sm:$0xff]
      %v251 = vld [vmem:[%s1 + $0x180] sm:$0xff]
      %v252 = vld [vmem:[%s1 + $0x188] sm:$0xff]
      %v253 = vld [vmem:[%s1 + $0x190] sm:$0xff]
      %v254 = vld [vmem:[%s1 + $0x198] sm:$0xff]
      %v255 = vld [vmem:[%s1 + $0x1a0] sm:$0xff]
      %v256 = vld [vmem:[%s1 + $0x1a8] sm:$0xff]
      %v257 = vld [vmem:[%s1 + $0x1b0] sm:$0xff]
      %v258 = vld [vmem:[%s1 + $0x1b8] sm:$0xff]
      %v259 = vld [vmem:[%s1 + $0x1c0] sm:$0xff]
      %v260 = vld [vmem:[%s1 + $0x1c8] sm:$0xff]
      %v261 = vld [vmem:[%s1 + $0x1d0] sm:$0xff]
      %v262 = vld [vmem:[%s1 + $0x1d8] sm:$0xff]
      %v263 = vld [vmem:[%s1 + $0x1e0] sm:$0xff]
      %v264 = vld [vmem:[%s1 + $0x1e8] sm:$0xff]
      %v265 = vld [vmem:[%s1 + $0x1f0] sm:$0xff]
      %v266 = vld [vmem:[%s1 + $0x1f8] sm:$0xff]
      %v267 = vld [vmem:[%s1 + $0x200] sm:$0xff]
      %v268 = vld [vmem:[%s1 + $0x208] sm:$0xff]
      %v269 = vld [vmem:[%s1 + $0x210] sm:$0xff]
      %v270 = vld [vmem:[%s1 + $0x218] sm:$0xff]
      %v271 = vld [vmem:[%s1 + $0x220] sm:$0xff]
      %v272 = vld [vmem:[%s1 + $0x228] sm:$0xff]
      %v273 = vld [vmem:[%s1 + $0x230] sm:$0xff]
      %v274 = vld [vmem:[%s1 + $0x238] sm:$0xff]
      %v275 = vld [vmem:[%s1 + $0x240] sm:$0xff]
      %v276 = vld [vmem:[%s1 + $0x248] sm:$0xff]
      %v277 = vld [vmem:[%s1 + $0x250] sm:$0xff]
      %v278 = vld [vmem:[%s1 + $0x258] sm:$0xff]
      %v279 = vld [vmem:[%s1 + $0x260] sm:$0xff]
      %v280 = vld [vmem:[%s1 + $0x268] sm:$0xff]
      %v281 = vld [vmem:[%s1 + $0x270] sm:$0xff]
      %v282 = vld [vmem:[%s1 + $0x278] sm:$0xff]
      %v283 = vld [vmem:[%s1 + $0x280] sm:$0xff]
      %v284 = vld [vmem:[%s1 + $0x288] sm:$0xff]
      %v285 = vld [vmem:[%s1 + $0x290] sm:$0xff]
      %v286 = vld [vmem:[%s1 + $0x298] sm:$0xff]
      %v287 = vld [vmem:[%s1 + $0x2a0] sm:$0xff]
      %v288 = vld [vmem:[%s1 + $0x2a8] sm:$0xff]
      %v289 = vld [vmem:[%s1 + $0x2b0] sm:$0xff]
      %v290 = vld [vmem:[%s1 + $0x2b8] sm:$0xff]
      %v291 = vld [vmem:[%s1 + $0x2c0] sm:$0xff]
      %v292 = vld [vmem:[%s1 + $0x2c8] sm:$0xff]
      %v293 = vld [vmem:[%s1 + $0x2d0] sm:$0xff]
      %v294 = vld [vmem:[%s1 + $0x2d8] sm:$0xff]
      %v295 = vld [vmem:[%s1 + $0x2e0] sm:$0xff]
      %v296 = vld [vmem:[%s1 + $0x2e8] sm:$0xff]
      %v297 = vld [vmem:[%s1 + $0x2f0] sm:$0xff]
      %v298 = vld [vmem:[%s1 + $0x2f8] sm:$0xff]
      %v299 = vld [vmem:[%s1 + $0x300] sm:$0xff]
      %v300 = vld [vmem:[%s1 + $0x308] sm:$0xff]
      %v301 = vld [vmem:[%s1 + $0x310] sm:$0xff]
      %v302 = vld [vmem:[%s1 + $0x318] sm:$0xff]
      %v303 = vld [vmem:[%s1 + $0x320] sm:$0xff]
      %v304 = vld [vmem:[%s1 + $0x328] sm:$0xff]
      %v305 = vld [vmem:[%s1 + $0x330] sm:$0xff]
      %v306 = vld [vmem:[%s1 + $0x338] sm:$0xff]
      %v307 = vld [vmem:[%s1 + $0x340] sm:$0xff]
      %v308 = vld [vmem:[%s1 + $0x348] sm:$0xff]
      %v309 = vld [vmem:[%s1 + $0x350] sm:$0xff]
      %v310 = vld [vmem:[%s1 + $0x358] sm:$0xff]
      %v311 = vld [vmem:[%s1 + $0x360] sm:$0xff]
      %v312 = vld [vmem:[%s1 + $0x368] sm:$0xff]
      %v313 = vld [vmem:[%s1 + $0x370] sm:$0xff]
      %v314 = vld [vmem:[%s1 + $0x378] sm:$0xff]
      %v315 = vld [vmem:[%s1 + $0x380] sm:$0xff]
      %v316 = vld [vmem:[%s1 + $0x388] sm:$0xff]
      %v317 = vld [vmem:[%s1 + $0x390] sm:$0xff]
      %v318 = vld [vmem:[%s1 + $0x398] sm:$0xff]
      %v319 = vld [vmem:[%s1 + $0x3a0] sm:$0xff]
      %v320 = vld [vmem:[%s1 + $0x3a8] sm:$0xff]
      %v321 = vld [vmem:[%s1 + $0x3b0] sm:$0xff]
      %v322 = vld [vmem:[%s1 + $0x3b8] sm:$0xff]
      %v323 = vld [vmem:[%s1 + $0x3c0] sm:$0xff]
      %v324 = vld [vmem:[%s1 + $0x3c8] sm:$0xff]
      %v325 = vld [vmem:[%s1 + $0x3d0] sm:$0xff]
      %v326 = vld [vmem:[%s1 + $0x3d8] sm:$0xff]
      %v327 = vld [vmem:[%s1 + $0x3e0] sm:$0xff]
      %v328 = vld [vmem:[%s1 + $0x3e8] sm:$0xff]
      %v329 = vld [vmem:[%s1 + $0x3f0] sm:$0xff]
      %v330 = vld [vmem:[%s1 + $0x3f8] sm:$0xff]
      %v331 = vld [vmem:[%s1 + $0x400] sm:$0xff]
      %v332 = vld [vmem:[%s1 + $0x408] sm:$0xff]
      %v333 = vld [vmem:[%s1 + $0x410] sm:$0xff]
      %v334 = vld [vmem:[%s1 + $0x418] sm:$0xff]
      %v335 = vld [vmem:[%s1 + $0x420] sm:$0xff]
      %v336 = vld [vmem:[%s1 + $0x428] sm:$0xff]
      %v337 = vld [vmem:[%s1 + $0x430] sm:$0xff]
      %v338 = vld [vmem:[%s1 + $0x438] sm:$0xff]
      %v339 = vld [vmem:[%s1 + $0x440] sm:$0xff]
      %v340 = vld [vmem:[%s1 + $0x448] sm:$0xff]
      %v341 = vld [vmem:[%s1 + $0x450] sm:$0xff]
      %v342 = vld [vmem:[%s1 + $0x458] sm:$0xff]
      %v343 = vld [vmem:[%s1 + $0x460] sm:$0xff]
      %v344 = vld [vmem:[%s1 + $0x468] sm:$0xff]
      %v345 = vld [vmem:[%s1 + $0x470] sm:$0xff]
      %v346 = vld [vmem:[%s1 + $0x478] sm:$0xff]
      %v347 = vld [vmem:[%s1 + $0x480] sm:$0xff]
      %v348 = vld [vmem:[%s1 + $0x488] sm:$0xff]
      %v349 = vld [vmem:[%s1 + $0x490] sm:$0xff]
      %v350 = vld [vmem:[%s1 + $0x498] sm:$0xff]
      %v351 = vld [vmem:[%s1 + $0x4a0] sm:$0xff]
      %v352 = vld [vmem:[%s1 + $0x4a8] sm:$0xff]
      %v353 = vld [vmem:[%s1 + $0x4b0] sm:$0xff]
      %v354 = vld [vmem:[%s1 + $0x4b8] sm:$0xff]
      %v355 = vld [vmem:[%s1 + $0x4c0] sm:$0xff]
      %v356 = vld [vmem:[%s1 + $0x4c8] sm:$0xff]
      %v357 = vld [vmem:[%s1 + $0x4d0] sm:$0xff]
      %v358 = vld [vmem:[%s1 + $0x4d8] sm:$0xff]
      %v359 = vld [vmem:[%s1 + $0x4e0] sm:$0xff]
      %v360 = vld [vmem:[%s1 + $0x4e8] sm:$0xff]
      %v361 = vld [vmem:[%s1 + $0x4f0] sm:$0xff]
      %v362 = vld [vmem:[%s1 + $0x4f8] sm:$0xff]
      %v363 = vld [vmem:[%s1 + $0x500] sm:$0xff]
      %v364 = vld [vmem:[%s1 + $0x508] sm:$0xff]
      %v365 = vld [vmem:[%s1 + $0x510] sm:$0xff]
      %v366 = vld [vmem:[%s1 + $0x518] sm:$0xff]
      %v367 = vld [vmem:[%s1 + $0x520] sm:$0xff]
      %v368 = vld [vmem:[%s1 + $0x528] sm:$0xff]
      %v369 = vld [vmem:[%s1 + $0x530] sm:$0xff]
      %v370 = vld [vmem:[%s1 + $0x538] sm:$0xff]
      %v371 = vld [vmem:[%s1 + $0x540] sm:$0xff]
      %v372 = vld [vmem:[%s1 + $0x548] sm:$0xff]
      %v373 = vld [vmem:[%s1 + $0x550] sm:$0xff]
      %v374 = vld [vmem:[%s1 + $0x558] sm:$0xff]
      %v375 = vld [vmem:[%s1 + $0x560] sm:$0xff]
      %v376 = vld [vmem:[%s1 + $0x568] sm:$0xff]
      %v377 = vld [vmem:[%s1 + $0x570] sm:$0xff]
      %v378 = vld [vmem:[%s1 + $0x578] sm:$0xff]
      %v379 = vld [vmem:[%s1 + $0x580] sm:$0xff]
      %v380 = vld [vmem:[%s1 + $0x588] sm:$0xff]
      %v381 = vld [vmem:[%s1 + $0x590] sm:$0xff]
      %v382 = vld [vmem:[%s1 + $0x598] sm:$0xff]
      %v383 = vld [vmem:[%s1 + $0x5a0] sm:$0xff]
      %v384 = vld [vmem:[%s1 + $0x5a8] sm:$0xff]
      %v385 = vld [vmem:[%s1 + $0x5b0] sm:$0xff]
      %v386 = vld [vmem:[%s1 + $0x5b8] sm:$0xff]
      %v387 = vld [vmem:[%s1 + $0x5c0] sm:$0xff]
      %v388 = vld [vmem:[%s1 + $0x5c8] sm:$0xff]
      %v389 = vld [vmem:[%s1 + $0x5d0] sm:$0xff]
      %v390 = vld [vmem:[%s1 + $0x5d8] sm:$0xff]
      %v391 = vld [vmem:[%s1 + $0x5e0] sm:$0xff]
      %v392 = vld [vmem:[%s1 + $0x5e8] sm:$0xff]
      %v393 = vld [vmem:[%s1 + $0x5f0] sm:$0xff]
      %v394 = vld [vmem:[%s1 + $0x5f8] sm:$0xff]
      %v395 = vld [vmem:[%s1 + $0x600] sm:$0xff]
      %v396 = vld [vmem:[%s1 + $0x608] sm:$0xff]
      %v397 = vld [vmem:[%s1 + $0x610] sm:$0xff]
      %v398 = vld [vmem:[%s1 + $0x618] sm:$0xff]
      %v399 = vld [vmem:[%s1 + $0x620] sm:$0xff]
      %v400 = vld [vmem:[%s1 + $0x628] sm:$0xff]
      %v401 = vld [vmem:[%s1 + $0x630] sm:$0xff]
      %v402 = vld [vmem:[%s1 + $0x638] sm:$0xff]
      %v403 = vld [vmem:[%s1 + $0x640] sm:$0xff]
      %v404 = vld [vmem:[%s1 + $0x648] sm:$0xff]
      %v405 = vld [vmem:[%s1 + $0x650] sm:$0xff]
      %v406 = vld [vmem:[%s1 + $0x658] sm:$0xff]
      %v407 = vld [vmem:[%s1 + $0x660] sm:$0xff]
      %v408 = vld [vmem:[%s1 + $0x668] sm:$0xff]
      %v409 = vld [vmem:[%s1 + $0x670] sm:$0xff]
      %v410 = vld [vmem:[%s1 + $0x678] sm:$0xff]
      %v411 = vld [vmem:[%s1 + $0x680] sm:$0xff]
      %v412 = vld [vmem:[%s1 + $0x688] sm:$0xff]
      %v413 = vld [vmem:[%s1 + $0x690] sm:$0xff]
      %v414 = vld [vmem:[%s1 + $0x698] sm:$0xff]
      %v415 = vld [vmem:[%s1 + $0x6a0] sm:$0xff]
      %v416 = vld [vmem:[%s1 + $0x6a8] sm:$0xff]
      %v417 = vld [vmem:[%s1 + $0x6b0] sm:$0xff]
      %v418 = vld [vmem:[%s1 + $0x6b8] sm:$0xff]
      %v419 = vld [vmem:[%s1 + $0x6c0] sm:$0xff]
      %v420 = vld [vmem:[%s1 + $0x6c8] sm:$0xff]
      %v421 = vld [vmem:[%s1 + $0x6d0] sm:$0xff]
      %v422 = vld [vmem:[%s1 + $0x6d8] sm:$0xff]
      %v423 = vld [vmem:[%s1 + $0x6e0] sm:$0xff]
      %v424 = vld [vmem:[%s1 + $0x6e8] sm:$0xff]
      %v425 = vld [vmem:[%s1 + $0x6f0] sm:$0xff]
      %v426 = vld [vmem:[%s1 + $0x6f8] sm:$0xff]
      %v427 = vld [vmem:[%s1 + $0x700] sm:$0xff]
      %v428 = vld [vmem:[%s1 + $0x708] sm:$0xff]
      %v429 = vld [vmem:[%s1 + $0x710] sm:$0xff]
      %v430 = vld [vmem:[%s1 + $0x718] sm:$0xff]
      %v431 = vld [vmem:[%s1 + $0x720] sm:$0xff]
      %v432 = vld [vmem:[%s1 + $0x728] sm:$0xff]
      %v433 = vld [vmem:[%s1 + $0x730] sm:$0xff]
      %v434 = vld [vmem:[%s1 + $0x738] sm:$0xff]
      %v435 = vld [vmem:[%s1 + $0x740] sm:$0xff]
      %v436 = vld [vmem:[%s1 + $0x748] sm:$0xff]
      %v437 = vld [vmem:[%s1 + $0x750] sm:$0xff]
      %v438 = vld [vmem:[%s1 + $0x758] sm:$0xff]
      %v439 = vld [vmem:[%s1 + $0x760] sm:$0xff]
      %v440 = vld [vmem:[%s1 + $0x768] sm:$0xff]
      %v441 = vld [vmem:[%s1 + $0x770] sm:$0xff]
      %v442 = vld [vmem:[%s1 + $0x778] sm:$0xff]
      %v443 = vld [vmem:[%s1 + $0x780] sm:$0xff]
      %v444 = vld [vmem:[%s1 + $0x788] sm:$0xff]
      %v445 = vld [vmem:[%s1 + $0x790] sm:$0xff]
      %v446 = vld [vmem:[%s1 + $0x798] sm:$0xff]
      %v447 = vld [vmem:[%s1 + $0x7a0] sm:$0xff]
      %v448 = vld [vmem:[%s1 + $0x7a8] sm:$0xff]
      %v449 = vld [vmem:[%s1 + $0x7b0] sm:$0xff]
      %v450 = vld [vmem:[%s1 + $0x7b8] sm:$0xff]
      %v451 = vld [vmem:[%s1 + $0x7c0] sm:$0xff]
      %v452 = vld [vmem:[%s1 + $0x7c8] sm:$0xff]
      %v453 = vld [vmem:[%s1 + $0x7d0] sm:$0xff]
      %v454 = vld [vmem:[%s1 + $0x7d8] sm:$0xff]
      %v455 = vld [vmem:[%s1 + $0x7e0] sm:$0xff]
      %v456 = vld [vmem:[%s1 + $0x7e8] sm:$0xff]
      %v457 = vld [vmem:[%s1 + $0x7f0] sm:$0xff]
      %v458 = vld [vmem:[%s1 + $0x7f8] sm:$0xff]
      %v459 = vld [vmem:[%s1 + $0x800] sm:$0xff]
      %v460 = vld [vmem:[%s1 + $0x808] sm:$0xff]
      %v461 = vld [vmem:[%s1 + $0x810] sm:$0xff]
      %v462 = vld [vmem:[%s1 + $0x818] sm:$0xff]
      %v463 = vld [vmem:[%s1 + $0x820] sm:$0xff]
      %v464 = vld [vmem:[%s1 + $0x828] sm:$0xff]
      %v465 = vld [vmem:[%s1 + $0x830] sm:$0xff]
      %v466 = vld [vmem:[%s1 + $0x838] sm:$0xff]
      %v467 = vld [vmem:[%s1 + $0x840] sm:$0xff]
      %v468 = vld [vmem:[%s1 + $0x848] sm:$0xff]
      %v469 = vld [vmem:[%s1 + $0x850] sm:$0xff]
      %v470 = vld [vmem:[%s1 + $0x858] sm:$0xff]
      %v471 = vld [vmem:[%s1 + $0x860] sm:$0xff]
      %v472 = vld [vmem:[%s1 + $0x868] sm:$0xff]
      %v473 = vld [vmem:[%s1 + $0x870] sm:$0xff]
      %v474 = vld [vmem:[%s1 + $0x878] sm:$0xff]
      %v475 = vld [vmem:[%s1 + $0x880] sm:$0xff]
      %v476 = vld [vmem:[%s1 + $0x888] sm:$0xff]
      %v477 = vld [vmem:[%s1 + $0x890] sm:$0xff]
      %v478 = vld [vmem:[%s1 + $0x898] sm:$0xff]
      %v479 = vld [vmem:[%s1 + $0x8a0] sm:$0xff]
      %v480 = vld [vmem:[%s1 + $0x8a8] sm:$0xff]
      %v481 = vld [vmem:[%s1 + $0x8b0] sm:$0xff]
      %v482 = vld [vmem:[%s1 + $0x8b8] sm:$0xff]
      %v483 = vld [vmem:[%s1 + $0x8c0] sm:$0xff]
      %v484 = vld [vmem:[%s1 + $0x8c8] sm:$0xff]
      %v485 = vld [vmem:[%s1 + $0x8d0] sm:$0xff]
      %v486 = vld [vmem:[%s1 + $0x8d8] sm:$0xff]
      %v487 = vld [vmem:[%s1 + $0x8e0] sm:$0xff]
      %v488 = vld [vmem:[%s1 + $0x8e8] sm:$0xff]
      %v489 = vld [vmem:[%s1 + $0x8f0] sm:$0xff]
      %v490 = vld [vmem:[%s1 + $0x8f8] sm:$0xff]
      %v491 = vld [vmem:[%s1 + $0x900] sm:$0xff]
      %v492 = vld [vmem:[%s1 + $0x908] sm:$0xff]
      %v493 = vld [vmem:[%s1 + $0x910] sm:$0xff]
      %v494 = vld [vmem:[%s1 + $0x918] sm:$0xff]
      %v495 = vld [vmem:[%s1 + $0x920] sm:$0xff]
      %v496 = vld [vmem:[%s1 + $0x928] sm:$0xff]
      %v497 = vld [vmem:[%s1 + $0x930] sm:$0xff]
      %v498 = vld [vmem:[%s1 + $0x938] sm:$0xff]
      %v499 = vld [vmem:[%s1 + $0x940] sm:$0xff]
      %v500 = vld [vmem:[%s1 + $0x948] sm:$0xff]
      %v501 = vld [vmem:[%s1 + $0x950] sm:$0xff]
      %v502 = vld [vmem:[%s1 + $0x958] sm:$0xff]
      %v503 = vld [vmem:[%s1 + $0x960] sm:$0xff]
      %v504 = vld [vmem:[%s1 + $0x968] sm:$0xff]
      %v505 = vld [vmem:[%s1 + $0x970] sm:$0xff]
      %v506 = vld [vmem:[%s1 + $0x978] sm:$0xff]
      %v507 = vld [vmem:[%s1 + $0x980] sm:$0xff]
      %v508 = vld [vmem:[%s1 + $0x988] sm:$0xff]
      %v509 = vld [vmem:[%s1 + $0x990] sm:$0xff]
      %v510 = vld [vmem:[%s1 + $0x998] sm:$0xff]
      %v511 = vld [vmem:[%s1 + $0x9a0] sm:$0xff]
      %v512 = vld [vmem:[%s1 + $0x9a8] sm:$0xff]
      %v513 = vld [vmem:[%s1 + $0x9b0] sm:$0xff]
      %v514 = vld [vmem:[%s1 + $0x9b8] sm:$0xff]
      %v515 = vld [vmem:[%s1 + $0x9c0] sm:$0xff]
      %v516 = vld [vmem:[%s1 + $0x9c8] sm:$0xff]
      %v517 = vld [vmem:[%s1 + $0x9d0] sm:$0xff]
      %v518 = vld [vmem:[%s1 + $0x9d8] sm:$0xff]
      %v519 = vld [vmem:[%s1 + $0x9e0] sm:$0xff]
      %v520 = vld [vmem:[%s1 + $0x9e8] sm:$0xff]
      %v521 = vld [vmem:[%s1 + $0x9f0] sm:$0xff]
      %v522 = vld [vmem:[%s1 + $0x9f8] sm:$0xff]
      %v523 = vld [vmem:[%s1 + $0xa00] sm:$0xff]
      %v524 = vld [vmem:[%s1 + $0xa08] sm:$0xff]
      %v525 = vld [vmem:[%s1 + $0xa10] sm:$0xff]
      %v526 = vld [vmem:[%s1 + $0xa18] sm:$0xff]
      %v527 = vld [vmem:[%s1 + $0xa20] sm:$0xff]
      %v528 = vld [vmem:[%s1 + $0xa28] sm:$0xff]
      %v529 = vld [vmem:[%s1 + $0xa30] sm:$0xff]
      %v530 = vld [vmem:[%s1 + $0xa38] sm:$0xff]
      %v531 = vld [vmem:[%s1 + $0xa40] sm:$0xff]
      %v532 = vld [vmem:[%s1 + $0xa48] sm:$0xff]
      %v533 = vld [vmem:[%s1 + $0xa50] sm:$0xff]
      %v534 = vld [vmem:[%s1 + $0xa58] sm:$0xff]
      %v535 = vld [vmem:[%s1 + $0xa60] sm:$0xff]
      %v536 = vld [vmem:[%s1 + $0xa68] sm:$0xff]
      %v537 = vld [vmem:[%s1 + $0xa70] sm:$0xff]
      %v538 = vld [vmem:[%s1 + $0xa78] sm:$0xff]
      %v539 = vld [vmem:[%s1 + $0xa80] sm:$0xff]
      %v540 = vld [vmem:[%s1 + $0xa88] sm:$0xff]
      %v541 = vld [vmem:[%s1 + $0xa90] sm:$0xff]
      %v542 = vld [vmem:[%s1 + $0xa98] sm:$0xff]
      %v543 = vld [vmem:[%s1 + $0xaa0] sm:$0xff]
      %v544 = vld [vmem:[%s1 + $0xaa8] sm:$0xff]
      %v545 = vld [vmem:[%s1 + $0xab0] sm:$0xff]
      %v546 = vld [vmem:[%s1 + $0xab8] sm:$0xff]
      %v547 = vld [vmem:[%s1 + $0xac0] sm:$0xff]
      %v548 = vld [vmem:[%s1 + $0xac8] sm:$0xff]
      %v549 = vld [vmem:[%s1 + $0xad0] sm:$0xff]
      %v550 = vld [vmem:[%s1 + $0xad8] sm:$0xff]
      %v551 = vld [vmem:[%s1 + $0xae0] sm:$0xff]
      %v552 = vld [vmem:[%s1 + $0xae8] sm:$0xff]
      %v553 = vld [vmem:[%s1 + $0xaf0] sm:$0xff]
      %v554 = vld [vmem:[%s1 + $0xaf8] sm:$0xff]
      %v555 = vld [vmem:[%s1 + $0xb00] sm:$0xff]
      %v556 = vld [vmem:[%s1 + $0xb08] sm:$0xff]
      %v557 = vld [vmem:[%s1 + $0xb10] sm:$0xff]
      %v558 = vld [vmem:[%s1 + $0xb18] sm:$0xff]
      %v559 = vld [vmem:[%s1 + $0xb20] sm:$0xff]
      %v560 = vld [vmem:[%s1 + $0xb28] sm:$0xff]
      %v561 = vld [vmem:[%s1 + $0xb30] sm:$0xff]
      %v562 = vld [vmem:[%s1 + $0xb38] sm:$0xff]
      %v563 = vld [vmem:[%s1 + $0xb40] sm:$0xff]
      %v564 = vld [vmem:[%s1 + $0xb48] sm:$0xff]
      %v565 = vld [vmem:[%s1 + $0xb50] sm:$0xff]
      %v566 = vld [vmem:[%s1 + $0xb58] sm:$0xff]
      %v567 = vld [vmem:[%s1 + $0xb60] sm:$0xff]
      %v568 = vld [vmem:[%s1 + $0xb68] sm:$0xff]
      %v569 = vld [vmem:[%s1 + $0xb70] sm:$0xff]
      %v570 = vld [vmem:[%s1 + $0xb78] sm:$0xff]
      %v571 = vld [vmem:[%s1 + $0xb80] sm:$0xff]
      %v572 = vld [vmem:[%s1 + $0xb88] sm:$0xff]
      %v573 = vld [vmem:[%s1 + $0xb90] sm:$0xff]
      %v574 = vld [vmem:[%s1 + $0xb98] sm:$0xff]
      %v575 = vld [vmem:[%s1 + $0xba0] sm:$0xff]
      %v576 = vld [vmem:[%s1 + $0xba8] sm:$0xff]
      %v577 = vld [vmem:[%s1 + $0xbb0] sm:$0xff]
      %v578 = vld [vmem:[%s1 + $0xbb8] sm:$0xff]
      %v579 = vld [vmem:[%s1 + $0xbc0] sm:$0xff]
      %v580 = vld [vmem:[%s1 + $0xbc8] sm:$0xff]
      %v581 = vld [vmem:[%s1 + $0xbd0] sm:$0xff]
      %v582 = vld [vmem:[%s1 + $0xbd8] sm:$0xff]
      %v583 = vld [vmem:[%s1 + $0xbe0] sm:$0xff]
      %v584 = vld [vmem:[%s1 + $0xbe8] sm:$0xff]
      %v585 = vld [vmem:[%s1 + $0xbf0] sm:$0xff]
      %v586 = vld [vmem:[%s1 + $0xbf8] sm:$0xff]
      %v587 = vld [vmem:[%s1 + $0xc00] sm:$0xff]
      %v588 = vld [vmem:[%s1 + $0xc08] sm:$0xff]
      %v589 = vld [vmem:[%s1 + $0xc10] sm:$0xff]
      %v590 = vld [vmem:[%s1 + $0xc18] sm:$0xff]
      %v591 = vld [vmem:[%s1 + $0xc20] sm:$0xff]
      %v592 = vld [vmem:[%s1 + $0xc28] sm:$0xff]
      %v593 = vld [vmem:[%s1 + $0xc30] sm:$0xff]
      %v594 = vld [vmem:[%s1 + $0xc38] sm:$0xff]
      %v595 = vld [vmem:[%s1 + $0xc40] sm:$0xff]
      %v596 = vld [vmem:[%s1 + $0xc48] sm:$0xff]
      %v597 = vld [vmem:[%s1 + $0xc50] sm:$0xff]
      %v598 = vld [vmem:[%s1 + $0xc58] sm:$0xff]
      %v599 = vld [vmem:[%s1 + $0xc60] sm:$0xff]
      %v600 = vld [vmem:[%s1 + $0xc68] sm:$0xff]
      %v601 = vld [vmem:[%s1 + $0xc70] sm:$0xff]
      %v602 = vld [vmem:[%s1 + $0xc78] sm:$0xff]
      %v603 = vld [vmem:[%s1 + $0xc80] sm:$0xff]
      %v604 = vld [vmem:[%s1 + $0xc88] sm:$0xff]
      %v605 = vld [vmem:[%s1 + $0xc90] sm:$0xff]
      %v606 = vld [vmem:[%s1 + $0xc98] sm:$0xff]
      %v607 = vld [vmem:[%s1 + $0xca0] sm:$0xff]
      %v608 = vld [vmem:[%s1 + $0xca8] sm:$0xff]
      %v609 = vld [vmem:[%s1 + $0xcb0] sm:$0xff]
      %v610 = vld [vmem:[%s1 + $0xcb8] sm:$0xff]
      %v611 = vld [vmem:[%s1 + $0xcc0] sm:$0xff]
      %v612 = vld [vmem:[%s1 + $0xcc8] sm:$0xff]
      %v613 = vld [vmem:[%s1 + $0xcd0] sm:$0xff]
      %v614 = vld [vmem:[%s1 + $0xcd8] sm:$0xff]
      %v615 = vld [vmem:[%s1 + $0xce0] sm:$0xff]
      %v616 = vld [vmem:[%s1 + $0xce8] sm:$0xff]
      %v617 = vld [vmem:[%s1 + $0xcf0] sm:$0xff]
      %v618 = vld [vmem:[%s1 + $0xcf8] sm:$0xff]
      %v619 = vld [vmem:[%s1 + $0xd00] sm:$0xff]
      %v620 = vld [vmem:[%s1 + $0xd08] sm:$0xff]
      %v621 = vld [vmem:[%s1 + $0xd10] sm:$0xff]
      %v622 = vld [vmem:[%s1 + $0xd18] sm:$0xff]
      %v623 = vld [vmem:[%s1 + $0xd20] sm:$0xff]
      %v624 = vld [vmem:[%s1 + $0xd28] sm:$0xff]
      %v625 = vld [vmem:[%s1 + $0xd30] sm:$0xff]
      %v626 = vld [vmem:[%s1 + $0xd38] sm:$0xff]
      %v627 = vld [vmem:[%s1 + $0xd40] sm:$0xff]
      %v628 = vld [vmem:[%s1 + $0xd48] sm:$0xff]
      %v629 = vld [vmem:[%s1 + $0xd50] sm:$0xff]
      %v630 = vld [vmem:[%s1 + $0xd58] sm:$0xff]
      %v631 = vld [vmem:[%s1 + $0xd60] sm:$0xff]
      %v632 = vld [vmem:[%s1 + $0xd68] sm:$0xff]
      %v633 = vld [vmem:[%s1 + $0xd70] sm:$0xff]
      %v634 = vld [vmem:[%s1 + $0xd78] sm:$0xff]
      %v635 = vld [vmem:[%s1 + $0xd80] sm:$0xff]
      %v636 = vld [vmem:[%s1 + $0xd88] sm:$0xff]
      %v637 = vld [vmem:[%s1 + $0xd90] sm:$0xff]
      %v638 = vld [vmem:[%s1 + $0xd98] sm:$0xff]
      %v639 = vld [vmem:[%s1 + $0xda0] sm:$0xff]
      %v640 = vld [vmem:[%s1 + $0xda8] sm:$0xff]
      %v641 = vld [vmem:[%s1 + $0xdb0] sm:$0xff]
      %v642 = vld [vmem:[%s1 + $0xdb8] sm:$0xff]
      %v643 = vld [vmem:[%s1 + $0xdc0] sm:$0xff]
      %v644 = vld [vmem:[%s1 + $0xdc8] sm:$0xff]
      %v645 = vld [vmem:[%s1 + $0xdd0] sm:$0xff]
      %v646 = vld [vmem:[%s1 + $0xdd8] sm:$0xff]
      %v647 = vld [vmem:[%s1 + $0xde0] sm:$0xff]
      %v648 = vld [vmem:[%s1 + $0xde8] sm:$0xff]
      %v649 = vld [vmem:[%s1 + $0xdf0] sm:$0xff]
      %v650 = vld [vmem:[%s1 + $0xdf8] sm:$0xff]
      %v651 = vld [vmem:[%s1 + $0xe00] sm:$0xff]
      %v652 = vld [vmem:[%s1 + $0xe08] sm:$0xff]
      %v653 = vld [vmem:[%s1 + $0xe10] sm:$0xff]
      %v654 = vld [vmem:[%s1 + $0xe18] sm:$0xff]
      %v655 = vld [vmem:[%s1 + $0xe20] sm:$0xff]
      %v656 = vld [vmem:[%s1 + $0xe28] sm:$0xff]
      %v657 = vld [vmem:[%s1 + $0xe30] sm:$0xff]
      %v658 = vld [vmem:[%s1 + $0xe38] sm:$0xff]
      %v659 = vld [vmem:[%s1 + $0xe40] sm:$0xff]
      %v660 = vld [vmem:[%s1 + $0xe48] sm:$0xff]
      %v661 = vld [vmem:[%s1 + $0xe50] sm:$0xff]
      %v662 = vld [vmem:[%s1 + $0xe58] sm:$0xff]
      %v663 = vld [vmem:[%s1 + $0xe60] sm:$0xff]
      %v664 = vld [vmem:[%s1 + $0xe68] sm:$0xff]
      %v665 = vld [vmem:[%s1 + $0xe70] sm:$0xff]
      %v666 = vld [vmem:[%s1 + $0xe78] sm:$0xff]
      %v667 = vld [vmem:[%s1 + $0xe80] sm:$0xff]
      %v668 = vld [vmem:[%s1 + $0xe88] sm:$0xff]
      %v669 = vld [vmem:[%s1 + $0xe90] sm:$0xff]
      %v670 = vld [vmem:[%s1 + $0xe98] sm:$0xff]
      %v671 = vld [vmem:[%s1 + $0xea0] sm:$0xff]
      %v672 = vld [vmem:[%s1 + $0xea8] sm:$0xff]
      %v673 = vld [vmem:[%s1 + $0xeb0] sm:$0xff]
      %v674 = vld [vmem:[%s1 + $0xeb8] sm:$0xff]
      %v675 = vld [vmem:[%s1 + $0xec0] sm:$0xff]
      %v676 = vld [vmem:[%s1 + $0xec8] sm:$0xff]
      %v677 = vld [vmem:[%s1 + $0xed0] sm:$0xff]
      %v678 = vld [vmem:[%s1 + $0xed8] sm:$0xff]
      %v679 = vld [vmem:[%s1 + $0xee0] sm:$0xff]
      %v680 = vld [vmem:[%s1 + $0xee8] sm:$0xff]
      %v681 = vld [vmem:[%s1 + $0xef0] sm:$0xff]
      %v682 = vld [vmem:[%s1 + $0xef8] sm:$0xff]
      %v683 = vld [vmem:[%s1 + $0xf00] sm:$0xff]
      %v684 = vld [vmem:[%s1 + $0xf08] sm:$0xff]
      %v685 = vld [vmem:[%s1 + $0xf10] sm:$0xff]
      %v686 = vld [vmem:[%s1 + $0xf18] sm:$0xff]
      %v687 = vld [vmem:[%s1 + $0xf20] sm:$0xff]
      %v688 = vld [vmem:[%s1 + $0xf28] sm:$0xff]
      %v689 = vld [vmem:[%s1 + $0xf30] sm:$0xff]
      %v690 = vld [vmem:[%s1 + $0xf38] sm:$0xff]
      %v691 = vld [vmem:[%s1 + $0xf40] sm:$0xff]
      %v692 = vld [vmem:[%s1 + $0xf48] sm:$0xff]
      %v693 = vld [vmem:[%s1 + $0xf50] sm:$0xff]
      %v694 = vld [vmem:[%s1 + $0xf58] sm:$0xff]
      %v695 = vld [vmem:[%s1 + $0xf60] sm:$0xff]
      %v696 = vld [vmem:[%s1 + $0xf68] sm:$0xff]
      %v697 = vld [vmem:[%s1 + $0xf70] sm:$0xff]
      %v698 = vld [vmem:[%s1 + $0xf78] sm:$0xff]
      %v699 = vld [vmem:[%s1 + $0xf80] sm:$0xff]
      %v700 = vld [vmem:[%s1 + $0xf88] sm:$0xff]
      %v701 = vld [vmem:[%s1 + $0xf90] sm:$0xff]
      %v702 = vld [vmem:[%s1 + $0xf98] sm:$0xff]
      %v703 = vld [vmem:[%s1 + $0xfa0] sm:$0xff]
      %v704 = vld [vmem:[%s1 + $0xfa8] sm:$0xff]
      %v705 = vld [vmem:[%s1 + $0xfb0] sm:$0xff]
      %v706 = vld [vmem:[%s1 + $0xfb8] sm:$0xff]
      %v707 = vld [vmem:[%s1 + $0xfc0] sm:$0xff]
      %v708 = vld [vmem:[%s1 + $0xfc8] sm:$0xff]
      %v709 = vld [vmem:[%s1 + $0xfd0] sm:$0xff]
      %v710 = vld [vmem:[%s1 + $0xfd8] sm:$0xff]
      %v711 = vld [vmem:[%s1 + $0xfe0] sm:$0xff]
      %v712 = vld [vmem:[%s1 + $0xfe8] sm:$0xff]
      %v713 = vld [vmem:[%s1 + $0xff0] sm:$0xff]
      %v714 = vld [vmem:[%s1 + $0xff8] sm:$0xff]
      %v715 = vld [vmem:[%s2] sm:$0x3]
      %v717 = vlaneseq
      %v718 = vshrl.u32 %v717, 7
      %v719 = vsub.s32 0, %v718
      %v720 = vrot.slane %v715, %v719
      %v721 = vlaneseq
      %v722 = vshrl.u32 %v721, 7
      %v723 = vsub.s32 1, %v722
      %v724 = vrot.slane %v715, %v723
      %727 = vmatprep.subr.mxu0 %v204
      %728 = vmatpush1.msra.mxu0 %v203
      %729 = vmatprep.subr.mxu0 %v206
      %730 = vmatpush1.msra.mxu0 %v205
      %731 = vmatprep.subr.mxu0 %v208
      %732 = vmatpush1.msra.mxu0 %v207
      %733 = vmatprep.subr.mxu0 %v210
      %734 = vmatpush1.msra.mxu0 %v209
      %735 = vmatprep.subr.mxu0 %v212
      %736 = vmatpush1.msra.mxu0 %v211
      %737 = vmatprep.subr.mxu0 %v214
      %738 = vmatpush1.msra.mxu0 %v213
      %739 = vmatprep.subr.mxu0 %v216
      %740 = vmatpush1.msra.mxu0 %v215
      %741 = vmatprep.subr.mxu0 %v218
      %742 = vmatpush1.msra.mxu0 %v217
      %743 = vmatprep.subr.mxu0 %v220
      %744 = vmatpush1.msra.mxu0 %v219
      %745 = vmatprep.subr.mxu0 %v222
      %746 = vmatpush1.msra.mxu0 %v221
      %747 = vmatprep.subr.mxu0 %v224
      %748 = vmatpush1.msra.mxu0 %v223
      %749 = vmatprep.subr.mxu0 %v226
      %750 = vmatpush1.msra.mxu0 %v225
      %751 = vmatprep.subr.mxu0 %v228
      %752 = vmatpush1.msra.mxu0 %v227
      %753 = vmatprep.subr.mxu0 %v230
      %754 = vmatpush1.msra.mxu0 %v229
      %755 = vmatprep.subr.mxu0 %v232
      %756 = vmatpush1.msra.mxu0 %v231
      %757 = vmatprep.subr.mxu0 %v234
      %758 = vmatpush1.msra.mxu0 %v233
      %759 = vmatprep.subr.mxu0 %v236
      %760 = vmatpush1.msra.mxu0 %v235
      %761 = vmatprep.subr.mxu0 %v238
      %762 = vmatpush1.msra.mxu0 %v237
      %763 = vmatprep.subr.mxu0 %v240
      %764 = vmatpush1.msra.mxu0 %v239
      %765 = vmatprep.subr.mxu0 %v242
      %766 = vmatpush1.msra.mxu0 %v241
      %767 = vmatprep.subr.mxu0 %v244
      %768 = vmatpush1.msra.mxu0 %v243
      %769 = vmatprep.subr.mxu0 %v246
      %770 = vmatpush1.msra.mxu0 %v245
      %771 = vmatprep.subr.mxu0 %v248
      %772 = vmatpush1.msra.mxu0 %v247
      %773 = vmatprep.subr.mxu0 %v250
      %774 = vmatpush1.msra.mxu0 %v249
      %775 = vmatprep.subr.mxu0 %v252
      %776 = vmatpush1.msra.mxu0 %v251
      %777 = vmatprep.subr.mxu0 %v254
      %778 = vmatpush1.msra.mxu0 %v253
      %779 = vmatprep.subr.mxu0 %v256
      %780 = vmatpush1.msra.mxu0 %v255
      %781 = vmatprep.subr.mxu0 %v258
      %782 = vmatpush1.msra.mxu0 %v257
      %783 = vmatprep.subr.mxu0 %v260
      %784 = vmatpush1.msra.mxu0 %v259
      %785 = vmatprep.subr.mxu0 %v262
      %786 = vmatpush1.msra.mxu0 %v261
      %787 = vmatprep.subr.mxu0 %v264
      %788 = vmatpush1.msra.mxu0 %v263
      %789 = vmatprep.subr.mxu0 %v266
      %790 = vmatpush1.msra.mxu0 %v265
      %791 = vmatprep.mubr.f32.mxu0 %v172
      %792 = vmatmul.mubr.f32.gmra.mrb[0].mxu0 %v171
      %v793 = vpop.f32.mrb[0].mxu0
      %v794 = vadd.f32 %v720, %v793
      %v795 = vpop.f32.mrb[0].mxu0
      %v796 = vadd.f32 %v724, %v795
      %797 = vmatprep.mubr.f32.mxu0 %v188
      %798 = vmatmul.mubr.f32.gmra.mrb[0].mxu0 %v187
      %v799 = vpop.f32.mrb[0].mxu0
      %v800 = vadd.f32 %v720, %v799
      %v801 = vpop.f32.mrb[0].mxu0
      %v802 = vadd.f32 %v724, %v801
      %803 = vdwg.mxu0
      %804 = vmatprep.subr.mxu0 %v268
      %805 = vmatpush1.msra.mxu0 %v267
      %806 = vmatprep.subr.mxu0 %v270
      %807 = vmatpush1.msra.mxu0 %v269
      %808 = vmatprep.subr.mxu0 %v272
      %809 = vmatpush1.msra.mxu0 %v271
      %810 = vmatprep.subr.mxu0 %v274
      %811 = vmatpush1.msra.mxu0 %v273
      %812 = vmatprep.subr.mxu0 %v276
      %813 = vmatpush1.msra.mxu0 %v275
      %814 = vmatprep.subr.mxu0 %v278
      %815 = vmatpush1.msra.mxu0 %v277
      %816 = vmatprep.subr.mxu0 %v280
      %817 = vmatpush1.msra.mxu0 %v279
      %818 = vmatprep.subr.mxu0 %v282
      %819 = vmatpush1.msra.mxu0 %v281
      %820 = vmatprep.subr.mxu0 %v284
      %821 = vmatpush1.msra.mxu0 %v283
      %822 = vmatprep.subr.mxu0 %v286
      %823 = vmatpush1.msra.mxu0 %v285
      %824 = vmatprep.subr.mxu0 %v288
      %825 = vmatpush1.msra.mxu0 %v287
      %826 = vmatprep.subr.mxu0 %v290
      %827 = vmatpush1.msra.mxu0 %v289
      %828 = vmatprep.subr.mxu0 %v292
      %829 = vmatpush1.msra.mxu0 %v291
      %830 = vmatprep.subr.mxu0 %v294
      %831 = vmatpush1.msra.mxu0 %v293
      %832 = vmatprep.subr.mxu0 %v296
      %833 = vmatpush1.msra.mxu0 %v295
      %834 = vmatprep.subr.mxu0 %v298
      %835 = vmatpush1.msra.mxu0 %v297
      %836 = vmatprep.subr.mxu0 %v300
      %837 = vmatpush1.msra.mxu0 %v299
      %838 = vmatprep.subr.mxu0 %v302
      %839 = vmatpush1.msra.mxu0 %v301
      %840 = vmatprep.subr.mxu0 %v304
      %841 = vmatpush1.msra.mxu0 %v303
      %842 = vmatprep.subr.mxu0 %v306
      %843 = vmatpush1.msra.mxu0 %v305
      %844 = vmatprep.subr.mxu0 %v308
      %845 = vmatpush1.msra.mxu0 %v307
      %846 = vmatprep.subr.mxu0 %v310
      %847 = vmatpush1.msra.mxu0 %v309
      %848 = vmatprep.subr.mxu0 %v312
      %849 = vmatpush1.msra.mxu0 %v311
      %850 = vmatprep.subr.mxu0 %v314
      %851 = vmatpush1.msra.mxu0 %v313
      %852 = vmatprep.subr.mxu0 %v316
      %853 = vmatpush1.msra.mxu0 %v315
      %854 = vmatprep.subr.mxu0 %v318
      %855 = vmatpush1.msra.mxu0 %v317
      %856 = vmatprep.subr.mxu0 %v320
      %857 = vmatpush1.msra.mxu0 %v319
      %858 = vmatprep.subr.mxu0 %v322
      %859 = vmatpush1.msra.mxu0 %v321
      %860 = vmatprep.subr.mxu0 %v324
      %861 = vmatpush1.msra.mxu0 %v323
      %862 = vmatprep.subr.mxu0 %v326
      %863 = vmatpush1.msra.mxu0 %v325
      %864 = vmatprep.subr.mxu0 %v328
      %865 = vmatpush1.msra.mxu0 %v327
      %866 = vmatprep.subr.mxu0 %v330
      %867 = vmatpush1.msra.mxu0 %v329
      %868 = vmatprep.mubr.f32.mxu0 %v174
      %869 = vmatmul.mubr.f32.gmra.mrb[0].mxu0 %v173
      %v870 = vpop.f32.mrb[0].mxu0
      %v871 = vadd.f32 %v794, %v870
      %v872 = vpop.f32.mrb[0].mxu0
      %v873 = vadd.f32 %v796, %v872
      %874 = vmatprep.mubr.f32.mxu0 %v190
      %875 = vmatmul.mubr.f32.gmra.mrb[0].mxu0 %v189
      %v876 = vpop.f32.mrb[0].mxu0
      %v877 = vadd.f32 %v800, %v876
      %v878 = vpop.f32.mrb[0].mxu0
      %v879 = vadd.f32 %v802, %v878
      %880 = vdwg.mxu0
      %881 = vmatprep.subr.mxu0 %v332
      %882 = vmatpush1.msra.mxu0 %v331
      %883 = vmatprep.subr.mxu0 %v334
      %884 = vmatpush1.msra.mxu0 %v333
      %885 = vmatprep.subr.mxu0 %v336
      %886 = vmatpush1.msra.mxu0 %v335
      %887 = vmatprep.subr.mxu0 %v338
      %888 = vmatpush1.msra.mxu0 %v337
      %889 = vmatprep.subr.mxu0 %v340
      %890 = vmatpush1.msra.mxu0 %v339
      %891 = vmatprep.subr.mxu0 %v342
      %892 = vmatpush1.msra.mxu0 %v341
      %893 = vmatprep.subr.mxu0 %v344
      %894 = vmatpush1.msra.mxu0 %v343
      %895 = vmatprep.subr.mxu0 %v346
      %896 = vmatpush1.msra.mxu0 %v345
      %897 = vmatprep.subr.mxu0 %v348
      %898 = vmatpush1.msra.mxu0 %v347
      %899 = vmatprep.subr.mxu0 %v350
      %900 = vmatpush1.msra.mxu0 %v349
      %901 = vmatprep.subr.mxu0 %v352
      %902 = vmatpush1.msra.mxu0 %v351
      %903 = vmatprep.subr.mxu0 %v354
      %904 = vmatpush1.msra.mxu0 %v353
      %905 = vmatprep.subr.mxu0 %v356
      %906 = vmatpush1.msra.mxu0 %v355
      %907 = vmatprep.subr.mxu0 %v358
      %908 = vmatpush1.msra.mxu0 %v357
      %909 = vmatprep.subr.mxu0 %v360
      %910 = vmatpush1.msra.mxu0 %v359
      %911 = vmatprep.subr.mxu0 %v362
      %912 = vmatpush1.msra.mxu0 %v361
      %913 = vmatprep.subr.mxu0 %v364
      %914 = vmatpush1.msra.mxu0 %v363
      %915 = vmatprep.subr.mxu0 %v366
      %916 = vmatpush1.msra.mxu0 %v365
      %917 = vmatprep.subr.mxu0 %v368
      %918 = vmatpush1.msra.mxu0 %v367
      %919 = vmatprep.subr.mxu0 %v370
      %920 = vmatpush1.msra.mxu0 %v369
      %921 = vmatprep.subr.mxu0 %v372
      %922 = vmatpush1.msra.mxu0 %v371
      %923 = vmatprep.subr.mxu0 %v374
      %924 = vmatpush1.msra.mxu0 %v373
      %925 = vmatprep.subr.mxu0 %v376
      %926 = vmatpush1.msra.mxu0 %v375
      %927 = vmatprep.subr.mxu0 %v378
      %928 = vmatpush1.msra.mxu0 %v377
      %929 = vmatprep.subr.mxu0 %v380
      %930 = vmatpush1.msra.mxu0 %v379
      %931 = vmatprep.subr.mxu0 %v382
      %932 = vmatpush1.msra.mxu0 %v381
      %933 = vmatprep.subr.mxu0 %v384
      %934 = vmatpush1.msra.mxu0 %v383
      %935 = vmatprep.subr.mxu0 %v386
      %936 = vmatpush1.msra.mxu0 %v385
      %937 = vmatprep.subr.mxu0 %v388
      %938 = vmatpush1.msra.mxu0 %v387
      %939 = vmatprep.subr.mxu0 %v390
      %940 = vmatpush1.msra.mxu0 %v389
      %941 = vmatprep.subr.mxu0 %v392
      %942 = vmatpush1.msra.mxu0 %v391
      %943 = vmatprep.subr.mxu0 %v394
      %944 = vmatpush1.msra.mxu0 %v393
      %945 = vmatprep.mubr.f32.mxu0 %v176
      %946 = vmatmul.mubr.f32.gmra.mrb[0].mxu0 %v175
      %v947 = vpop.f32.mrb[0].mxu0
      %v948 = vadd.f32 %v871, %v947
      %v949 = vpop.f32.mrb[0].mxu0
      %v950 = vadd.f32 %v873, %v949
      %951 = vmatprep.mubr.f32.mxu0 %v192
      %952 = vmatmul.mubr.f32.gmra.mrb[0].mxu0 %v191
      %v953 = vpop.f32.mrb[0].mxu0
      %v954 = vadd.f32 %v877, %v953
      %v955 = vpop.f32.mrb[0].mxu0
      %v956 = vadd.f32 %v879, %v955
      %957 = vdwg.mxu0
      %958 = vmatprep.subr.mxu0 %v396
      %959 = vmatpush1.msra.mxu0 %v395
      %960 = vmatprep.subr.mxu0 %v398
      %961 = vmatpush1.msra.mxu0 %v397
      %962 = vmatprep.subr.mxu0 %v400
      %963 = vmatpush1.msra.mxu0 %v399
      %964 = vmatprep.subr.mxu0 %v402
      %965 = vmatpush1.msra.mxu0 %v401
      %966 = vmatprep.subr.mxu0 %v404
      %967 = vmatpush1.msra.mxu0 %v403
      %968 = vmatprep.subr.mxu0 %v406
      %969 = vmatpush1.msra.mxu0 %v405
      %970 = vmatprep.subr.mxu0 %v408
      %971 = vmatpush1.msra.mxu0 %v407
      %972 = vmatprep.subr.mxu0 %v410
      %973 = vmatpush1.msra.mxu0 %v409
      %974 = vmatprep.subr.mxu0 %v412
      %975 = vmatpush1.msra.mxu0 %v411
      %976 = vmatprep.subr.mxu0 %v414
      %977 = vmatpush1.msra.mxu0 %v413
      %978 = vmatprep.subr.mxu0 %v416
      %979 = vmatpush1.msra.mxu0 %v415
      %980 = vmatprep.subr.mxu0 %v418
      %981 = vmatpush1.msra.mxu0 %v417
      %982 = vmatprep.subr.mxu0 %v420
      %983 = vmatpush1.msra.mxu0 %v419
      %984 = vmatprep.subr.mxu0 %v422
      %985 = vmatpush1.msra.mxu0 %v421
      %986 = vmatprep.subr.mxu0 %v424
      %987 = vmatpush1.msra.mxu0 %v423
      %988 = vmatprep.subr.mxu0 %v426
      %989 = vmatpush1.msra.mxu0 %v425
      %990 = vmatprep.subr.mxu0 %v428
      %991 = vmatpush1.msra.mxu0 %v427
      %992 = vmatprep.subr.mxu0 %v430
      %993 = vmatpush1.msra.mxu0 %v429
      %994 = vmatprep.subr.mxu0 %v432
      %995 = vmatpush1.msra.mxu0 %v431
      %996 = vmatprep.subr.mxu0 %v434
      %997 = vmatpush1.msra.mxu0 %v433
      %998 = vmatprep.subr.mxu0 %v436
      %999 = vmatpush1.msra.mxu0 %v435
      %1000 = vmatprep.subr.mxu0 %v438
      %1001 = vmatpush1.msra.mxu0 %v437
      %1002 = vmatprep.subr.mxu0 %v440
      %1003 = vmatpush1.msra.mxu0 %v439
      %1004 = vmatprep.subr.mxu0 %v442
      %1005 = vmatpush1.msra.mxu0 %v441
      %1006 = vmatprep.subr.mxu0 %v444
      %1007 = vmatpush1.msra.mxu0 %v443
      %1008 = vmatprep.subr.mxu0 %v446
      %1009 = vmatpush1.msra.mxu0 %v445
      %1010 = vmatprep.subr.mxu0 %v448
      %1011 = vmatpush1.msra.mxu0 %v447
      %1012 = vmatprep.subr.mxu0 %v450
      %1013 = vmatpush1.msra.mxu0 %v449
      %1014 = vmatprep.subr.mxu0 %v452
      %1015 = vmatpush1.msra.mxu0 %v451
      %1016 = vmatprep.subr.mxu0 %v454
      %1017 = vmatpush1.msra.mxu0 %v453
      %1018 = vmatprep.subr.mxu0 %v456
      %1019 = vmatpush1.msra.mxu0 %v455
      %1020 = vmatprep.subr.mxu0 %v458
      %1021 = vmatpush1.msra.mxu0 %v457
      %1022 = vmatprep.mubr.f32.mxu0 %v178
      %1023 = vmatmul.mubr.f32.gmra.mrb[0].mxu0 %v177
      %v1024 = vpop.f32.mrb[0].mxu0
      %v1025 = vadd.f32 %v948, %v1024
      %v1026 = vpop.f32.mrb[0].mxu0
      %v1027 = vadd.f32 %v950, %v1026
      %1028 = vmatprep.mubr.f32.mxu0 %v194
      %1029 = vmatmul.mubr.f32.gmra.mrb[0].mxu0 %v193
      %v1030 = vpop.f32.mrb[0].mxu0
      %v1031 = vadd.f32 %v954, %v1030
      %v1032 = vpop.f32.mrb[0].mxu0
      %v1033 = vadd.f32 %v956, %v1032
      %1034 = vdwg.mxu0
      %1035 = vmatprep.subr.mxu0 %v460
      %1036 = vmatpush1.msra.mxu0 %v459
      %1037 = vmatprep.subr.mxu0 %v462
      %1038 = vmatpush1.msra.mxu0 %v461
      %1039 = vmatprep.subr.mxu0 %v464
      %1040 = vmatpush1.msra.mxu0 %v463
      %1041 = vmatprep.subr.mxu0 %v466
      %1042 = vmatpush1.msra.mxu0 %v465
      %1043 = vmatprep.subr.mxu0 %v468
      %1044 = vmatpush1.msra.mxu0 %v467
      %1045 = vmatprep.subr.mxu0 %v470
      %1046 = vmatpush1.msra.mxu0 %v469
      %1047 = vmatprep.subr.mxu0 %v472
      %1048 = vmatpush1.msra.mxu0 %v471
      %1049 = vmatprep.subr.mxu0 %v474
      %1050 = vmatpush1.msra.mxu0 %v473
      %1051 = vmatprep.subr.mxu0 %v476
      %1052 = vmatpush1.msra.mxu0 %v475
      %1053 = vmatprep.subr.mxu0 %v478
      %1054 = vmatpush1.msra.mxu0 %v477
      %1055 = vmatprep.subr.mxu0 %v480
      %1056 = vmatpush1.msra.mxu0 %v479
      %1057 = vmatprep.subr.mxu0 %v482
      %1058 = vmatpush1.msra.mxu0 %v481
      %1059 = vmatprep.subr.mxu0 %v484
      %1060 = vmatpush1.msra.mxu0 %v483
      %1061 = vmatprep.subr.mxu0 %v486
      %1062 = vmatpush1.msra.mxu0 %v485
      %1063 = vmatprep.subr.mxu0 %v488
      %1064 = vmatpush1.msra.mxu0 %v487
      %1065 = vmatprep.subr.mxu0 %v490
      %1066 = vmatpush1.msra.mxu0 %v489
      %1067 = vmatprep.subr.mxu0 %v492
      %1068 = vmatpush1.msra.mxu0 %v491
      %1069 = vmatprep.subr.mxu0 %v494
      %1070 = vmatpush1.msra.mxu0 %v493
      %1071 = vmatprep.subr.mxu0 %v496
      %1072 = vmatpush1.msra.mxu0 %v495
      %1073 = vmatprep.subr.mxu0 %v498
      %1074 = vmatpush1.msra.mxu0 %v497
      %1075 = vmatprep.subr.mxu0 %v500
      %1076 = vmatpush1.msra.mxu0 %v499
      %1077 = vmatprep.subr.mxu0 %v502
      %1078 = vmatpush1.msra.mxu0 %v501
      %1079 = vmatprep.subr.mxu0 %v504
      %1080 = vmatpush1.msra.mxu0 %v503
      %1081 = vmatprep.subr.mxu0 %v506
      %1082 = vmatpush1.msra.mxu0 %v505
      %1083 = vmatprep.subr.mxu0 %v508
      %1084 = vmatpush1.msra.mxu0 %v507
      %1085 = vmatprep.subr.mxu0 %v510
      %1086 = vmatpush1.msra.mxu0 %v509
      %1087 = vmatprep.subr.mxu0 %v512
      %1088 = vmatpush1.msra.mxu0 %v511
      %1089 = vmatprep.subr.mxu0 %v514
      %1090 = vmatpush1.msra.mxu0 %v513
      %1091 = vmatprep.subr.mxu0 %v516
      %1092 = vmatpush1.msra.mxu0 %v515
      %1093 = vmatprep.subr.mxu0 %v518
      %1094 = vmatpush1.msra.mxu0 %v517
      %1095 = vmatprep.subr.mxu0 %v520
      %1096 = vmatpush1.msra.mxu0 %v519
      %1097 = vmatprep.subr.mxu0 %v522
      %1098 = vmatpush1.msra.mxu0 %v521
      %1099 = vmatprep.mubr.f32.mxu0 %v180
      %1100 = vmatmul.mubr.f32.gmra.mrb[0].mxu0 %v179
      %v1101 = vpop.f32.mrb[0].mxu0
      %v1102 = vadd.f32 %v1025, %v1101
      %v1103 = vpop.f32.mrb[0].mxu0
      %v1104 = vadd.f32 %v1027, %v1103
      %1105 = vmatprep.mubr.f32.mxu0 %v196
      %1106 = vmatmul.mubr.f32.gmra.mrb[0].mxu0 %v195
      %v1107 = vpop.f32.mrb[0].mxu0
      %v1108 = vadd.f32 %v1031, %v1107
      %v1109 = vpop.f32.mrb[0].mxu0
      %v1110 = vadd.f32 %v1033, %v1109
      %1111 = vdwg.mxu0
      %1112 = vmatprep.subr.mxu0 %v524
      %1113 = vmatpush1.msra.mxu0 %v523
      %1114 = vmatprep.subr.mxu0 %v526
      %1115 = vmatpush1.msra.mxu0 %v525
      %1116 = vmatprep.subr.mxu0 %v528
      %1117 = vmatpush1.msra.mxu0 %v527
      %1118 = vmatprep.subr.mxu0 %v530
      %1119 = vmatpush1.msra.mxu0 %v529
      %1120 = vmatprep.subr.mxu0 %v532
      %1121 = vmatpush1.msra.mxu0 %v531
      %1122 = vmatprep.subr.mxu0 %v534
      %1123 = vmatpush1.msra.mxu0 %v533
      %1124 = vmatprep.subr.mxu0 %v536
      %1125 = vmatpush1.msra.mxu0 %v535
      %1126 = vmatprep.subr.mxu0 %v538
      %1127 = vmatpush1.msra.mxu0 %v537
      %1128 = vmatprep.subr.mxu0 %v540
      %1129 = vmatpush1.msra.mxu0 %v539
      %1130 = vmatprep.subr.mxu0 %v542
      %1131 = vmatpush1.msra.mxu0 %v541
      %1132 = vmatprep.subr.mxu0 %v544
      %1133 = vmatpush1.msra.mxu0 %v543
      %1134 = vmatprep.subr.mxu0 %v546
      %1135 = vmatpush1.msra.mxu0 %v545
      %1136 = vmatprep.subr.mxu0 %v548
      %1137 = vmatpush1.msra.mxu0 %v547
      %1138 = vmatprep.subr.mxu0 %v550
      %1139 = vmatpush1.msra.mxu0 %v549
      %1140 = vmatprep.subr.mxu0 %v552
      %1141 = vmatpush1.msra.mxu0 %v551
      %1142 = vmatprep.subr.mxu0 %v554
      %1143 = vmatpush1.msra.mxu0 %v553
      %1144 = vmatprep.subr.mxu0 %v556
      %1145 = vmatpush1.msra.mxu0 %v555
      %1146 = vmatprep.subr.mxu0 %v558
      %1147 = vmatpush1.msra.mxu0 %v557
      %1148 = vmatprep.subr.mxu0 %v560
      %1149 = vmatpush1.msra.mxu0 %v559
      %1150 = vmatprep.subr.mxu0 %v562
      %1151 = vmatpush1.msra.mxu0 %v561
      %1152 = vmatprep.subr.mxu0 %v564
      %1153 = vmatpush1.msra.mxu0 %v563
      %1154 = vmatprep.subr.mxu0 %v566
      %1155 = vmatpush1.msra.mxu0 %v565
      %1156 = vmatprep.subr.mxu0 %v568
      %1157 = vmatpush1.msra.mxu0 %v567
      %1158 = vmatprep.subr.mxu0 %v570
      %1159 = vmatpush1.msra.mxu0 %v569
      %1160 = vmatprep.subr.mxu0 %v572
      %1161 = vmatpush1.msra.mxu0 %v571
      %1162 = vmatprep.subr.mxu0 %v574
      %1163 = vmatpush1.msra.mxu0 %v573
      %1164 = vmatprep.subr.mxu0 %v576
      %1165 = vmatpush1.msra.mxu0 %v575
      %1166 = vmatprep.subr.mxu0 %v578
      %1167 = vmatpush1.msra.mxu0 %v577
      %1168 = vmatprep.subr.mxu0 %v580
      %1169 = vmatpush1.msra.mxu0 %v579
      %1170 = vmatprep.subr.mxu0 %v582
      %1171 = vmatpush1.msra.mxu0 %v581
      %1172 = vmatprep.subr.mxu0 %v584
      %1173 = vmatpush1.msra.mxu0 %v583
      %1174 = vmatprep.subr.mxu0 %v586
      %1175 = vmatpush1.msra.mxu0 %v585
      %1176 = vmatprep.mubr.f32.mxu0 %v182
      %1177 = vmatmul.mubr.f32.gmra.mrb[0].mxu0 %v181
      %v1178 = vpop.f32.mrb[0].mxu0
      %v1179 = vadd.f32 %v1102, %v1178
      %v1180 = vpop.f32.mrb[0].mxu0
      %v1181 = vadd.f32 %v1104, %v1180
      %1182 = vmatprep.mubr.f32.mxu0 %v198
      %1183 = vmatmul.mubr.f32.gmra.mrb[0].mxu0 %v197
      %v1184 = vpop.f32.mrb[0].mxu0
      %v1185 = vadd.f32 %v1108, %v1184
      %v1186 = vpop.f32.mrb[0].mxu0
      %v1187 = vadd.f32 %v1110, %v1186
      %1188 = vdwg.mxu0
      %1189 = vmatprep.subr.mxu0 %v588
      %1190 = vmatpush1.msra.mxu0 %v587
      %1191 = vmatprep.subr.mxu0 %v590
      %1192 = vmatpush1.msra.mxu0 %v589
      %1193 = vmatprep.subr.mxu0 %v592
      %1194 = vmatpush1.msra.mxu0 %v591
      %1195 = vmatprep.subr.mxu0 %v594
      %1196 = vmatpush1.msra.mxu0 %v593
      %1197 = vmatprep.subr.mxu0 %v596
      %1198 = vmatpush1.msra.mxu0 %v595
      %1199 = vmatprep.subr.mxu0 %v598
      %1200 = vmatpush1.msra.mxu0 %v597
      %1201 = vmatprep.subr.mxu0 %v600
      %1202 = vmatpush1.msra.mxu0 %v599
      %1203 = vmatprep.subr.mxu0 %v602
      %1204 = vmatpush1.msra.mxu0 %v601
      %1205 = vmatprep.subr.mxu0 %v604
      %1206 = vmatpush1.msra.mxu0 %v603
      %1207 = vmatprep.subr.mxu0 %v606
      %1208 = vmatpush1.msra.mxu0 %v605
      %1209 = vmatprep.subr.mxu0 %v608
      %1210 = vmatpush1.msra.mxu0 %v607
      %1211 = vmatprep.subr.mxu0 %v610
      %1212 = vmatpush1.msra.mxu0 %v609
      %1213 = vmatprep.subr.mxu0 %v612
      %1214 = vmatpush1.msra.mxu0 %v611
      %1215 = vmatprep.subr.mxu0 %v614
      %1216 = vmatpush1.msra.mxu0 %v613
      %1217 = vmatprep.subr.mxu0 %v616
      %1218 = vmatpush1.msra.mxu0 %v615
      %1219 = vmatprep.subr.mxu0 %v618
      %1220 = vmatpush1.msra.mxu0 %v617
      %1221 = vmatprep.subr.mxu0 %v620
      %1222 = vmatpush1.msra.mxu0 %v619
      %1223 = vmatprep.subr.mxu0 %v622
      %1224 = vmatpush1.msra.mxu0 %v621
      %1225 = vmatprep.subr.mxu0 %v624
      %1226 = vmatpush1.msra.mxu0 %v623
      %1227 = vmatprep.subr.mxu0 %v626
      %1228 = vmatpush1.msra.mxu0 %v625
      %1229 = vmatprep.subr.mxu0 %v628
      %1230 = vmatpush1.msra.mxu0 %v627
      %1231 = vmatprep.subr.mxu0 %v630
      %1232 = vmatpush1.msra.mxu0 %v629
      %1233 = vmatprep.subr.mxu0 %v632
      %1234 = vmatpush1.msra.mxu0 %v631
      %1235 = vmatprep.subr.mxu0 %v634
      %1236 = vmatpush1.msra.mxu0 %v633
      %1237 = vmatprep.subr.mxu0 %v636
      %1238 = vmatpush1.msra.mxu0 %v635
      %1239 = vmatprep.subr.mxu0 %v638
      %1240 = vmatpush1.msra.mxu0 %v637
      %1241 = vmatprep.subr.mxu0 %v640
      %1242 = vmatpush1.msra.mxu0 %v639
      %1243 = vmatprep.subr.mxu0 %v642
      %1244 = vmatpush1.msra.mxu0 %v641
      %1245 = vmatprep.subr.mxu0 %v644
      %1246 = vmatpush1.msra.mxu0 %v643
      %1247 = vmatprep.subr.mxu0 %v646
      %1248 = vmatpush1.msra.mxu0 %v645
      %1249 = vmatprep.subr.mxu0 %v648
      %1250 = vmatpush1.msra.mxu0 %v647
      %1251 = vmatprep.subr.mxu0 %v650
      %1252 = vmatpush1.msra.mxu0 %v649
      %1253 = vmatprep.mubr.f32.mxu0 %v184
      %1254 = vmatmul.mubr.f32.gmra.mrb[0].mxu0 %v183
      %v1255 = vpop.f32.mrb[0].mxu0
      %v1256 = vadd.f32 %v1179, %v1255
      %v1257 = vpop.f32.mrb[0].mxu0
      %v1258 = vadd.f32 %v1181, %v1257
      %1259 = vmatprep.mubr.f32.mxu0 %v200
      %1260 = vmatmul.mubr.f32.gmra.mrb[0].mxu0 %v199
      %v1261 = vpop.f32.mrb[0].mxu0
      %v1262 = vadd.f32 %v1185, %v1261
      %v1263 = vpop.f32.mrb[0].mxu0
      %v1264 = vadd.f32 %v1187, %v1263
      %1265 = vdwg.mxu0
      %1266 = vmatprep.subr.mxu0 %v652
      %1267 = vmatpush1.msra.mxu0 %v651
      %1268 = vmatprep.subr.mxu0 %v654
      %1269 = vmatpush1.msra.mxu0 %v653
      %1270 = vmatprep.subr.mxu0 %v656
      %1271 = vmatpush1.msra.mxu0 %v655
      %1272 = vmatprep.subr.mxu0 %v658
      %1273 = vmatpush1.msra.mxu0 %v657
      %1274 = vmatprep.subr.mxu0 %v660
      %1275 = vmatpush1.msra.mxu0 %v659
      %1276 = vmatprep.subr.mxu0 %v662
      %1277 = vmatpush1.msra.mxu0 %v661
      %1278 = vmatprep.subr.mxu0 %v664
      %1279 = vmatpush1.msra.mxu0 %v663
      %1280 = vmatprep.subr.mxu0 %v666
      %1281 = vmatpush1.msra.mxu0 %v665
      %1282 = vmatprep.subr.mxu0 %v668
      %1283 = vmatpush1.msra.mxu0 %v667
      %1284 = vmatprep.subr.mxu0 %v670
      %1285 = vmatpush1.msra.mxu0 %v669
      %1286 = vmatprep.subr.mxu0 %v672
      %1287 = vmatpush1.msra.mxu0 %v671
      %1288 = vmatprep.subr.mxu0 %v674
      %1289 = vmatpush1.msra.mxu0 %v673
      %1290 = vmatprep.subr.mxu0 %v676
      %1291 = vmatpush1.msra.mxu0 %v675
      %1292 = vmatprep.subr.mxu0 %v678
      %1293 = vmatpush1.msra.mxu0 %v677
      %1294 = vmatprep.subr.mxu0 %v680
      %1295 = vmatpush1.msra.mxu0 %v679
      %1296 = vmatprep.subr.mxu0 %v682
      %1297 = vmatpush1.msra.mxu0 %v681
      %1298 = vmatprep.subr.mxu0 %v684
      %1299 = vmatpush1.msra.mxu0 %v683
      %1300 = vmatprep.subr.mxu0 %v686
      %1301 = vmatpush1.msra.mxu0 %v685
      %1302 = vmatprep.subr.mxu0 %v688
      %1303 = vmatpush1.msra.mxu0 %v687
      %1304 = vmatprep.subr.mxu0 %v690
      %1305 = vmatpush1.msra.mxu0 %v689
      %1306 = vmatprep.subr.mxu0 %v692
      %1307 = vmatpush1.msra.mxu0 %v691
      %1308 = vmatprep.subr.mxu0 %v694
      %1309 = vmatpush1.msra.mxu0 %v693
      %1310 = vmatprep.subr.mxu0 %v696
      %1311 = vmatpush1.msra.mxu0 %v695
      %1312 = vmatprep.subr.mxu0 %v698
      %1313 = vmatpush1.msra.mxu0 %v697
      %1314 = vmatprep.subr.mxu0 %v700
      %1315 = vmatpush1.msra.mxu0 %v699
      %1316 = vmatprep.subr.mxu0 %v702
      %1317 = vmatpush1.msra.mxu0 %v701
      %1318 = vmatprep.subr.mxu0 %v704
      %1319 = vmatpush1.msra.mxu0 %v703
      %1320 = vmatprep.subr.mxu0 %v706
      %1321 = vmatpush1.msra.mxu0 %v705
      %1322 = vmatprep.subr.mxu0 %v708
      %1323 = vmatpush1.msra.mxu0 %v707
      %1324 = vmatprep.subr.mxu0 %v710
      %1325 = vmatpush1.msra.mxu0 %v709
      %1326 = vmatprep.subr.mxu0 %v712
      %1327 = vmatpush1.msra.mxu0 %v711
      %1328 = vmatprep.subr.mxu0 %v714
      %1329 = vmatpush1.msra.mxu0 %v713
      %1330 = vmatprep.mubr.f32.mxu0 %v186
      %1331 = vmatmul.mubr.f32.gmra.mrb[0].mxu0 %v185
      %v1332 = vpop.f32.mrb[0].mxu0
      %v1333 = vadd.f32 %v1256, %v1332
      %v1334 = vpop.f32.mrb[0].mxu0
      %v1335 = vadd.f32 %v1258, %v1334
      %1336 = vmatprep.mubr.f32.mxu0 %v202
      %1337 = vmatmul.mubr.f32.gmra.mrb[0].mxu0 %v201
      %v1338 = vpop.f32.mrb[0].mxu0
      %v1339 = vadd.f32 %v1262, %v1338
      %v1340 = vpop.f32.mrb[0].mxu0
      %v1341 = vadd.f32 %v1264, %v1340
      %1342 = vdwg.mxu0
      %v1343 = vadd.f32 %v1333, %v1339
      %v1344 = vrot.slane %v1343, 4
      %v1345 = vadd.f32 %v1343, %v1344
      %v1346 = vrot.slane %v1345, 2
      %v1347 = vadd.f32 %v1345, %v1346
      %v1348 = vrot.slane %v1347, 1
      %v1349 = vadd.f32 %v1347, %v1348
      %v1350 = vadd.f32 %v1335, %v1341
      %v1351 = vrot.slane %v1350, 4
      %v1352 = vadd.f32 %v1350, %v1351
      %v1353 = vrot.slane %v1352, 2
      %v1354 = vadd.f32 %v1352, %v1353
      %v1355 = vrot.slane %v1354, 1
      %v1356 = vadd.f32 %v1354, %v1355
      %v1357 = vrcp.pop 16.0
      %v1358 = vmul.f32 %v1349, %v1357
      %v1359 = vmul.f32 %v1356, %v1357
      %v1360 = vsub.f32 %v1333, %v1358
      %v1361 = vsub.f32 %v1335, %v1359
      %v1362 = vsub.f32 %v1339, %v1358
      %v1363 = vsub.f32 %v1341, %v1359
      %v1364 = vmul.f32 %v1360, %v1360
      %v1365 = vmul.f32 %v1361, %v1361
      %v1366 = vmul.f32 %v1362, %v1362
      %v1367 = vmul.f32 %v1363, %v1363
      %v1368 = vadd.f32 %v1364, %v1366
      %v1369 = vrot.slane %v1368, 4
      %v1370 = vadd.f32 %v1368, %v1369
      %v1371 = vrot.slane %v1370, 2
      %v1372 = vadd.f32 %v1370, %v1371
      %v1373 = vrot.slane %v1372, 1
      %v1374 = vadd.f32 %v1372, %v1373
      %v1375 = vadd.f32 %v1365, %v1367
      %v1376 = vrot.slane %v1375, 4
      %v1377 = vadd.f32 %v1375, %v1376
      %v1378 = vrot.slane %v1377, 2
      %v1379 = vadd.f32 %v1377, %v1378
      %v1380 = vrot.slane %v1379, 1
      %v1381 = vadd.f32 %v1379, %v1380
      %v1382 = vmul.f32 %v1374, %v1357
      %v1383 = vmul.f32 %v1381, %v1357
      %v1384 = vadd.f32 %v1382, 1e-05
      %v1385 = vadd.f32 %v1383, 1e-05
      %v1386 = vrsqrt.pop %v1384
      %v1387 = vrsqrt.pop %v1385
      %v1388 = vmul.f32 %v1360, %v1386
      %v1389 = vmul.f32 %v1361, %v1387
      %v1390 = vmul.f32 %v1362, %v1386
      %v1391 = vmul.f32 %v1363, %v1387
      %vm1392 = vcmp.ge.f32.partialorder %v1388, 0.0
      %vm1393 = vcmp.ge.f32.partialorder %v1389, 0.0
      %vm1394 = vcmp.ge.f32.partialorder %v1390, 0.0
      %vm1395 = vcmp.ge.f32.partialorder %v1391, 0.0
      %v1396 = vmul.f32 %v1388, 0.2
      %v1397 = vmul.f32 %v1389, 0.2
      %v1398 = vmul.f32 %v1390, 0.2
      %v1399 = vmul.f32 %v1391, 0.2
      %v1400 = vsel %vm1392, %v1388, %v1396
      %v1401 = vsel %vm1393, %v1389, %v1397
      %v1402 = vsel %vm1394, %v1390, %v1398
      %v1403 = vsel %vm1395, %v1391, %v1399
      %1404 = vst [vmem:[%s170] sm:$0xff] %v1400
      %1405 = vst [vmem:[%s170 + $0x8] sm:$0xff] %v1401
      %1406 = vst [vmem:[%s170 + $0x10] sm:$0xff] %v1402
      %1407 = vst [vmem:[%s170 + $0x18] sm:$0xff] %v1403
      %p1408 = scmp.lt.s32.totalorder %s14, 1
      %s1409 = scalar_select %p1408, %s14, 1
      %s1410 = smul.addr %s1409, 4
      %s1411 = smul.addr %s1410, 8
      %s1412 = scalar_lea.vmem %s3, %s1411
      // Predicated region
      $region33: #{discriminator_forward.7} parent=31 // pred_check
        %p1413 = pneg %p100
      $region34: #{discriminator_forward.7} parent=31 // pred_check_branch
        %1415 = sbr.rel (%p1413) target = $region36
      $region35: #{discriminator_forward.7} parent=31 // pred_region
        _
      $region36: #{discriminator_forward.7} parent=31 // pred_fallthru
        _
    $region32: #{discriminator_forward.7} parent=5 // pred_fallthru
      _
    %p1416 = scmp.le.s32.totalorder 2, %s9
    // Predicated region
    $region37: #{discriminator_forward.7} parent=5 // pred_check
      %p1417 = pneg %p1416
    $region38: #{discriminator_forward.7} parent=5 // pred_check_branch
      %1419 = sbr.rel (%p1417) target = $region40
    $region39: #{discriminator_forward.7} parent=5 // pred_region
      %s1420 = ssub.s32 %s9, 2
      // Predicated region
      $region41: #{discriminator_forward.7} parent=39 // pred_check
        %p1421 = pneg %p106
      $region42: #{discriminator_forward.7} parent=39 // pred_check_branch
        %1423 = sbr.rel (%p1421) target = $region44
      $region43: #{discriminator_forward.7} parent=39 // pred_region
        %p1424 = scmp.lt.s32.totalorder %s15, 1
        %s1425 = scalar_select %p1424, %s15, 1
        %s1426 = smul.addr %s1425, 4
        %s1427 = smul.addr %s1426, 8
        %s1428 = scalar_lea.vmem %s3, %s1427
      $region44: #{discriminator_forward.7} parent=39 // pred_fallthru
        _
    $region40: #{discriminator_forward.7} parent=5 // pred_fallthru
      _
  $region6: #{discriminator_forward.7} parent=0 // loop_footer
    %s13 = sadd.s32 1, %s9
  $region7: #{discriminator_forward.7} parent=0 // loop_footer_branch
    %8 = sbr.rel target = $region3
  $region8: #{discriminator_forward.7} parent=0 // loop_exit
    _

// kernel: discriminator_forward.9
$region0: #{discriminator_forward.9}
  #allocation0 [shape = 'u32[]', space=smem, size = 0x4, offset = 0x4, fixed_abs, tag = 'smem constant byte address 0x4 - core index']
  #allocation1 [shape = 'u32[144,128]{1,0:T(1,128)}', space=vmem, size = 0x12000, scoped, tag = 'internal scratch']
  #allocation2 [shape = 'f32[1,1]{1,0:T(1,128)S(1)}', space=vmem, size = 0x200, scoped, tag = 'scoped memory for discriminator_forward.9']
  %s0 = inlined_call_operand.vmem [shape: f32[2,4,8192], index: 0, kind: input, shape index: {}]
  %s1 = inlined_call_operand.vmem [shape: f32[1,8192], index: 1, kind: input, shape index: {}]
  %s2 = inlined_call_operand.<no memory space> [shape: f32[1,1], index: 2, kind: input, shape index: {}]
  %s3 = inlined_call_operand.vmem [shape: f32[2,4,1], index: 3, kind: output, shape index: {}]
  %s4 = sld [smem:[#allocation0]]
  $region45: #{discriminator_forward.9} parent=0
    _
  %s6 = ssub.s32 1, %s4
  %s7 = scalar_select 0, %s6, %s4
  %v8 = vstv %s2
  %9 = vst [vmem:[#allocation2] sm:$0x1] %v8
  loop: start=0, step=1, limit=4
  $region2: #{discriminator_forward.9} parent=0 // loop_pre_header
    _
  $region3: #{discriminator_forward.9} parent=0 // loop_header
    %s11 = sphi 0, %s15
    %p12 = scmp.ge.s32.totalorder %s11, 4
    %s21 = sphi 0, %s23
    %s24 = sphi 0, %s21
    %s25 = sphi 0, %s24
    %s41 = sphi 0, %s25
    %s45 = sphi 0, %s45
    %s47 = sphi 0, %s45
    %s48 = sphi 0, %s47
    %s62 = sphi 0, %s48
    %s66 = sphi 0, %s66
    %s68 = sphi 0, %s66
    %s69 = sphi 0, %s68
    %s83 = sphi 0, %s69
    %s89 = sphi 0, %s91
    %s92 = sphi 0, %s89
    %s93 = sphi 0, %s92
    %s109 = sphi 0, %s93
  $region4: #{discriminator_forward.9} parent=0 // loop_header_branch
    %14 = sbr.rel (%p12) target = $region8
  $region5: #{discriminator_forward.9} parent=0 // loop_body
    %s16 = ssub.s32 %s11, 1
    %s17 = ssub.s32 %s11, 2
    %s18 = sadd.s32 %s11, 1
    %s19 = ssub.s32 %s11, %s18
    %p20 = scmp.eq.s32.totalorder %s19, 0
    %s22 = sadd.s32 %s21, 1
    %s23 = scalar_select %p20, %s21, %s22
    %p26 = pneg %p20
    %p27 = scmp.eq.s32.totalorder %s11, 1
    %p28 = por %p26, %p27
    %p29 = scmp.ne.s32.totalorder %s21, %s24
    %p30 = scmp.eq.s32.totalorder %s11, 0
    %p31 = por %p29, %p30
    %p32 = scmp.ne.s32.totalorder %s21, %s24
    %p33 = scmp.eq.s32.totalorder %s16, 1
    %p34 = por %p32, %p33
    %p35 = scmp.ne.s32.totalorder %s24, %s25
    %p36 = scmp.eq.s32.totalorder %s16, 0
    %p37 = por %p35, %p36
    %p38 = scmp.ne.s32.totalorder %s24, %s25
    %p39 = scmp.eq.s32.totalorder %s17, 1
    %p40 = por %p38, %p39
    %p42 = scmp.ne.s32.totalorder %s25, %s41
    %p43 = scmp.eq.s32.totalorder %s17, 0
    %p44 = por %p42, %p43
    %s46 = sadd.s32 %s45, 1
    %p49 = scmp.eq.s32.totalorder %s11, 1
    %p50 = scmp.ne.s32.totalorder %s45, %s47
    %p51 = scmp.eq.s32.totalorder %s11, 0
    %p52 = por %p50, %p51
    %p53 = scmp.ne.s32.totalorder %s45, %s47
    %p54 = scmp.eq.s32.totalorder %s16, 1
    %p55 = por %p53, %p54
    %p56 = scmp.ne.s32.totalorder %s47, %s48
    %p57 = scmp.eq.s32.totalorder %s16, 0
    %p58 = por %p56, %p57
    %p59 = scmp.ne.s32.totalorder %s47, %s48
    %p60 = scmp.eq.s32.totalorder %s17, 1
    %p61 = por %p59, %p60
    %p63 = scmp.ne.s32.totalorder %s48, %s62
    %p64 = scmp.eq.s32.totalorder %s17, 0
    %p65 = por %p63, %p64
    %s67 = sadd.s32 %s66, 1
    %p70 = scmp.eq.s32.totalorder %s11, 1
    %p71 = scmp.ne.s32.totalorder %s66, %s68
    %p72 = scmp.eq.s32.totalorder %s11, 0
    %p73 = por %p71, %p72
    %p74 = scmp.ne.s32.totalorder %s66, %s68
    %p75 = scmp.eq.s32.totalorder %s16, 1
    %p76 = por %p74, %p75
    %p77 = scmp.ne.s32.totalorder %s68, %s69
    %p78 = scmp.eq.s32.totalorder %s16, 0
    %p79 = por %p77, %p78
    %p80 = scmp.ne.s32.totalorder %s68, %s69
    %p81 = scmp.eq.s32.totalorder %s17, 1
    %p82 = por %p80, %p81
    %p84 = scmp.ne.s32.totalorder %s69, %s83
    %p85 = scmp.eq.s32.totalorder %s17, 0
    %p86 = por %p84, %p85
    %s87 = ssub.s32 %s11, %s18
    %p88 = scmp.eq.s32.totalorder %s87, 0
    %s90 = sadd.s32 %s89, 1
    %s91 = scalar_select %p88, %s89, %s90
    %p94 = pneg %p88
    %p95 = scmp.eq.s32.totalorder %s11, 1
    %p96 = por %p94, %p95
    %p97 = scmp.ne.s32.totalorder %s89, %s92
    %p98 = scmp.eq.s32.totalorder %s11, 0
    %p99 = por %p97, %p98
    %p100 = scmp.ne.s32.totalorder %s89, %s92
    %p101 = scmp.eq.s32.totalorder %s16, 1
    %p102 = por %p100, %p101
    %p103 = scmp.ne.s32.totalorder %s92, %s93
    %p104 = scmp.eq.s32.totalorder %s16, 0
    %p105 = por %p103, %p104
    %p106 = scmp.ne.s32.totalorder %s92, %s93
    %p107 = scmp.eq.s32.totalorder %s17, 1
    %p108 = por %p106, %p107
    %p110 = scmp.ne.s32.totalorder %s93, %s109
    %p111 = scmp.eq.s32.totalorder %s17, 0
    %p112 = por %p110, %p111
    %p113 = scmp.le.s32.totalorder 1, %s11
    %p114 = scmp.lt.s32.totalorder %s11, 3
    %p115 = pnand %p113, %p114
    %p116 = pneg %p115
    // Predicated region
    $region9: #{discriminator_forward.9} parent=5 // pred_check
      _
    $region10: #{discriminator_forward.9} parent=5 // pred_check_branch
      %118 = sbr.rel (%p115) target = $region12
    $region11: #{discriminator_forward.9} parent=5 // pred_region
      %s119 = ssub.s32 %s11, 1
      // Predicated region
      $region13: #{discriminator_forward.9} parent=11 // pred_check
        %p120 = pneg %p58
      $region14: #{discriminator_forward.9} parent=11 // pred_check_branch
        %122 = sbr.rel (%p120) target = $region16
      $region15: #{discriminator_forward.9} parent=11 // pred_region
        _
      $region16: #{discriminator_forward.9} parent=11 // pred_fallthru
        _
      // Predicated region
      $region17: #{discriminator_forward.9} parent=11 // pred_check
        %p123 = pneg %p79
      $region18: #{discriminator_forward.9} parent=11 // pred_check_branch
        %125 = sbr.rel (%p123) target = $region20
      $region19: #{discriminator_forward.9} parent=11 // pred_region
        _
      $region20: #{discriminator_forward.9} parent=11 // pred_fallthru
        _
    $region12: #{discriminator_forward.9} parent=5 // pred_fallthru
      _
    %p126 = scmp.lt.s32.totalorder %s11, 2
    // Predicated region
    $region21: #{discriminator_forward.9} parent=5 // pred_check
      %p127 = pneg %p126
    $region22: #{discriminator_forward.9} parent=5 // pred_check_branch
      %129 = sbr.rel (%p127) target = $region24
    $region23: #{discriminator_forward.9} parent=5 // pred_region
      // Predicated region
      $region25: #{discriminator_forward.9} parent=23 // pred_check
        %p130 = pneg %p31
      $region26: #{discriminator_forward.9} parent=23 // pred_check_branch
        %132 = sbr.rel (%p130) target = $region28
      $region27: #{discriminator_forward.9} parent=23 // pred_region
        %p133 = scmp.lt.s32.totalorder %s11, 1
        %s134 = scalar_select %p133, %s11, 1
        %s135 = smul.addr %s134, 64
        %s136 = smul.addr %s135, 4
        %s137 = scalar_lea.vmem %s0, %s136
      $region28: #{discriminator_forward.9} parent=23 // pred_fallthru
        _
    $region24: #{discriminator_forward.9} parent=5 // pred_fallthru
      _
    %p138 = scmp.le.s32.totalorder 1, %s11
    %p139 = scmp.lt.s32.totalorder %s11, 3
    %p140 = pnand %p138, %p139
    %p141 = pneg %p140
    // Predicated region
    $region29: #{discriminator_forward.9} parent=5 // pred_check
      _
    $region30: #{discriminator_forward.9} parent=5 // pred_check_branch
      %143 = sbr.rel (%p140) target = $region32
    $region31: #{discriminator_forward.9} parent=5 // pred_region
      %s144 = ssub.s32 %s11, 1
      %p145 = scmp.lt.s32.totalorder %s16, 1
      %s146 = scalar_select %p145, %s16, 1
      %s147 = smul.addr %s146, 64
      %s148 = smul.addr %s147, 4
      %s149 = scalar_lea.vmem %s0, %s148
      %p150 = pneg %p37
      %p151 = pneg %p34
      %p152 = pneg %p58
      %p153 = pneg %p55
      %p154 = pneg %p79
      %p155 = pneg %p76
      %p156 = pneg %p105
      %p157 = pneg %p102
      %p158 = scmp.lt.s32.totalorder %s16, 1
      %s159 = scalar_select %p158, %s16, 1
      %s160 = smul.addr %s159, 4
      %s161 = scalar_lea.vmem %s3, %s160
      %p162 = scmp.lt.s32.totalorder %s16, 1
      %s163 = scalar_select %p162, %s16, 1
      %s164 = smul.addr %s163, 64
      %s165 = smul.addr %s164, 4
      %s166 = scalar_lea.vmem %s0, %s165
      %p167 = scmp.lt.s32.totalorder %s16, 1
      %s168 = scalar_select %p167, %s16, 1
      %s169 = smul.addr %s168, 4
      %s170 = scalar_lea.vmem %s3, %s169
      %v171 = vld [vmem:[%s166] sm:$0xff]
      %v172 = vld [vmem:[%s166 + $0x8] sm:$0xff]
      %v173 = vld [vmem:[%s166 + $0x10] sm:$0xff]
      %v174 = vld [vmem:[%s166 + $0x18] sm:$0xff]
      %v175 = vld [vmem:[%s166 + $0x20] sm:$0xff]
      %v176 = vld [vmem:[%s166 + $0x28] sm:$0xff]
      %v177 = vld [vmem:[%s166 + $0x30] sm:$0xff]
      %v178 = vld [vmem:[%s166 + $0x38] sm:$0xff]
      %v179 = vld [vmem:[%s166 + $0x40] sm:$0xff]
      %v180 = vld [vmem:[%s166 + $0x48] sm:$0xff]
      %v181 = vld [vmem:[%s166 + $0x50] sm:$0xff]
      %v182 = vld [vmem:[%s166 + $0x58] sm:$0xff]
      %v183 = vld [vmem:[%s166 + $0x60] sm:$0xff]
      %v184 = vld [vmem:[%s166 + $0x68] sm:$0xff]
      %v185 = vld [vmem:[%s166 + $0x70] sm:$0xff]
      %v186 = vld [vmem:[%s166 + $0x78] sm:$0xff]
      %v187 = vld [vmem:[%s166 + $0x80] sm:$0xff]
      %v188 = vld [vmem:[%s166 + $0x88] sm:$0xff]
      %v189 = vld [vmem:[%s166 + $0x90] sm:$0xff]
      %v190 = vld [vmem:[%s166 + $0x98] sm:$0xff]
      %v191 = vld [vmem:[%s166 + $0xa0] sm:$0xff]
      %v192 = vld [vmem:[%s166 + $0xa8] sm:$0xff]
      %v193 = vld [vmem:[%s166 + $0xb0] sm:$0xff]
      %v194 = vld [vmem:[%s166 + $0xb8] sm:$0xff]
      %v195 = vld [vmem:[%s166 + $0xc0] sm:$0xff]
      %v196 = vld [vmem:[%s166 + $0xc8] sm:$0xff]
      %v197 = vld [vmem:[%s166 + $0xd0] sm:$0xff]
      %v198 = vld [vmem:[%s166 + $0xd8] sm:$0xff]
      %v199 = vld [vmem:[%s166 + $0xe0] sm:$0xff]
      %v200 = vld [vmem:[%s166 + $0xe8] sm:$0xff]
      %v201 = vld [vmem:[%s166 + $0xf0] sm:$0xff]
      %v202 = vld [vmem:[%s166 + $0xf8] sm:$0xff]
      %v203 = vld [vmem:[%s1] sm:$0xff]
      %v204 = vld [vmem:[%s1 + $0x8] sm:$0xff]
      %v205 = vld [vmem:[%s1 + $0x10] sm:$0xff]
      %v206 = vld [vmem:[%s1 + $0x18] sm:$0xff]
      %v207 = vld [vmem:[%s1 + $0x20] sm:$0xff]
      %v208 = vld [vmem:[%s1 + $0x28] sm:$0xff]
      %v209 = vld [vmem:[%s1 + $0x30] sm:$0xff]
      %v210 = vld [vmem:[%s1 + $0x38] sm:$0xff]
      %v219 = vlaneseq
      %v220 = vshrl.u32 %v219, 7
      %v221 = vsub.s32 0, %v220
      %v222 = vrot.slane %v203, %v221
      %v223 = vlaneseq
      %v224 = vshrl.u32 %v223, 7
      %v225 = vsub.s32 1, %v224
      %v226 = vrot.slane %v203, %v225
      %v227 = vlaneseq
      %v228 = vshrl.u32 %v227, 7
      %v229 = vsub.s32 2, %v228
      %v230 = vrot.slane %v203, %v229
      %v231 = vlaneseq
      %v232 = vshrl.u32 %v231, 7
      %v233 = vsub.s32 3, %v232
      %v234 = vrot.slane %v203, %v233
      %v235 = vlaneseq
      %v236 = vshrl.u32 %v235, 7
      %v237 = vsub.s32 4, %v236
      %v238 = vrot.slane %v203, %v237
      %v239 = vlaneseq
      %v240 = vshrl.u32 %v239, 7
      %v241 = vsub.s32 5, %v240
      %v242 = vrot.slane %v203, %v241
      %v243 = vlaneseq
      %v244 = vshrl.u32 %v243, 7
      %v245 = vsub.s32 6, %v244
      %v246 = vrot.slane %v203, %v245
      %v247 = vlaneseq
      %v248 = vshrl.u32 %v247, 7
      %v249 = vsub.s32 7, %v248
      %v250 = vrot.slane %v203, %v249
      %v251 = vlaneseq
      %v252 = vshrl.u32 %v251, 7
      %v253 = vsub.s32 0, %v252
      %v254 = vrot.slane %v204, %v253
      %v255 = vlaneseq
      %v256 = vshrl.u32 %v255, 7
      %v257 = vsub.s32 1, %v256
      %v258 = vrot.slane %v204, %v257
      %v259 = vlaneseq
      %v260 = vshrl.u32 %v259, 7
      %v261 = vsub.s32 2, %v260
      %v262 = vrot.slane %v204, %v261
      %v263 = vlaneseq
      %v264 = vshrl.u32 %v263, 7
      %v265 = vsub.s32 3, %v264
      %v266 = vrot.slane %v204, %v265
      %v267 = vlaneseq
      %v268 = vshrl.u32 %v267, 7
      %v269 = vsub.s32 4, %v268
      %v270 = vrot.slane %v204, %v269
      %v271 = vlaneseq
      %v272 = vshrl.u32 %v271, 7
      %v273 = vsub.s32 5, %v272
      %v274 = vrot.slane %v204, %v273
      %v275 = vlaneseq
      %v276 = vshrl.u32 %v275, 7
      %v277 = vsub.s32 6, %v276
      %v278 = vrot.slane %v204, %v277
      %v279 = vlaneseq
      %v280 = vshrl.u32 %v279, 7
      %v281 = vsub.s32 7, %v280
      %v282 = vrot.slane %v204, %v281
      %v283 = vlaneseq
      %v284 = vshrl.u32 %v283, 7
      %v285 = vsub.s32 0, %v284
      %v286 = vrot.slane %v205, %v285
      %v287 = vlaneseq
      %v288 = vshrl.u32 %v287, 7
      %v289 = vsub.s32 1, %v288
      %v290 = vrot.slane %v205, %v289
      %v291 = vlaneseq
      %v292 = vshrl.u32 %v291, 7
      %v293 = vsub.s32 2, %v292
      %v294 = vrot.slane %v205, %v293
      %v295 = vlaneseq
      %v296 = vshrl.u32 %v295, 7
      %v297 = vsub.s32 3, %v296
      %v298 = vrot.slane %v205, %v297
      %v299 = vlaneseq
      %v300 = vshrl.u32 %v299, 7
      %v301 = vsub.s32 4, %v300
      %v302 = vrot.slane %v205, %v301
      %v303 = vlaneseq
      %v304 = vshrl.u32 %v303, 7
      %v305 = vsub.s32 5, %v304
      %v306 = vrot.slane %v205, %v305
      %v307 = vlaneseq
      %v308 = vshrl.u32 %v307, 7
      %v309 = vsub.s32 6, %v308
      %v310 = vrot.slane %v205, %v309
      %v311 = vlaneseq
      %v312 = vshrl.u32 %v311, 7
      %v313 = vsub.s32 7, %v312
      %v314 = vrot.slane %v205, %v313
      %v315 = vlaneseq
      %v316 = vshrl.u32 %v315, 7
      %v317 = vsub.s32 0, %v316
      %v318 = vrot.slane %v206, %v317
      %v319 = vlaneseq
      %v320 = vshrl.u32 %v319, 7
      %v321 = vsub.s32 1, %v320
      %v322 = vrot.slane %v206, %v321
      %v323 = vlaneseq
      %v324 = vshrl.u32 %v323, 7
      %v325 = vsub.s32 2, %v324
      %v326 = vrot.slane %v206, %v325
      %v327 = vlaneseq
      %v328 = vshrl.u32 %v327, 7
      %v329 = vsub.s32 3, %v328
      %v330 = vrot.slane %v206, %v329
      %v331 = vlaneseq
      %v332 = vshrl.u32 %v331, 7
      %v333 = vsub.s32 4, %v332
      %v334 = vrot.slane %v206, %v333
      %v335 = vlaneseq
      %v336 = vshrl.u32 %v335, 7
      %v337 = vsub.s32 5, %v336
      %v338 = vrot.slane %v206, %v337
      %v339 = vlaneseq
      %v340 = vshrl.u32 %v339, 7
      %v341 = vsub.s32 6, %v340
      %v342 = vrot.slane %v206, %v341
      %v343 = vlaneseq
      %v344 = vshrl.u32 %v343, 7
      %v345 = vsub.s32 7, %v344
      %v346 = vrot.slane %v206, %v345
      %v347 = vlaneseq
      %v348 = vshrl.u32 %v347, 7
      %v349 = vsub.s32 0, %v348
      %v350 = vrot.slane %v207, %v349
      %v351 = vlaneseq
      %v352 = vshrl.u32 %v351, 7
      %v353 = vsub.s32 1, %v352
      %v354 = vrot.slane %v207, %v353
      %v355 = vlaneseq
      %v356 = vshrl.u32 %v355, 7
      %v357 = vsub.s32 2, %v356
      %v358 = vrot.slane %v207, %v357
      %v359 = vlaneseq
      %v360 = vshrl.u32 %v359, 7
      %v361 = vsub.s32 3, %v360
      %v362 = vrot.slane %v207, %v361
      %v363 = vlaneseq
      %v364 = vshrl.u32 %v363, 7
      %v365 = vsub.s32 4, %v364
      %v366 = vrot.slane %v207, %v365
      %v367 = vlaneseq
      %v368 = vshrl.u32 %v367, 7
      %v369 = vsub.s32 5, %v368
      %v370 = vrot.slane %v207, %v369
      %v371 = vlaneseq
      %v372 = vshrl.u32 %v371, 7
      %v373 = vsub.s32 6, %v372
      %v374 = vrot.slane %v207, %v373
      %v375 = vlaneseq
      %v376 = vshrl.u32 %v375, 7
      %v377 = vsub.s32 7, %v376
      %v378 = vrot.slane %v207, %v377
      %v379 = vlaneseq
      %v380 = vshrl.u32 %v379, 7
      %v381 = vsub.s32 0, %v380
      %v382 = vrot.slane %v208, %v381
      %v383 = vlaneseq
      %v384 = vshrl.u32 %v383, 7
      %v385 = vsub.s32 1, %v384
      %v386 = vrot.slane %v208, %v385
      %v387 = vlaneseq
      %v388 = vshrl.u32 %v387, 7
      %v389 = vsub.s32 2, %v388
      %v390 = vrot.slane %v208, %v389
      %v391 = vlaneseq
      %v392 = vshrl.u32 %v391, 7
      %v393 = vsub.s32 3, %v392
      %v394 = vrot.slane %v208, %v393
      %v395 = vlaneseq
      %v396 = vshrl.u32 %v395, 7
      %v397 = vsub.s32 4, %v396
      %v398 = vrot.slane %v208, %v397
      %v399 = vlaneseq
      %v400 = vshrl.u32 %v399, 7
      %v401 = vsub.s32 5, %v400
      %v402 = vrot.slane %v208, %v401
      %v403 = vlaneseq
      %v404 = vshrl.u32 %v403, 7
      %v405 = vsub.s32 6, %v404
      %v406 = vrot.slane %v208, %v405
      %v407 = vlaneseq
      %v408 = vshrl.u32 %v407, 7
      %v409 = vsub.s32 7, %v408
      %v410 = vrot.slane %v208, %v409
      %v411 = vlaneseq
      %v412 = vshrl.u32 %v411, 7
      %v413 = vsub.s32 0, %v412
      %v414 = vrot.slane %v209, %v413
      %v415 = vlaneseq
      %v416 = vshrl.u32 %v415, 7
      %v417 = vsub.s32 1, %v416
      %v418 = vrot.slane %v209, %v417
      %v419 = vlaneseq
      %v420 = vshrl.u32 %v419, 7
      %v421 = vsub.s32 2, %v420
      %v422 = vrot.slane %v209, %v421
      %v423 = vlaneseq
      %v424 = vshrl.u32 %v423, 7
      %v425 = vsub.s32 3, %v424
      %v426 = vrot.slane %v209, %v425
      %v427 = vlaneseq
      %v428 = vshrl.u32 %v427, 7
      %v429 = vsub.s32 4, %v428
      %v430 = vrot.slane %v209, %v429
      %v431 = vlaneseq
      %v432 = vshrl.u32 %v431, 7
      %v433 = vsub.s32 5, %v432
      %v434 = vrot.slane %v209, %v433
      %v435 = vlaneseq
      %v436 = vshrl.u32 %v435, 7
      %v437 = vsub.s32 6, %v436
      %v438 = vrot.slane %v209, %v437
      %v439 = vlaneseq
      %v440 = vshrl.u32 %v439, 7
      %v441 = vsub.s32 7, %v440
      %v442 = vrot.slane %v209, %v441
      %v443 = vlaneseq
      %v444 = vshrl.u32 %v443, 7
      %v445 = vsub.s32 0, %v444
      %v446 = vrot.slane %v210, %v445
      %v447 = vlaneseq
      %v448 = vshrl.u32 %v447, 7
      %v449 = vsub.s32 1, %v448
      %v450 = vrot.slane %v210, %v449
      %v451 = vlaneseq
      %v452 = vshrl.u32 %v451, 7
      %v453 = vsub.s32 2, %v452
      %v454 = vrot.slane %v210, %v453
      %v455 = vlaneseq
      %v456 = vshrl.u32 %v455, 7
      %v457 = vsub.s32 3, %v456
      %v458 = vrot.slane %v210, %v457
      %v459 = vlaneseq
      %v460 = vshrl.u32 %v459, 7
      %v461 = vsub.s32 4, %v460
      %v462 = vrot.slane %v210, %v461
      %v463 = vlaneseq
      %v464 = vshrl.u32 %v463, 7
      %v465 = vsub.s32 5, %v464
      %v466 = vrot.slane %v210, %v465
      %v467 = vlaneseq
      %v468 = vshrl.u32 %v467, 7
      %v469 = vsub.s32 6, %v468
      %v470 = vrot.slane %v210, %v469
      %v471 = vlaneseq
      %v472 = vshrl.u32 %v471, 7
      %v473 = vsub.s32 7, %v472
      %v474 = vrot.slane %v210, %v473
      %v475 = vcombine.low %v222, %v226
      %v476 = vcombine.low %v230, %v234
      %v477 = vcombine.low %v238, %v242
      %v478 = vcombine.low %v246, %v250
      %v479 = vcombine.low %v254, %v258
      %v480 = vcombine.low %v262, %v266
      %v481 = vcombine.low %v270, %v274
      %v482 = vcombine.low %v278, %v282
      %v483 = vcombine.low %v286, %v290
      %v484 = vcombine.low %v294, %v298
      %v485 = vcombine.low %v302, %v306
      %v486 = vcombine.low %v310, %v314
      %v487 = vcombine.low %v318, %v322
      %v488 = vcombine.low %v326, %v330
      %v489 = vcombine.low %v334, %v338
      %v490 = vcombine.low %v342, %v346
      %v491 = vcombine.low %v350, %v354
      %v492 = vcombine.low %v358, %v362
      %v493 = vcombine.low %v366, %v370
      %v494 = vcombine.low %v374, %v378
      %v495 = vcombine.low %v382, %v386
      %v496 = vcombine.low %v390, %v394
      %v497 = vcombine.low %v398, %v402
      %v498 = vcombine.low %v406, %v410
      %v499 = vcombine.low %v414, %v418
      %v500 = vcombine.low %v422, %v426
      %v501 = vcombine.low %v430, %v434
      %v502 = vcombine.low %v438, %v442
      %v503 = vcombine.low %v446, %v450
      %v504 = vcombine.low %v454, %v458
      %v505 = vcombine.low %v462, %v466
      %v506 = vcombine.low %v470, %v474
      %v539 = vmul.f32 %v171, %v475
      %v540 = vmul.f32 %v172, %v476
      %v541 = vmul.f32 %v173, %v477
      %v542 = vmul.f32 %v174, %v478
      %v543 = vmul.f32 %v175, %v479
      %v544 = vmul.f32 %v176, %v480
      %v545 = vmul.f32 %v177, %v481
      %v546 = vmul.f32 %v178, %v482
      %v547 = vmul.f32 %v179, %v483
      %v548 = vmul.f32 %v180, %v484
      %v549 = vmul.f32 %v181, %v485
      %v550 = vmul.f32 %v182, %v486
      %v551 = vmul.f32 %v183, %v487
      %v552 = vmul.f32 %v184, %v488
      %v553 = vmul.f32 %v185, %v489
      %v554 = vmul.f32 %v186, %v490
      %v555 = vmul.f32 %v187, %v491
      %v556 = vmul.f32 %v188, %v492
      %v557 = vmul.f32 %v189, %v493
      %v558 = vmul.f32 %v190, %v494
      %v559 = vmul.f32 %v191, %v495
      %v560 = vmul.f32 %v192, %v496
      %v561 = vmul.f32 %v193, %v497
      %v562 = vmul.f32 %v194, %v498
      %v563 = vmul.f32 %v195, %v499
      %v564 = vmul.f32 %v196, %v500
      %v565 = vmul.f32 %v197, %v501
      %v566 = vmul.f32 %v198, %v502
      %v567 = vmul.f32 %v199, %v503
      %v568 = vmul.f32 %v200, %v504
      %v569 = vmul.f32 %v201, %v505
      %v570 = vmul.f32 %v202, %v506
      %v603 = vcombine.high %v539, %v539
      %v604 = vcombine.high %v540, %v540
      %v605 = vcombine.high %v541, %v541
      %v606 = vcombine.high %v542, %v542
      %v607 = vcombine.high %v543, %v543
      %v608 = vcombine.high %v544, %v544
      %v609 = vcombine.high %v545, %v545
      %v610 = vcombine.high %v546, %v546
      %v611 = vcombine.high %v547, %v547
      %v612 = vcombine.high %v548, %v548
      %v613 = vcombine.high %v549, %v549
      %v614 = vcombine.high %v550, %v550
      %v615 = vcombine.high %v551, %v551
      %v616 = vcombine.high %v552, %v552
      %v617 = vcombine.high %v553, %v553
      %v618 = vcombine.high %v554, %v554
      %v619 = vcombine.high %v555, %v555
      %v620 = vcombine.high %v556, %v556
      %v621 = vcombine.high %v557, %v557
      %v622 = vcombine.high %v558, %v558
      %v623 = vcombine.high %v559, %v559
      %v624 = vcombine.high %v560, %v560
      %v625 = vcombine.high %v561, %v561
      %v626 = vcombine.high %v562, %v562
      %v627 = vcombine.high %v563, %v563
      %v628 = vcombine.high %v564, %v564
      %v629 = vcombine.high %v565, %v565
      %v630 = vcombine.high %v566, %v566
      %v631 = vcombine.high %v567, %v567
      %v632 = vcombine.high %v568, %v568
      %v633 = vcombine.high %v569, %v569
      %v634 = vcombine.high %v570, %v570
      %vm667 = vcmask 1043456
      %v668 = vsel %vm667, %v539, 0.0
      %v669 = vsel %vm667, %v603, 0.0
      %v670 = vadd.f32 %v668, %v669
      %v671 = vsel %vm667, %v540, 0.0
      %v672 = vadd.f32 %v670, %v671
      %v673 = vsel %vm667, %v604, 0.0
      %v674 = vadd.f32 %v672, %v673
      %v675 = vsel %vm667, %v541, 0.0
      %v676 = vadd.f32 %v674, %v675
      %v677 = vsel %vm667, %v605, 0.0
      %v678 = vadd.f32 %v676, %v677
      %v679 = vsel %vm667, %v542, 0.0
      %v680 = vadd.f32 %v678, %v679
      %v681 = vsel %vm667, %v606, 0.0
      %v682 = vadd.f32 %v680, %v681
      %v683 = vsel %vm667, %v543, 0.0
      %v684 = vadd.f32 %v682, %v683
      %v685 = vsel %vm667, %v607, 0.0
      %v686 = vadd.f32 %v684, %v685
      %v687 = vsel %vm667, %v544, 0.0
      %v688 = vadd.f32 %v686, %v687
      %v689 = vsel %vm667, %v608, 0.0
      %v690 = vadd.f32 %v688, %v689
      %v691 = vsel %vm667, %v545, 0.0
      %v692 = vadd.f32 %v690, %v691
      %v693 = vsel %vm667, %v609, 0.0
      %v694 = vadd.f32 %v692, %v693
      %v695 = vsel %vm667, %v546, 0.0
      %v696 = vadd.f32 %v694, %v695
      %v697 = vsel %vm667, %v610, 0.0
      %v698 = vadd.f32 %v696, %v697
      %v699 = vsel %vm667, %v547, 0.0
      %v700 = vadd.f32 %v698, %v699
      %v701 = vsel %vm667, %v611, 0.0
      %v702 = vadd.f32 %v700, %v701
      %v703 = vsel %vm667, %v548, 0.0
      %v704 = vadd.f32 %v702, %v703
      %v705 = vsel %vm667, %v612, 0.0
      %v706 = vadd.f32 %v704, %v705
      %v707 = vsel %vm667, %v549, 0.0
      %v708 = vadd.f32 %v706, %v707
      %v709 = vsel %vm667, %v613, 0.0
      %v710 = vadd.f32 %v708, %v709
      %v711 = vsel %vm667, %v550, 0.0
      %v712 = vadd.f32 %v710, %v711
      %v713 = vsel %vm667, %v614, 0.0
      %v714 = vadd.f32 %v712, %v713
      %v715 = vsel %vm667, %v551, 0.0
      %v716 = vadd.f32 %v714, %v715
      %v717 = vsel %vm667, %v615, 0.0
      %v718 = vadd.f32 %v716, %v717
      %v719 = vsel %vm667, %v552, 0.0
      %v720 = vadd.f32 %v718, %v719
      %v721 = vsel %vm667, %v616, 0.0
      %v722 = vadd.f32 %v720, %v721
      %v723 = vsel %vm667, %v553, 0.0
      %v724 = vadd.f32 %v722, %v723
      %v725 = vsel %vm667, %v617, 0.0
      %v726 = vadd.f32 %v724, %v725
      %v727 = vsel %vm667, %v554, 0.0
      %v728 = vadd.f32 %v726, %v727
      %v729 = vsel %vm667, %v618, 0.0
      %v730 = vadd.f32 %v728, %v729
      %v731 = vsel %vm667, %v555, 0.0
      %v732 = vadd.f32 %v730, %v731
      %v733 = vsel %vm667, %v619, 0.0
      %v734 = vadd.f32 %v732, %v733
      %v735 = vsel %vm667, %v556, 0.0
      %v736 = vadd.f32 %v734, %v735
      %v737 = vsel %vm667, %v620, 0.0
      %v738 = vadd.f32 %v736, %v737
      %v739 = vsel %vm667, %v557, 0.0
      %v740 = vadd.f32 %v738, %v739
      %v741 = vsel %vm667, %v621, 0.0
      %v742 = vadd.f32 %v740, %v741
      %v743 = vsel %vm667, %v558, 0.0
      %v744 = vadd.f32 %v742, %v743
      %v745 = vsel %vm667, %v622, 0.0
      %v746 = vadd.f32 %v744, %v745
      %v747 = vsel %vm667, %v559, 0.0
      %v748 = vadd.f32 %v746, %v747
      %v749 = vsel %vm667, %v623, 0.0
      %v750 = vadd.f32 %v748, %v749
      %v751 = vsel %vm667, %v560, 0.0
      %v752 = vadd.f32 %v750, %v751
      %v753 = vsel %vm667, %v624, 0.0
      %v754 = vadd.f32 %v752, %v753
      %v755 = vsel %vm667, %v561, 0.0
      %v756 = vadd.f32 %v754, %v755
      %v757 = vsel %vm667, %v625, 0.0
      %v758 = vadd.f32 %v756, %v757
      %v759 = vsel %vm667, %v562, 0.0
      %v760 = vadd.f32 %v758, %v759
      %v761 = vsel %vm667, %v626, 0.0
      %v762 = vadd.f32 %v760, %v761
      %v763 = vsel %vm667, %v563, 0.0
      %v764 = vadd.f32 %v762, %v763
      %v765 = vsel %vm667, %v627, 0.0
      %v766 = vadd.f32 %v764, %v765
      %v767 = vsel %vm667, %v564, 0.0
      %v768 = vadd.f32 %v766, %v767
      %v769 = vsel %vm667, %v628, 0.0
      %v770 = vadd.f32 %v768, %v769
      %v771 = vsel %vm667, %v565, 0.0
      %v772 = vadd.f32 %v770, %v771
      %v773 = vsel %vm667, %v629, 0.0
      %v774 = vadd.f32 %v772, %v773
      %v775 = vsel %vm667, %v566, 0.0
      %v776 = vadd.f32 %v774, %v775
      %v777 = vsel %vm667, %v630, 0.0
      %v778 = vadd.f32 %v776, %v777
      %v779 = vsel %vm667, %v567, 0.0
      %v780 = vadd.f32 %v778, %v779
      %v781 = vsel %vm667, %v631, 0.0
      %v782 = vadd.f32 %v780, %v781
      %v783 = vsel %vm667, %v568, 0.0
      %v784 = vadd.f32 %v782, %v783
      %v785 = vsel %vm667, %v632, 0.0
      %v786 = vadd.f32 %v784, %v785
      %v787 = vsel %vm667, %v569, 0.0
      %v788 = vadd.f32 %v786, %v787
      %v789 = vsel %vm667, %v633, 0.0
      %v790 = vadd.f32 %v788, %v789
      %v791 = vsel %vm667, %v570, 0.0
      %v792 = vadd.f32 %v790, %v791
      %v793 = vsel %vm667, %v634, 0.0
      %v794 = vadd.f32 %v792, %v793
      %795 = vadd.xlane.f32.xlu0 %v794
      %v796 = vpop.xlane.xlu0 %795
      %v797 = vld [vmem:[#allocation2] sm:$0x1]
      %v799 = vlaneseq
      %v800 = vshrl.u32 %v799, 7
      %v801 = vsub.s32 0, %v800
      %v802 = vrot.slane %v797, %v801
      %v804 = vadd.f32 %v796, %v802
      %vm805 = vcmask 3072
      %806 = vst.msk [vmem:[%s170] sm:$0xf] %vm805, %v804
      %p807 = scmp.lt.s32.totalorder %s16, 1
      %s808 = scalar_select %p807, %s16, 1
      %s809 = smul.addr %s808, 4
      %s810 = scalar_lea.vmem %s3, %s809
      // Predicated region
      $region33: #{discriminator_forward.9} parent=31 // pred_check
        %p811 = pneg %p102
      $region34: #{discriminator_forward.9} parent=31 // pred_check_branch
        %813 = sbr.rel (%p811) target = $region36
      $region35: #{discriminator_forward.9} parent=31 // pred_region
        _
      $region36: #{discriminator_forward.9} parent=31 // pred_fallthru
        _
    $region32: #{discriminator_forward.9} parent=5 // pred_fallthru
      _
    %p814 = scmp.le.s32.totalorder 2, %s11
    // Predicated region
    $region37: #{discriminator_forward.9} parent=5 // pred_check
      %p815 = pneg %p814
    $region38: #{discriminator_forward.9} parent=5 // pred_check_branch
      %817 = sbr.rel (%p815) target = $region40
    $region39: #{discriminator_forward.9} parent=5 // pred_region
      %s818 = ssub.s32 %s11, 2
      // Predicated region
      $region41: #{discriminator_forward.9} parent=39 // pred_check
        %p819 = pneg %p108
      $region42: #{discriminator_forward.9} parent=39 // pred_check_branch
        %821 = sbr.rel (%p819) target = $region44
      $region43: #{discriminator_forward.9} parent=39 // pred_region
        %p822 = scmp.lt.s32.totalorder %s17, 1
        %s823 = scalar_select %p822, %s17, 1
        %s824 = smul.addr %s823, 4
        %s825 = scalar_lea.vmem %s3, %s824
      $region44: #{discriminator_forward.9} parent=39 // pred_fallthru
        _
    $region40: #{discriminator_forward.9} parent=5 // pred_fallthru
      _
  $region6: #{discriminator_forward.9} parent=0 // loop_footer
    %s15 = sadd.s32 1, %s11
  $region7: #{discriminator_forward.9} parent=0 // loop_footer_branch
    %10 = sbr.rel target = $region3
  $region8: #{discriminator_forward.9} parent=0 // loop_exit
    _

// kernel: discriminator_forward.8
$region0: #{discriminator_forward.8}
  #allocation0 [shape = 'u32[]', space=smem, size = 0x4, offset = 0x4, fixed_abs, tag = 'smem constant byte address 0x4 - core index']
  #allocation1 [shape = 'u32[144,128]{1,0:T(1,128)}', space=vmem, size = 0x12000, scoped, tag = 'internal scratch']
  %s0 = inlined_call_operand.vmem [shape: f32[2,9,4096], index: 0, kind: input, shape index: {}]
  %s1 = inlined_call_operand.vmem [shape: f32[4096,512], index: 1, kind: input, shape index: {}]
  %s2 = inlined_call_operand.vmem [shape: f32[1,512], index: 2, kind: input, shape index: {}]
  %s3 = inlined_call_operand.vmem [shape: f32[2,9,512], index: 3, kind: output, shape index: {}]
  %s4 = sld [smem:[#allocation0]]
  $region45: #{discriminator_forward.8} parent=0
    _
  %s6 = ssub.s32 1, %s4
  %s7 = scalar_select 0, %s6, %s4
  loop: start=0, step=1, limit=4
  $region2: #{discriminator_forward.8} parent=0 // loop_pre_header
    _
  $region3: #{discriminator_forward.8} parent=0 // loop_header
    %s9 = sphi 0, %s13
    %p10 = scmp.ge.s32.totalorder %s9, 4
    %s19 = sphi 0, %s21
    %s22 = sphi 0, %s19
    %s23 = sphi 0, %s22
    %s39 = sphi 0, %s23
    %s43 = sphi 0, %s43
    %s45 = sphi 0, %s43
    %s46 = sphi 0, %s45
    %s60 = sphi 0, %s46
    %s64 = sphi 0, %s64
    %s66 = sphi 0, %s64
    %s67 = sphi 0, %s66
    %s81 = sphi 0, %s67
    %s87 = sphi 0, %s89
    %s90 = sphi 0, %s87
    %s91 = sphi 0, %s90
    %s107 = sphi 0, %s91
  $region4: #{discriminator_forward.8} parent=0 // loop_header_branch
    %12 = sbr.rel (%p10) target = $region8
  $region5: #{discriminator_forward.8} parent=0 // loop_body
    %s14 = ssub.s32 %s9, 1
    %s15 = ssub.s32 %s9, 2
    %s16 = sadd.s32 %s9, 1
    %s17 = ssub.s32 %s9, %s16
    %p18 = scmp.eq.s32.totalorder %s17, 0
    %s20 = sadd.s32 %s19, 1
    %s21 = scalar_select %p18, %s19, %s20
    %p24 = pneg %p18
    %p25 = scmp.eq.s32.totalorder %s9, 1
    %p26 = por %p24, %p25
    %p27 = scmp.ne.s32.totalorder %s19, %s22
    %p28 = scmp.eq.s32.totalorder %s9, 0
    %p29 = por %p27, %p28
    %p30 = scmp.ne.s32.totalorder %s19, %s22
    %p31 = scmp.eq.s32.totalorder %s14, 1
    %p32 = por %p30, %p31
    %p33 = scmp.ne.s32.totalorder %s22, %s23
    %p34 = scmp.eq.s32.totalorder %s14, 0
    %p35 = por %p33, %p34
    %p36 = scmp.ne.s32.totalorder %s22, %s23
    %p37 = scmp.eq.s32.totalorder %s15, 1
    %p38 = por %p36, %p37
    %p40 = scmp.ne.s32.totalorder %s23, %s39
    %p41 = scmp.eq.s32.totalorder %s15, 0
    %p42 = por %p40, %p41
    %s44 = sadd.s32 %s43, 1
    %p47 = scmp.eq.s32.totalorder %s9, 1
    %p48 = scmp.ne.s32.totalorder %s43, %s45
    %p49 = scmp.eq.s32.totalorder %s9, 0
    %p50 = por %p48, %p49
    %p51 = scmp.ne.s32.totalorder %s43, %s45
    %p52 = scmp.eq.s32.totalorder %s14, 1
    %p53 = por %p51, %p52
    %p54 = scmp.ne.s32.totalorder %s45, %s46
    %p55 = scmp.eq.s32.totalorder %s14, 0
    %p56 = por %p54, %p55
    %p57 = scmp.ne.s32.totalorder %s45, %s46
    %p58 = scmp.eq.s32.totalorder %s15, 1
    %p59 = por %p57, %p58
    %p61 = scmp.ne.s32.totalorder %s46, %s60
    %p62 = scmp.eq.s32.totalorder %s15, 0
    %p63 = por %p61, %p62
    %s65 = sadd.s32 %s64, 1
    %p68 = scmp.eq.s32.totalorder %s9, 1
    %p69 = scmp.ne.s32.totalorder %s64, %s66
    %p70 = scmp.eq.s32.totalorder %s9, 0
    %p71 = por %p69, %p70
    %p72 = scmp.ne.s32.totalorder %s64, %s66
    %p73 = scmp.eq.s32.totalorder %s14, 1
    %p74 = por %p72, %p73
    %p75 = scmp.ne.s32.totalorder %s66, %s67
    %p76 = scmp.eq.s32.totalorder %s14, 0
    %p77 = por %p75, %p76
    %p78 = scmp.ne.s32.totalorder %s66, %s67
    %p79 = scmp.eq.s32.totalorder %s15, 1
    %p80 = por %p78, %p79
    %p82 = scmp.ne.s32.totalorder %s67, %s81
    %p83 = scmp.eq.s32.totalorder %s15, 0
    %p84 = por %p82, %p83
    %s85 = ssub.s32 %s9, %s16
    %p86 = scmp.eq.s32.totalorder %s85, 0
    %s88 = sadd.s32 %s87, 1
    %s89 = scalar_select %p86, %s87, %s88
    %p92 = pneg %p86
    %p93 = scmp.eq.s32.totalorder %s9, 1
    %p94 = por %p92, %p93
    %p95 = scmp.ne.s32.totalorder %s87, %s90
    %p96 = scmp.eq.s32.totalorder %s9, 0
    %p97 = por %p95, %p96
    %p98 = scmp.ne.s32.totalorder %s87, %s90
    %p99 = scmp.eq.s32.totalorder %s14, 1
    %p100 = por %p98, %p99
    %p101 = scmp.ne.s32.totalorder %s90, %s91
    %p102 = scmp.eq.s32.totalorder %s14, 0
    %p103 = por %p101, %p102
    %p104 = scmp.ne.s32.totalorder %s90, %s91
    %p105 = scmp.eq.s32.totalorder %s15, 1
    %p106 = por %p104, %p105
    %p108 = scmp.ne.s32.totalorder %s91, %s107
    %p109 = scmp.eq.s32.totalorder %s15, 0
    %p110 = por %p108, %p109
    %p111 = scmp.le.s32.totalorder 1, %s9
    %p112 = scmp.lt.s32.totalorder %s9, 3
    %p113 = pnand %p111, %p112
    %p114 = pneg %p113
    // Predicated region
    $region9: #{discriminator_forward.8} parent=5 // pred_check
      _
    $region10: #{discriminator_forward.8} parent=5 // pred_check_branch
      %116 = sbr.rel (%p113) target = $region12
    $region11: #{discriminator_forward.8} parent=5 // pred_region
      %s117 = ssub.s32 %s9, 1
      // Predicated region
      $region13: #{discriminator_forward.8} parent=11 // pred_check
        %p118 = pneg %p56
      $region14: #{discriminator_forward.8} parent=11 // pred_check_branch
        %120 = sbr.rel (%p118) target = $region16
      $region15: #{discriminator_forward.8} parent=11 // pred_region
        _
      $region16: #{discriminator_forward.8} parent=11 // pred_fallthru
        _
      // Predicated region
      $region17: #{discriminator_forward.8} parent=11 // pred_check
        %p121 = pneg %p77
      $region18: #{discriminator_forward.8} parent=11 // pred_check_branch
        %123 = sbr.rel (%p121) target = $region20
      $region19: #{discriminator_forward.8} parent=11 // pred_region
        _
      $region20: #{discriminator_forward.8} parent=11 // pred_fallthru
        _
    $region12: #{discriminator_forward.8} parent=5 // pred_fallthru
      _
    %p124 = scmp.lt.s32.totalorder %s9, 2
    // Predicated region
    $region21: #{discriminator_forward.8} parent=5 // pred_check
      %p125 = pneg %p124
    $region22: #{discriminator_forward.8} parent=5 // pred_check_branch
      %127 = sbr.rel (%p125) target = $region24
    $region23: #{discriminator_forward.8} parent=5 // pred_region
      // Predicated region
      $region25: #{discriminator_forward.8} parent=23 // pred_check
        %p128 = pneg %p29
      $region26: #{discriminator_forward.8} parent=23 // pred_check_branch
        %130 = sbr.rel (%p128) target = $region28
      $region27: #{discriminator_forward.8} parent=23 // pred_region
        %p131 = scmp.lt.s32.totalorder %s9, 1
        %s132 = scalar_select %p131, %s9, 1
        %s133 = smul.addr %s132, 64
        %s134 = smul.addr %s133, 8
        %s135 = scalar_lea.vmem %s0, %s134
      $region28: #{discriminator_forward.8} parent=23 // pred_fallthru
        _
    $region24: #{discriminator_forward.8} parent=5 // pred_fallthru
      _
    %p136 = scmp.le.s32.totalorder 1, %s9
    %p137 = scmp.lt.s32.totalorder %s9, 3
    %p138 = pnand %p136, %p137
    %p139 = pneg %p138
    // Predicated region
    $region29: #{discriminator_forward.8} parent=5 // pred_check
      _
    $region30: #{discriminator_forward.8} parent=5 // pred_check_branch
      %141 = sbr.rel (%p138) target = $region32
    $region31: #{discriminator_forward.8} parent=5 // pred_region
      %s142 = ssub.s32 %s9, 1
      %p143 = scmp.lt.s32.totalorder %s14, 1
      %s144 = scalar_select %p143, %s14, 1
      %s145 = smul.addr %s144, 64
      %s146 = smul.addr %s145, 8
      %s147 = scalar_lea.vmem %s0, %s146
      %p148 = pneg %p35
      %p149 = pneg %p32
      %p150 = pneg %p56
      %p151 = pneg %p53
      %p152 = pneg %p77
      %p153 = pneg %p74
      %p154 = pneg %p103
      %p155 = pneg %p100
      %p156 = scmp.lt.s32.totalorder %s14, 1
      %s157 = scalar_select %p156, %s14, 1
      %s158 = smul.addr %s157, 8
      %s159 = smul.addr %s158, 8
      %s160 = scalar_lea.vmem %s3, %s159
      %p161 = scmp.lt.s32.totalorder %s14, 1
      %s162 = scalar_select %p161, %s14, 1
      %s163 = smul.addr %s162, 64
      %s164 = smul.addr %s163, 8
      %s165 = scalar_lea.vmem %s0, %s164
      %p166 = scmp.lt.s32.totalorder %s14, 1
      %s167 = scalar_select %p166, %s14, 1
      %s168 = smul.addr %s167, 8
      %s169 = smul.addr %s168, 8
      %s170 = scalar_lea.vmem %s3, %s169
      %v171 = vld [vmem:[%s165] sm:$0xff]
      %v172 = vld [vmem:[%s165 + $0x8] sm:$0xff]
      %v173 = vld [vmem:[%s165 + $0x10] sm:$0xff]
      %v174 = vld [vmem:[%s165 + $0x18] sm:$0xff]
      %v175 = vld [vmem:[%s165 + $0x20] sm:$0xff]
      %v176 = vld [vmem:[%s165 + $0x28] sm:$0xff]
      %v177 = vld [vmem:[%s165 + $0x30] sm:$0xff]
      %v178 = vld [vmem:[%s165 + $0x38] sm:$0xff]
      %v179 = vld [vmem:[%s165 + $0x40] sm:$0xff]
      %v180 = vld [vmem:[%s165 + $0x48] sm:$0xff]
      %v181 = vld [vmem:[%s165 + $0x50] sm:$0xff]
      %v182 = vld [vmem:[%s165 + $0x58] sm:$0xff]
      %v183 = vld [vmem:[%s165 + $0x60] sm:$0xff]
      %v184 = vld [vmem:[%s165 + $0x68] sm:$0xff]
      %v185 = vld [vmem:[%s165 + $0x70] sm:$0xff]
      %v186 = vld [vmem:[%s165 + $0x78] sm:$0xff]
      %v187 = vld [vmem:[%s165 + $0x80] sm:$0xff]
      %v188 = vld [vmem:[%s165 + $0x88] sm:$0xff]
      %v189 = vld [vmem:[%s165 + $0x90] sm:$0xff]
      %v190 = vld [vmem:[%s165 + $0x98] sm:$0xff]
      %v191 = vld [vmem:[%s165 + $0xa0] sm:$0xff]
      %v192 = vld [vmem:[%s165 + $0xa8] sm:$0xff]
      %v193 = vld [vmem:[%s165 + $0xb0] sm:$0xff]
      %v194 = vld [vmem:[%s165 + $0xb8] sm:$0xff]
      %v195 = vld [vmem:[%s165 + $0xc0] sm:$0xff]
      %v196 = vld [vmem:[%s165 + $0xc8] sm:$0xff]
      %v197 = vld [vmem:[%s165 + $0xd0] sm:$0xff]
      %v198 = vld [vmem:[%s165 + $0xd8] sm:$0xff]
      %v199 = vld [vmem:[%s165 + $0xe0] sm:$0xff]
      %v200 = vld [vmem:[%s165 + $0xe8] sm:$0xff]
      %v201 = vld [vmem:[%s165 + $0xf0] sm:$0xff]
      %v202 = vld [vmem:[%s165 + $0xf8] sm:$0xff]
      %v203 = vld [vmem:[%s165 + $0x100] sm:$0x1]
      %v204 = vld [vmem:[%s165 + $0x108] sm:$0x1]
      %v205 = vld [vmem:[%s165 + $0x110] sm:$0x1]
      %v206 = vld [vmem:[%s165 + $0x118] sm:$0x1]
      %v207 = vld [vmem:[%s165 + $0x120] sm:$0x1]
      %v208 = vld [vmem:[%s165 + $0x128] sm:$0x1]
      %v209 = vld [vmem:[%s165 + $0x130] sm:$0x1]
      %v210 = vld [vmem:[%s165 + $0x138] sm:$0x1]
      %v211 = vld [vmem:[%s165 + $0x140] sm:$0x1]
      %v212 = vld [vmem:[%s165 + $0x148] sm:$0x1]
      %v213 = vld [vmem:[%s165 + $0x150] sm:$0x1]
      %v214 = vld [vmem:[%s165 + $0x158] sm:$0x1]
      %v215 = vld [vmem:[%s165 + $0x160] sm:$0x1]
      %v216 = vld [vmem:[%s165 + $0x168] sm:$0x1]
      %v217 = vld [vmem:[%s165 + $0x170] sm:$0x1]
      %v218 = vld [vmem:[%s165 + $0x178] sm:$0x1]
      %v219 = vld [vmem:[%s165 + $0x180] sm:$0x1]
      %v220 = vld [vmem:[%s165 + $0x188] sm:$0x1]
      %v221 = vld [vmem:[%s165 + $0x190] sm:$0x1]
      %v222 = vld [vmem:[%s165 + $0x198] sm:$0x1]
      %v223 = vld [vmem:[%s165 + $0x1a0] sm:$0x1]
      %v224 = vld [vmem:[%s165 + $0x1a8] sm:$0x1]
      %v225 = vld [vmem:[%s165 + $0x1b0] sm:$0x1]
      %v226 = vld [vmem:[%s165 + $0x1b8] sm:$0x1]
      %v227 = vld [vmem:[%s165 + $0x1c0] sm:$0x1]
      %v228 = vld [vmem:[%s165 + $0x1c8] sm:$0x1]
      %v229 = vld [vmem:[%s165 + $0x1d0] sm:$0x1]
      %v230 = vld [vmem:[%s165 + $0x1d8] sm:$0x1]
      %v231 = vld [vmem:[%s165 + $0x1e0] sm:$0x1]
      %v232 = vld [vmem:[%s165 + $0x1e8] sm:$0x1]
      %v233 = vld [vmem:[%s165 + $0x1f0] sm:$0x1]
      %v234 = vld [vmem:[%s165 + $0x1f8] sm:$0x1]
      %v235 = vld [vmem:[%s1] sm:$0xff]
      %v236 = vld [vmem:[%s1 + $0x8] sm:$0xff]
      %v237 = vld [vmem:[%s1 + $0x10] sm:$0xff]
      %v238 = vld [vmem:[%s1 + $0x18] sm:$0xff]
      %v239 = vld [vmem:[%s1 + $0x20] sm:$0xff]
      %v240 = vld [vmem:[%s1 + $0x28] sm:$0xff]
      %v241 = vld [vmem:[%s1 + $0x30] sm:$0xff]
      %v242 = vld [vmem:[%s1 + $0x38] sm:$0xff]
      %v243 = vld [vmem:[%s1 + $0x40] sm:$0xff]
      %v244 = vld [vmem:[%s1 + $0x48] sm:$0xff]
      %v245 = vld [vmem:[%s1 + $0x50] sm:$0xff]
      %v246 = vld [vmem:[%s1 + $0x58] sm:$0xff]
      %v247 = vld [vmem:[%s1 + $0x60] sm:$0xff]
      %v248 = vld [vmem:[%s1 + $0x68] sm:$0xff]
      %v249 = vld [vmem:[%s1 + $0x70] sm:$0xff]
      %v250 = vld [vmem:[%s1 + $0x78] sm:$0xff]
      %v251 = vld [vmem:[%s1 + $0x80] sm:$0xff]
      %v252 = vld [vmem:[%s1 + $0x88] sm:$0xff]
      %v253 = vld [vmem:[%s1 + $0x90] sm:$0xff]
      %v254 = vld [vmem:[%s1 + $0x98] sm:$0xff]
      %v255 = vld [vmem:[%s1 + $0xa0] sm:$0xff]
      %v256 = vld [vmem:[%s1 + $0xa8] sm:$0xff]
      %v257 = vld [vmem:[%s1 + $0xb0] sm:$0xff]
      %v258 = vld [vmem:[%s1 + $0xb8] sm:$0xff]
      %v259 = vld [vmem:[%s1 + $0xc0] sm:$0xff]
      %v260 = vld [vmem:[%s1 + $0xc8] sm:$0xff]
      %v261 = vld [vmem:[%s1 + $0xd0] sm:$0xff]
      %v262 = vld [vmem:[%s1 + $0xd8] sm:$0xff]
      %v263 = vld [vmem:[%s1 + $0xe0] sm:$0xff]
      %v264 = vld [vmem:[%s1 + $0xe8] sm:$0xff]
      %v265 = vld [vmem:[%s1 + $0xf0] sm:$0xff]
      %v266 = vld [vmem:[%s1 + $0xf8] sm:$0xff]
      %v267 = vld [vmem:[%s1 + $0x100] sm:$0xff]
      %v268 = vld [vmem:[%s1 + $0x108] sm:$0xff]
      %v269 = vld [vmem:[%s1 + $0x110] sm:$0xff]
      %v270 = vld [vmem:[%s1 + $0x118] sm:$0xff]
      %v271 = vld [vmem:[%s1 + $0x120] sm:$0xff]
      %v272 = vld [vmem:[%s1 + $0x128] sm:$0xff]
      %v273 = vld [vmem:[%s1 + $0x130] sm:$0xff]
      %v274 = vld [vmem:[%s1 + $0x138] sm:$0xff]
      %v275 = vld [vmem:[%s1 + $0x140] sm:$0xff]
      %v276 = vld [vmem:[%s1 + $0x148] sm:$0xff]
      %v277 = vld [vmem:[%s1 + $0x150] sm:$0xff]
      %v278 = vld [vmem:[%s1 + $0x158] sm:$0xff]
      %v279 = vld [vmem:[%s1 + $0x160] sm:$0xff]
      %v280 = vld [vmem:[%s1 + $0x168] sm:$0xff]
      %v281 = vld [vmem:[%s1 + $0x170] sm:$0xff]
      %v282 = vld [vmem:[%s1 + $0x178] sm:$0xff]
      %v283 = vld [vmem:[%s1 + $0x180] sm:$0xff]
      %v284 = vld [vmem:[%s1 + $0x188] sm:$0xff]
      %v285 = vld [vmem:[%s1 + $0x190] sm:$0xff]
      %v286 = vld [vmem:[%s1 + $0x198] sm:$0xff]
      %v287 = vld [vmem:[%s1 + $0x1a0] sm:$0xff]
      %v288 = vld [vmem:[%s1 + $0x1a8] sm:$0xff]
      %v289 = vld [vmem:[%s1 + $0x1b0] sm:$0xff]
      %v290 = vld [vmem:[%s1 + $0x1b8] sm:$0xff]
      %v291 = vld [vmem:[%s1 + $0x1c0] sm:$0xff]
      %v292 = vld [vmem:[%s1 + $0x1c8] sm:$0xff]
      %v293 = vld [vmem:[%s1 + $0x1d0] sm:$0xff]
      %v294 = vld [vmem:[%s1 + $0x1d8] sm:$0xff]
      %v295 = vld [vmem:[%s1 + $0x1e0] sm:$0xff]
      %v296 = vld [vmem:[%s1 + $0x1e8] sm:$0xff]
      %v297 = vld [vmem:[%s1 + $0x1f0] sm:$0xff]
      %v298 = vld [vmem:[%s1 + $0x1f8] sm:$0xff]
      %v299 = vld [vmem:[%s1 + $0x200] sm:$0xff]
      %v300 = vld [vmem:[%s1 + $0x208] sm:$0xff]
      %v301 = vld [vmem:[%s1 + $0x210] sm:$0xff]
      %v302 = vld [vmem:[%s1 + $0x218] sm:$0xff]
      %v303 = vld [vmem:[%s1 + $0x220] sm:$0xff]
      %v304 = vld [vmem:[%s1 + $0x228] sm:$0xff]
      %v305 = vld [vmem:[%s1 + $0x230] sm:$0xff]
      %v306 = vld [vmem:[%s1 + $0x238] sm:$0xff]
      %v307 = vld [vmem:[%s1 + $0x240] sm:$0xff]
      %v308 = vld [vmem:[%s1 + $0x248] sm:$0xff]
      %v309 = vld [vmem:[%s1 + $0x250] sm:$0xff]
      %v310 = vld [vmem:[%s1 + $0x258] sm:$0xff]
      %v311 = vld [vmem:[%s1 + $0x260] sm:$0xff]
      %v312 = vld [vmem:[%s1 + $0x268] sm:$0xff]
      %v313 = vld [vmem:[%s1 + $0x270] sm:$0xff]
      %v314 = vld [vmem:[%s1 + $0x278] sm:$0xff]
      %v315 = vld [vmem:[%s1 + $0x280] sm:$0xff]
      %v316 = vld [vmem:[%s1 + $0x288] sm:$0xff]
      %v317 = vld [vmem:[%s1 + $0x290] sm:$0xff]
      %v318 = vld [vmem:[%s1 + $0x298] sm:$0xff]
      %v319 = vld [vmem:[%s1 + $0x2a0] sm:$0xff]
      %v320 = vld [vmem:[%s1 + $0x2a8] sm:$0xff]
      %v321 = vld [vmem:[%s1 + $0x2b0] sm:$0xff]
      %v322 = vld [vmem:[%s1 + $0x2b8] sm:$0xff]
      %v323 = vld [vmem:[%s1 + $0x2c0] sm:$0xff]
      %v324 = vld [vmem:[%s1 + $0x2c8] sm:$0xff]
      %v325 = vld [vmem:[%s1 + $0x2d0] sm:$0xff]
      %v326 = vld [vmem:[%s1 + $0x2d8] sm:$0xff]
      %v327 = vld [vmem:[%s1 + $0x2e0] sm:$0xff]
      %v328 = vld [vmem:[%s1 + $0x2e8] sm:$0xff]
      %v329 = vld [vmem:[%s1 + $0x2f0] sm:$0xff]
      %v330 = vld [vmem:[%s1 + $0x2f8] sm:$0xff]
      %v331 = vld [vmem:[%s1 + $0x300] sm:$0xff]
      %v332 = vld [vmem:[%s1 + $0x308] sm:$0xff]
      %v333 = vld [vmem:[%s1 + $0x310] sm:$0xff]
      %v334 = vld [vmem:[%s1 + $0x318] sm:$0xff]
      %v335 = vld [vmem:[%s1 + $0x320] sm:$0xff]
      %v336 = vld [vmem:[%s1 + $0x328] sm:$0xff]
      %v337 = vld [vmem:[%s1 + $0x330] sm:$0xff]
      %v338 = vld [vmem:[%s1 + $0x338] sm:$0xff]
      %v339 = vld [vmem:[%s1 + $0x340] sm:$0xff]
      %v340 = vld [vmem:[%s1 + $0x348] sm:$0xff]
      %v341 = vld [vmem:[%s1 + $0x350] sm:$0xff]
      %v342 = vld [vmem:[%s1 + $0x358] sm:$0xff]
      %v343 = vld [vmem:[%s1 + $0x360] sm:$0xff]
      %v344 = vld [vmem:[%s1 + $0x368] sm:$0xff]
      %v345 = vld [vmem:[%s1 + $0x370] sm:$0xff]
      %v346 = vld [vmem:[%s1 + $0x378] sm:$0xff]
      %v347 = vld [vmem:[%s1 + $0x380] sm:$0xff]
      %v348 = vld [vmem:[%s1 + $0x388] sm:$0xff]
      %v349 = vld [vmem:[%s1 + $0x390] sm:$0xff]
      %v350 = vld [vmem:[%s1 + $0x398] sm:$0xff]
      %v351 = vld [vmem:[%s1 + $0x3a0] sm:$0xff]
      %v352 = vld [vmem:[%s1 + $0x3a8] sm:$0xff]
      %v353 = vld [vmem:[%s1 + $0x3b0] sm:$0xff]
      %v354 = vld [vmem:[%s1 + $0x3b8] sm:$0xff]
      %v355 = vld [vmem:[%s1 + $0x3c0] sm:$0xff]
      %v356 = vld [vmem:[%s1 + $0x3c8] sm:$0xff]
      %v357 = vld [vmem:[%s1 + $0x3d0] sm:$0xff]
      %v358 = vld [vmem:[%s1 + $0x3d8] sm:$0xff]
      %v359 = vld [vmem:[%s1 + $0x3e0] sm:$0xff]
      %v360 = vld [vmem:[%s1 + $0x3e8] sm:$0xff]
      %v361 = vld [vmem:[%s1 + $0x3f0] sm:$0xff]
      %v362 = vld [vmem:[%s1 + $0x3f8] sm:$0xff]
      %v363 = vld [vmem:[%s1 + $0x400] sm:$0xff]
      %v364 = vld [vmem:[%s1 + $0x408] sm:$0xff]
      %v365 = vld [vmem:[%s1 + $0x410] sm:$0xff]
      %v366 = vld [vmem:[%s1 + $0x418] sm:$0xff]
      %v367 = vld [vmem:[%s1 + $0x420] sm:$0xff]
      %v368 = vld [vmem:[%s1 + $0x428] sm:$0xff]
      %v369 = vld [vmem:[%s1 + $0x430] sm:$0xff]
      %v370 = vld [vmem:[%s1 + $0x438] sm:$0xff]
      %v371 = vld [vmem:[%s1 + $0x440] sm:$0xff]
      %v372 = vld [vmem:[%s1 + $0x448] sm:$0xff]
      %v373 = vld [vmem:[%s1 + $0x450] sm:$0xff]
      %v374 = vld [vmem:[%s1 + $0x458] sm:$0xff]
      %v375 = vld [vmem:[%s1 + $0x460] sm:$0xff]
      %v376 = vld [vmem:[%s1 + $0x468] sm:$0xff]
      %v377 = vld [vmem:[%s1 + $0x470] sm:$0xff]
      %v378 = vld [vmem:[%s1 + $0x478] sm:$0xff]
      %v379 = vld [vmem:[%s1 + $0x480] sm:$0xff]
      %v380 = vld [vmem:[%s1 + $0x488] sm:$0xff]
      %v381 = vld [vmem:[%s1 + $0x490] sm:$0xff]
      %v382 = vld [vmem:[%s1 + $0x498] sm:$0xff]
      %v383 = vld [vmem:[%s1 + $0x4a0] sm:$0xff]
      %v384 = vld [vmem:[%s1 + $0x4a8] sm:$0xff]
      %v385 = vld [vmem:[%s1 + $0x4b0] sm:$0xff]
      %v386 = vld [vmem:[%s1 + $0x4b8] sm:$0xff]
      %v387 = vld [vmem:[%s1 + $0x4c0] sm:$0xff]
      %v388 = vld [vmem:[%s1 + $0x4c8] sm:$0xff]
      %v389 = vld [vmem:[%s1 + $0x4d0] sm:$0xff]
      %v390 = vld [vmem:[%s1 + $0x4d8] sm:$0xff]
      %v391 = vld [vmem:[%s1 + $0x4e0] sm:$0xff]
      %v392 = vld [vmem:[%s1 + $0x4e8] sm:$0xff]
      %v393 = vld [vmem:[%s1 + $0x4f0] sm:$0xff]
      %v394 = vld [vmem:[%s1 + $0x4f8] sm:$0xff]
      %v395 = vld [vmem:[%s1 + $0x500] sm:$0xff]
      %v396 = vld [vmem:[%s1 + $0x508] sm:$0xff]
      %v397 = vld [vmem:[%s1 + $0x510] sm:$0xff]
      %v398 = vld [vmem:[%s1 + $0x518] sm:$0xff]
      %v399 = vld [vmem:[%s1 + $0x520] sm:$0xff]
      %v400 = vld [vmem:[%s1 + $0x528] sm:$0xff]
      %v401 = vld [vmem:[%s1 + $0x530] sm:$0xff]
      %v402 = vld [vmem:[%s1 + $0x538] sm:$0xff]
      %v403 = vld [vmem:[%s1 + $0x540] sm:$0xff]
      %v404 = vld [vmem:[%s1 + $0x548] sm:$0xff]
      %v405 = vld [vmem:[%s1 + $0x550] sm:$0xff]
      %v406 = vld [vmem:[%s1 + $0x558] sm:$0xff]
      %v407 = vld [vmem:[%s1 + $0x560] sm:$0xff]
      %v408 = vld [vmem:[%s1 + $0x568] sm:$0xff]
      %v409 = vld [vmem:[%s1 + $0x570] sm:$0xff]
      %v410 = vld [vmem:[%s1 + $0x578] sm:$0xff]
      %v411 = vld [vmem:[%s1 + $0x580] sm:$0xff]
      %v412 = vld [vmem:[%s1 + $0x588] sm:$0xff]
      %v413 = vld [vmem:[%s1 + $0x590] sm:$0xff]
      %v414 = vld [vmem:[%s1 + $0x598] sm:$0xff]
      %v415 = vld [vmem:[%s1 + $0x5a0] sm:$0xff]
      %v416 = vld [vmem:[%s1 + $0x5a8] sm:$0xff]
      %v417 = vld [vmem:[%s1 + $0x5b0] sm:$0xff]
      %v418 = vld [vmem:[%s1 + $0x5b8] sm:$0xff]
      %v419 = vld [vmem:[%s1 + $0x5c0] sm:$0xff]
      %v420 = vld [vmem:[%s1 + $0x5c8] sm:$0xff]
      %v421 = vld [vmem:[%s1 + $0x5d0] sm:$0xff]
      %v422 = vld [vmem:[%s1 + $0x5d8] sm:$0xff]
      %v423 = vld [vmem:[%s1 + $0x5e0] sm:$0xff]
      %v424 = vld [vmem:[%s1 + $0x5e8] sm:$0xff]
      %v425 = vld [vmem:[%s1 + $0x5f0] sm:$0xff]
      %v426 = vld [vmem:[%s1 + $0x5f8] sm:$0xff]
      %v427 = vld [vmem:[%s1 + $0x600] sm:$0xff]
      %v428 = vld [vmem:[%s1 + $0x608] sm:$0xff]
      %v429 = vld [vmem:[%s1 + $0x610] sm:$0xff]
      %v430 = vld [vmem:[%s1 + $0x618] sm:$0xff]
      %v431 = vld [vmem:[%s1 + $0x620] sm:$0xff]
      %v432 = vld [vmem:[%s1 + $0x628] sm:$0xff]
      %v433 = vld [vmem:[%s1 + $0x630] sm:$0xff]
      %v434 = vld [vmem:[%s1 + $0x638] sm:$0xff]
      %v435 = vld [vmem:[%s1 + $0x640] sm:$0xff]
      %v436 = vld [vmem:[%s1 + $0x648] sm:$0xff]
      %v437 = vld [vmem:[%s1 + $0x650] sm:$0xff]
      %v438 = vld [vmem:[%s1 + $0x658] sm:$0xff]
      %v439 = vld [vmem:[%s1 + $0x660] sm:$0xff]
      %v440 = vld [vmem:[%s1 + $0x668] sm:$0xff]
      %v441 = vld [vmem:[%s1 + $0x670] sm:$0xff]
      %v442 = vld [vmem:[%s1 + $0x678] sm:$0xff]
      %v443 = vld [vmem:[%s1 + $0x680] sm:$0xff]
      %v444 = vld [vmem:[%s1 + $0x688] sm:$0xff]
      %v445 = vld [vmem:[%s1 + $0x690] sm:$0xff]
      %v446 = vld [vmem:[%s1 + $0x698] sm:$0xff]
      %v447 = vld [vmem:[%s1 + $0x6a0] sm:$0xff]
      %v448 = vld [vmem:[%s1 + $0x6a8] sm:$0xff]
      %v449 = vld [vmem:[%s1 + $0x6b0] sm:$0xff]
      %v450 = vld [vmem:[%s1 + $0x6b8] sm:$0xff]
      %v451 = vld [vmem:[%s1 + $0x6c0] sm:$0xff]
      %v452 = vld [vmem:[%s1 + $0x6c8] sm:$0xff]
      %v453 = vld [vmem:[%s1 + $0x6d0] sm:$0xff]
      %v454 = vld [vmem:[%s1 + $0x6d8] sm:$0xff]
      %v455 = vld [vmem:[%s1 + $0x6e0] sm:$0xff]
      %v456 = vld [vmem:[%s1 + $0x6e8] sm:$0xff]
      %v457 = vld [vmem:[%s1 + $0x6f0] sm:$0xff]
      %v458 = vld [vmem:[%s1 + $0x6f8] sm:$0xff]
      %v459 = vld [vmem:[%s1 + $0x700] sm:$0xff]
      %v460 = vld [vmem:[%s1 + $0x708] sm:$0xff]
      %v461 = vld [vmem:[%s1 + $0x710] sm:$0xff]
      %v462 = vld [vmem:[%s1 + $0x718] sm:$0xff]
      %v463 = vld [vmem:[%s1 + $0x720] sm:$0xff]
      %v464 = vld [vmem:[%s1 + $0x728] sm:$0xff]
      %v465 = vld [vmem:[%s1 + $0x730] sm:$0xff]
      %v466 = vld [vmem:[%s1 + $0x738] sm:$0xff]
      %v467 = vld [vmem:[%s1 + $0x740] sm:$0xff]
      %v468 = vld [vmem:[%s1 + $0x748] sm:$0xff]
      %v469 = vld [vmem:[%s1 + $0x750] sm:$0xff]
      %v470 = vld [vmem:[%s1 + $0x758] sm:$0xff]
      %v471 = vld [vmem:[%s1 + $0x760] sm:$0xff]
      %v472 = vld [vmem:[%s1 + $0x768] sm:$0xff]
      %v473 = vld [vmem:[%s1 + $0x770] sm:$0xff]
      %v474 = vld [vmem:[%s1 + $0x778] sm:$0xff]
      %v475 = vld [vmem:[%s1 + $0x780] sm:$0xff]
      %v476 = vld [vmem:[%s1 + $0x788] sm:$0xff]
      %v477 = vld [vmem:[%s1 + $0x790] sm:$0xff]
      %v478 = vld [vmem:[%s1 + $0x798] sm:$0xff]
      %v479 = vld [vmem:[%s1 + $0x7a0] sm:$0xff]
      %v480 = vld [vmem:[%s1 + $0x7a8] sm:$0xff]
      %v481 = vld [vmem:[%s1 + $0x7b0] sm:$0xff]
      %v482 = vld [vmem:[%s1 + $0x7b8] sm:$0xff]
      %v483 = vld [vmem:[%s1 + $0x7c0] sm:$0xff]
      %v484 = vld [vmem:[%s1 + $0x7c8] sm:$0xff]
      %v485 = vld [vmem:[%s1 + $0x7d0] sm:$0xff]
      %v486 = vld [vmem:[%s1 + $0x7d8] sm:$0xff]
      %v487 = vld [vmem:[%s1 + $0x7e0] sm:$0xff]
      %v488 = vld [vmem:[%s1 + $0x7e8] sm:$0xff]
      %v489 = vld [vmem:[%s1 + $0x7f0] sm:$0xff]
      %v490 = vld [vmem:[%s1 + $0x7f8] sm:$0xff]
      %v491 = vld [vmem:[%s1 + $0x800] sm:$0xff]
      %v492 = vld [vmem:[%s1 + $0x808] sm:$0xff]
      %v493 = vld [vmem:[%s1 + $0x810] sm:$0xff]
      %v494 = vld [vmem:[%s1 + $0x818] sm:$0xff]
      %v495 = vld [vmem:[%s1 + $0x820] sm:$0xff]
      %v496 = vld [vmem:[%s1 + $0x828] sm:$0xff]
      %v497 = vld [vmem:[%s1 + $0x830] sm:$0xff]
      %v498 = vld [vmem:[%s1 + $0x838] sm:$0xff]
      %v499 = vld [vmem:[%s1 + $0x840] sm:$0xff]
      %v500 = vld [vmem:[%s1 + $0x848] sm:$0xff]
      %v501 = vld [vmem:[%s1 + $0x850] sm:$0xff]
      %v502 = vld [vmem:[%s1 + $0x858] sm:$0xff]
      %v503 = vld [vmem:[%s1 + $0x860] sm:$0xff]
      %v504 = vld [vmem:[%s1 + $0x868] sm:$0xff]
      %v505 = vld [vmem:[%s1 + $0x870] sm:$0xff]
      %v506 = vld [vmem:[%s1 + $0x878] sm:$0xff]
      %v507 = vld [vmem:[%s1 + $0x880] sm:$0xff]
      %v508 = vld [vmem:[%s1 + $0x888] sm:$0xff]
      %v509 = vld [vmem:[%s1 + $0x890] sm:$0xff]
      %v510 = vld [vmem:[%s1 + $0x898] sm:$0xff]
      %v511 = vld [vmem:[%s1 + $0x8a0] sm:$0xff]
      %v512 = vld [vmem:[%s1 + $0x8a8] sm:$0xff]
      %v513 = vld [vmem:[%s1 + $0x8b0] sm:$0xff]
      %v514 = vld [vmem:[%s1 + $0x8b8] sm:$0xff]
      %v515 = vld [vmem:[%s1 + $0x8c0] sm:$0xff]
      %v516 = vld [vmem:[%s1 + $0x8c8] sm:$0xff]
      %v517 = vld [vmem:[%s1 + $0x8d0] sm:$0xff]
      %v518 = vld [vmem:[%s1 + $0x8d8] sm:$0xff]
      %v519 = vld [vmem:[%s1 + $0x8e0] sm:$0xff]
      %v520 = vld [vmem:[%s1 + $0x8e8] sm:$0xff]
      %v521 = vld [vmem:[%s1 + $0x8f0] sm:$0xff]
      %v522 = vld [vmem:[%s1 + $0x8f8] sm:$0xff]
      %v523 = vld [vmem:[%s1 + $0x900] sm:$0xff]
      %v524 = vld [vmem:[%s1 + $0x908] sm:$0xff]
      %v525 = vld [vmem:[%s1 + $0x910] sm:$0xff]
      %v526 = vld [vmem:[%s1 + $0x918] sm:$0xff]
      %v527 = vld [vmem:[%s1 + $0x920] sm:$0xff]
      %v528 = vld [vmem:[%s1 + $0x928] sm:$0xff]
      %v529 = vld [vmem:[%s1 + $0x930] sm:$0xff]
      %v530 = vld [vmem:[%s1 + $0x938] sm:$0xff]
      %v531 = vld [vmem:[%s1 + $0x940] sm:$0xff]
      %v532 = vld [vmem:[%s1 + $0x948] sm:$0xff]
      %v533 = vld [vmem:[%s1 + $0x950] sm:$0xff]
      %v534 = vld [vmem:[%s1 + $0x958] sm:$0xff]
      %v535 = vld [vmem:[%s1 + $0x960] sm:$0xff]
      %v536 = vld [vmem:[%s1 + $0x968] sm:$0xff]
      %v537 = vld [vmem:[%s1 + $0x970] sm:$0xff]
      %v538 = vld [vmem:[%s1 + $0x978] sm:$0xff]
      %v539 = vld [vmem:[%s1 + $0x980] sm:$0xff]
      %v540 = vld [vmem:[%s1 + $0x988] sm:$0xff]
      %v541 = vld [vmem:[%s1 + $0x990] sm:$0xff]
      %v542 = vld [vmem:[%s1 + $0x998] sm:$0xff]
      %v543 = vld [vmem:[%s1 + $0x9a0] sm:$0xff]
      %v544 = vld [vmem:[%s1 + $0x9a8] sm:$0xff]
      %v545 = vld [vmem:[%s1 + $0x9b0] sm:$0xff]
      %v546 = vld [vmem:[%s1 + $0x9b8] sm:$0xff]
      %v547 = vld [vmem:[%s1 + $0x9c0] sm:$0xff]
      %v548 = vld [vmem:[%s1 + $0x9c8] sm:$0xff]
      %v549 = vld [vmem:[%s1 + $0x9d0] sm:$0xff]
      %v550 = vld [vmem:[%s1 + $0x9d8] sm:$0xff]
      %v551 = vld [vmem:[%s1 + $0x9e0] sm:$0xff]
      %v552 = vld [vmem:[%s1 + $0x9e8] sm:$0xff]
      %v553 = vld [vmem:[%s1 + $0x9f0] sm:$0xff]
      %v554 = vld [vmem:[%s1 + $0x9f8] sm:$0xff]
      %v555 = vld [vmem:[%s1 + $0xa00] sm:$0xff]
      %v556 = vld [vmem:[%s1 + $0xa08] sm:$0xff]
      %v557 = vld [vmem:[%s1 + $0xa10] sm:$0xff]
      %v558 = vld [vmem:[%s1 + $0xa18] sm:$0xff]
      %v559 = vld [vmem:[%s1 + $0xa20] sm:$0xff]
      %v560 = vld [vmem:[%s1 + $0xa28] sm:$0xff]
      %v561 = vld [vmem:[%s1 + $0xa30] sm:$0xff]
      %v562 = vld [vmem:[%s1 + $0xa38] sm:$0xff]
      %v563 = vld [vmem:[%s1 + $0xa40] sm:$0xff]
      %v564 = vld [vmem:[%s1 + $0xa48] sm:$0xff]
      %v565 = vld [vmem:[%s1 + $0xa50] sm:$0xff]
      %v566 = vld [vmem:[%s1 + $0xa58] sm:$0xff]
      %v567 = vld [vmem:[%s1 + $0xa60] sm:$0xff]
      %v568 = vld [vmem:[%s1 + $0xa68] sm:$0xff]
      %v569 = vld [vmem:[%s1 + $0xa70] sm:$0xff]
      %v570 = vld [vmem:[%s1 + $0xa78] sm:$0xff]
      %v571 = vld [vmem:[%s1 + $0xa80] sm:$0xff]
      %v572 = vld [vmem:[%s1 + $0xa88] sm:$0xff]
      %v573 = vld [vmem:[%s1 + $0xa90] sm:$0xff]
      %v574 = vld [vmem:[%s1 + $0xa98] sm:$0xff]
      %v575 = vld [vmem:[%s1 + $0xaa0] sm:$0xff]
      %v576 = vld [vmem:[%s1 + $0xaa8] sm:$0xff]
      %v577 = vld [vmem:[%s1 + $0xab0] sm:$0xff]
      %v578 = vld [vmem:[%s1 + $0xab8] sm:$0xff]
      %v579 = vld [vmem:[%s1 + $0xac0] sm:$0xff]
      %v580 = vld [vmem:[%s1 + $0xac8] sm:$0xff]
      %v581 = vld [vmem:[%s1 + $0xad0] sm:$0xff]
      %v582 = vld [vmem:[%s1 + $0xad8] sm:$0xff]
      %v583 = vld [vmem:[%s1 + $0xae0] sm:$0xff]
      %v584 = vld [vmem:[%s1 + $0xae8] sm:$0xff]
      %v585 = vld [vmem:[%s1 + $0xaf0] sm:$0xff]
      %v586 = vld [vmem:[%s1 + $0xaf8] sm:$0xff]
      %v587 = vld [vmem:[%s1 + $0xb00] sm:$0xff]
      %v588 = vld [vmem:[%s1 + $0xb08] sm:$0xff]
      %v589 = vld [vmem:[%s1 + $0xb10] sm:$0xff]
      %v590 = vld [vmem:[%s1 + $0xb18] sm:$0xff]
      %v591 = vld [vmem:[%s1 + $0xb20] sm:$0xff]
      %v592 = vld [vmem:[%s1 + $0xb28] sm:$0xff]
      %v593 = vld [vmem:[%s1 + $0xb30] sm:$0xff]
      %v594 = vld [vmem:[%s1 + $0xb38] sm:$0xff]
      %v595 = vld [vmem:[%s1 + $0xb40] sm:$0xff]
      %v596 = vld [vmem:[%s1 + $0xb48] sm:$0xff]
      %v597 = vld [vmem:[%s1 + $0xb50] sm:$0xff]
      %v598 = vld [vmem:[%s1 + $0xb58] sm:$0xff]
      %v599 = vld [vmem:[%s1 + $0xb60] sm:$0xff]
      %v600 = vld [vmem:[%s1 + $0xb68] sm:$0xff]
      %v601 = vld [vmem:[%s1 + $0xb70] sm:$0xff]
      %v602 = vld [vmem:[%s1 + $0xb78] sm:$0xff]
      %v603 = vld [vmem:[%s1 + $0xb80] sm:$0xff]
      %v604 = vld [vmem:[%s1 + $0xb88] sm:$0xff]
      %v605 = vld [vmem:[%s1 + $0xb90] sm:$0xff]
      %v606 = vld [vmem:[%s1 + $0xb98] sm:$0xff]
      %v607 = vld [vmem:[%s1 + $0xba0] sm:$0xff]
      %v608 = vld [vmem:[%s1 + $0xba8] sm:$0xff]
      %v609 = vld [vmem:[%s1 + $0xbb0] sm:$0xff]
      %v610 = vld [vmem:[%s1 + $0xbb8] sm:$0xff]
      %v611 = vld [vmem:[%s1 + $0xbc0] sm:$0xff]
      %v612 = vld [vmem:[%s1 + $0xbc8] sm:$0xff]
      %v613 = vld [vmem:[%s1 + $0xbd0] sm:$0xff]
      %v614 = vld [vmem:[%s1 + $0xbd8] sm:$0xff]
      %v615 = vld [vmem:[%s1 + $0xbe0] sm:$0xff]
      %v616 = vld [vmem:[%s1 + $0xbe8] sm:$0xff]
      %v617 = vld [vmem:[%s1 + $0xbf0] sm:$0xff]
      %v618 = vld [vmem:[%s1 + $0xbf8] sm:$0xff]
      %v619 = vld [vmem:[%s1 + $0xc00] sm:$0xff]
      %v620 = vld [vmem:[%s1 + $0xc08] sm:$0xff]
      %v621 = vld [vmem:[%s1 + $0xc10] sm:$0xff]
      %v622 = vld [vmem:[%s1 + $0xc18] sm:$0xff]
      %v623 = vld [vmem:[%s1 + $0xc20] sm:$0xff]
      %v624 = vld [vmem:[%s1 + $0xc28] sm:$0xff]
      %v625 = vld [vmem:[%s1 + $0xc30] sm:$0xff]
      %v626 = vld [vmem:[%s1 + $0xc38] sm:$0xff]
      %v627 = vld [vmem:[%s1 + $0xc40] sm:$0xff]
      %v628 = vld [vmem:[%s1 + $0xc48] sm:$0xff]
      %v629 = vld [vmem:[%s1 + $0xc50] sm:$0xff]
      %v630 = vld [vmem:[%s1 + $0xc58] sm:$0xff]
      %v631 = vld [vmem:[%s1 + $0xc60] sm:$0xff]
      %v632 = vld [vmem:[%s1 + $0xc68] sm:$0xff]
      %v633 = vld [vmem:[%s1 + $0xc70] sm:$0xff]
      %v634 = vld [vmem:[%s1 + $0xc78] sm:$0xff]
      %v635 = vld [vmem:[%s1 + $0xc80] sm:$0xff]
      %v636 = vld [vmem:[%s1 + $0xc88] sm:$0xff]
      %v637 = vld [vmem:[%s1 + $0xc90] sm:$0xff]
      %v638 = vld [vmem:[%s1 + $0xc98] sm:$0xff]
      %v639 = vld [vmem:[%s1 + $0xca0] sm:$0xff]
      %v640 = vld [vmem:[%s1 + $0xca8] sm:$0xff]
      %v641 = vld [vmem:[%s1 + $0xcb0] sm:$0xff]
      %v642 = vld [vmem:[%s1 + $0xcb8] sm:$0xff]
      %v643 = vld [vmem:[%s1 + $0xcc0] sm:$0xff]
      %v644 = vld [vmem:[%s1 + $0xcc8] sm:$0xff]
      %v645 = vld [vmem:[%s1 + $0xcd0] sm:$0xff]
      %v646 = vld [vmem:[%s1 + $0xcd8] sm:$0xff]
      %v647 = vld [vmem:[%s1 + $0xce0] sm:$0xff]
      %v648 = vld [vmem:[%s1 + $0xce8] sm:$0xff]
      %v649 = vld [vmem:[%s1 + $0xcf0] sm:$0xff]
      %v650 = vld [vmem:[%s1 + $0xcf8] sm:$0xff]
      %v651 = vld [vmem:[%s1 + $0xd00] sm:$0xff]
      %v652 = vld [vmem:[%s1 + $0xd08] sm:$0xff]
      %v653 = vld [vmem:[%s1 + $0xd10] sm:$0xff]
      %v654 = vld [vmem:[%s1 + $0xd18] sm:$0xff]
      %v655 = vld [vmem:[%s1 + $0xd20] sm:$0xff]
      %v656 = vld [vmem:[%s1 + $0xd28] sm:$0xff]
      %v657 = vld [vmem:[%s1 + $0xd30] sm:$0xff]
      %v658 = vld [vmem:[%s1 + $0xd38] sm:$0xff]
      %v659 = vld [vmem:[%s1 + $0xd40] sm:$0xff]
      %v660 = vld [vmem:[%s1 + $0xd48] sm:$0xff]
      %v661 = vld [vmem:[%s1 + $0xd50] sm:$0xff]
      %v662 = vld [vmem:[%s1 + $0xd58] sm:$0xff]
      %v663 = vld [vmem:[%s1 + $0xd60] sm:$0xff]
      %v664 = vld [vmem:[%s1 + $0xd68] sm:$0xff]
      %v665 = vld [vmem:[%s1 + $0xd70] sm:$0xff]
      %v666 = vld [vmem:[%s1 + $0xd78] sm:$0xff]
      %v667 = vld [vmem:[%s1 + $0xd80] sm:$0xff]
      %v668 = vld [vmem:[%s1 + $0xd88] sm:$0xff]
      %v669 = vld [vmem:[%s1 + $0xd90] sm:$0xff]
      %v670 = vld [vmem:[%s1 + $0xd98] sm:$0xff]
      %v671 = vld [vmem:[%s1 + $0xda0] sm:$0xff]
      %v672 = vld [vmem:[%s1 + $0xda8] sm:$0xff]
      %v673 = vld [vmem:[%s1 + $0xdb0] sm:$0xff]
      %v674 = vld [vmem:[%s1 + $0xdb8] sm:$0xff]
      %v675 = vld [vmem:[%s1 + $0xdc0] sm:$0xff]
      %v676 = vld [vmem:[%s1 + $0xdc8] sm:$0xff]
      %v677 = vld [vmem:[%s1 + $0xdd0] sm:$0xff]
      %v678 = vld [vmem:[%s1 + $0xdd8] sm:$0xff]
      %v679 = vld [vmem:[%s1 + $0xde0] sm:$0xff]
      %v680 = vld [vmem:[%s1 + $0xde8] sm:$0xff]
      %v681 = vld [vmem:[%s1 + $0xdf0] sm:$0xff]
      %v682 = vld [vmem:[%s1 + $0xdf8] sm:$0xff]
      %v683 = vld [vmem:[%s1 + $0xe00] sm:$0xff]
      %v684 = vld [vmem:[%s1 + $0xe08] sm:$0xff]
      %v685 = vld [vmem:[%s1 + $0xe10] sm:$0xff]
      %v686 = vld [vmem:[%s1 + $0xe18] sm:$0xff]
      %v687 = vld [vmem:[%s1 + $0xe20] sm:$0xff]
      %v688 = vld [vmem:[%s1 + $0xe28] sm:$0xff]
      %v689 = vld [vmem:[%s1 + $0xe30] sm:$0xff]
      %v690 = vld [vmem:[%s1 + $0xe38] sm:$0xff]
      %v691 = vld [vmem:[%s1 + $0xe40] sm:$0xff]
      %v692 = vld [vmem:[%s1 + $0xe48] sm:$0xff]
      %v693 = vld [vmem:[%s1 + $0xe50] sm:$0xff]
      %v694 = vld [vmem:[%s1 + $0xe58] sm:$0xff]
      %v695 = vld [vmem:[%s1 + $0xe60] sm:$0xff]
      %v696 = vld [vmem:[%s1 + $0xe68] sm:$0xff]
      %v697 = vld [vmem:[%s1 + $0xe70] sm:$0xff]
      %v698 = vld [vmem:[%s1 + $0xe78] sm:$0xff]
      %v699 = vld [vmem:[%s1 + $0xe80] sm:$0xff]
      %v700 = vld [vmem:[%s1 + $0xe88] sm:$0xff]
      %v701 = vld [vmem:[%s1 + $0xe90] sm:$0xff]
      %v702 = vld [vmem:[%s1 + $0xe98] sm:$0xff]
      %v703 = vld [vmem:[%s1 + $0xea0] sm:$0xff]
      %v704 = vld [vmem:[%s1 + $0xea8] sm:$0xff]
      %v705 = vld [vmem:[%s1 + $0xeb0] sm:$0xff]
      %v706 = vld [vmem:[%s1 + $0xeb8] sm:$0xff]
      %v707 = vld [vmem:[%s1 + $0xec0] sm:$0xff]
      %v708 = vld [vmem:[%s1 + $0xec8] sm:$0xff]
      %v709 = vld [vmem:[%s1 + $0xed0] sm:$0xff]
      %v710 = vld [vmem:[%s1 + $0xed8] sm:$0xff]
      %v711 = vld [vmem:[%s1 + $0xee0] sm:$0xff]
      %v712 = vld [vmem:[%s1 + $0xee8] sm:$0xff]
      %v713 = vld [vmem:[%s1 + $0xef0] sm:$0xff]
      %v714 = vld [vmem:[%s1 + $0xef8] sm:$0xff]
      %v715 = vld [vmem:[%s1 + $0xf00] sm:$0xff]
      %v716 = vld [vmem:[%s1 + $0xf08] sm:$0xff]
      %v717 = vld [vmem:[%s1 + $0xf10] sm:$0xff]
      %v718 = vld [vmem:[%s1 + $0xf18] sm:$0xff]
      %v719 = vld [vmem:[%s1 + $0xf20] sm:$0xff]
      %v720 = vld [vmem:[%s1 + $0xf28] sm:$0xff]
      %v721 = vld [vmem:[%s1 + $0xf30] sm:$0xff]
      %v722 = vld [vmem:[%s1 + $0xf38] sm:$0xff]
      %v723 = vld [vmem:[%s1 + $0xf40] sm:$0xff]
      %v724 = vld [vmem:[%s1 + $0xf48] sm:$0xff]
      %v725 = vld [vmem:[%s1 + $0xf50] sm:$0xff]
      %v726 = vld [vmem:[%s1 + $0xf58] sm:$0xff]
      %v727 = vld [vmem:[%s1 + $0xf60] sm:$0xff]
      %v728 = vld [vmem:[%s1 + $0xf68] sm:$0xff]
      %v729 = vld [vmem:[%s1 + $0xf70] sm:$0xff]
      %v730 = vld [vmem:[%s1 + $0xf78] sm:$0xff]
      %v731 = vld [vmem:[%s1 + $0xf80] sm:$0xff]
      %v732 = vld [vmem:[%s1 + $0xf88] sm:$0xff]
      %v733 = vld [vmem:[%s1 + $0xf90] sm:$0xff]
      %v734 = vld [vmem:[%s1 + $0xf98] sm:$0xff]
      %v735 = vld [vmem:[%s1 + $0xfa0] sm:$0xff]
      %v736 = vld [vmem:[%s1 + $0xfa8] sm:$0xff]
      %v737 = vld [vmem:[%s1 + $0xfb0] sm:$0xff]
      %v738 = vld [vmem:[%s1 + $0xfb8] sm:$0xff]
      %v739 = vld [vmem:[%s1 + $0xfc0] sm:$0xff]
      %v740 = vld [vmem:[%s1 + $0xfc8] sm:$0xff]
      %v741 = vld [vmem:[%s1 + $0xfd0] sm:$0xff]
      %v742 = vld [vmem:[%s1 + $0xfd8] sm:$0xff]
      %v743 = vld [vmem:[%s1 + $0xfe0] sm:$0xff]
      %v744 = vld [vmem:[%s1 + $0xfe8] sm:$0xff]
      %v745 = vld [vmem:[%s1 + $0xff0] sm:$0xff]
      %v746 = vld [vmem:[%s1 + $0xff8] sm:$0xff]
      %v747 = vld [vmem:[%s1 + $0x1000] sm:$0xff]
      %v748 = vld [vmem:[%s1 + $0x1008] sm:$0xff]
      %v749 = vld [vmem:[%s1 + $0x1010] sm:$0xff]
      %v750 = vld [vmem:[%s1 + $0x1018] sm:$0xff]
      %v751 = vld [vmem:[%s1 + $0x1020] sm:$0xff]
      %v752 = vld [vmem:[%s1 + $0x1028] sm:$0xff]
      %v753 = vld [vmem:[%s1 + $0x1030] sm:$0xff]
      %v754 = vld [vmem:[%s1 + $0x1038] sm:$0xff]
      %v755 = vld [vmem:[%s1 + $0x1040] sm:$0xff]
      %v756 = vld [vmem:[%s1 + $0x1048] sm:$0xff]
      %v757 = vld [vmem:[%s1 + $0x1050] sm:$0xff]
      %v758 = vld [vmem:[%s1 + $0x1058] sm:$0xff]
      %v759 = vld [vmem:[%s1 + $0x1060] sm:$0xff]
      %v760 = vld [vmem:[%s1 + $0x1068] sm:$0xff]
      %v761 = vld [vmem:[%s1 + $0x1070] sm:$0xff]
      %v762 = vld [vmem:[%s1 + $0x1078] sm:$0xff]
      %v763 = vld [vmem:[%s1 + $0x1080] sm:$0xff]
      %v764 = vld [vmem:[%s1 + $0x1088] sm:$0xff]
      %v765 = vld [vmem:[%s1 + $0x1090] sm:$0xff]
      %v766 = vld [vmem:[%s1 + $0x1098] sm:$0xff]
      %v767 = vld [vmem:[%s1 + $0x10a0] sm:$0xff]
      %v768 = vld [vmem:[%s1 + $0x10a8] sm:$0xff]
      %v769 = vld [vmem:[%s1 + $0x10b0] sm:$0xff]
      %v770 = vld [vmem:[%s1 + $0x10b8] sm:$0xff]
      %v771 = vld [vmem:[%s1 + $0x10c0] sm:$0xff]
      %v772 = vld [vmem:[%s1 + $0x10c8] sm:$0xff]
      %v773 = vld [vmem:[%s1 + $0x10d0] sm:$0xff]
      %v774 = vld [vmem:[%s1 + $0x10d8] sm:$0xff]
      %v775 = vld [vmem:[%s1 + $0x10e0] sm:$0xff]
      %v776 = vld [vmem:[%s1 + $0x10e8] sm:$0xff]
      %v777 = vld [vmem:[%s1 + $0x10f0] sm:$0xff]
      %v778 = vld [vmem:[%s1 + $0x10f8] sm:$0xff]
      %v779 = vld [vmem:[%s1 + $0x1100] sm:$0xff]
      %v780 = vld [vmem:[%s1 + $0x1108] sm:$0xff]
      %v781 = vld [vmem:[%s1 + $0x1110] sm:$0xff]
      %v782 = vld [vmem:[%s1 + $0x1118] sm:$0xff]
      %v783 = vld [vmem:[%s1 + $0x1120] sm:$0xff]
      %v784 = vld [vmem:[%s1 + $0x1128] sm:$0xff]
      %v785 = vld [vmem:[%s1 + $0x1130] sm:$0xff]
      %v786 = vld [vmem:[%s1 + $0x1138] sm:$0xff]
      %v787 = vld [vmem:[%s1 + $0x1140] sm:$0xff]
      %v788 = vld [vmem:[%s1 + $0x1148] sm:$0xff]
      %v789 = vld [vmem:[%s1 + $0x1150] sm:$0xff]
      %v790 = vld [vmem:[%s1 + $0x1158] sm:$0xff]
      %v791 = vld [vmem:[%s1 + $0x1160] sm:$0xff]
      %v792 = vld [vmem:[%s1 + $0x1168] sm:$0xff]
      %v793 = vld [vmem:[%s1 + $0x1170] sm:$0xff]
      %v794 = vld [vmem:[%s1 + $0x1178] sm:$0xff]
      %v795 = vld [vmem:[%s1 + $0x1180] sm:$0xff]
      %v796 = vld [vmem:[%s1 + $0x1188] sm:$0xff]
      %v797 = vld [vmem:[%s1 + $0x1190] sm:$0xff]
      %v798 = vld [vmem:[%s1 + $0x1198] sm:$0xff]
      %v799 = vld [vmem:[%s1 + $0x11a0] sm:$0xff]
      %v800 = vld [vmem:[%s1 + $0x11a8] sm:$0xff]
      %v801 = vld [vmem:[%s1 + $0x11b0] sm:$0xff]
      %v802 = vld [vmem:[%s1 + $0x11b8] sm:$0xff]
      %v803 = vld [vmem:[%s1 + $0x11c0] sm:$0xff]
      %v804 = vld [vmem:[%s1 + $0x11c8] sm:$0xff]
      %v805 = vld [vmem:[%s1 + $0x11d0] sm:$0xff]
      %v806 = vld [vmem:[%s1 + $0x11d8] sm:$0xff]
      %v807 = vld [vmem:[%s1 + $0x11e0] sm:$0xff]
      %v808 = vld [vmem:[%s1 + $0x11e8] sm:$0xff]
      %v809 = vld [vmem:[%s1 + $0x11f0] sm:$0xff]
      %v810 = vld [vmem:[%s1 + $0x11f8] sm:$0xff]
      %v811 = vld [vmem:[%s1 + $0x1200] sm:$0xff]
      %v812 = vld [vmem:[%s1 + $0x1208] sm:$0xff]
      %v813 = vld [vmem:[%s1 + $0x1210] sm:$0xff]
      %v814 = vld [vmem:[%s1 + $0x1218] sm:$0xff]
      %v815 = vld [vmem:[%s1 + $0x1220] sm:$0xff]
      %v816 = vld [vmem:[%s1 + $0x1228] sm:$0xff]
      %v817 = vld [vmem:[%s1 + $0x1230] sm:$0xff]
      %v818 = vld [vmem:[%s1 + $0x1238] sm:$0xff]
      %v819 = vld [vmem:[%s1 + $0x1240] sm:$0xff]
      %v820 = vld [vmem:[%s1 + $0x1248] sm:$0xff]
      %v821 = vld [vmem:[%s1 + $0x1250] sm:$0xff]
      %v822 = vld [vmem:[%s1 + $0x1258] sm:$0xff]
      %v823 = vld [vmem:[%s1 + $0x1260] sm:$0xff]
      %v824 = vld [vmem:[%s1 + $0x1268] sm:$0xff]
      %v825 = vld [vmem:[%s1 + $0x1270] sm:$0xff]
      %v826 = vld [vmem:[%s1 + $0x1278] sm:$0xff]
      %v827 = vld [vmem:[%s1 + $0x1280] sm:$0xff]
      %v828 = vld [vmem:[%s1 + $0x1288] sm:$0xff]
      %v829 = vld [vmem:[%s1 + $0x1290] sm:$0xff]
      %v830 = vld [vmem:[%s1 + $0x1298] sm:$0xff]
      %v831 = vld [vmem:[%s1 + $0x12a0] sm:$0xff]
      %v832 = vld [vmem:[%s1 + $0x12a8] sm:$0xff]
      %v833 = vld [vmem:[%s1 + $0x12b0] sm:$0xff]
      %v834 = vld [vmem:[%s1 + $0x12b8] sm:$0xff]
      %v835 = vld [vmem:[%s1 + $0x12c0] sm:$0xff]
      %v836 = vld [vmem:[%s1 + $0x12c8] sm:$0xff]
      %v837 = vld [vmem:[%s1 + $0x12d0] sm:$0xff]
      %v838 = vld [vmem:[%s1 + $0x12d8] sm:$0xff]
      %v839 = vld [vmem:[%s1 + $0x12e0] sm:$0xff]
      %v840 = vld [vmem:[%s1 + $0x12e8] sm:$0xff]
      %v841 = vld [vmem:[%s1 + $0x12f0] sm:$0xff]
      %v842 = vld [vmem:[%s1 + $0x12f8] sm:$0xff]
      %v843 = vld [vmem:[%s1 + $0x1300] sm:$0xff]
      %v844 = vld [vmem:[%s1 + $0x1308] sm:$0xff]
      %v845 = vld [vmem:[%s1 + $0x1310] sm:$0xff]
      %v846 = vld [vmem:[%s1 + $0x1318] sm:$0xff]
      %v847 = vld [vmem:[%s1 + $0x1320] sm:$0xff]
      %v848 = vld [vmem:[%s1 + $0x1328] sm:$0xff]
      %v849 = vld [vmem:[%s1 + $0x1330] sm:$0xff]
      %v850 = vld [vmem:[%s1 + $0x1338] sm:$0xff]
      %v851 = vld [vmem:[%s1 + $0x1340] sm:$0xff]
      %v852 = vld [vmem:[%s1 + $0x1348] sm:$0xff]
      %v853 = vld [vmem:[%s1 + $0x1350] sm:$0xff]
      %v854 = vld [vmem:[%s1 + $0x1358] sm:$0xff]
      %v855 = vld [vmem:[%s1 + $0x1360] sm:$0xff]
      %v856 = vld [vmem:[%s1 + $0x1368] sm:$0xff]
      %v857 = vld [vmem:[%s1 + $0x1370] sm:$0xff]
      %v858 = vld [vmem:[%s1 + $0x1378] sm:$0xff]
      %v859 = vld [vmem:[%s1 + $0x1380] sm:$0xff]
      %v860 = vld [vmem:[%s1 + $0x1388] sm:$0xff]
      %v861 = vld [vmem:[%s1 + $0x1390] sm:$0xff]
      %v862 = vld [vmem:[%s1 + $0x1398] sm:$0xff]
      %v863 = vld [vmem:[%s1 + $0x13a0] sm:$0xff]
      %v864 = vld [vmem:[%s1 + $0x13a8] sm:$0xff]
      %v865 = vld [vmem:[%s1 + $0x13b0] sm:$0xff]
      %v866 = vld [vmem:[%s1 + $0x13b8] sm:$0xff]
      %v867 = vld [vmem:[%s1 + $0x13c0] sm:$0xff]
      %v868 = vld [vmem:[%s1 + $0x13c8] sm:$0xff]
      %v869 = vld [vmem:[%s1 + $0x13d0] sm:$0xff]
      %v870 = vld [vmem:[%s1 + $0x13d8] sm:$0xff]
      %v871 = vld [vmem:[%s1 + $0x13e0] sm:$0xff]
      %v872 = vld [vmem:[%s1 + $0x13e8] sm:$0xff]
      %v873 = vld [vmem:[%s1 + $0x13f0] sm:$0xff]
      %v874 = vld [vmem:[%s1 + $0x13f8] sm:$0xff]
      %v875 = vld [vmem:[%s1 + $0x1400] sm:$0xff]
      %v876 = vld [vmem:[%s1 + $0x1408] sm:$0xff]
      %v877 = vld [vmem:[%s1 + $0x1410] sm:$0xff]
      %v878 = vld [vmem:[%s1 + $0x1418] sm:$0xff]
      %v879 = vld [vmem:[%s1 + $0x1420] sm:$0xff]
      %v880 = vld [vmem:[%s1 + $0x1428] sm:$0xff]
      %v881 = vld [vmem:[%s1 + $0x1430] sm:$0xff]
      %v882 = vld [vmem:[%s1 + $0x1438] sm:$0xff]
      %v883 = vld [vmem:[%s1 + $0x1440] sm:$0xff]
      %v884 = vld [vmem:[%s1 + $0x1448] sm:$0xff]
      %v885 = vld [vmem:[%s1 + $0x1450] sm:$0xff]
      %v886 = vld [vmem:[%s1 + $0x1458] sm:$0xff]
      %v887 = vld [vmem:[%s1 + $0x1460] sm:$0xff]
      %v888 = vld [vmem:[%s1 + $0x1468] sm:$0xff]
      %v889 = vld [vmem:[%s1 + $0x1470] sm:$0xff]
      %v890 = vld [vmem:[%s1 + $0x1478] sm:$0xff]
      %v891 = vld [vmem:[%s1 + $0x1480] sm:$0xff]
      %v892 = vld [vmem:[%s1 + $0x1488] sm:$0xff]
      %v893 = vld [vmem:[%s1 + $0x1490] sm:$0xff]
      %v894 = vld [vmem:[%s1 + $0x1498] sm:$0xff]
      %v895 = vld [vmem:[%s1 + $0x14a0] sm:$0xff]
      %v896 = vld [vmem:[%s1 + $0x14a8] sm:$0xff]
      %v897 = vld [vmem:[%s1 + $0x14b0] sm:$0xff]
      %v898 = vld [vmem:[%s1 + $0x14b8] sm:$0xff]
      %v899 = vld [vmem:[%s1 + $0x14c0] sm:$0xff]
      %v900 = vld [vmem:[%s1 + $0x14c8] sm:$0xff]
      %v901 = vld [vmem:[%s1 + $0x14d0] sm:$0xff]
      %v902 = vld [vmem:[%s1 + $0x14d8] sm:$0xff]
      %v903 = vld [vmem:[%s1 + $0x14e0] sm:$0xff]
      %v904 = vld [vmem:[%s1 + $0x14e8] sm:$0xff]
      %v905 = vld [vmem:[%s1 + $0x14f0] sm:$0xff]
      %v906 = vld [vmem:[%s1 + $0x14f8] sm:$0xff]
      %v907 = vld [vmem:[%s1 + $0x1500] sm:$0xff]
      %v908 = vld [vmem:[%s1 + $0x1508] sm:$0xff]
      %v909 = vld [vmem:[%s1 + $0x1510] sm:$0xff]
      %v910 = vld [vmem:[%s1 + $0x1518] sm:$0xff]
      %v911 = vld [vmem:[%s1 + $0x1520] sm:$0xff]
      %v912 = vld [vmem:[%s1 + $0x1528] sm:$0xff]
      %v913 = vld [vmem:[%s1 + $0x1530] sm:$0xff]
      %v914 = vld [vmem:[%s1 + $0x1538] sm:$0xff]
      %v915 = vld [vmem:[%s1 + $0x1540] sm:$0xff]
      %v916 = vld [vmem:[%s1 + $0x1548] sm:$0xff]
      %v917 = vld [vmem:[%s1 + $0x1550] sm:$0xff]
      %v918 = vld [vmem:[%s1 + $0x1558] sm:$0xff]
      %v919 = vld [vmem:[%s1 + $0x1560] sm:$0xff]
      %v920 = vld [vmem:[%s1 + $0x1568] sm:$0xff]
      %v921 = vld [vmem:[%s1 + $0x1570] sm:$0xff]
      %v922 = vld [vmem:[%s1 + $0x1578] sm:$0xff]
      %v923 = vld [vmem:[%s1 + $0x1580] sm:$0xff]
      %v924 = vld [vmem:[%s1 + $0x1588] sm:$0xff]
      %v925 = vld [vmem:[%s1 + $0x1590] sm:$0xff]
      %v926 = vld [vmem:[%s1 + $0x1598] sm:$0xff]
      %v927 = vld [vmem:[%s1 + $0x15a0] sm:$0xff]
      %v928 = vld [vmem:[%s1 + $0x15a8] sm:$0xff]
      %v929 = vld [vmem:[%s1 + $0x15b0] sm:$0xff]
      %v930 = vld [vmem:[%s1 + $0x15b8] sm:$0xff]
      %v931 = vld [vmem:[%s1 + $0x15c0] sm:$0xff]
      %v932 = vld [vmem:[%s1 + $0x15c8] sm:$0xff]
      %v933 = vld [vmem:[%s1 + $0x15d0] sm:$0xff]
      %v934 = vld [vmem:[%s1 + $0x15d8] sm:$0xff]
      %v935 = vld [vmem:[%s1 + $0x15e0] sm:$0xff]
      %v936 = vld [vmem:[%s1 + $0x15e8] sm:$0xff]
      %v937 = vld [vmem:[%s1 + $0x15f0] sm:$0xff]
      %v938 = vld [vmem:[%s1 + $0x15f8] sm:$0xff]
      %v939 = vld [vmem:[%s1 + $0x1600] sm:$0xff]
      %v940 = vld [vmem:[%s1 + $0x1608] sm:$0xff]
      %v941 = vld [vmem:[%s1 + $0x1610] sm:$0xff]
      %v942 = vld [vmem:[%s1 + $0x1618] sm:$0xff]
      %v943 = vld [vmem:[%s1 + $0x1620] sm:$0xff]
      %v944 = vld [vmem:[%s1 + $0x1628] sm:$0xff]
      %v945 = vld [vmem:[%s1 + $0x1630] sm:$0xff]
      %v946 = vld [vmem:[%s1 + $0x1638] sm:$0xff]
      %v947 = vld [vmem:[%s1 + $0x1640] sm:$0xff]
      %v948 = vld [vmem:[%s1 + $0x1648] sm:$0xff]
      %v949 = vld [vmem:[%s1 + $0x1650] sm:$0xff]
      %v950 = vld [vmem:[%s1 + $0x1658] sm:$0xff]
      %v951 = vld [vmem:[%s1 + $0x1660] sm:$0xff]
      %v952 = vld [vmem:[%s1 + $0x1668] sm:$0xff]
      %v953 = vld [vmem:[%s1 + $0x1670] sm:$0xff]
      %v954 = vld [vmem:[%s1 + $0x1678] sm:$0xff]
      %v955 = vld [vmem:[%s1 + $0x1680] sm:$0xff]
      %v956 = vld [vmem:[%s1 + $0x1688] sm:$0xff]
      %v957 = vld [vmem:[%s1 + $0x1690] sm:$0xff]
      %v958 = vld [vmem:[%s1 + $0x1698] sm:$0xff]
      %v959 = vld [vmem:[%s1 + $0x16a0] sm:$0xff]
      %v960 = vld [vmem:[%s1 + $0x16a8] sm:$0xff]
      %v961 = vld [vmem:[%s1 + $0x16b0] sm:$0xff]
      %v962 = vld [vmem:[%s1 + $0x16b8] sm:$0xff]
      %v963 = vld [vmem:[%s1 + $0x16c0] sm:$0xff]
      %v964 = vld [vmem:[%s1 + $0x16c8] sm:$0xff]
      %v965 = vld [vmem:[%s1 + $0x16d0] sm:$0xff]
      %v966 = vld [vmem:[%s1 + $0x16d8] sm:$0xff]
      %v967 = vld [vmem:[%s1 + $0x16e0] sm:$0xff]
      %v968 = vld [vmem:[%s1 + $0x16e8] sm:$0xff]
      %v969 = vld [vmem:[%s1 + $0x16f0] sm:$0xff]
      %v970 = vld [vmem:[%s1 + $0x16f8] sm:$0xff]
      %v971 = vld [vmem:[%s1 + $0x1700] sm:$0xff]
      %v972 = vld [vmem:[%s1 + $0x1708] sm:$0xff]
      %v973 = vld [vmem:[%s1 + $0x1710] sm:$0xff]
      %v974 = vld [vmem:[%s1 + $0x1718] sm:$0xff]
      %v975 = vld [vmem:[%s1 + $0x1720] sm:$0xff]
      %v976 = vld [vmem:[%s1 + $0x1728] sm:$0xff]
      %v977 = vld [vmem:[%s1 + $0x1730] sm:$0xff]
      %v978 = vld [vmem:[%s1 + $0x1738] sm:$0xff]
      %v979 = vld [vmem:[%s1 + $0x1740] sm:$0xff]
      %v980 = vld [vmem:[%s1 + $0x1748] sm:$0xff]
      %v981 = vld [vmem:[%s1 + $0x1750] sm:$0xff]
      %v982 = vld [vmem:[%s1 + $0x1758] sm:$0xff]
      %v983 = vld [vmem:[%s1 + $0x1760] sm:$0xff]
      %v984 = vld [vmem:[%s1 + $0x1768] sm:$0xff]
      %v985 = vld [vmem:[%s1 + $0x1770] sm:$0xff]
      %v986 = vld [vmem:[%s1 + $0x1778] sm:$0xff]
      %v987 = vld [vmem:[%s1 + $0x1780] sm:$0xff]
      %v988 = vld [vmem:[%s1 + $0x1788] sm:$0xff]
      %v989 = vld [vmem:[%s1 + $0x1790] sm:$0xff]
      %v990 = vld [vmem:[%s1 + $0x1798] sm:$0xff]
      %v991 = vld [vmem:[%s1 + $0x17a0] sm:$0xff]
      %v992 = vld [vmem:[%s1 + $0x17a8] sm:$0xff]
      %v993 = vld [vmem:[%s1 + $0x17b0] sm:$0xff]
      %v994 = vld [vmem:[%s1 + $0x17b8] sm:$0xff]
      %v995 = vld [vmem:[%s1 + $0x17c0] sm:$0xff]
      %v996 = vld [vmem:[%s1 + $0x17c8] sm:$0xff]
      %v997 = vld [vmem:[%s1 + $0x17d0] sm:$0xff]
      %v998 = vld [vmem:[%s1 + $0x17d8] sm:$0xff]
      %v999 = vld [vmem:[%s1 + $0x17e0] sm:$0xff]
      %v1000 = vld [vmem:[%s1 + $0x17e8] sm:$0xff]
      %v1001 = vld [vmem:[%s1 + $0x17f0] sm:$0xff]
      %v1002 = vld [vmem:[%s1 + $0x17f8] sm:$0xff]
      %v1003 = vld [vmem:[%s1 + $0x1800] sm:$0xff]
      %v1004 = vld [vmem:[%s1 + $0x1808] sm:$0xff]
      %v1005 = vld [vmem:[%s1 + $0x1810] sm:$0xff]
      %v1006 = vld [vmem:[%s1 + $0x1818] sm:$0xff]
      %v1007 = vld [vmem:[%s1 + $0x1820] sm:$0xff]
      %v1008 = vld [vmem:[%s1 + $0x1828] sm:$0xff]
      %v1009 = vld [vmem:[%s1 + $0x1830] sm:$0xff]
      %v1010 = vld [vmem:[%s1 + $0x1838] sm:$0xff]
      %v1011 = vld [vmem:[%s1 + $0x1840] sm:$0xff]
      %v1012 = vld [vmem:[%s1 + $0x1848] sm:$0xff]
      %v1013 = vld [vmem:[%s1 + $0x1850] sm:$0xff]
      %v1014 = vld [vmem:[%s1 + $0x1858] sm:$0xff]
      %v1015 = vld [vmem:[%s1 + $0x1860] sm:$0xff]
      %v1016 = vld [vmem:[%s1 + $0x1868] sm:$0xff]
      %v1017 = vld [vmem:[%s1 + $0x1870] sm:$0xff]
      %v1018 = vld [vmem:[%s1 + $0x1878] sm:$0xff]
      %v1019 = vld [vmem:[%s1 + $0x1880] sm:$0xff]
      %v1020 = vld [vmem:[%s1 + $0x1888] sm:$0xff]
      %v1021 = vld [vmem:[%s1 + $0x1890] sm:$0xff]
      %v1022 = vld [vmem:[%s1 + $0x1898] sm:$0xff]
      %v1023 = vld [vmem:[%s1 + $0x18a0] sm:$0xff]
      %v1024 = vld [vmem:[%s1 + $0x18a8] sm:$0xff]
      %v1025 = vld [vmem:[%s1 + $0x18b0] sm:$0xff]
      %v1026 = vld [vmem:[%s1 + $0x18b8] sm:$0xff]
      %v1027 = vld [vmem:[%s1 + $0x18c0] sm:$0xff]
      %v1028 = vld [vmem:[%s1 + $0x18c8] sm:$0xff]
      %v1029 = vld [vmem:[%s1 + $0x18d0] sm:$0xff]
      %v1030 = vld [vmem:[%s1 + $0x18d8] sm:$0xff]
      %v1031 = vld [vmem:[%s1 + $0x18e0] sm:$0xff]
      %v1032 = vld [vmem:[%s1 + $0x18e8] sm:$0xff]
      %v1033 = vld [vmem:[%s1 + $0x18f0] sm:$0xff]
      %v1034 = vld [vmem:[%s1 + $0x18f8] sm:$0xff]
      %v1035 = vld [vmem:[%s1 + $0x1900] sm:$0xff]
      %v1036 = vld [vmem:[%s1 + $0x1908] sm:$0xff]
      %v1037 = vld [vmem:[%s1 + $0x1910] sm:$0xff]
      %v1038 = vld [vmem:[%s1 + $0x1918] sm:$0xff]
      %v1039 = vld [vmem:[%s1 + $0x1920] sm:$0xff]
      %v1040 = vld [vmem:[%s1 + $0x1928] sm:$0xff]
      %v1041 = vld [vmem:[%s1 + $0x1930] sm:$0xff]
      %v1042 = vld [vmem:[%s1 + $0x1938] sm:$0xff]
      %v1043 = vld [vmem:[%s1 + $0x1940] sm:$0xff]
      %v1044 = vld [vmem:[%s1 + $0x1948] sm:$0xff]
      %v1045 = vld [vmem:[%s1 + $0x1950] sm:$0xff]
      %v1046 = vld [vmem:[%s1 + $0x1958] sm:$0xff]
      %v1047 = vld [vmem:[%s1 + $0x1960] sm:$0xff]
      %v1048 = vld [vmem:[%s1 + $0x1968] sm:$0xff]
      %v1049 = vld [vmem:[%s1 + $0x1970] sm:$0xff]
      %v1050 = vld [vmem:[%s1 + $0x1978] sm:$0xff]
      %v1051 = vld [vmem:[%s1 + $0x1980] sm:$0xff]
      %v1052 = vld [vmem:[%s1 + $0x1988] sm:$0xff]
      %v1053 = vld [vmem:[%s1 + $0x1990] sm:$0xff]
      %v1054 = vld [vmem:[%s1 + $0x1998] sm:$0xff]
      %v1055 = vld [vmem:[%s1 + $0x19a0] sm:$0xff]
      %v1056 = vld [vmem:[%s1 + $0x19a8] sm:$0xff]
      %v1057 = vld [vmem:[%s1 + $0x19b0] sm:$0xff]
      %v1058 = vld [vmem:[%s1 + $0x19b8] sm:$0xff]
      %v1059 = vld [vmem:[%s1 + $0x19c0] sm:$0xff]
      %v1060 = vld [vmem:[%s1 + $0x19c8] sm:$0xff]
      %v1061 = vld [vmem:[%s1 + $0x19d0] sm:$0xff]
      %v1062 = vld [vmem:[%s1 + $0x19d8] sm:$0xff]
      %v1063 = vld [vmem:[%s1 + $0x19e0] sm:$0xff]
      %v1064 = vld [vmem:[%s1 + $0x19e8] sm:$0xff]
      %v1065 = vld [vmem:[%s1 + $0x19f0] sm:$0xff]
      %v1066 = vld [vmem:[%s1 + $0x19f8] sm:$0xff]
      %v1067 = vld [vmem:[%s1 + $0x1a00] sm:$0xff]
      %v1068 = vld [vmem:[%s1 + $0x1a08] sm:$0xff]
      %v1069 = vld [vmem:[%s1 + $0x1a10] sm:$0xff]
      %v1070 = vld [vmem:[%s1 + $0x1a18] sm:$0xff]
      %v1071 = vld [vmem:[%s1 + $0x1a20] sm:$0xff]
      %v1072 = vld [vmem:[%s1 + $0x1a28] sm:$0xff]
      %v1073 = vld [vmem:[%s1 + $0x1a30] sm:$0xff]
      %v1074 = vld [vmem:[%s1 + $0x1a38] sm:$0xff]
      %v1075 = vld [vmem:[%s1 + $0x1a40] sm:$0xff]
      %v1076 = vld [vmem:[%s1 + $0x1a48] sm:$0xff]
      %v1077 = vld [vmem:[%s1 + $0x1a50] sm:$0xff]
      %v1078 = vld [vmem:[%s1 + $0x1a58] sm:$0xff]
      %v1079 = vld [vmem:[%s1 + $0x1a60] sm:$0xff]
      %v1080 = vld [vmem:[%s1 + $0x1a68] sm:$0xff]
      %v1081 = vld [vmem:[%s1 + $0x1a70] sm:$0xff]
      %v1082 = vld [vmem:[%s1 + $0x1a78] sm:$0xff]
      %v1083 = vld [vmem:[%s1 + $0x1a80] sm:$0xff]
      %v1084 = vld [vmem:[%s1 + $0x1a88] sm:$0xff]
      %v1085 = vld [vmem:[%s1 + $0x1a90] sm:$0xff]
      %v1086 = vld [vmem:[%s1 + $0x1a98] sm:$0xff]
      %v1087 = vld [vmem:[%s1 + $0x1aa0] sm:$0xff]
      %v1088 = vld [vmem:[%s1 + $0x1aa8] sm:$0xff]
      %v1089 = vld [vmem:[%s1 + $0x1ab0] sm:$0xff]
      %v1090 = vld [vmem:[%s1 + $0x1ab8] sm:$0xff]
      %v1091 = vld [vmem:[%s1 + $0x1ac0] sm:$0xff]
      %v1092 = vld [vmem:[%s1 + $0x1ac8] sm:$0xff]
      %v1093 = vld [vmem:[%s1 + $0x1ad0] sm:$0xff]
      %v1094 = vld [vmem:[%s1 + $0x1ad8] sm:$0xff]
      %v1095 = vld [vmem:[%s1 + $0x1ae0] sm:$0xff]
      %v1096 = vld [vmem:[%s1 + $0x1ae8] sm:$0xff]
      %v1097 = vld [vmem:[%s1 + $0x1af0] sm:$0xff]
      %v1098 = vld [vmem:[%s1 + $0x1af8] sm:$0xff]
      %v1099 = vld [vmem:[%s1 + $0x1b00] sm:$0xff]
      %v1100 = vld [vmem:[%s1 + $0x1b08] sm:$0xff]
      %v1101 = vld [vmem:[%s1 + $0x1b10] sm:$0xff]
      %v1102 = vld [vmem:[%s1 + $0x1b18] sm:$0xff]
      %v1103 = vld [vmem:[%s1 + $0x1b20] sm:$0xff]
      %v1104 = vld [vmem:[%s1 + $0x1b28] sm:$0xff]
      %v1105 = vld [vmem:[%s1 + $0x1b30] sm:$0xff]
      %v1106 = vld [vmem:[%s1 + $0x1b38] sm:$0xff]
      %v1107 = vld [vmem:[%s1 + $0x1b40] sm:$0xff]
      %v1108 = vld [vmem:[%s1 + $0x1b48] sm:$0xff]
      %v1109 = vld [vmem:[%s1 + $0x1b50] sm:$0xff]
      %v1110 = vld [vmem:[%s1 + $0x1b58] sm:$0xff]
      %v1111 = vld [vmem:[%s1 + $0x1b60] sm:$0xff]
      %v1112 = vld [vmem:[%s1 + $0x1b68] sm:$0xff]
      %v1113 = vld [vmem:[%s1 + $0x1b70] sm:$0xff]
      %v1114 = vld [vmem:[%s1 + $0x1b78] sm:$0xff]
      %v1115 = vld [vmem:[%s1 + $0x1b80] sm:$0xff]
      %v1116 = vld [vmem:[%s1 + $0x1b88] sm:$0xff]
      %v1117 = vld [vmem:[%s1 + $0x1b90] sm:$0xff]
      %v1118 = vld [vmem:[%s1 + $0x1b98] sm:$0xff]
      %v1119 = vld [vmem:[%s1 + $0x1ba0] sm:$0xff]
      %v1120 = vld [vmem:[%s1 + $0x1ba8] sm:$0xff]
      %v1121 = vld [vmem:[%s1 + $0x1bb0] sm:$0xff]
      %v1122 = vld [vmem:[%s1 + $0x1bb8] sm:$0xff]
      %v1123 = vld [vmem:[%s1 + $0x1bc0] sm:$0xff]
      %v1124 = vld [vmem:[%s1 + $0x1bc8] sm:$0xff]
      %v1125 = vld [vmem:[%s1 + $0x1bd0] sm:$0xff]
      %v1126 = vld [vmem:[%s1 + $0x1bd8] sm:$0xff]
      %v1127 = vld [vmem:[%s1 + $0x1be0] sm:$0xff]
      %v1128 = vld [vmem:[%s1 + $0x1be8] sm:$0xff]
      %v1129 = vld [vmem:[%s1 + $0x1bf0] sm:$0xff]
      %v1130 = vld [vmem:[%s1 + $0x1bf8] sm:$0xff]
      %v1131 = vld [vmem:[%s1 + $0x1c00] sm:$0xff]
      %v1132 = vld [vmem:[%s1 + $0x1c08] sm:$0xff]
      %v1133 = vld [vmem:[%s1 + $0x1c10] sm:$0xff]
      %v1134 = vld [vmem:[%s1 + $0x1c18] sm:$0xff]
      %v1135 = vld [vmem:[%s1 + $0x1c20] sm:$0xff]
      %v1136 = vld [vmem:[%s1 + $0x1c28] sm:$0xff]
      %v1137 = vld [vmem:[%s1 + $0x1c30] sm:$0xff]
      %v1138 = vld [vmem:[%s1 + $0x1c38] sm:$0xff]
      %v1139 = vld [vmem:[%s1 + $0x1c40] sm:$0xff]
      %v1140 = vld [vmem:[%s1 + $0x1c48] sm:$0xff]
      %v1141 = vld [vmem:[%s1 + $0x1c50] sm:$0xff]
      %v1142 = vld [vmem:[%s1 + $0x1c58] sm:$0xff]
      %v1143 = vld [vmem:[%s1 + $0x1c60] sm:$0xff]
      %v1144 = vld [vmem:[%s1 + $0x1c68] sm:$0xff]
      %v1145 = vld [vmem:[%s1 + $0x1c70] sm:$0xff]
      %v1146 = vld [vmem:[%s1 + $0x1c78] sm:$0xff]
      %v1147 = vld [vmem:[%s1 + $0x1c80] sm:$0xff]
      %v1148 = vld [vmem:[%s1 + $0x1c88] sm:$0xff]
      %v1149 = vld [vmem:[%s1 + $0x1c90] sm:$0xff]
      %v1150 = vld [vmem:[%s1 + $0x1c98] sm:$0xff]
      %v1151 = vld [vmem:[%s1 + $0x1ca0] sm:$0xff]
      %v1152 = vld [vmem:[%s1 + $0x1ca8] sm:$0xff]
      %v1153 = vld [vmem:[%s1 + $0x1cb0] sm:$0xff]
      %v1154 = vld [vmem:[%s1 + $0x1cb8] sm:$0xff]
      %v1155 = vld [vmem:[%s1 + $0x1cc0] sm:$0xff]
      %v1156 = vld [vmem:[%s1 + $0x1cc8] sm:$0xff]
      %v1157 = vld [vmem:[%s1 + $0x1cd0] sm:$0xff]
      %v1158 = vld [vmem:[%s1 + $0x1cd8] sm:$0xff]
      %v1159 = vld [vmem:[%s1 + $0x1ce0] sm:$0xff]
      %v1160 = vld [vmem:[%s1 + $0x1ce8] sm:$0xff]
      %v1161 = vld [vmem:[%s1 + $0x1cf0] sm:$0xff]
      %v1162 = vld [vmem:[%s1 + $0x1cf8] sm:$0xff]
      %v1163 = vld [vmem:[%s1 + $0x1d00] sm:$0xff]
      %v1164 = vld [vmem:[%s1 + $0x1d08] sm:$0xff]
      %v1165 = vld [vmem:[%s1 + $0x1d10] sm:$0xff]
      %v1166 = vld [vmem:[%s1 + $0x1d18] sm:$0xff]
      %v1167 = vld [vmem:[%s1 + $0x1d20] sm:$0xff]
      %v1168 = vld [vmem:[%s1 + $0x1d28] sm:$0xff]
      %v1169 = vld [vmem:[%s1 + $0x1d30] sm:$0xff]
      %v1170 = vld [vmem:[%s1 + $0x1d38] sm:$0xff]
      %v1171 = vld [vmem:[%s1 + $0x1d40] sm:$0xff]
      %v1172 = vld [vmem:[%s1 + $0x1d48] sm:$0xff]
      %v1173 = vld [vmem:[%s1 + $0x1d50] sm:$0xff]
      %v1174 = vld [vmem:[%s1 + $0x1d58] sm:$0xff]
      %v1175 = vld [vmem:[%s1 + $0x1d60] sm:$0xff]
      %v1176 = vld [vmem:[%s1 + $0x1d68] sm:$0xff]
      %v1177 = vld [vmem:[%s1 + $0x1d70] sm:$0xff]
      %v1178 = vld [vmem:[%s1 + $0x1d78] sm:$0xff]
      %v1179 = vld [vmem:[%s1 + $0x1d80] sm:$0xff]
      %v1180 = vld [vmem:[%s1 + $0x1d88] sm:$0xff]
      %v1181 = vld [vmem:[%s1 + $0x1d90] sm:$0xff]
      %v1182 = vld [vmem:[%s1 + $0x1d98] sm:$0xff]
      %v1183 = vld [vmem:[%s1 + $0x1da0] sm:$0xff]
      %v1184 = vld [vmem:[%s1 + $0x1da8] sm:$0xff]
      %v1185 = vld [vmem:[%s1 + $0x1db0] sm:$0xff]
      %v1186 = vld [vmem:[%s1 + $0x1db8] sm:$0xff]
      %v1187 = vld [vmem:[%s1 + $0x1dc0] sm:$0xff]
      %v1188 = vld [vmem:[%s1 + $0x1dc8] sm:$0xff]
      %v1189 = vld [vmem:[%s1 + $0x1dd0] sm:$0xff]
      %v1190 = vld [vmem:[%s1 + $0x1dd8] sm:$0xff]
      %v1191 = vld [vmem:[%s1 + $0x1de0] sm:$0xff]
      %v1192 = vld [vmem:[%s1 + $0x1de8] sm:$0xff]
      %v1193 = vld [vmem:[%s1 + $0x1df0] sm:$0xff]
      %v1194 = vld [vmem:[%s1 + $0x1df8] sm:$0xff]
      %v1195 = vld [vmem:[%s1 + $0x1e00] sm:$0xff]
      %v1196 = vld [vmem:[%s1 + $0x1e08] sm:$0xff]
      %v1197 = vld [vmem:[%s1 + $0x1e10] sm:$0xff]
      %v1198 = vld [vmem:[%s1 + $0x1e18] sm:$0xff]
      %v1199 = vld [vmem:[%s1 + $0x1e20] sm:$0xff]
      %v1200 = vld [vmem:[%s1 + $0x1e28] sm:$0xff]
      %v1201 = vld [vmem:[%s1 + $0x1e30] sm:$0xff]
      %v1202 = vld [vmem:[%s1 + $0x1e38] sm:$0xff]
      %v1203 = vld [vmem:[%s1 + $0x1e40] sm:$0xff]
      %v1204 = vld [vmem:[%s1 + $0x1e48] sm:$0xff]
      %v1205 = vld [vmem:[%s1 + $0x1e50] sm:$0xff]
      %v1206 = vld [vmem:[%s1 + $0x1e58] sm:$0xff]
      %v1207 = vld [vmem:[%s1 + $0x1e60] sm:$0xff]
      %v1208 = vld [vmem:[%s1 + $0x1e68] sm:$0xff]
      %v1209 = vld [vmem:[%s1 + $0x1e70] sm:$0xff]
      %v1210 = vld [vmem:[%s1 + $0x1e78] sm:$0xff]
      %v1211 = vld [vmem:[%s1 + $0x1e80] sm:$0xff]
      %v1212 = vld [vmem:[%s1 + $0x1e88] sm:$0xff]
      %v1213 = vld [vmem:[%s1 + $0x1e90] sm:$0xff]
      %v1214 = vld [vmem:[%s1 + $0x1e98] sm:$0xff]
      %v1215 = vld [vmem:[%s1 + $0x1ea0] sm:$0xff]
      %v1216 = vld [vmem:[%s1 + $0x1ea8] sm:$0xff]
      %v1217 = vld [vmem:[%s1 + $0x1eb0] sm:$0xff]
      %v1218 = vld [vmem:[%s1 + $0x1eb8] sm:$0xff]
      %v1219 = vld [vmem:[%s1 + $0x1ec0] sm:$0xff]
      %v1220 = vld [vmem:[%s1 + $0x1ec8] sm:$0xff]
      %v1221 = vld [vmem:[%s1 + $0x1ed0] sm:$0xff]
      %v1222 = vld [vmem:[%s1 + $0x1ed8] sm:$0xff]
      %v1223 = vld [vmem:[%s1 + $0x1ee0] sm:$0xff]
      %v1224 = vld [vmem:[%s1 + $0x1ee8] sm:$0xff]
      %v1225 = vld [vmem:[%s1 + $0x1ef0] sm:$0xff]
      %v1226 = vld [vmem:[%s1 + $0x1ef8] sm:$0xff]
      %v1227 = vld [vmem:[%s1 + $0x1f00] sm:$0xff]
      %v1228 = vld [vmem:[%s1 + $0x1f08] sm:$0xff]
      %v1229 = vld [vmem:[%s1 + $0x1f10] sm:$0xff]
      %v1230 = vld [vmem:[%s1 + $0x1f18] sm:$0xff]
      %v1231 = vld [vmem:[%s1 + $0x1f20] sm:$0xff]
      %v1232 = vld [vmem:[%s1 + $0x1f28] sm:$0xff]
      %v1233 = vld [vmem:[%s1 + $0x1f30] sm:$0xff]
      %v1234 = vld [vmem:[%s1 + $0x1f38] sm:$0xff]
      %v1235 = vld [vmem:[%s1 + $0x1f40] sm:$0xff]
      %v1236 = vld [vmem:[%s1 + $0x1f48] sm:$0xff]
      %v1237 = vld [vmem:[%s1 + $0x1f50] sm:$0xff]
      %v1238 = vld [vmem:[%s1 + $0x1f58] sm:$0xff]
      %v1239 = vld [vmem:[%s1 + $0x1f60] sm:$0xff]
      %v1240 = vld [vmem:[%s1 + $0x1f68] sm:$0xff]
      %v1241 = vld [vmem:[%s1 + $0x1f70] sm:$0xff]
      %v1242 = vld [vmem:[%s1 + $0x1f78] sm:$0xff]
      %v1243 = vld [vmem:[%s1 + $0x1f80] sm:$0xff]
      %v1244 = vld [vmem:[%s1 + $0x1f88] sm:$0xff]
      %v1245 = vld [vmem:[%s1 + $0x1f90] sm:$0xff]
      %v1246 = vld [vmem:[%s1 + $0x1f98] sm:$0xff]
      %v1247 = vld [vmem:[%s1 + $0x1fa0] sm:$0xff]
      %v1248 = vld [vmem:[%s1 + $0x1fa8] sm:$0xff]
      %v1249 = vld [vmem:[%s1 + $0x1fb0] sm:$0xff]
      %v1250 = vld [vmem:[%s1 + $0x1fb8] sm:$0xff]
      %v1251 = vld [vmem:[%s1 + $0x1fc0] sm:$0xff]
      %v1252 = vld [vmem:[%s1 + $0x1fc8] sm:$0xff]
      %v1253 = vld [vmem:[%s1 + $0x1fd0] sm:$0xff]
      %v1254 = vld [vmem:[%s1 + $0x1fd8] sm:$0xff]
      %v1255 = vld [vmem:[%s1 + $0x1fe0] sm:$0xff]
      %v1256 = vld [vmem:[%s1 + $0x1fe8] sm:$0xff]
      %v1257 = vld [vmem:[%s1 + $0x1ff0] sm:$0xff]
      %v1258 = vld [vmem:[%s1 + $0x1ff8] sm:$0xff]
      %v1259 = vld [vmem:[%s1 + $0x2000] sm:$0xff]
      %v1260 = vld [vmem:[%s1 + $0x2008] sm:$0xff]
      %v1261 = vld [vmem:[%s1 + $0x2010] sm:$0xff]
      %v1262 = vld [vmem:[%s1 + $0x2018] sm:$0xff]
      %v1263 = vld [vmem:[%s1 + $0x2020] sm:$0xff]
      %v1264 = vld [vmem:[%s1 + $0x2028] sm:$0xff]
      %v1265 = vld [vmem:[%s1 + $0x2030] sm:$0xff]
      %v1266 = vld [vmem:[%s1 + $0x2038] sm:$0xff]
      %v1267 = vld [vmem:[%s1 + $0x2040] sm:$0xff]
      %v1268 = vld [vmem:[%s1 + $0x2048] sm:$0xff]
      %v1269 = vld [vmem:[%s1 + $0x2050] sm:$0xff]
      %v1270 = vld [vmem:[%s1 + $0x2058] sm:$0xff]
      %v1271 = vld [vmem:[%s1 + $0x2060] sm:$0xff]
      %v1272 = vld [vmem:[%s1 + $0x2068] sm:$0xff]
      %v1273 = vld [vmem:[%s1 + $0x2070] sm:$0xff]
      %v1274 = vld [vmem:[%s1 + $0x2078] sm:$0xff]
      %v1275 = vld [vmem:[%s1 + $0x2080] sm:$0xff]
      %v1276 = vld [vmem:[%s1 + $0x2088] sm:$0xff]
      %v1277 = vld [vmem:[%s1 + $0x2090] sm:$0xff]
      %v1278 = vld [vmem:[%s1 + $0x2098] sm:$0xff]
      %v1279 = vld [vmem:[%s1 + $0x20a0] sm:$0xff]
      %v1280 = vld [vmem:[%s1 + $0x20a8] sm:$0xff]
      %v1281 = vld [vmem:[%s1 + $0x20b0] sm:$0xff]
      %v1282 = vld [vmem:[%s1 + $0x20b8] sm:$0xff]
      %v1283 = vld [vmem:[%s1 + $0x20c0] sm:$0xff]
      %v1284 = vld [vmem:[%s1 + $0x20c8] sm:$0xff]
      %v1285 = vld [vmem:[%s1 + $0x20d0] sm:$0xff]
      %v1286 = vld [vmem:[%s1 + $0x20d8] sm:$0xff]
      %v1287 = vld [vmem:[%s1 + $0x20e0] sm:$0xff]
      %v1288 = vld [vmem:[%s1 + $0x20e8] sm:$0xff]
      %v1289 = vld [vmem:[%s1 + $0x20f0] sm:$0xff]
      %v1290 = vld [vmem:[%s1 + $0x20f8] sm:$0xff]
      %v1291 = vld [vmem:[%s1 + $0x2100] sm:$0xff]
      %v1292 = vld [vmem:[%s1 + $0x2108] sm:$0xff]
      %v1293 = vld [vmem:[%s1 + $0x2110] sm:$0xff]
      %v1294 = vld [vmem:[%s1 + $0x2118] sm:$0xff]
      %v1295 = vld [vmem:[%s1 + $0x2120] sm:$0xff]
      %v1296 = vld [vmem:[%s1 + $0x2128] sm:$0xff]
      %v1297 = vld [vmem:[%s1 + $0x2130] sm:$0xff]
      %v1298 = vld [vmem:[%s1 + $0x2138] sm:$0xff]
      %v1299 = vld [vmem:[%s1 + $0x2140] sm:$0xff]
      %v1300 = vld [vmem:[%s1 + $0x2148] sm:$0xff]
      %v1301 = vld [vmem:[%s1 + $0x2150] sm:$0xff]
      %v1302 = vld [vmem:[%s1 + $0x2158] sm:$0xff]
      %v1303 = vld [vmem:[%s1 + $0x2160] sm:$0xff]
      %v1304 = vld [vmem:[%s1 + $0x2168] sm:$0xff]
      %v1305 = vld [vmem:[%s1 + $0x2170] sm:$0xff]
      %v1306 = vld [vmem:[%s1 + $0x2178] sm:$0xff]
      %v1307 = vld [vmem:[%s1 + $0x2180] sm:$0xff]
      %v1308 = vld [vmem:[%s1 + $0x2188] sm:$0xff]
      %v1309 = vld [vmem:[%s1 + $0x2190] sm:$0xff]
      %v1310 = vld [vmem:[%s1 + $0x2198] sm:$0xff]
      %v1311 = vld [vmem:[%s1 + $0x21a0] sm:$0xff]
      %v1312 = vld [vmem:[%s1 + $0x21a8] sm:$0xff]
      %v1313 = vld [vmem:[%s1 + $0x21b0] sm:$0xff]
      %v1314 = vld [vmem:[%s1 + $0x21b8] sm:$0xff]
      %v1315 = vld [vmem:[%s1 + $0x21c0] sm:$0xff]
      %v1316 = vld [vmem:[%s1 + $0x21c8] sm:$0xff]
      %v1317 = vld [vmem:[%s1 + $0x21d0] sm:$0xff]
      %v1318 = vld [vmem:[%s1 + $0x21d8] sm:$0xff]
      %v1319 = vld [vmem:[%s1 + $0x21e0] sm:$0xff]
      %v1320 = vld [vmem:[%s1 + $0x21e8] sm:$0xff]
      %v1321 = vld [vmem:[%s1 + $0x21f0] sm:$0xff]
      %v1322 = vld [vmem:[%s1 + $0x21f8] sm:$0xff]
      %v1323 = vld [vmem:[%s1 + $0x2200] sm:$0xff]
      %v1324 = vld [vmem:[%s1 + $0x2208] sm:$0xff]
      %v1325 = vld [vmem:[%s1 + $0x2210] sm:$0xff]
      %v1326 = vld [vmem:[%s1 + $0x2218] sm:$0xff]
      %v1327 = vld [vmem:[%s1 + $0x2220] sm:$0xff]
      %v1328 = vld [vmem:[%s1 + $0x2228] sm:$0xff]
      %v1329 = vld [vmem:[%s1 + $0x2230] sm:$0xff]
      %v1330 = vld [vmem:[%s1 + $0x2238] sm:$0xff]
      %v1331 = vld [vmem:[%s1 + $0x2240] sm:$0xff]
      %v1332 = vld [vmem:[%s1 + $0x2248] sm:$0xff]
      %v1333 = vld [vmem:[%s1 + $0x2250] sm:$0xff]
      %v1334 = vld [vmem:[%s1 + $0x2258] sm:$0xff]
      %v1335 = vld [vmem:[%s1 + $0x2260] sm:$0xff]
      %v1336 = vld [vmem:[%s1 + $0x2268] sm:$0xff]
      %v1337 = vld [vmem:[%s1 + $0x2270] sm:$0xff]
      %v1338 = vld [vmem:[%s1 + $0x2278] sm:$0xff]
      %v1339 = vld [vmem:[%s1 + $0x2280] sm:$0xff]
      %v1340 = vld [vmem:[%s1 + $0x2288] sm:$0xff]
      %v1341 = vld [vmem:[%s1 + $0x2290] sm:$0xff]
      %v1342 = vld [vmem:[%s1 + $0x2298] sm:$0xff]
      %v1343 = vld [vmem:[%s1 + $0x22a0] sm:$0xff]
      %v1344 = vld [vmem:[%s1 + $0x22a8] sm:$0xff]
      %v1345 = vld [vmem:[%s1 + $0x22b0] sm:$0xff]
      %v1346 = vld [vmem:[%s1 + $0x22b8] sm:$0xff]
      %v1347 = vld [vmem:[%s1 + $0x22c0] sm:$0xff]
      %v1348 = vld [vmem:[%s1 + $0x22c8] sm:$0xff]
      %v1349 = vld [vmem:[%s1 + $0x22d0] sm:$0xff]
      %v1350 = vld [vmem:[%s1 + $0x22d8] sm:$0xff]
      %v1351 = vld [vmem:[%s1 + $0x22e0] sm:$0xff]
      %v1352 = vld [vmem:[%s1 + $0x22e8] sm:$0xff]
      %v1353 = vld [vmem:[%s1 + $0x22f0] sm:$0xff]
      %v1354 = vld [vmem:[%s1 + $0x22f8] sm:$0xff]
      %v1355 = vld [vmem:[%s1 + $0x2300] sm:$0xff]
      %v1356 = vld [vmem:[%s1 + $0x2308] sm:$0xff]
      %v1357 = vld [vmem:[%s1 + $0x2310] sm:$0xff]
      %v1358 = vld [vmem:[%s1 + $0x2318] sm:$0xff]
      %v1359 = vld [vmem:[%s1 + $0x2320] sm:$0xff]
      %v1360 = vld [vmem:[%s1 + $0x2328] sm:$0xff]
      %v1361 = vld [vmem:[%s1 + $0x2330] sm:$0xff]
      %v1362 = vld [vmem:[%s1 + $0x2338] sm:$0xff]
      %v1363 = vld [vmem:[%s1 + $0x2340] sm:$0xff]
      %v1364 = vld [vmem:[%s1 + $0x2348] sm:$0xff]
      %v1365 = vld [vmem:[%s1 + $0x2350] sm:$0xff]
      %v1366 = vld [vmem:[%s1 + $0x2358] sm:$0xff]
      %v1367 = vld [vmem:[%s1 + $0x2360] sm:$0xff]
      %v1368 = vld [vmem:[%s1 + $0x2368] sm:$0xff]
      %v1369 = vld [vmem:[%s1 + $0x2370] sm:$0xff]
      %v1370 = vld [vmem:[%s1 + $0x2378] sm:$0xff]
      %v1371 = vld [vmem:[%s1 + $0x2380] sm:$0xff]
      %v1372 = vld [vmem:[%s1 + $0x2388] sm:$0xff]
      %v1373 = vld [vmem:[%s1 + $0x2390] sm:$0xff]
      %v1374 = vld [vmem:[%s1 + $0x2398] sm:$0xff]
      %v1375 = vld [vmem:[%s1 + $0x23a0] sm:$0xff]
      %v1376 = vld [vmem:[%s1 + $0x23a8] sm:$0xff]
      %v1377 = vld [vmem:[%s1 + $0x23b0] sm:$0xff]
      %v1378 = vld [vmem:[%s1 + $0x23b8] sm:$0xff]
      %v1379 = vld [vmem:[%s1 + $0x23c0] sm:$0xff]
      %v1380 = vld [vmem:[%s1 + $0x23c8] sm:$0xff]
      %v1381 = vld [vmem:[%s1 + $0x23d0] sm:$0xff]
      %v1382 = vld [vmem:[%s1 + $0x23d8] sm:$0xff]
      %v1383 = vld [vmem:[%s1 + $0x23e0] sm:$0xff]
      %v1384 = vld [vmem:[%s1 + $0x23e8] sm:$0xff]
      %v1385 = vld [vmem:[%s1 + $0x23f0] sm:$0xff]
      %v1386 = vld [vmem:[%s1 + $0x23f8] sm:$0xff]
      %v1387 = vld [vmem:[%s1 + $0x2400] sm:$0xff]
      %v1388 = vld [vmem:[%s1 + $0x2408] sm:$0xff]
      %v1389 = vld [vmem:[%s1 + $0x2410] sm:$0xff]
      %v1390 = vld [vmem:[%s1 + $0x2418] sm:$0xff]
      %v1391 = vld [vmem:[%s1 + $0x2420] sm:$0xff]
      %v1392 = vld [vmem:[%s1 + $0x2428] sm:$0xff]
      %v1393 = vld [vmem:[%s1 + $0x2430] sm:$0xff]
      %v1394 = vld [vmem:[%s1 + $0x2438] sm:$0xff]
      %v1395 = vld [vmem:[%s1 + $0x2440] sm:$0xff]
      %v1396 = vld [vmem:[%s1 + $0x2448] sm:$0xff]
      %v1397 = vld [vmem:[%s1 + $0x2450] sm:$0xff]
      %v1398 = vld [vmem:[%s1 + $0x2458] sm:$0xff]
      %v1399 = vld [vmem:[%s1 + $0x2460] sm:$0xff]
      %v1400 = vld [vmem:[%s1 + $0x2468] sm:$0xff]
      %v1401 = vld [vmem:[%s1 + $0x2470] sm:$0xff]
      %v1402 = vld [vmem:[%s1 + $0x2478] sm:$0xff]
      %v1403 = vld [vmem:[%s1 + $0x2480] sm:$0xff]
      %v1404 = vld [vmem:[%s1 + $0x2488] sm:$0xff]
      %v1405 = vld [vmem:[%s1 + $0x2490] sm:$0xff]
      %v1406 = vld [vmem:[%s1 + $0x2498] sm:$0xff]
      %v1407 = vld [vmem:[%s1 + $0x24a0] sm:$0xff]
      %v1408 = vld [vmem:[%s1 + $0x24a8] sm:$0xff]
      %v1409 = vld [vmem:[%s1 + $0x24b0] sm:$0xff]
      %v1410 = vld [vmem:[%s1 + $0x24b8] sm:$0xff]
      %v1411 = vld [vmem:[%s1 + $0x24c0] sm:$0xff]
      %v1412 = vld [vmem:[%s1 + $0x24c8] sm:$0xff]
      %v1413 = vld [vmem:[%s1 + $0x24d0] sm:$0xff]
      %v1414 = vld [vmem:[%s1 + $0x24d8] sm:$0xff]
      %v1415 = vld [vmem:[%s1 + $0x24e0] sm:$0xff]
      %v1416 = vld [vmem:[%s1 + $0x24e8] sm:$0xff]
      %v1417 = vld [vmem:[%s1 + $0x24f0] sm:$0xff]
      %v1418 = vld [vmem:[%s1 + $0x24f8] sm:$0xff]
      %v1419 = vld [vmem:[%s1 + $0x2500] sm:$0xff]
      %v1420 = vld [vmem:[%s1 + $0x2508] sm:$0xff]
      %v1421 = vld [vmem:[%s1 + $0x2510] sm:$0xff]
      %v1422 = vld [vmem:[%s1 + $0x2518] sm:$0xff]
      %v1423 = vld [vmem:[%s1 + $0x2520] sm:$0xff]
      %v1424 = vld [vmem:[%s1 + $0x2528] sm:$0xff]
      %v1425 = vld [vmem:[%s1 + $0x2530] sm:$0xff]
      %v1426 = vld [vmem:[%s1 + $0x2538] sm:$0xff]
      %v1427 = vld [vmem:[%s1 + $0x2540] sm:$0xff]
      %v1428 = vld [vmem:[%s1 + $0x2548] sm:$0xff]
      %v1429 = vld [vmem:[%s1 + $0x2550] sm:$0xff]
      %v1430 = vld [vmem:[%s1 + $0x2558] sm:$0xff]
      %v1431 = vld [vmem:[%s1 + $0x2560] sm:$0xff]
      %v1432 = vld [vmem:[%s1 + $0x2568] sm:$0xff]
      %v1433 = vld [vmem:[%s1 + $0x2570] sm:$0xff]
      %v1434 = vld [vmem:[%s1 + $0x2578] sm:$0xff]
      %v1435 = vld [vmem:[%s1 + $0x2580] sm:$0xff]
      %v1436 = vld [vmem:[%s1 + $0x2588] sm:$0xff]
      %v1437 = vld [vmem:[%s1 + $0x2590] sm:$0xff]
      %v1438 = vld [vmem:[%s1 + $0x2598] sm:$0xff]
      %v1439 = vld [vmem:[%s1 + $0x25a0] sm:$0xff]
      %v1440 = vld [vmem:[%s1 + $0x25a8] sm:$0xff]
      %v1441 = vld [vmem:[%s1 + $0x25b0] sm:$0xff]
      %v1442 = vld [vmem:[%s1 + $0x25b8] sm:$0xff]
      %v1443 = vld [vmem:[%s1 + $0x25c0] sm:$0xff]
      %v1444 = vld [vmem:[%s1 + $0x25c8] sm:$0xff]
      %v1445 = vld [vmem:[%s1 + $0x25d0] sm:$0xff]
      %v1446 = vld [vmem:[%s1 + $0x25d8] sm:$0xff]
      %v1447 = vld [vmem:[%s1 + $0x25e0] sm:$0xff]
      %v1448 = vld [vmem:[%s1 + $0x25e8] sm:$0xff]
      %v1449 = vld [vmem:[%s1 + $0x25f0] sm:$0xff]
      %v1450 = vld [vmem:[%s1 + $0x25f8] sm:$0xff]
      %v1451 = vld [vmem:[%s1 + $0x2600] sm:$0xff]
      %v1452 = vld [vmem:[%s1 + $0x2608] sm:$0xff]
      %v1453 = vld [vmem:[%s1 + $0x2610] sm:$0xff]
      %v1454 = vld [vmem:[%s1 + $0x2618] sm:$0xff]
      %v1455 = vld [vmem:[%s1 + $0x2620] sm:$0xff]
      %v1456 = vld [vmem:[%s1 + $0x2628] sm:$0xff]
      %v1457 = vld [vmem:[%s1 + $0x2630] sm:$0xff]
      %v1458 = vld [vmem:[%s1 + $0x2638] sm:$0xff]
      %v1459 = vld [vmem:[%s1 + $0x2640] sm:$0xff]
      %v1460 = vld [vmem:[%s1 + $0x2648] sm:$0xff]
      %v1461 = vld [vmem:[%s1 + $0x2650] sm:$0xff]
      %v1462 = vld [vmem:[%s1 + $0x2658] sm:$0xff]
      %v1463 = vld [vmem:[%s1 + $0x2660] sm:$0xff]
      %v1464 = vld [vmem:[%s1 + $0x2668] sm:$0xff]
      %v1465 = vld [vmem:[%s1 + $0x2670] sm:$0xff]
      %v1466 = vld [vmem:[%s1 + $0x2678] sm:$0xff]
      %v1467 = vld [vmem:[%s1 + $0x2680] sm:$0xff]
      %v1468 = vld [vmem:[%s1 + $0x2688] sm:$0xff]
      %v1469 = vld [vmem:[%s1 + $0x2690] sm:$0xff]
      %v1470 = vld [vmem:[%s1 + $0x2698] sm:$0xff]
      %v1471 = vld [vmem:[%s1 + $0x26a0] sm:$0xff]
      %v1472 = vld [vmem:[%s1 + $0x26a8] sm:$0xff]
      %v1473 = vld [vmem:[%s1 + $0x26b0] sm:$0xff]
      %v1474 = vld [vmem:[%s1 + $0x26b8] sm:$0xff]
      %v1475 = vld [vmem:[%s1 + $0x26c0] sm:$0xff]
      %v1476 = vld [vmem:[%s1 + $0x26c8] sm:$0xff]
      %v1477 = vld [vmem:[%s1 + $0x26d0] sm:$0xff]
      %v1478 = vld [vmem:[%s1 + $0x26d8] sm:$0xff]
      %v1479 = vld [vmem:[%s1 + $0x26e0] sm:$0xff]
      %v1480 = vld [vmem:[%s1 + $0x26e8] sm:$0xff]
      %v1481 = vld [vmem:[%s1 + $0x26f0] sm:$0xff]
      %v1482 = vld [vmem:[%s1 + $0x26f8] sm:$0xff]
      %v1483 = vld [vmem:[%s1 + $0x2700] sm:$0xff]
      %v1484 = vld [vmem:[%s1 + $0x2708] sm:$0xff]
      %v1485 = vld [vmem:[%s1 + $0x2710] sm:$0xff]
      %v1486 = vld [vmem:[%s1 + $0x2718] sm:$0xff]
      %v1487 = vld [vmem:[%s1 + $0x2720] sm:$0xff]
      %v1488 = vld [vmem:[%s1 + $0x2728] sm:$0xff]
      %v1489 = vld [vmem:[%s1 + $0x2730] sm:$0xff]
      %v1490 = vld [vmem:[%s1 + $0x2738] sm:$0xff]
      %v1491 = vld [vmem:[%s1 + $0x2740] sm:$0xff]
      %v1492 = vld [vmem:[%s1 + $0x2748] sm:$0xff]
      %v1493 = vld [vmem:[%s1 + $0x2750] sm:$0xff]
      %v1494 = vld [vmem:[%s1 + $0x2758] sm:$0xff]
      %v1495 = vld [vmem:[%s1 + $0x2760] sm:$0xff]
      %v1496 = vld [vmem:[%s1 + $0x2768] sm:$0xff]
      %v1497 = vld [vmem:[%s1 + $0x2770] sm:$0xff]
      %v1498 = vld [vmem:[%s1 + $0x2778] sm:$0xff]
      %v1499 = vld [vmem:[%s1 + $0x2780] sm:$0xff]
      %v1500 = vld [vmem:[%s1 + $0x2788] sm:$0xff]
      %v1501 = vld [vmem:[%s1 + $0x2790] sm:$0xff]
      %v1502 = vld [vmem:[%s1 + $0x2798] sm:$0xff]
      %v1503 = vld [vmem:[%s1 + $0x27a0] sm:$0xff]
      %v1504 = vld [vmem:[%s1 + $0x27a8] sm:$0xff]
      %v1505 = vld [vmem:[%s1 + $0x27b0] sm:$0xff]
      %v1506 = vld [vmem:[%s1 + $0x27b8] sm:$0xff]
      %v1507 = vld [vmem:[%s1 + $0x27c0] sm:$0xff]
      %v1508 = vld [vmem:[%s1 + $0x27c8] sm:$0xff]
      %v1509 = vld [vmem:[%s1 + $0x27d0] sm:$0xff]
      %v1510 = vld [vmem:[%s1 + $0x27d8] sm:$0xff]
      %v1511 = vld [vmem:[%s1 + $0x27e0] sm:$0xff]
      %v1512 = vld [vmem:[%s1 + $0x27e8] sm:$0xff]
      %v1513 = vld [vmem:[%s1 + $0x27f0] sm:$0xff]
      %v1514 = vld [vmem:[%s1 + $0x27f8] sm:$0xff]
      %v1515 = vld [vmem:[%s1 + $0x2800] sm:$0xff]
      %v1516 = vld [vmem:[%s1 + $0x2808] sm:$0xff]
      %v1517 = vld [vmem:[%s1 + $0x2810] sm:$0xff]
      %v1518 = vld [vmem:[%s1 + $0x2818] sm:$0xff]
      %v1519 = vld [vmem:[%s1 + $0x2820] sm:$0xff]
      %v1520 = vld [vmem:[%s1 + $0x2828] sm:$0xff]
      %v1521 = vld [vmem:[%s1 + $0x2830] sm:$0xff]
      %v1522 = vld [vmem:[%s1 + $0x2838] sm:$0xff]
      %v1523 = vld [vmem:[%s1 + $0x2840] sm:$0xff]
      %v1524 = vld [vmem:[%s1 + $0x2848] sm:$0xff]
      %v1525 = vld [vmem:[%s1 + $0x2850] sm:$0xff]
      %v1526 = vld [vmem:[%s1 + $0x2858] sm:$0xff]
      %v1527 = vld [vmem:[%s1 + $0x2860] sm:$0xff]
      %v1528 = vld [vmem:[%s1 + $0x2868] sm:$0xff]
      %v1529 = vld [vmem:[%s1 + $0x2870] sm:$0xff]
      %v1530 = vld [vmem:[%s1 + $0x2878] sm:$0xff]
      %v1531 = vld [vmem:[%s1 + $0x2880] sm:$0xff]
      %v1532 = vld [vmem:[%s1 + $0x2888] sm:$0xff]
      %v1533 = vld [vmem:[%s1 + $0x2890] sm:$0xff]
      %v1534 = vld [vmem:[%s1 + $0x2898] sm:$0xff]
      %v1535 = vld [vmem:[%s1 + $0x28a0] sm:$0xff]
      %v1536 = vld [vmem:[%s1 + $0x28a8] sm:$0xff]
      %v1537 = vld [vmem:[%s1 + $0x28b0] sm:$0xff]
      %v1538 = vld [vmem:[%s1 + $0x28b8] sm:$0xff]
      %v1539 = vld [vmem:[%s1 + $0x28c0] sm:$0xff]
      %v1540 = vld [vmem:[%s1 + $0x28c8] sm:$0xff]
      %v1541 = vld [vmem:[%s1 + $0x28d0] sm:$0xff]
      %v1542 = vld [vmem:[%s1 + $0x28d8] sm:$0xff]
      %v1543 = vld [vmem:[%s1 + $0x28e0] sm:$0xff]
      %v1544 = vld [vmem:[%s1 + $0x28e8] sm:$0xff]
      %v1545 = vld [vmem:[%s1 + $0x28f0] sm:$0xff]
      %v1546 = vld [vmem:[%s1 + $0x28f8] sm:$0xff]
      %v1547 = vld [vmem:[%s1 + $0x2900] sm:$0xff]
      %v1548 = vld [vmem:[%s1 + $0x2908] sm:$0xff]
      %v1549 = vld [vmem:[%s1 + $0x2910] sm:$0xff]
      %v1550 = vld [vmem:[%s1 + $0x2918] sm:$0xff]
      %v1551 = vld [vmem:[%s1 + $0x2920] sm:$0xff]
      %v1552 = vld [vmem:[%s1 + $0x2928] sm:$0xff]
      %v1553 = vld [vmem:[%s1 + $0x2930] sm:$0xff]
      %v1554 = vld [vmem:[%s1 + $0x2938] sm:$0xff]
      %v1555 = vld [vmem:[%s1 + $0x2940] sm:$0xff]
      %v1556 = vld [vmem:[%s1 + $0x2948] sm:$0xff]
      %v1557 = vld [vmem:[%s1 + $0x2950] sm:$0xff]
      %v1558 = vld [vmem:[%s1 + $0x2958] sm:$0xff]
      %v1559 = vld [vmem:[%s1 + $0x2960] sm:$0xff]
      %v1560 = vld [vmem:[%s1 + $0x2968] sm:$0xff]
      %v1561 = vld [vmem:[%s1 + $0x2970] sm:$0xff]
      %v1562 = vld [vmem:[%s1 + $0x2978] sm:$0xff]
      %v1563 = vld [vmem:[%s1 + $0x2980] sm:$0xff]
      %v1564 = vld [vmem:[%s1 + $0x2988] sm:$0xff]
      %v1565 = vld [vmem:[%s1 + $0x2990] sm:$0xff]
      %v1566 = vld [vmem:[%s1 + $0x2998] sm:$0xff]
      %v1567 = vld [vmem:[%s1 + $0x29a0] sm:$0xff]
      %v1568 = vld [vmem:[%s1 + $0x29a8] sm:$0xff]
      %v1569 = vld [vmem:[%s1 + $0x29b0] sm:$0xff]
      %v1570 = vld [vmem:[%s1 + $0x29b8] sm:$0xff]
      %v1571 = vld [vmem:[%s1 + $0x29c0] sm:$0xff]
      %v1572 = vld [vmem:[%s1 + $0x29c8] sm:$0xff]
      %v1573 = vld [vmem:[%s1 + $0x29d0] sm:$0xff]
      %v1574 = vld [vmem:[%s1 + $0x29d8] sm:$0xff]
      %v1575 = vld [vmem:[%s1 + $0x29e0] sm:$0xff]
      %v1576 = vld [vmem:[%s1 + $0x29e8] sm:$0xff]
      %v1577 = vld [vmem:[%s1 + $0x29f0] sm:$0xff]
      %v1578 = vld [vmem:[%s1 + $0x29f8] sm:$0xff]
      %v1579 = vld [vmem:[%s1 + $0x2a00] sm:$0xff]
      %v1580 = vld [vmem:[%s1 + $0x2a08] sm:$0xff]
      %v1581 = vld [vmem:[%s1 + $0x2a10] sm:$0xff]
      %v1582 = vld [vmem:[%s1 + $0x2a18] sm:$0xff]
      %v1583 = vld [vmem:[%s1 + $0x2a20] sm:$0xff]
      %v1584 = vld [vmem:[%s1 + $0x2a28] sm:$0xff]
      %v1585 = vld [vmem:[%s1 + $0x2a30] sm:$0xff]
      %v1586 = vld [vmem:[%s1 + $0x2a38] sm:$0xff]
      %v1587 = vld [vmem:[%s1 + $0x2a40] sm:$0xff]
      %v1588 = vld [vmem:[%s1 + $0x2a48] sm:$0xff]
      %v1589 = vld [vmem:[%s1 + $0x2a50] sm:$0xff]
      %v1590 = vld [vmem:[%s1 + $0x2a58] sm:$0xff]
      %v1591 = vld [vmem:[%s1 + $0x2a60] sm:$0xff]
      %v1592 = vld [vmem:[%s1 + $0x2a68] sm:$0xff]
      %v1593 = vld [vmem:[%s1 + $0x2a70] sm:$0xff]
      %v1594 = vld [vmem:[%s1 + $0x2a78] sm:$0xff]
      %v1595 = vld [vmem:[%s1 + $0x2a80] sm:$0xff]
      %v1596 = vld [vmem:[%s1 + $0x2a88] sm:$0xff]
      %v1597 = vld [vmem:[%s1 + $0x2a90] sm:$0xff]
      %v1598 = vld [vmem:[%s1 + $0x2a98] sm:$0xff]
      %v1599 = vld [vmem:[%s1 + $0x2aa0] sm:$0xff]
      %v1600 = vld [vmem:[%s1 + $0x2aa8] sm:$0xff]
      %v1601 = vld [vmem:[%s1 + $0x2ab0] sm:$0xff]
      %v1602 = vld [vmem:[%s1 + $0x2ab8] sm:$0xff]
      %v1603 = vld [vmem:[%s1 + $0x2ac0] sm:$0xff]
      %v1604 = vld [vmem:[%s1 + $0x2ac8] sm:$0xff]
      %v1605 = vld [vmem:[%s1 + $0x2ad0] sm:$0xff]
      %v1606 = vld [vmem:[%s1 + $0x2ad8] sm:$0xff]
      %v1607 = vld [vmem:[%s1 + $0x2ae0] sm:$0xff]
      %v1608 = vld [vmem:[%s1 + $0x2ae8] sm:$0xff]
      %v1609 = vld [vmem:[%s1 + $0x2af0] sm:$0xff]
      %v1610 = vld [vmem:[%s1 + $0x2af8] sm:$0xff]
      %v1611 = vld [vmem:[%s1 + $0x2b00] sm:$0xff]
      %v1612 = vld [vmem:[%s1 + $0x2b08] sm:$0xff]
      %v1613 = vld [vmem:[%s1 + $0x2b10] sm:$0xff]
      %v1614 = vld [vmem:[%s1 + $0x2b18] sm:$0xff]
      %v1615 = vld [vmem:[%s1 + $0x2b20] sm:$0xff]
      %v1616 = vld [vmem:[%s1 + $0x2b28] sm:$0xff]
      %v1617 = vld [vmem:[%s1 + $0x2b30] sm:$0xff]
      %v1618 = vld [vmem:[%s1 + $0x2b38] sm:$0xff]
      %v1619 = vld [vmem:[%s1 + $0x2b40] sm:$0xff]
      %v1620 = vld [vmem:[%s1 + $0x2b48] sm:$0xff]
      %v1621 = vld [vmem:[%s1 + $0x2b50] sm:$0xff]
      %v1622 = vld [vmem:[%s1 + $0x2b58] sm:$0xff]
      %v1623 = vld [vmem:[%s1 + $0x2b60] sm:$0xff]
      %v1624 = vld [vmem:[%s1 + $0x2b68] sm:$0xff]
      %v1625 = vld [vmem:[%s1 + $0x2b70] sm:$0xff]
      %v1626 = vld [vmem:[%s1 + $0x2b78] sm:$0xff]
      %v1627 = vld [vmem:[%s1 + $0x2b80] sm:$0xff]
      %v1628 = vld [vmem:[%s1 + $0x2b88] sm:$0xff]
      %v1629 = vld [vmem:[%s1 + $0x2b90] sm:$0xff]
      %v1630 = vld [vmem:[%s1 + $0x2b98] sm:$0xff]
      %v1631 = vld [vmem:[%s1 + $0x2ba0] sm:$0xff]
      %v1632 = vld [vmem:[%s1 + $0x2ba8] sm:$0xff]
      %v1633 = vld [vmem:[%s1 + $0x2bb0] sm:$0xff]
      %v1634 = vld [vmem:[%s1 + $0x2bb8] sm:$0xff]
      %v1635 = vld [vmem:[%s1 + $0x2bc0] sm:$0xff]
      %v1636 = vld [vmem:[%s1 + $0x2bc8] sm:$0xff]
      %v1637 = vld [vmem:[%s1 + $0x2bd0] sm:$0xff]
      %v1638 = vld [vmem:[%s1 + $0x2bd8] sm:$0xff]
      %v1639 = vld [vmem:[%s1 + $0x2be0] sm:$0xff]
      %v1640 = vld [vmem:[%s1 + $0x2be8] sm:$0xff]
      %v1641 = vld [vmem:[%s1 + $0x2bf0] sm:$0xff]
      %v1642 = vld [vmem:[%s1 + $0x2bf8] sm:$0xff]
      %v1643 = vld [vmem:[%s1 + $0x2c00] sm:$0xff]
      %v1644 = vld [vmem:[%s1 + $0x2c08] sm:$0xff]
      %v1645 = vld [vmem:[%s1 + $0x2c10] sm:$0xff]
      %v1646 = vld [vmem:[%s1 + $0x2c18] sm:$0xff]
      %v1647 = vld [vmem:[%s1 + $0x2c20] sm:$0xff]
      %v1648 = vld [vmem:[%s1 + $0x2c28] sm:$0xff]
      %v1649 = vld [vmem:[%s1 + $0x2c30] sm:$0xff]
      %v1650 = vld [vmem:[%s1 + $0x2c38] sm:$0xff]
      %v1651 = vld [vmem:[%s1 + $0x2c40] sm:$0xff]
      %v1652 = vld [vmem:[%s1 + $0x2c48] sm:$0xff]
      %v1653 = vld [vmem:[%s1 + $0x2c50] sm:$0xff]
      %v1654 = vld [vmem:[%s1 + $0x2c58] sm:$0xff]
      %v1655 = vld [vmem:[%s1 + $0x2c60] sm:$0xff]
      %v1656 = vld [vmem:[%s1 + $0x2c68] sm:$0xff]
      %v1657 = vld [vmem:[%s1 + $0x2c70] sm:$0xff]
      %v1658 = vld [vmem:[%s1 + $0x2c78] sm:$0xff]
      %v1659 = vld [vmem:[%s1 + $0x2c80] sm:$0xff]
      %v1660 = vld [vmem:[%s1 + $0x2c88] sm:$0xff]
      %v1661 = vld [vmem:[%s1 + $0x2c90] sm:$0xff]
      %v1662 = vld [vmem:[%s1 + $0x2c98] sm:$0xff]
      %v1663 = vld [vmem:[%s1 + $0x2ca0] sm:$0xff]
      %v1664 = vld [vmem:[%s1 + $0x2ca8] sm:$0xff]
      %v1665 = vld [vmem:[%s1 + $0x2cb0] sm:$0xff]
      %v1666 = vld [vmem:[%s1 + $0x2cb8] sm:$0xff]
      %v1667 = vld [vmem:[%s1 + $0x2cc0] sm:$0xff]
      %v1668 = vld [vmem:[%s1 + $0x2cc8] sm:$0xff]
      %v1669 = vld [vmem:[%s1 + $0x2cd0] sm:$0xff]
      %v1670 = vld [vmem:[%s1 + $0x2cd8] sm:$0xff]
      %v1671 = vld [vmem:[%s1 + $0x2ce0] sm:$0xff]
      %v1672 = vld [vmem:[%s1 + $0x2ce8] sm:$0xff]
      %v1673 = vld [vmem:[%s1 + $0x2cf0] sm:$0xff]
      %v1674 = vld [vmem:[%s1 + $0x2cf8] sm:$0xff]
      %v1675 = vld [vmem:[%s1 + $0x2d00] sm:$0xff]
      %v1676 = vld [vmem:[%s1 + $0x2d08] sm:$0xff]
      %v1677 = vld [vmem:[%s1 + $0x2d10] sm:$0xff]
      %v1678 = vld [vmem:[%s1 + $0x2d18] sm:$0xff]
      %v1679 = vld [vmem:[%s1 + $0x2d20] sm:$0xff]
      %v1680 = vld [vmem:[%s1 + $0x2d28] sm:$0xff]
      %v1681 = vld [vmem:[%s1 + $0x2d30] sm:$0xff]
      %v1682 = vld [vmem:[%s1 + $0x2d38] sm:$0xff]
      %v1683 = vld [vmem:[%s1 + $0x2d40] sm:$0xff]
      %v1684 = vld [vmem:[%s1 + $0x2d48] sm:$0xff]
      %v1685 = vld [vmem:[%s1 + $0x2d50] sm:$0xff]
      %v1686 = vld [vmem:[%s1 + $0x2d58] sm:$0xff]
      %v1687 = vld [vmem:[%s1 + $0x2d60] sm:$0xff]
      %v1688 = vld [vmem:[%s1 + $0x2d68] sm:$0xff]
      %v1689 = vld [vmem:[%s1 + $0x2d70] sm:$0xff]
      %v1690 = vld [vmem:[%s1 + $0x2d78] sm:$0xff]
      %v1691 = vld [vmem:[%s1 + $0x2d80] sm:$0xff]
      %v1692 = vld [vmem:[%s1 + $0x2d88] sm:$0xff]
      %v1693 = vld [vmem:[%s1 + $0x2d90] sm:$0xff]
      %v1694 = vld [vmem:[%s1 + $0x2d98] sm:$0xff]
      %v1695 = vld [vmem:[%s1 + $0x2da0] sm:$0xff]
      %v1696 = vld [vmem:[%s1 + $0x2da8] sm:$0xff]
      %v1697 = vld [vmem:[%s1 + $0x2db0] sm:$0xff]
      %v1698 = vld [vmem:[%s1 + $0x2db8] sm:$0xff]
      %v1699 = vld [vmem:[%s1 + $0x2dc0] sm:$0xff]
      %v1700 = vld [vmem:[%s1 + $0x2dc8] sm:$0xff]
      %v1701 = vld [vmem:[%s1 + $0x2dd0] sm:$0xff]
      %v1702 = vld [vmem:[%s1 + $0x2dd8] sm:$0xff]
      %v1703 = vld [vmem:[%s1 + $0x2de0] sm:$0xff]
      %v1704 = vld [vmem:[%s1 + $0x2de8] sm:$0xff]
      %v1705 = vld [vmem:[%s1 + $0x2df0] sm:$0xff]
      %v1706 = vld [vmem:[%s1 + $0x2df8] sm:$0xff]
      %v1707 = vld [vmem:[%s1 + $0x2e00] sm:$0xff]
      %v1708 = vld [vmem:[%s1 + $0x2e08] sm:$0xff]
      %v1709 = vld [vmem:[%s1 + $0x2e10] sm:$0xff]
      %v1710 = vld [vmem:[%s1 + $0x2e18] sm:$0xff]
      %v1711 = vld [vmem:[%s1 + $0x2e20] sm:$0xff]
      %v1712 = vld [vmem:[%s1 + $0x2e28] sm:$0xff]
      %v1713 = vld [vmem:[%s1 + $0x2e30] sm:$0xff]
      %v1714 = vld [vmem:[%s1 + $0x2e38] sm:$0xff]
      %v1715 = vld [vmem:[%s1 + $0x2e40] sm:$0xff]
      %v1716 = vld [vmem:[%s1 + $0x2e48] sm:$0xff]
      %v1717 = vld [vmem:[%s1 + $0x2e50] sm:$0xff]
      %v1718 = vld [vmem:[%s1 + $0x2e58] sm:$0xff]
      %v1719 = vld [vmem:[%s1 + $0x2e60] sm:$0xff]
      %v1720 = vld [vmem:[%s1 + $0x2e68] sm:$0xff]
      %v1721 = vld [vmem:[%s1 + $0x2e70] sm:$0xff]
      %v1722 = vld [vmem:[%s1 + $0x2e78] sm:$0xff]
      %v1723 = vld [vmem:[%s1 + $0x2e80] sm:$0xff]
      %v1724 = vld [vmem:[%s1 + $0x2e88] sm:$0xff]
      %v1725 = vld [vmem:[%s1 + $0x2e90] sm:$0xff]
      %v1726 = vld [vmem:[%s1 + $0x2e98] sm:$0xff]
      %v1727 = vld [vmem:[%s1 + $0x2ea0] sm:$0xff]
      %v1728 = vld [vmem:[%s1 + $0x2ea8] sm:$0xff]
      %v1729 = vld [vmem:[%s1 + $0x2eb0] sm:$0xff]
      %v1730 = vld [vmem:[%s1 + $0x2eb8] sm:$0xff]
      %v1731 = vld [vmem:[%s1 + $0x2ec0] sm:$0xff]
      %v1732 = vld [vmem:[%s1 + $0x2ec8] sm:$0xff]
      %v1733 = vld [vmem:[%s1 + $0x2ed0] sm:$0xff]
      %v1734 = vld [vmem:[%s1 + $0x2ed8] sm:$0xff]
      %v1735 = vld [vmem:[%s1 + $0x2ee0] sm:$0xff]
      %v1736 = vld [vmem:[%s1 + $0x2ee8] sm:$0xff]
      %v1737 = vld [vmem:[%s1 + $0x2ef0] sm:$0xff]
      %v1738 = vld [vmem:[%s1 + $0x2ef8] sm:$0xff]
      %v1739 = vld [vmem:[%s1 + $0x2f00] sm:$0xff]
      %v1740 = vld [vmem:[%s1 + $0x2f08] sm:$0xff]
      %v1741 = vld [vmem:[%s1 + $0x2f10] sm:$0xff]
      %v1742 = vld [vmem:[%s1 + $0x2f18] sm:$0xff]
      %v1743 = vld [vmem:[%s1 + $0x2f20] sm:$0xff]
      %v1744 = vld [vmem:[%s1 + $0x2f28] sm:$0xff]
      %v1745 = vld [vmem:[%s1 + $0x2f30] sm:$0xff]
      %v1746 = vld [vmem:[%s1 + $0x2f38] sm:$0xff]
      %v1747 = vld [vmem:[%s1 + $0x2f40] sm:$0xff]
      %v1748 = vld [vmem:[%s1 + $0x2f48] sm:$0xff]
      %v1749 = vld [vmem:[%s1 + $0x2f50] sm:$0xff]
      %v1750 = vld [vmem:[%s1 + $0x2f58] sm:$0xff]
      %v1751 = vld [vmem:[%s1 + $0x2f60] sm:$0xff]
      %v1752 = vld [vmem:[%s1 + $0x2f68] sm:$0xff]
      %v1753 = vld [vmem:[%s1 + $0x2f70] sm:$0xff]
      %v1754 = vld [vmem:[%s1 + $0x2f78] sm:$0xff]
      %v1755 = vld [vmem:[%s1 + $0x2f80] sm:$0xff]
      %v1756 = vld [vmem:[%s1 + $0x2f88] sm:$0xff]
      %v1757 = vld [vmem:[%s1 + $0x2f90] sm:$0xff]
      %v1758 = vld [vmem:[%s1 + $0x2f98] sm:$0xff]
      %v1759 = vld [vmem:[%s1 + $0x2fa0] sm:$0xff]
      %v1760 = vld [vmem:[%s1 + $0x2fa8] sm:$0xff]
      %v1761 = vld [vmem:[%s1 + $0x2fb0] sm:$0xff]
      %v1762 = vld [vmem:[%s1 + $0x2fb8] sm:$0xff]
      %v1763 = vld [vmem:[%s1 + $0x2fc0] sm:$0xff]
      %v1764 = vld [vmem:[%s1 + $0x2fc8] sm:$0xff]
      %v1765 = vld [vmem:[%s1 + $0x2fd0] sm:$0xff]
      %v1766 = vld [vmem:[%s1 + $0x2fd8] sm:$0xff]
      %v1767 = vld [vmem:[%s1 + $0x2fe0] sm:$0xff]
      %v1768 = vld [vmem:[%s1 + $0x2fe8] sm:$0xff]
      %v1769 = vld [vmem:[%s1 + $0x2ff0] sm:$0xff]
      %v1770 = vld [vmem:[%s1 + $0x2ff8] sm:$0xff]
      %v1771 = vld [vmem:[%s1 + $0x3000] sm:$0xff]
      %v1772 = vld [vmem:[%s1 + $0x3008] sm:$0xff]
      %v1773 = vld [vmem:[%s1 + $0x3010] sm:$0xff]
      %v1774 = vld [vmem:[%s1 + $0x3018] sm:$0xff]
      %v1775 = vld [vmem:[%s1 + $0x3020] sm:$0xff]
      %v1776 = vld [vmem:[%s1 + $0x3028] sm:$0xff]
      %v1777 = vld [vmem:[%s1 + $0x3030] sm:$0xff]
      %v1778 = vld [vmem:[%s1 + $0x3038] sm:$0xff]
      %v1779 = vld [vmem:[%s1 + $0x3040] sm:$0xff]
      %v1780 = vld [vmem:[%s1 + $0x3048] sm:$0xff]
      %v1781 = vld [vmem:[%s1 + $0x3050] sm:$0xff]
      %v1782 = vld [vmem:[%s1 + $0x3058] sm:$0xff]
      %v1783 = vld [vmem:[%s1 + $0x3060] sm:$0xff]
      %v1784 = vld [vmem:[%s1 + $0x3068] sm:$0xff]
      %v1785 = vld [vmem:[%s1 + $0x3070] sm:$0xff]
      %v1786 = vld [vmem:[%s1 + $0x3078] sm:$0xff]
      %v1787 = vld [vmem:[%s1 + $0x3080] sm:$0xff]
      %v1788 = vld [vmem:[%s1 + $0x3088] sm:$0xff]
      %v1789 = vld [vmem:[%s1 + $0x3090] sm:$0xff]
      %v1790 = vld [vmem:[%s1 + $0x3098] sm:$0xff]
      %v1791 = vld [vmem:[%s1 + $0x30a0] sm:$0xff]
      %v1792 = vld [vmem:[%s1 + $0x30a8] sm:$0xff]
      %v1793 = vld [vmem:[%s1 + $0x30b0] sm:$0xff]
      %v1794 = vld [vmem:[%s1 + $0x30b8] sm:$0xff]
      %v1795 = vld [vmem:[%s1 + $0x30c0] sm:$0xff]
      %v1796 = vld [vmem:[%s1 + $0x30c8] sm:$0xff]
      %v1797 = vld [vmem:[%s1 + $0x30d0] sm:$0xff]
      %v1798 = vld [vmem:[%s1 + $0x30d8] sm:$0xff]
      %v1799 = vld [vmem:[%s1 + $0x30e0] sm:$0xff]
      %v1800 = vld [vmem:[%s1 + $0x30e8] sm:$0xff]
      %v1801 = vld [vmem:[%s1 + $0x30f0] sm:$0xff]
      %v1802 = vld [vmem:[%s1 + $0x30f8] sm:$0xff]
      %v1803 = vld [vmem:[%s1 + $0x3100] sm:$0xff]
      %v1804 = vld [vmem:[%s1 + $0x3108] sm:$0xff]
      %v1805 = vld [vmem:[%s1 + $0x3110] sm:$0xff]
      %v1806 = vld [vmem:[%s1 + $0x3118] sm:$0xff]
      %v1807 = vld [vmem:[%s1 + $0x3120] sm:$0xff]
      %v1808 = vld [vmem:[%s1 + $0x3128] sm:$0xff]
      %v1809 = vld [vmem:[%s1 + $0x3130] sm:$0xff]
      %v1810 = vld [vmem:[%s1 + $0x3138] sm:$0xff]
      %v1811 = vld [vmem:[%s1 + $0x3140] sm:$0xff]
      %v1812 = vld [vmem:[%s1 + $0x3148] sm:$0xff]
      %v1813 = vld [vmem:[%s1 + $0x3150] sm:$0xff]
      %v1814 = vld [vmem:[%s1 + $0x3158] sm:$0xff]
      %v1815 = vld [vmem:[%s1 + $0x3160] sm:$0xff]
      %v1816 = vld [vmem:[%s1 + $0x3168] sm:$0xff]
      %v1817 = vld [vmem:[%s1 + $0x3170] sm:$0xff]
      %v1818 = vld [vmem:[%s1 + $0x3178] sm:$0xff]
      %v1819 = vld [vmem:[%s1 + $0x3180] sm:$0xff]
      %v1820 = vld [vmem:[%s1 + $0x3188] sm:$0xff]
      %v1821 = vld [vmem:[%s1 + $0x3190] sm:$0xff]
      %v1822 = vld [vmem:[%s1 + $0x3198] sm:$0xff]
      %v1823 = vld [vmem:[%s1 + $0x31a0] sm:$0xff]
      %v1824 = vld [vmem:[%s1 + $0x31a8] sm:$0xff]
      %v1825 = vld [vmem:[%s1 + $0x31b0] sm:$0xff]
      %v1826 = vld [vmem:[%s1 + $0x31b8] sm:$0xff]
      %v1827 = vld [vmem:[%s1 + $0x31c0] sm:$0xff]
      %v1828 = vld [vmem:[%s1 + $0x31c8] sm:$0xff]
      %v1829 = vld [vmem:[%s1 + $0x31d0] sm:$0xff]
      %v1830 = vld [vmem:[%s1 + $0x31d8] sm:$0xff]
      %v1831 = vld [vmem:[%s1 + $0x31e0] sm:$0xff]
      %v1832 = vld [vmem:[%s1 + $0x31e8] sm:$0xff]
      %v1833 = vld [vmem:[%s1 + $0x31f0] sm:$0xff]
      %v1834 = vld [vmem:[%s1 + $0x31f8] sm:$0xff]
      %v1835 = vld [vmem:[%s1 + $0x3200] sm:$0xff]
      %v1836 = vld [vmem:[%s1 + $0x3208] sm:$0xff]
      %v1837 = vld [vmem:[%s1 + $0x3210] sm:$0xff]
      %v1838 = vld [vmem:[%s1 + $0x3218] sm:$0xff]
      %v1839 = vld [vmem:[%s1 + $0x3220] sm:$0xff]
      %v1840 = vld [vmem:[%s1 + $0x3228] sm:$0xff]
      %v1841 = vld [vmem:[%s1 + $0x3230] sm:$0xff]
      %v1842 = vld [vmem:[%s1 + $0x3238] sm:$0xff]
      %v1843 = vld [vmem:[%s1 + $0x3240] sm:$0xff]
      %v1844 = vld [vmem:[%s1 + $0x3248] sm:$0xff]
      %v1845 = vld [vmem:[%s1 + $0x3250] sm:$0xff]
      %v1846 = vld [vmem:[%s1 + $0x3258] sm:$0xff]
      %v1847 = vld [vmem:[%s1 + $0x3260] sm:$0xff]
      %v1848 = vld [vmem:[%s1 + $0x3268] sm:$0xff]
      %v1849 = vld [vmem:[%s1 + $0x3270] sm:$0xff]
      %v1850 = vld [vmem:[%s1 + $0x3278] sm:$0xff]
      %v1851 = vld [vmem:[%s1 + $0x3280] sm:$0xff]
      %v1852 = vld [vmem:[%s1 + $0x3288] sm:$0xff]
      %v1853 = vld [vmem:[%s1 + $0x3290] sm:$0xff]
      %v1854 = vld [vmem:[%s1 + $0x3298] sm:$0xff]
      %v1855 = vld [vmem:[%s1 + $0x32a0] sm:$0xff]
      %v1856 = vld [vmem:[%s1 + $0x32a8] sm:$0xff]
      %v1857 = vld [vmem:[%s1 + $0x32b0] sm:$0xff]
      %v1858 = vld [vmem:[%s1 + $0x32b8] sm:$0xff]
      %v1859 = vld [vmem:[%s1 + $0x32c0] sm:$0xff]
      %v1860 = vld [vmem:[%s1 + $0x32c8] sm:$0xff]
      %v1861 = vld [vmem:[%s1 + $0x32d0] sm:$0xff]
      %v1862 = vld [vmem:[%s1 + $0x32d8] sm:$0xff]
      %v1863 = vld [vmem:[%s1 + $0x32e0] sm:$0xff]
      %v1864 = vld [vmem:[%s1 + $0x32e8] sm:$0xff]
      %v1865 = vld [vmem:[%s1 + $0x32f0] sm:$0xff]
      %v1866 = vld [vmem:[%s1 + $0x32f8] sm:$0xff]
      %v1867 = vld [vmem:[%s1 + $0x3300] sm:$0xff]
      %v1868 = vld [vmem:[%s1 + $0x3308] sm:$0xff]
      %v1869 = vld [vmem:[%s1 + $0x3310] sm:$0xff]
      %v1870 = vld [vmem:[%s1 + $0x3318] sm:$0xff]
      %v1871 = vld [vmem:[%s1 + $0x3320] sm:$0xff]
      %v1872 = vld [vmem:[%s1 + $0x3328] sm:$0xff]
      %v1873 = vld [vmem:[%s1 + $0x3330] sm:$0xff]
      %v1874 = vld [vmem:[%s1 + $0x3338] sm:$0xff]
      %v1875 = vld [vmem:[%s1 + $0x3340] sm:$0xff]
      %v1876 = vld [vmem:[%s1 + $0x3348] sm:$0xff]
      %v1877 = vld [vmem:[%s1 + $0x3350] sm:$0xff]
      %v1878 = vld [vmem:[%s1 + $0x3358] sm:$0xff]
      %v1879 = vld [vmem:[%s1 + $0x3360] sm:$0xff]
      %v1880 = vld [vmem:[%s1 + $0x3368] sm:$0xff]
      %v1881 = vld [vmem:[%s1 + $0x3370] sm:$0xff]
      %v1882 = vld [vmem:[%s1 + $0x3378] sm:$0xff]
      %v1883 = vld [vmem:[%s1 + $0x3380] sm:$0xff]
      %v1884 = vld [vmem:[%s1 + $0x3388] sm:$0xff]
      %v1885 = vld [vmem:[%s1 + $0x3390] sm:$0xff]
      %v1886 = vld [vmem:[%s1 + $0x3398] sm:$0xff]
      %v1887 = vld [vmem:[%s1 + $0x33a0] sm:$0xff]
      %v1888 = vld [vmem:[%s1 + $0x33a8] sm:$0xff]
      %v1889 = vld [vmem:[%s1 + $0x33b0] sm:$0xff]
      %v1890 = vld [vmem:[%s1 + $0x33b8] sm:$0xff]
      %v1891 = vld [vmem:[%s1 + $0x33c0] sm:$0xff]
      %v1892 = vld [vmem:[%s1 + $0x33c8] sm:$0xff]
      %v1893 = vld [vmem:[%s1 + $0x33d0] sm:$0xff]
      %v1894 = vld [vmem:[%s1 + $0x33d8] sm:$0xff]
      %v1895 = vld [vmem:[%s1 + $0x33e0] sm:$0xff]
      %v1896 = vld [vmem:[%s1 + $0x33e8] sm:$0xff]
      %v1897 = vld [vmem:[%s1 + $0x33f0] sm:$0xff]
      %v1898 = vld [vmem:[%s1 + $0x33f8] sm:$0xff]
      %v1899 = vld [vmem:[%s1 + $0x3400] sm:$0xff]
      %v1900 = vld [vmem:[%s1 + $0x3408] sm:$0xff]
      %v1901 = vld [vmem:[%s1 + $0x3410] sm:$0xff]
      %v1902 = vld [vmem:[%s1 + $0x3418] sm:$0xff]
      %v1903 = vld [vmem:[%s1 + $0x3420] sm:$0xff]
      %v1904 = vld [vmem:[%s1 + $0x3428] sm:$0xff]
      %v1905 = vld [vmem:[%s1 + $0x3430] sm:$0xff]
      %v1906 = vld [vmem:[%s1 + $0x3438] sm:$0xff]
      %v1907 = vld [vmem:[%s1 + $0x3440] sm:$0xff]
      %v1908 = vld [vmem:[%s1 + $0x3448] sm:$0xff]
      %v1909 = vld [vmem:[%s1 + $0x3450] sm:$0xff]
      %v1910 = vld [vmem:[%s1 + $0x3458] sm:$0xff]
      %v1911 = vld [vmem:[%s1 + $0x3460] sm:$0xff]
      %v1912 = vld [vmem:[%s1 + $0x3468] sm:$0xff]
      %v1913 = vld [vmem:[%s1 + $0x3470] sm:$0xff]
      %v1914 = vld [vmem:[%s1 + $0x3478] sm:$0xff]
      %v1915 = vld [vmem:[%s1 + $0x3480] sm:$0xff]
      %v1916 = vld [vmem:[%s1 + $0x3488] sm:$0xff]
      %v1917 = vld [vmem:[%s1 + $0x3490] sm:$0xff]
      %v1918 = vld [vmem:[%s1 + $0x3498] sm:$0xff]
      %v1919 = vld [vmem:[%s1 + $0x34a0] sm:$0xff]
      %v1920 = vld [vmem:[%s1 + $0x34a8] sm:$0xff]
      %v1921 = vld [vmem:[%s1 + $0x34b0] sm:$0xff]
      %v1922 = vld [vmem:[%s1 + $0x34b8] sm:$0xff]
      %v1923 = vld [vmem:[%s1 + $0x34c0] sm:$0xff]
      %v1924 = vld [vmem:[%s1 + $0x34c8] sm:$0xff]
      %v1925 = vld [vmem:[%s1 + $0x34d0] sm:$0xff]
      %v1926 = vld [vmem:[%s1 + $0x34d8] sm:$0xff]
      %v1927 = vld [vmem:[%s1 + $0x34e0] sm:$0xff]
      %v1928 = vld [vmem:[%s1 + $0x34e8] sm:$0xff]
      %v1929 = vld [vmem:[%s1 + $0x34f0] sm:$0xff]
      %v1930 = vld [vmem:[%s1 + $0x34f8] sm:$0xff]
      %v1931 = vld [vmem:[%s1 + $0x3500] sm:$0xff]
      %v1932 = vld [vmem:[%s1 + $0x3508] sm:$0xff]
      %v1933 = vld [vmem:[%s1 + $0x3510] sm:$0xff]
      %v1934 = vld [vmem:[%s1 + $0x3518] sm:$0xff]
      %v1935 = vld [vmem:[%s1 + $0x3520] sm:$0xff]
      %v1936 = vld [vmem:[%s1 + $0x3528] sm:$0xff]
      %v1937 = vld [vmem:[%s1 + $0x3530] sm:$0xff]
      %v1938 = vld [vmem:[%s1 + $0x3538] sm:$0xff]
      %v1939 = vld [vmem:[%s1 + $0x3540] sm:$0xff]
      %v1940 = vld [vmem:[%s1 + $0x3548] sm:$0xff]
      %v1941 = vld [vmem:[%s1 + $0x3550] sm:$0xff]
      %v1942 = vld [vmem:[%s1 + $0x3558] sm:$0xff]
      %v1943 = vld [vmem:[%s1 + $0x3560] sm:$0xff]
      %v1944 = vld [vmem:[%s1 + $0x3568] sm:$0xff]
      %v1945 = vld [vmem:[%s1 + $0x3570] sm:$0xff]
      %v1946 = vld [vmem:[%s1 + $0x3578] sm:$0xff]
      %v1947 = vld [vmem:[%s1 + $0x3580] sm:$0xff]
      %v1948 = vld [vmem:[%s1 + $0x3588] sm:$0xff]
      %v1949 = vld [vmem:[%s1 + $0x3590] sm:$0xff]
      %v1950 = vld [vmem:[%s1 + $0x3598] sm:$0xff]
      %v1951 = vld [vmem:[%s1 + $0x35a0] sm:$0xff]
      %v1952 = vld [vmem:[%s1 + $0x35a8] sm:$0xff]
      %v1953 = vld [vmem:[%s1 + $0x35b0] sm:$0xff]
      %v1954 = vld [vmem:[%s1 + $0x35b8] sm:$0xff]
      %v1955 = vld [vmem:[%s1 + $0x35c0] sm:$0xff]
      %v1956 = vld [vmem:[%s1 + $0x35c8] sm:$0xff]
      %v1957 = vld [vmem:[%s1 + $0x35d0] sm:$0xff]
      %v1958 = vld [vmem:[%s1 + $0x35d8] sm:$0xff]
      %v1959 = vld [vmem:[%s1 + $0x35e0] sm:$0xff]
      %v1960 = vld [vmem:[%s1 + $0x35e8] sm:$0xff]
      %v1961 = vld [vmem:[%s1 + $0x35f0] sm:$0xff]
      %v1962 = vld [vmem:[%s1 + $0x35f8] sm:$0xff]
      %v1963 = vld [vmem:[%s1 + $0x3600] sm:$0xff]
      %v1964 = vld [vmem:[%s1 + $0x3608] sm:$0xff]
      %v1965 = vld [vmem:[%s1 + $0x3610] sm:$0xff]
      %v1966 = vld [vmem:[%s1 + $0x3618] sm:$0xff]
      %v1967 = vld [vmem:[%s1 + $0x3620] sm:$0xff]
      %v1968 = vld [vmem:[%s1 + $0x3628] sm:$0xff]
      %v1969 = vld [vmem:[%s1 + $0x3630] sm:$0xff]
      %v1970 = vld [vmem:[%s1 + $0x3638] sm:$0xff]
      %v1971 = vld [vmem:[%s1 + $0x3640] sm:$0xff]
      %v1972 = vld [vmem:[%s1 + $0x3648] sm:$0xff]
      %v1973 = vld [vmem:[%s1 + $0x3650] sm:$0xff]
      %v1974 = vld [vmem:[%s1 + $0x3658] sm:$0xff]
      %v1975 = vld [vmem:[%s1 + $0x3660] sm:$0xff]
      %v1976 = vld [vmem:[%s1 + $0x3668] sm:$0xff]
      %v1977 = vld [vmem:[%s1 + $0x3670] sm:$0xff]
      %v1978 = vld [vmem:[%s1 + $0x3678] sm:$0xff]
      %v1979 = vld [vmem:[%s1 + $0x3680] sm:$0xff]
      %v1980 = vld [vmem:[%s1 + $0x3688] sm:$0xff]
      %v1981 = vld [vmem:[%s1 + $0x3690] sm:$0xff]
      %v1982 = vld [vmem:[%s1 + $0x3698] sm:$0xff]
      %v1983 = vld [vmem:[%s1 + $0x36a0] sm:$0xff]
      %v1984 = vld [vmem:[%s1 + $0x36a8] sm:$0xff]
      %v1985 = vld [vmem:[%s1 + $0x36b0] sm:$0xff]
      %v1986 = vld [vmem:[%s1 + $0x36b8] sm:$0xff]
      %v1987 = vld [vmem:[%s1 + $0x36c0] sm:$0xff]
      %v1988 = vld [vmem:[%s1 + $0x36c8] sm:$0xff]
      %v1989 = vld [vmem:[%s1 + $0x36d0] sm:$0xff]
      %v1990 = vld [vmem:[%s1 + $0x36d8] sm:$0xff]
      %v1991 = vld [vmem:[%s1 + $0x36e0] sm:$0xff]
      %v1992 = vld [vmem:[%s1 + $0x36e8] sm:$0xff]
      %v1993 = vld [vmem:[%s1 + $0x36f0] sm:$0xff]
      %v1994 = vld [vmem:[%s1 + $0x36f8] sm:$0xff]
      %v1995 = vld [vmem:[%s1 + $0x3700] sm:$0xff]
      %v1996 = vld [vmem:[%s1 + $0x3708] sm:$0xff]
      %v1997 = vld [vmem:[%s1 + $0x3710] sm:$0xff]
      %v1998 = vld [vmem:[%s1 + $0x3718] sm:$0xff]
      %v1999 = vld [vmem:[%s1 + $0x3720] sm:$0xff]
      %v2000 = vld [vmem:[%s1 + $0x3728] sm:$0xff]
      %v2001 = vld [vmem:[%s1 + $0x3730] sm:$0xff]
      %v2002 = vld [vmem:[%s1 + $0x3738] sm:$0xff]
      %v2003 = vld [vmem:[%s1 + $0x3740] sm:$0xff]
      %v2004 = vld [vmem:[%s1 + $0x3748] sm:$0xff]
      %v2005 = vld [vmem:[%s1 + $0x3750] sm:$0xff]
      %v2006 = vld [vmem:[%s1 + $0x3758] sm:$0xff]
      %v2007 = vld [vmem:[%s1 + $0x3760] sm:$0xff]
      %v2008 = vld [vmem:[%s1 + $0x3768] sm:$0xff]
      %v2009 = vld [vmem:[%s1 + $0x3770] sm:$0xff]
      %v2010 = vld [vmem:[%s1 + $0x3778] sm:$0xff]
      %v2011 = vld [vmem:[%s1 + $0x3780] sm:$0xff]
      %v2012 = vld [vmem:[%s1 + $0x3788] sm:$0xff]
      %v2013 = vld [vmem:[%s1 + $0x3790] sm:$0xff]
      %v2014 = vld [vmem:[%s1 + $0x3798] sm:$0xff]
      %v2015 = vld [vmem:[%s1 + $0x37a0] sm:$0xff]
      %v2016 = vld [vmem:[%s1 + $0x37a8] sm:$0xff]
      %v2017 = vld [vmem:[%s1 + $0x37b0] sm:$0xff]
      %v2018 = vld [vmem:[%s1 + $0x37b8] sm:$0xff]
      %v2019 = vld [vmem:[%s1 + $0x37c0] sm:$0xff]
      %v2020 = vld [vmem:[%s1 + $0x37c8] sm:$0xff]
      %v2021 = vld [vmem:[%s1 + $0x37d0] sm:$0xff]
      %v2022 = vld [vmem:[%s1 + $0x37d8] sm:$0xff]
      %v2023 = vld [vmem:[%s1 + $0x37e0] sm:$0xff]
      %v2024 = vld [vmem:[%s1 + $0x37e8] sm:$0xff]
      %v2025 = vld [vmem:[%s1 + $0x37f0] sm:$0xff]
      %v2026 = vld [vmem:[%s1 + $0x37f8] sm:$0xff]
      %v2027 = vld [vmem:[%s1 + $0x3800] sm:$0xff]
      %v2028 = vld [vmem:[%s1 + $0x3808] sm:$0xff]
      %v2029 = vld [vmem:[%s1 + $0x3810] sm:$0xff]
      %v2030 = vld [vmem:[%s1 + $0x3818] sm:$0xff]
      %v2031 = vld [vmem:[%s1 + $0x3820] sm:$0xff]
      %v2032 = vld [vmem:[%s1 + $0x3828] sm:$0xff]
      %v2033 = vld [vmem:[%s1 + $0x3830] sm:$0xff]
      %v2034 = vld [vmem:[%s1 + $0x3838] sm:$0xff]
      %v2035 = vld [vmem:[%s1 + $0x3840] sm:$0xff]
      %v2036 = vld [vmem:[%s1 + $0x3848] sm:$0xff]
      %v2037 = vld [vmem:[%s1 + $0x3850] sm:$0xff]
      %v2038 = vld [vmem:[%s1 + $0x3858] sm:$0xff]
      %v2039 = vld [vmem:[%s1 + $0x3860] sm:$0xff]
      %v2040 = vld [vmem:[%s1 + $0x3868] sm:$0xff]
      %v2041 = vld [vmem:[%s1 + $0x3870] sm:$0xff]
      %v2042 = vld [vmem:[%s1 + $0x3878] sm:$0xff]
      %v2043 = vld [vmem:[%s1 + $0x3880] sm:$0xff]
      %v2044 = vld [vmem:[%s1 + $0x3888] sm:$0xff]
      %v2045 = vld [vmem:[%s1 + $0x3890] sm:$0xff]
      %v2046 = vld [vmem:[%s1 + $0x3898] sm:$0xff]
      %v2047 = vld [vmem:[%s1 + $0x38a0] sm:$0xff]
      %v2048 = vld [vmem:[%s1 + $0x38a8] sm:$0xff]
      %v2049 = vld [vmem:[%s1 + $0x38b0] sm:$0xff]
      %v2050 = vld [vmem:[%s1 + $0x38b8] sm:$0xff]
      %v2051 = vld [vmem:[%s1 + $0x38c0] sm:$0xff]
      %v2052 = vld [vmem:[%s1 + $0x38c8] sm:$0xff]
      %v2053 = vld [vmem:[%s1 + $0x38d0] sm:$0xff]
      %v2054 = vld [vmem:[%s1 + $0x38d8] sm:$0xff]
      %v2055 = vld [vmem:[%s1 + $0x38e0] sm:$0xff]
      %v2056 = vld [vmem:[%s1 + $0x38e8] sm:$0xff]
      %v2057 = vld [vmem:[%s1 + $0x38f0] sm:$0xff]
      %v2058 = vld [vmem:[%s1 + $0x38f8] sm:$0xff]
      %v2059 = vld [vmem:[%s1 + $0x3900] sm:$0xff]
      %v2060 = vld [vmem:[%s1 + $0x3908] sm:$0xff]
      %v2061 = vld [vmem:[%s1 + $0x3910] sm:$0xff]
      %v2062 = vld [vmem:[%s1 + $0x3918] sm:$0xff]
      %v2063 = vld [vmem:[%s1 + $0x3920] sm:$0xff]
      %v2064 = vld [vmem:[%s1 + $0x3928] sm:$0xff]
      %v2065 = vld [vmem:[%s1 + $0x3930] sm:$0xff]
      %v2066 = vld [vmem:[%s1 + $0x3938] sm:$0xff]
      %v2067 = vld [vmem:[%s1 + $0x3940] sm:$0xff]
      %v2068 = vld [vmem:[%s1 + $0x3948] sm:$0xff]
      %v2069 = vld [vmem:[%s1 + $0x3950] sm:$0xff]
      %v2070 = vld [vmem:[%s1 + $0x3958] sm:$0xff]
      %v2071 = vld [vmem:[%s1 + $0x3960] sm:$0xff]
      %v2072 = vld [vmem:[%s1 + $0x3968] sm:$0xff]
      %v2073 = vld [vmem:[%s1 + $0x3970] sm:$0xff]
      %v2074 = vld [vmem:[%s1 + $0x3978] sm:$0xff]
      %v2075 = vld [vmem:[%s1 + $0x3980] sm:$0xff]
      %v2076 = vld [vmem:[%s1 + $0x3988] sm:$0xff]
      %v2077 = vld [vmem:[%s1 + $0x3990] sm:$0xff]
      %v2078 = vld [vmem:[%s1 + $0x3998] sm:$0xff]
      %v2079 = vld [vmem:[%s1 + $0x39a0] sm:$0xff]
      %v2080 = vld [vmem:[%s1 + $0x39a8] sm:$0xff]
      %v2081 = vld [vmem:[%s1 + $0x39b0] sm:$0xff]
      %v2082 = vld [vmem:[%s1 + $0x39b8] sm:$0xff]
      %v2083 = vld [vmem:[%s1 + $0x39c0] sm:$0xff]
      %v2084 = vld [vmem:[%s1 + $0x39c8] sm:$0xff]
      %v2085 = vld [vmem:[%s1 + $0x39d0] sm:$0xff]
      %v2086 = vld [vmem:[%s1 + $0x39d8] sm:$0xff]
      %v2087 = vld [vmem:[%s1 + $0x39e0] sm:$0xff]
      %v2088 = vld [vmem:[%s1 + $0x39e8] sm:$0xff]
      %v2089 = vld [vmem:[%s1 + $0x39f0] sm:$0xff]
      %v2090 = vld [vmem:[%s1 + $0x39f8] sm:$0xff]
      %v2091 = vld [vmem:[%s1 + $0x3a00] sm:$0xff]
      %v2092 = vld [vmem:[%s1 + $0x3a08] sm:$0xff]
      %v2093 = vld [vmem:[%s1 + $0x3a10] sm:$0xff]
      %v2094 = vld [vmem:[%s1 + $0x3a18] sm:$0xff]
      %v2095 = vld [vmem:[%s1 + $0x3a20] sm:$0xff]
      %v2096 = vld [vmem:[%s1 + $0x3a28] sm:$0xff]
      %v2097 = vld [vmem:[%s1 + $0x3a30] sm:$0xff]
      %v2098 = vld [vmem:[%s1 + $0x3a38] sm:$0xff]
      %v2099 = vld [vmem:[%s1 + $0x3a40] sm:$0xff]
      %v2100 = vld [vmem:[%s1 + $0x3a48] sm:$0xff]
      %v2101 = vld [vmem:[%s1 + $0x3a50] sm:$0xff]
      %v2102 = vld [vmem:[%s1 + $0x3a58] sm:$0xff]
      %v2103 = vld [vmem:[%s1 + $0x3a60] sm:$0xff]
      %v2104 = vld [vmem:[%s1 + $0x3a68] sm:$0xff]
      %v2105 = vld [vmem:[%s1 + $0x3a70] sm:$0xff]
      %v2106 = vld [vmem:[%s1 + $0x3a78] sm:$0xff]
      %v2107 = vld [vmem:[%s1 + $0x3a80] sm:$0xff]
      %v2108 = vld [vmem:[%s1 + $0x3a88] sm:$0xff]
      %v2109 = vld [vmem:[%s1 + $0x3a90] sm:$0xff]
      %v2110 = vld [vmem:[%s1 + $0x3a98] sm:$0xff]
      %v2111 = vld [vmem:[%s1 + $0x3aa0] sm:$0xff]
      %v2112 = vld [vmem:[%s1 + $0x3aa8] sm:$0xff]
      %v2113 = vld [vmem:[%s1 + $0x3ab0] sm:$0xff]
      %v2114 = vld [vmem:[%s1 + $0x3ab8] sm:$0xff]
      %v2115 = vld [vmem:[%s1 + $0x3ac0] sm:$0xff]
      %v2116 = vld [vmem:[%s1 + $0x3ac8] sm:$0xff]
      %v2117 = vld [vmem:[%s1 + $0x3ad0] sm:$0xff]
      %v2118 = vld [vmem:[%s1 + $0x3ad8] sm:$0xff]
      %v2119 = vld [vmem:[%s1 + $0x3ae0] sm:$0xff]
      %v2120 = vld [vmem:[%s1 + $0x3ae8] sm:$0xff]
      %v2121 = vld [vmem:[%s1 + $0x3af0] sm:$0xff]
      %v2122 = vld [vmem:[%s1 + $0x3af8] sm:$0xff]
      %v2123 = vld [vmem:[%s1 + $0x3b00] sm:$0xff]
      %v2124 = vld [vmem:[%s1 + $0x3b08] sm:$0xff]
      %v2125 = vld [vmem:[%s1 + $0x3b10] sm:$0xff]
      %v2126 = vld [vmem:[%s1 + $0x3b18] sm:$0xff]
      %v2127 = vld [vmem:[%s1 + $0x3b20] sm:$0xff]
      %v2128 = vld [vmem:[%s1 + $0x3b28] sm:$0xff]
      %v2129 = vld [vmem:[%s1 + $0x3b30] sm:$0xff]
      %v2130 = vld [vmem:[%s1 + $0x3b38] sm:$0xff]
      %v2131 = vld [vmem:[%s1 + $0x3b40] sm:$0xff]
      %v2132 = vld [vmem:[%s1 + $0x3b48] sm:$0xff]
      %v2133 = vld [vmem:[%s1 + $0x3b50] sm:$0xff]
      %v2134 = vld [vmem:[%s1 + $0x3b58] sm:$0xff]
      %v2135 = vld [vmem:[%s1 + $0x3b60] sm:$0xff]
      %v2136 = vld [vmem:[%s1 + $0x3b68] sm:$0xff]
      %v2137 = vld [vmem:[%s1 + $0x3b70] sm:$0xff]
      %v2138 = vld [vmem:[%s1 + $0x3b78] sm:$0xff]
      %v2139 = vld [vmem:[%s1 + $0x3b80] sm:$0xff]
      %v2140 = vld [vmem:[%s1 + $0x3b88] sm:$0xff]
      %v2141 = vld [vmem:[%s1 + $0x3b90] sm:$0xff]
      %v2142 = vld [vmem:[%s1 + $0x3b98] sm:$0xff]
      %v2143 = vld [vmem:[%s1 + $0x3ba0] sm:$0xff]
      %v2144 = vld [vmem:[%s1 + $0x3ba8] sm:$0xff]
      %v2145 = vld [vmem:[%s1 + $0x3bb0] sm:$0xff]
      %v2146 = vld [vmem:[%s1 + $0x3bb8] sm:$0xff]
      %v2147 = vld [vmem:[%s1 + $0x3bc0] sm:$0xff]
      %v2148 = vld [vmem:[%s1 + $0x3bc8] sm:$0xff]
      %v2149 = vld [vmem:[%s1 + $0x3bd0] sm:$0xff]
      %v2150 = vld [vmem:[%s1 + $0x3bd8] sm:$0xff]
      %v2151 = vld [vmem:[%s1 + $0x3be0] sm:$0xff]
      %v2152 = vld [vmem:[%s1 + $0x3be8] sm:$0xff]
      %v2153 = vld [vmem:[%s1 + $0x3bf0] sm:$0xff]
      %v2154 = vld [vmem:[%s1 + $0x3bf8] sm:$0xff]
      %v2155 = vld [vmem:[%s1 + $0x3c00] sm:$0xff]
      %v2156 = vld [vmem:[%s1 + $0x3c08] sm:$0xff]
      %v2157 = vld [vmem:[%s1 + $0x3c10] sm:$0xff]
      %v2158 = vld [vmem:[%s1 + $0x3c18] sm:$0xff]
      %v2159 = vld [vmem:[%s1 + $0x3c20] sm:$0xff]
      %v2160 = vld [vmem:[%s1 + $0x3c28] sm:$0xff]
      %v2161 = vld [vmem:[%s1 + $0x3c30] sm:$0xff]
      %v2162 = vld [vmem:[%s1 + $0x3c38] sm:$0xff]
      %v2163 = vld [vmem:[%s1 + $0x3c40] sm:$0xff]
      %v2164 = vld [vmem:[%s1 + $0x3c48] sm:$0xff]
      %v2165 = vld [vmem:[%s1 + $0x3c50] sm:$0xff]
      %v2166 = vld [vmem:[%s1 + $0x3c58] sm:$0xff]
      %v2167 = vld [vmem:[%s1 + $0x3c60] sm:$0xff]
      %v2168 = vld [vmem:[%s1 + $0x3c68] sm:$0xff]
      %v2169 = vld [vmem:[%s1 + $0x3c70] sm:$0xff]
      %v2170 = vld [vmem:[%s1 + $0x3c78] sm:$0xff]
      %v2171 = vld [vmem:[%s1 + $0x3c80] sm:$0xff]
      %v2172 = vld [vmem:[%s1 + $0x3c88] sm:$0xff]
      %v2173 = vld [vmem:[%s1 + $0x3c90] sm:$0xff]
      %v2174 = vld [vmem:[%s1 + $0x3c98] sm:$0xff]
      %v2175 = vld [vmem:[%s1 + $0x3ca0] sm:$0xff]
      %v2176 = vld [vmem:[%s1 + $0x3ca8] sm:$0xff]
      %v2177 = vld [vmem:[%s1 + $0x3cb0] sm:$0xff]
      %v2178 = vld [vmem:[%s1 + $0x3cb8] sm:$0xff]
      %v2179 = vld [vmem:[%s1 + $0x3cc0] sm:$0xff]
      %v2180 = vld [vmem:[%s1 + $0x3cc8] sm:$0xff]
      %v2181 = vld [vmem:[%s1 + $0x3cd0] sm:$0xff]
      %v2182 = vld [vmem:[%s1 + $0x3cd8] sm:$0xff]
      %v2183 = vld [vmem:[%s1 + $0x3ce0] sm:$0xff]
      %v2184 = vld [vmem:[%s1 + $0x3ce8] sm:$0xff]
      %v2185 = vld [vmem:[%s1 + $0x3cf0] sm:$0xff]
      %v2186 = vld [vmem:[%s1 + $0x3cf8] sm:$0xff]
      %v2187 = vld [vmem:[%s1 + $0x3d00] sm:$0xff]
      %v2188 = vld [vmem:[%s1 + $0x3d08] sm:$0xff]
      %v2189 = vld [vmem:[%s1 + $0x3d10] sm:$0xff]
      %v2190 = vld [vmem:[%s1 + $0x3d18] sm:$0xff]
      %v2191 = vld [vmem:[%s1 + $0x3d20] sm:$0xff]
      %v2192 = vld [vmem:[%s1 + $0x3d28] sm:$0xff]
      %v2193 = vld [vmem:[%s1 + $0x3d30] sm:$0xff]
      %v2194 = vld [vmem:[%s1 + $0x3d38] sm:$0xff]
      %v2195 = vld [vmem:[%s1 + $0x3d40] sm:$0xff]
      %v2196 = vld [vmem:[%s1 + $0x3d48] sm:$0xff]
      %v2197 = vld [vmem:[%s1 + $0x3d50] sm:$0xff]
      %v2198 = vld [vmem:[%s1 + $0x3d58] sm:$0xff]
      %v2199 = vld [vmem:[%s1 + $0x3d60] sm:$0xff]
      %v2200 = vld [vmem:[%s1 + $0x3d68] sm:$0xff]
      %v2201 = vld [vmem:[%s1 + $0x3d70] sm:$0xff]
      %v2202 = vld [vmem:[%s1 + $0x3d78] sm:$0xff]
      %v2203 = vld [vmem:[%s1 + $0x3d80] sm:$0xff]
      %v2204 = vld [vmem:[%s1 + $0x3d88] sm:$0xff]
      %v2205 = vld [vmem:[%s1 + $0x3d90] sm:$0xff]
      %v2206 = vld [vmem:[%s1 + $0x3d98] sm:$0xff]
      %v2207 = vld [vmem:[%s1 + $0x3da0] sm:$0xff]
      %v2208 = vld [vmem:[%s1 + $0x3da8] sm:$0xff]
      %v2209 = vld [vmem:[%s1 + $0x3db0] sm:$0xff]
      %v2210 = vld [vmem:[%s1 + $0x3db8] sm:$0xff]
      %v2211 = vld [vmem:[%s1 + $0x3dc0] sm:$0xff]
      %v2212 = vld [vmem:[%s1 + $0x3dc8] sm:$0xff]
      %v2213 = vld [vmem:[%s1 + $0x3dd0] sm:$0xff]
      %v2214 = vld [vmem:[%s1 + $0x3dd8] sm:$0xff]
      %v2215 = vld [vmem:[%s1 + $0x3de0] sm:$0xff]
      %v2216 = vld [vmem:[%s1 + $0x3de8] sm:$0xff]
      %v2217 = vld [vmem:[%s1 + $0x3df0] sm:$0xff]
      %v2218 = vld [vmem:[%s1 + $0x3df8] sm:$0xff]
      %v2219 = vld [vmem:[%s1 + $0x3e00] sm:$0xff]
      %v2220 = vld [vmem:[%s1 + $0x3e08] sm:$0xff]
      %v2221 = vld [vmem:[%s1 + $0x3e10] sm:$0xff]
      %v2222 = vld [vmem:[%s1 + $0x3e18] sm:$0xff]
      %v2223 = vld [vmem:[%s1 + $0x3e20] sm:$0xff]
      %v2224 = vld [vmem:[%s1 + $0x3e28] sm:$0xff]
      %v2225 = vld [vmem:[%s1 + $0x3e30] sm:$0xff]
      %v2226 = vld [vmem:[%s1 + $0x3e38] sm:$0xff]
      %v2227 = vld [vmem:[%s1 + $0x3e40] sm:$0xff]
      %v2228 = vld [vmem:[%s1 + $0x3e48] sm:$0xff]
      %v2229 = vld [vmem:[%s1 + $0x3e50] sm:$0xff]
      %v2230 = vld [vmem:[%s1 + $0x3e58] sm:$0xff]
      %v2231 = vld [vmem:[%s1 + $0x3e60] sm:$0xff]
      %v2232 = vld [vmem:[%s1 + $0x3e68] sm:$0xff]
      %v2233 = vld [vmem:[%s1 + $0x3e70] sm:$0xff]
      %v2234 = vld [vmem:[%s1 + $0x3e78] sm:$0xff]
      %v2235 = vld [vmem:[%s1 + $0x3e80] sm:$0xff]
      %v2236 = vld [vmem:[%s1 + $0x3e88] sm:$0xff]
      %v2237 = vld [vmem:[%s1 + $0x3e90] sm:$0xff]
      %v2238 = vld [vmem:[%s1 + $0x3e98] sm:$0xff]
      %v2239 = vld [vmem:[%s1 + $0x3ea0] sm:$0xff]
      %v2240 = vld [vmem:[%s1 + $0x3ea8] sm:$0xff]
      %v2241 = vld [vmem:[%s1 + $0x3eb0] sm:$0xff]
      %v2242 = vld [vmem:[%s1 + $0x3eb8] sm:$0xff]
      %v2243 = vld [vmem:[%s1 + $0x3ec0] sm:$0xff]
      %v2244 = vld [vmem:[%s1 + $0x3ec8] sm:$0xff]
      %v2245 = vld [vmem:[%s1 + $0x3ed0] sm:$0xff]
      %v2246 = vld [vmem:[%s1 + $0x3ed8] sm:$0xff]
      %v2247 = vld [vmem:[%s1 + $0x3ee0] sm:$0xff]
      %v2248 = vld [vmem:[%s1 + $0x3ee8] sm:$0xff]
      %v2249 = vld [vmem:[%s1 + $0x3ef0] sm:$0xff]
      %v2250 = vld [vmem:[%s1 + $0x3ef8] sm:$0xff]
      %v2251 = vld [vmem:[%s1 + $0x3f00] sm:$0xff]
      %v2252 = vld [vmem:[%s1 + $0x3f08] sm:$0xff]
      %v2253 = vld [vmem:[%s1 + $0x3f10] sm:$0xff]
      %v2254 = vld [vmem:[%s1 + $0x3f18] sm:$0xff]
      %v2255 = vld [vmem:[%s1 + $0x3f20] sm:$0xff]
      %v2256 = vld [vmem:[%s1 + $0x3f28] sm:$0xff]
      %v2257 = vld [vmem:[%s1 + $0x3f30] sm:$0xff]
      %v2258 = vld [vmem:[%s1 + $0x3f38] sm:$0xff]
      %v2259 = vld [vmem:[%s1 + $0x3f40] sm:$0xff]
      %v2260 = vld [vmem:[%s1 + $0x3f48] sm:$0xff]
      %v2261 = vld [vmem:[%s1 + $0x3f50] sm:$0xff]
      %v2262 = vld [vmem:[%s1 + $0x3f58] sm:$0xff]
      %v2263 = vld [vmem:[%s1 + $0x3f60] sm:$0xff]
      %v2264 = vld [vmem:[%s1 + $0x3f68] sm:$0xff]
      %v2265 = vld [vmem:[%s1 + $0x3f70] sm:$0xff]
      %v2266 = vld [vmem:[%s1 + $0x3f78] sm:$0xff]
      %v2267 = vld [vmem:[%s1 + $0x3f80] sm:$0xff]
      %v2268 = vld [vmem:[%s1 + $0x3f88] sm:$0xff]
      %v2269 = vld [vmem:[%s1 + $0x3f90] sm:$0xff]
      %v2270 = vld [vmem:[%s1 + $0x3f98] sm:$0xff]
      %v2271 = vld [vmem:[%s1 + $0x3fa0] sm:$0xff]
      %v2272 = vld [vmem:[%s1 + $0x3fa8] sm:$0xff]
      %v2273 = vld [vmem:[%s1 + $0x3fb0] sm:$0xff]
      %v2274 = vld [vmem:[%s1 + $0x3fb8] sm:$0xff]
      %v2275 = vld [vmem:[%s1 + $0x3fc0] sm:$0xff]
      %v2276 = vld [vmem:[%s1 + $0x3fc8] sm:$0xff]
      %v2277 = vld [vmem:[%s1 + $0x3fd0] sm:$0xff]
      %v2278 = vld [vmem:[%s1 + $0x3fd8] sm:$0xff]
      %v2279 = vld [vmem:[%s1 + $0x3fe0] sm:$0xff]
      %v2280 = vld [vmem:[%s1 + $0x3fe8] sm:$0xff]
      %v2281 = vld [vmem:[%s1 + $0x3ff0] sm:$0xff]
      %v2282 = vld [vmem:[%s1 + $0x3ff8] sm:$0xff]
      %v2283 = vld [vmem:[%s2] sm:$0xf]
      %v2285 = vlaneseq
      %v2286 = vshrl.u32 %v2285, 7
      %v2287 = vsub.s32 0, %v2286
      %v2288 = vrot.slane %v2283, %v2287
      %v2289 = vlaneseq
      %v2290 = vshrl.u32 %v2289, 7
      %v2291 = vsub.s32 1, %v2290
      %v2292 = vrot.slane %v2283, %v2291
      %v2293 = vlaneseq
      %v2294 = vshrl.u32 %v2293, 7
      %v2295 = vsub.s32 2, %v2294
      %v2296 = vrot.slane %v2283, %v2295
      %v2297 = vlaneseq
      %v2298 = vshrl.u32 %v2297, 7
      %v2299 = vsub.s32 3, %v2298
      %v2300 = vrot.slane %v2283, %v2299
      %2305 = vmatprep.subr.mxu0 %v236
      %2306 = vmatpush1.msra.mxu0 %v235
      %2307 = vmatprep.subr.mxu0 %v240
      %2308 = vmatpush1.msra.mxu0 %v239
      %2309 = vmatprep.subr.mxu0 %v244
      %2310 = vmatpush1.msra.mxu0 %v243
      %2311 = vmatprep.subr.mxu0 %v248
      %2312 = vmatpush1.msra.mxu0 %v247
      %2313 = vmatprep.subr.mxu0 %v252
      %2314 = vmatpush1.msra.mxu0 %v251
      %2315 = vmatprep.subr.mxu0 %v256
      %2316 = vmatpush1.msra.mxu0 %v255
      %2317 = vmatprep.subr.mxu0 %v260
      %2318 = vmatpush1.msra.mxu0 %v259
      %2319 = vmatprep.subr.mxu0 %v264
      %2320 = vmatpush1.msra.mxu0 %v263
      %2321 = vmatprep.subr.mxu0 %v268
      %2322 = vmatpush1.msra.mxu0 %v267
      %2323 = vmatprep.subr.mxu0 %v272
      %2324 = vmatpush1.msra.mxu0 %v271
      %2325 = vmatprep.subr.mxu0 %v276
      %2326 = vmatpush1.msra.mxu0 %v275
      %2327 = vmatprep.subr.mxu0 %v280
      %2328 = vmatpush1.msra.mxu0 %v279
      %2329 = vmatprep.subr.mxu0 %v284
      %2330 = vmatpush1.msra.mxu0 %v283
      %2331 = vmatprep.subr.mxu0 %v288
      %2332 = vmatpush1.msra.mxu0 %v287
      %2333 = vmatprep.subr.mxu0 %v292
      %2334 = vmatpush1.msra.mxu0 %v291
      %2335 = vmatprep.subr.mxu0 %v296
      %2336 = vmatpush1.msra.mxu0 %v295
      %2337 = vmatprep.subr.mxu0 %v300
      %2338 = vmatpush1.msra.mxu0 %v299
      %2339 = vmatprep.subr.mxu0 %v304
      %2340 = vmatpush1.msra.mxu0 %v303
      %2341 = vmatprep.subr.mxu0 %v308
      %2342 = vmatpush1.msra.mxu0 %v307
      %2343 = vmatprep.subr.mxu0 %v312
      %2344 = vmatpush1.msra.mxu0 %v311
      %2345 = vmatprep.subr.mxu0 %v316
      %2346 = vmatpush1.msra.mxu0 %v315
      %2347 = vmatprep.subr.mxu0 %v320
      %2348 = vmatpush1.msra.mxu0 %v319
      %2349 = vmatprep.subr.mxu0 %v324
      %2350 = vmatpush1.msra.mxu0 %v323
      %2351 = vmatprep.subr.mxu0 %v328
      %2352 = vmatpush1.msra.mxu0 %v327
      %2353 = vmatprep.subr.mxu0 %v332
      %2354 = vmatpush1.msra.mxu0 %v331
      %2355 = vmatprep.subr.mxu0 %v336
      %2356 = vmatpush1.msra.mxu0 %v335
      %2357 = vmatprep.subr.mxu0 %v340
      %2358 = vmatpush1.msra.mxu0 %v339
      %2359 = vmatprep.subr.mxu0 %v344
      %2360 = vmatpush1.msra.mxu0 %v343
      %2361 = vmatprep.subr.mxu0 %v348
      %2362 = vmatpush1.msra.mxu0 %v347
      %2363 = vmatprep.subr.mxu0 %v352
      %2364 = vmatpush1.msra.mxu0 %v351
      %2365 = vmatprep.subr.mxu0 %v356
      %2366 = vmatpush1.msra.mxu0 %v355
      %2367 = vmatprep.subr.mxu0 %v360
      %2368 = vmatpush1.msra.mxu0 %v359
      %2369 = vmatprep.mubr.f32.mxu0 %v172
      %2370 = vmatmul.mubr.f32.gmra.mrb[0].mxu0 %v171
      %v2371 = vpop.f32.mrb[0].mxu0
      %v2372 = vadd.f32 %v2288, %v2371
      %v2373 = vpop.f32.mrb[0].mxu0
      %v2374 = vadd.f32 %v2292, %v2373
      %2375 = vmatprep.mubr.f32.mxu0 %v204
      %2376 = vmatmul.mubr.f32.gmra.mrb[0].mxu0 %v203
      %v2377 = vpop.f32.mrb[0].mxu0
      %v2378 = vadd.f32 %v2288, %v2377
      %v2379 = vpop.f32.mrb[0].mxu0
      %v2380 = vadd.f32 %v2292, %v2379
      %2381 = vdwg.mxu0
      %2382 = vmatprep.subr.mxu0 %v364
      %2383 = vmatpush1.msra.mxu0 %v363
      %2384 = vmatprep.subr.mxu0 %v368
      %2385 = vmatpush1.msra.mxu0 %v367
      %2386 = vmatprep.subr.mxu0 %v372
      %2387 = vmatpush1.msra.mxu0 %v371
      %2388 = vmatprep.subr.mxu0 %v376
      %2389 = vmatpush1.msra.mxu0 %v375
      %2390 = vmatprep.subr.mxu0 %v380
      %2391 = vmatpush1.msra.mxu0 %v379
      %2392 = vmatprep.subr.mxu0 %v384
      %2393 = vmatpush1.msra.mxu0 %v383
      %2394 = vmatprep.subr.mxu0 %v388
      %2395 = vmatpush1.msra.mxu0 %v387
      %2396 = vmatprep.subr.mxu0 %v392
      %2397 = vmatpush1.msra.mxu0 %v391
      %2398 = vmatprep.subr.mxu0 %v396
      %2399 = vmatpush1.msra.mxu0 %v395
      %2400 = vmatprep.subr.mxu0 %v400
      %2401 = vmatpush1.msra.mxu0 %v399
      %2402 = vmatprep.subr.mxu0 %v404
      %2403 = vmatpush1.msra.mxu0 %v403
      %2404 = vmatprep.subr.mxu0 %v408
      %2405 = vmatpush1.msra.mxu0 %v407
      %2406 = vmatprep.subr.mxu0 %v412
      %2407 = vmatpush1.msra.mxu0 %v411
      %2408 = vmatprep.subr.mxu0 %v416
      %2409 = vmatpush1.msra.mxu0 %v415
      %2410 = vmatprep.subr.mxu0 %v420
      %2411 = vmatpush1.msra.mxu0 %v419
      %2412 = vmatprep.subr.mxu0 %v424
      %2413 = vmatpush1.msra.mxu0 %v423
      %2414 = vmatprep.subr.mxu0 %v428
      %2415 = vmatpush1.msra.mxu0 %v427
      %2416 = vmatprep.subr.mxu0 %v432
      %2417 = vmatpush1.msra.mxu0 %v431
      %2418 = vmatprep.subr.mxu0 %v436
      %2419 = vmatpush1.msra.mxu0 %v435
      %2420 = vmatprep.subr.mxu0 %v440
      %2421 = vmatpush1.msra.mxu0 %v439
      %2422 = vmatprep.subr.mxu0 %v444
      %2423 = vmatpush1.msra.mxu0 %v443
      %2424 = vmatprep.subr.mxu0 %v448
      %2425 = vmatpush1.msra.mxu0 %v447
      %2426 = vmatprep.subr.mxu0 %v452
      %2427 = vmatpush1.msra.mxu0 %v451
      %2428 = vmatprep.subr.mxu0 %v456
      %2429 = vmatpush1.msra.mxu0 %v455
      %2430 = vmatprep.subr.mxu0 %v460
      %2431 = vmatpush1.msra.mxu0 %v459
      %2432 = vmatprep.subr.mxu0 %v464
      %2433 = vmatpush1.msra.mxu0 %v463
      %2434 = vmatprep.subr.mxu0 %v468
      %2435 = vmatpush1.msra.mxu0 %v467
      %2436 = vmatprep.subr.mxu0 %v472
      %2437 = vmatpush1.msra.mxu0 %v471
      %2438 = vmatprep.subr.mxu0 %v476
      %2439 = vmatpush1.msra.mxu0 %v475
      %2440 = vmatprep.subr.mxu0 %v480
      %2441 = vmatpush1.msra.mxu0 %v479
      %2442 = vmatprep.subr.mxu0 %v484
      %2443 = vmatpush1.msra.mxu0 %v483
      %2444 = vmatprep.subr.mxu0 %v488
      %2445 = vmatpush1.msra.mxu0 %v487
      %2446 = vmatprep.mubr.f32.mxu0 %v174
      %2447 = vmatmul.mubr.f32.gmra.mrb[0].mxu0 %v173
      %v2448 = vpop.f32.mrb[0].mxu0
      %v2449 = vadd.f32 %v2372, %v2448
      %v2450 = vpop.f32.mrb[0].mxu0
      %v2451 = vadd.f32 %v2374, %v2450
      %2452 = vmatprep.mubr.f32.mxu0 %v206
      %2453 = vmatmul.mubr.f32.gmra.mrb[0].mxu0 %v205
      %v2454 = vpop.f32.mrb[0].mxu0
      %v2455 = vadd.f32 %v2378, %v2454
      %v2456 = vpop.f32.mrb[0].mxu0
      %v2457 = vadd.f32 %v2380, %v2456
      %2458 = vdwg.mxu0
      %2459 = vmatprep.subr.mxu0 %v492
      %2460 = vmatpush1.msra.mxu0 %v491
      %2461 = vmatprep.subr.mxu0 %v496
      %2462 = vmatpush1.msra.mxu0 %v495
      %2463 = vmatprep.subr.mxu0 %v500
      %2464 = vmatpush1.msra.mxu0 %v499
      %2465 = vmatprep.subr.mxu0 %v504
      %2466 = vmatpush1.msra.mxu0 %v503
      %2467 = vmatprep.subr.mxu0 %v508
      %2468 = vmatpush1.msra.mxu0 %v507
      %2469 = vmatprep.subr.mxu0 %v512
      %2470 = vmatpush1.msra.mxu0 %v511
      %2471 = vmatprep.subr.mxu0 %v516
      %2472 = vmatpush1.msra.mxu0 %v515
      %2473 = vmatprep.subr.mxu0 %v520
      %2474 = vmatpush1.msra.mxu0 %v519
      %2475 = vmatprep.subr.mxu0 %v524
      %2476 = vmatpush1.msra.mxu0 %v523
      %2477 = vmatprep.subr.mxu0 %v528
      %2478 = vmatpush1.msra.mxu0 %v527
      %2479 = vmatprep.subr.mxu0 %v532
      %2480 = vmatpush1.msra.mxu0 %v531
      %2481 = vmatprep.subr.mxu0 %v536
      %2482 = vmatpush1.msra.mxu0 %v535
      %2483 = vmatprep.subr.mxu0 %v540
      %2484 = vmatpush1.msra.mxu0 %v539
      %2485 = vmatprep.subr.mxu0 %v544
      %2486 = vmatpush1.msra.mxu0 %v543
      %2487 = vmatprep.subr.mxu0 %v548
      %2488 = vmatpush1.msra.mxu0 %v547
      %2489 = vmatprep.subr.mxu0 %v552
      %2490 = vmatpush1.msra.mxu0 %v551
      %2491 = vmatprep.subr.mxu0 %v556
      %2492 = vmatpush1.msra.mxu0 %v555
      %2493 = vmatprep.subr.mxu0 %v560
      %2494 = vmatpush1.msra.mxu0 %v559
      %2495 = vmatprep.subr.mxu0 %v564
      %2496 = vmatpush1.msra.mxu0 %v563
      %2497 = vmatprep.subr.mxu0 %v568
      %2498 = vmatpush1.msra.mxu0 %v567
      %2499 = vmatprep.subr.mxu0 %v572
      %2500 = vmatpush1.msra.mxu0 %v571
      %2501 = vmatprep.subr.mxu0 %v576
      %2502 = vmatpush1.msra.mxu0 %v575
      %2503 = vmatprep.subr.mxu0 %v580
      %2504 = vmatpush1.msra.mxu0 %v579
      %2505 = vmatprep.subr.mxu0 %v584
      %2506 = vmatpush1.msra.mxu0 %v583
      %2507 = vmatprep.subr.mxu0 %v588
      %2508 = vmatpush1.msra.mxu0 %v587
      %2509 = vmatprep.subr.mxu0 %v592
      %2510 = vmatpush1.msra.mxu0 %v591
      %2511 = vmatprep.subr.mxu0 %v596
      %2512 = vmatpush1.msra.mxu0 %v595
      %2513 = vmatprep.subr.mxu0 %v600
      %2514 = vmatpush1.msra.mxu0 %v599
      %2515 = vmatprep.subr.mxu0 %v604
      %2516 = vmatpush1.msra.mxu0 %v603
      %2517 = vmatprep.subr.mxu0 %v608
      %2518 = vmatpush1.msra.mxu0 %v607
      %2519 = vmatprep.subr.mxu0 %v612
      %2520 = vmatpush1.msra.mxu0 %v611
      %2521 = vmatprep.subr.mxu0 %v616
      %2522 = vmatpush1.msra.mxu0 %v615
      %2523 = vmatprep.mubr.f32.mxu0 %v176
      %2524 = vmatmul.mubr.f32.gmra.mrb[0].mxu0 %v175
      %v2525 = vpop.f32.mrb[0].mxu0
      %v2526 = vadd.f32 %v2449, %v2525
      %v2527 = vpop.f32.mrb[0].mxu0
      %v2528 = vadd.f32 %v2451, %v2527
      %2529 = vmatprep.mubr.f32.mxu0 %v208
      %2530 = vmatmul.mubr.f32.gmra.mrb[0].mxu0 %v207
      %v2531 = vpop.f32.mrb[0].mxu0
      %v2532 = vadd.f32 %v2455, %v2531
      %v2533 = vpop.f32.mrb[0].mxu0
      %v2534 = vadd.f32 %v2457, %v2533
      %2535 = vdwg.mxu0
      %2536 = vmatprep.subr.mxu0 %v620
      %2537 = vmatpush1.msra.mxu0 %v619
      %2538 = vmatprep.subr.mxu0 %v624
      %2539 = vmatpush1.msra.mxu0 %v623
      %2540 = vmatprep.subr.mxu0 %v628
      %2541 = vmatpush1.msra.mxu0 %v627
      %2542 = vmatprep.subr.mxu0 %v632
      %2543 = vmatpush1.msra.mxu0 %v631
      %2544 = vmatprep.subr.mxu0 %v636
      %2545 = vmatpush1.msra.mxu0 %v635
      %2546 = vmatprep.subr.mxu0 %v640
      %2547 = vmatpush1.msra.mxu0 %v639
      %2548 = vmatprep.subr.mxu0 %v644
      %2549 = vmatpush1.msra.mxu0 %v643
      %2550 = vmatprep.subr.mxu0 %v648
      %2551 = vmatpush1.msra.mxu0 %v647
      %2552 = vmatprep.subr.mxu0 %v652
      %2553 = vmatpush1.msra.mxu0 %v651
      %2554 = vmatprep.subr.mxu0 %v656
      %2555 = vmatpush1.msra.mxu0 %v655
      %2556 = vmatprep.subr.mxu0 %v660
      %2557 = vmatpush1.msra.mxu0 %v659
      %2558 = vmatprep.subr.mxu0 %v664
      %2559 = vmatpush1.msra.mxu0 %v663
      %2560 = vmatprep.subr.mxu0 %v668
      %2561 = vmatpush1.msra.mxu0 %v667
      %2562 = vmatprep.subr.mxu0 %v672
      %2563 = vmatpush1.msra.mxu0 %v671
      %2564 = vmatprep.subr.mxu0 %v676
      %2565 = vmatpush1.msra.mxu0 %v675
      %2566 = vmatprep.subr.mxu0 %v680
      %2567 = vmatpush1.msra.mxu0 %v679
      %2568 = vmatprep.subr.mxu0 %v684
      %2569 = vmatpush1.msra.mxu0 %v683
      %2570 = vmatprep.subr.mxu0 %v688
      %2571 = vmatpush1.msra.mxu0 %v687
      %2572 = vmatprep.subr.mxu0 %v692
      %2573 = vmatpush1.msra.mxu0 %v691
      %2574 = vmatprep.subr.mxu0 %v696
      %2575 = vmatpush1.msra.mxu0 %v695
      %2576 = vmatprep.subr.mxu0 %v700
      %2577 = vmatpush1.msra.mxu0 %v699
      %2578 = vmatprep.subr.mxu0 %v704
      %2579 = vmatpush1.msra.mxu0 %v703
      %2580 = vmatprep.subr.mxu0 %v708
      %2581 = vmatpush1.msra.mxu0 %v707
      %2582 = vmatprep.subr.mxu0 %v712
      %2583 = vmatpush1.msra.mxu0 %v711
      %2584 = vmatprep.subr.mxu0 %v716
      %2585 = vmatpush1.msra.mxu0 %v715
      %2586 = vmatprep.subr.mxu0 %v720
      %2587 = vmatpush1.msra.mxu0 %v719
      %2588 = vmatprep.subr.mxu0 %v724
      %2589 = vmatpush1.msra.mxu0 %v723
      %2590 = vmatprep.subr.mxu0 %v728
      %2591 = vmatpush1.msra.mxu0 %v727
      %2592 = vmatprep.subr.mxu0 %v732
      %2593 = vmatpush1.msra.mxu0 %v731
      %2594 = vmatprep.subr.mxu0 %v736
      %2595 = vmatpush1.msra.mxu0 %v735
      %2596 = vmatprep.subr.mxu0 %v740
      %2597 = vmatpush1.msra.mxu0 %v739
      %2598 = vmatprep.subr.mxu0 %v744
      %2599 = vmatpush1.msra.mxu0 %v743
      %2600 = vmatprep.mubr.f32.mxu0 %v178
      %2601 = vmatmul.mubr.f32.gmra.mrb[0].mxu0 %v177
      %v2602 = vpop.f32.mrb[0].mxu0
      %v2603 = vadd.f32 %v2526, %v2602
      %v2604 = vpop.f32.mrb[0].mxu0
      %v2605 = vadd.f32 %v2528, %v2604
      %2606 = vmatprep.mubr.f32.mxu0 %v210
      %2607 = vmatmul.mubr.f32.gmra.mrb[0].mxu0 %v209
      %v2608 = vpop.f32.mrb[0].mxu0
      %v2609 = vadd.f32 %v2532, %v2608
      %v2610 = vpop.f32.mrb[0].mxu0
      %v2611 = vadd.f32 %v2534, %v2610
      %2612 = vdwg.mxu0
      %2613 = vmatprep.subr.mxu0 %v748
      %2614 = vmatpush1.msra.mxu0 %v747
      %2615 = vmatprep.subr.mxu0 %v752
      %2616 = vmatpush1.msra.mxu0 %v751
      %2617 = vmatprep.subr.mxu0 %v756
      %2618 = vmatpush1.msra.mxu0 %v755
      %2619 = vmatprep.subr.mxu0 %v760
      %2620 = vmatpush1.msra.mxu0 %v759
      %2621 = vmatprep.subr.mxu0 %v764
      %2622 = vmatpush1.msra.mxu0 %v763
      %2623 = vmatprep.subr.mxu0 %v768
      %2624 = vmatpush1.msra.mxu0 %v767
      %2625 = vmatprep.subr.mxu0 %v772
      %2626 = vmatpush1.msra.mxu0 %v771
      %2627 = vmatprep.subr.mxu0 %v776
      %2628 = vmatpush1.msra.mxu0 %v775
      %2629 = vmatprep.subr.mxu0 %v780
      %2630 = vmatpush1.msra.mxu0 %v779
      %2631 = vmatprep.subr.mxu0 %v784
      %2632 = vmatpush1.msra.mxu0 %v783
      %2633 = vmatprep.subr.mxu0 %v788
      %2634 = vmatpush1.msra.mxu0 %v787
      %2635 = vmatprep.subr.mxu0 %v792
      %2636 = vmatpush1.msra.mxu0 %v791
      %2637 = vmatprep.subr.mxu0 %v796
      %2638 = vmatpush1.msra.mxu0 %v795
      %2639 = vmatprep.subr.mxu0 %v800
      %2640 = vmatpush1.msra.mxu0 %v799
      %2641 = vmatprep.subr.mxu0 %v804
      %2642 = vmatpush1.msra.mxu0 %v803
      %2643 = vmatprep.subr.mxu0 %v808
      %2644 = vmatpush1.msra.mxu0 %v807
      %2645 = vmatprep.subr.mxu0 %v812
      %2646 = vmatpush1.msra.mxu0 %v811
      %2647 = vmatprep.subr.mxu0 %v816
      %2648 = vmatpush1.msra.mxu0 %v815
      %2649 = vmatprep.subr.mxu0 %v820
      %2650 = vmatpush1.msra.mxu0 %v819
      %2651 = vmatprep.subr.mxu0 %v824
      %2652 = vmatpush1.msra.mxu0 %v823
      %2653 = vmatprep.subr.mxu0 %v828
      %2654 = vmatpush1.msra.mxu0 %v827
      %2655 = vmatprep.subr.mxu0 %v832
      %2656 = vmatpush1.msra.mxu0 %v831
      %2657 = vmatprep.subr.mxu0 %v836
      %2658 = vmatpush1.msra.mxu0 %v835
      %2659 = vmatprep.subr.mxu0 %v840
      %2660 = vmatpush1.msra.mxu0 %v839
      %2661 = vmatprep.subr.mxu0 %v844
      %2662 = vmatpush1.msra.mxu0 %v843
      %2663 = vmatprep.subr.mxu0 %v848
      %2664 = vmatpush1.msra.mxu0 %v847
      %2665 = vmatprep.subr.mxu0 %v852
      %2666 = vmatpush1.msra.mxu0 %v851
      %2667 = vmatprep.subr.mxu0 %v856
      %2668 = vmatpush1.msra.mxu0 %v855
      %2669 = vmatprep.subr.mxu0 %v860
      %2670 = vmatpush1.msra.mxu0 %v859
      %2671 = vmatprep.subr.mxu0 %v864
      %2672 = vmatpush1.msra.mxu0 %v863
      %2673 = vmatprep.subr.mxu0 %v868
      %2674 = vmatpush1.msra.mxu0 %v867
      %2675 = vmatprep.subr.mxu0 %v872
      %2676 = vmatpush1.msra.mxu0 %v871
      %2677 = vmatprep.mubr.f32.mxu0 %v180
      %2678 = vmatmul.mubr.f32.gmra.mrb[0].mxu0 %v179
      %v2679 = vpop.f32.mrb[0].mxu0
      %v2680 = vadd.f32 %v2603, %v2679
      %v2681 = vpop.f32.mrb[0].mxu0
      %v2682 = vadd.f32 %v2605, %v2681
      %2683 = vmatprep.mubr.f32.mxu0 %v212
      %2684 = vmatmul.mubr.f32.gmra.mrb[0].mxu0 %v211
      %v2685 = vpop.f32.mrb[0].mxu0
      %v2686 = vadd.f32 %v2609, %v2685
      %v2687 = vpop.f32.mrb[0].mxu0
      %v2688 = vadd.f32 %v2611, %v2687
      %2689 = vdwg.mxu0
      %2690 = vmatprep.subr.mxu0 %v876
      %2691 = vmatpush1.msra.mxu0 %v875
      %2692 = vmatprep.subr.mxu0 %v880
      %2693 = vmatpush1.msra.mxu0 %v879
      %2694 = vmatprep.subr.mxu0 %v884
      %2695 = vmatpush1.msra.mxu0 %v883
      %2696 = vmatprep.subr.mxu0 %v888
      %2697 = vmatpush1.msra.mxu0 %v887
      %2698 = vmatprep.subr.mxu0 %v892
      %2699 = vmatpush1.msra.mxu0 %v891
      %2700 = vmatprep.subr.mxu0 %v896
      %2701 = vmatpush1.msra.mxu0 %v895
      %2702 = vmatprep.subr.mxu0 %v900
      %2703 = vmatpush1.msra.mxu0 %v899
      %2704 = vmatprep.subr.mxu0 %v904
      %2705 = vmatpush1.msra.mxu0 %v903
      %2706 = vmatprep.subr.mxu0 %v908
      %2707 = vmatpush1.msra.mxu0 %v907
      %2708 = vmatprep.subr.mxu0 %v912
      %2709 = vmatpush1.msra.mxu0 %v911
      %2710 = vmatprep.subr.mxu0 %v916
      %2711 = vmatpush1.msra.mxu0 %v915
      %2712 = vmatprep.subr.mxu0 %v920
      %2713 = vmatpush1.msra.mxu0 %v919
      %2714 = vmatprep.subr.mxu0 %v924
      %2715 = vmatpush1.msra.mxu0 %v923
      %2716 = vmatprep.subr.mxu0 %v928
      %2717 = vmatpush1.msra.mxu0 %v927
      %2718 = vmatprep.subr.mxu0 %v932
      %2719 = vmatpush1.msra.mxu0 %v931
      %2720 = vmatprep.subr.mxu0 %v936
      %2721 = vmatpush1.msra.mxu0 %v935
      %2722 = vmatprep.subr.mxu0 %v940
      %2723 = vmatpush1.msra.mxu0 %v939
      %2724 = vmatprep.subr.mxu0 %v944
      %2725 = vmatpush1.msra.mxu0 %v943
      %2726 = vmatprep.subr.mxu0 %v948
      %2727 = vmatpush1.msra.mxu0 %v947
      %2728 = vmatprep.subr.mxu0 %v952
      %2729 = vmatpush1.msra.mxu0 %v951
      %2730 = vmatprep.subr.mxu0 %v956
      %2731 = vmatpush1.msra.mxu0 %v955
      %2732 = vmatprep.subr.mxu0 %v960
      %2733 = vmatpush1.msra.mxu0 %v959
      %2734 = vmatprep.subr.mxu0 %v964
      %2735 = vmatpush1.msra.mxu0 %v963
      %2736 = vmatprep.subr.mxu0 %v968
      %2737 = vmatpush1.msra.mxu0 %v967
      %2738 = vmatprep.subr.mxu0 %v972
      %2739 = vmatpush1.msra.mxu0 %v971
      %2740 = vmatprep.subr.mxu0 %v976
      %2741 = vmatpush1.msra.mxu0 %v975
      %2742 = vmatprep.subr.mxu0 %v980
      %2743 = vmatpush1.msra.mxu0 %v979
      %2744 = vmatprep.subr.mxu0 %v984
      %2745 = vmatpush1.msra.mxu0 %v983
      %2746 = vmatprep.subr.mxu0 %v988
      %2747 = vmatpush1.msra.mxu0 %v987
      %2748 = vmatprep.subr.mxu0 %v992
      %2749 = vmatpush1.msra.mxu0 %v991
      %2750 = vmatprep.subr.mxu0 %v996
      %2751 = vmatpush1.msra.mxu0 %v995
      %2752 = vmatprep.subr.mxu0 %v1000
      %2753 = vmatpush1.msra.mxu0 %v999
      %2754 = vmatprep.mubr.f32.mxu0 %v182
      %2755 = vmatmul.mubr.f32.gmra.mrb[0].mxu0 %v181
      %v2756 = vpop.f32.mrb[0].mxu0
      %v2757 = vadd.f32 %v2680, %v2756
      %v2758 = vpop.f32.mrb[0].mxu0
      %v2759 = vadd.f32 %v2682, %v2758
      %2760 = vmatprep.mubr.f32.mxu0 %v214
      %2761 = vmatmul.mubr.f32.gmra.mrb[0].mxu0 %v213
      %v2762 = vpop.f32.mrb[0].mxu0
      %v2763 = vadd.f32 %v2686, %v2762
      %v2764 = vpop.f32.mrb[0].mxu0
      %v2765 = vadd.f32 %v2688, %v2764
      %2766 = vdwg.mxu0
      %2767 = vmatprep.subr.mxu0 %v1004
      %2768 = vmatpush1.msra.mxu0 %v1003
      %2769 = vmatprep.subr.mxu0 %v1008
      %2770 = vmatpush1.msra.mxu0 %v1007
      %2771 = vmatprep.subr.mxu0 %v1012
      %2772 = vmatpush1.msra.mxu0 %v1011
      %2773 = vmatprep.subr.mxu0 %v1016
      %2774 = vmatpush1.msra.mxu0 %v1015
      %2775 = vmatprep.subr.mxu0 %v1020
      %2776 = vmatpush1.msra.mxu0 %v1019
      %2777 = vmatprep.subr.mxu0 %v1024
      %2778 = vmatpush1.msra.mxu0 %v1023
      %2779 = vmatprep.subr.mxu0 %v1028
      %2780 = vmatpush1.msra.mxu0 %v1027
      %2781 = vmatprep.subr.mxu0 %v1032
      %2782 = vmatpush1.msra.mxu0 %v1031
      %2783 = vmatprep.subr.mxu0 %v1036
      %2784 = vmatpush1.msra.mxu0 %v1035
      %2785 = vmatprep.subr.mxu0 %v1040
      %2786 = vmatpush1.msra.mxu0 %v1039
      %2787 = vmatprep.subr.mxu0 %v1044
      %2788 = vmatpush1.msra.mxu0 %v1043
      %2789 = vmatprep.subr.mxu0 %v1048
      %2790 = vmatpush1.msra.mxu0 %v1047
      %2791 = vmatprep.subr.mxu0 %v1052
      %2792 = vmatpush1.msra.mxu0 %v1051
      %2793 = vmatprep.subr.mxu0 %v1056
      %2794 = vmatpush1.msra.mxu0 %v1055
      %2795 = vmatprep.subr.mxu0 %v1060
      %2796 = vmatpush1.msra.mxu0 %v1059
      %2797 = vmatprep.subr.mxu0 %v1064
      %2798 = vmatpush1.msra.mxu0 %v1063
      %2799 = vmatprep.subr.mxu0 %v1068
      %2800 = vmatpush1.msra.mxu0 %v1067
      %2801 = vmatprep.subr.mxu0 %v1072
      %2802 = vmatpush1.msra.mxu0 %v1071
      %2803 = vmatprep.subr.mxu0 %v1076
      %2804 = vmatpush1.msra.mxu0 %v1075
      %2805 = vmatprep.subr.mxu0 %v1080
      %2806 = vmatpush1.msra.mxu0 %v1079
      %2807 = vmatprep.subr.mxu0 %v1084
      %2808 = vmatpush1.msra.mxu0 %v1083
      %2809 = vmatprep.subr.mxu0 %v1088
      %2810 = vmatpush1.msra.mxu0 %v1087
      %2811 = vmatprep.subr.mxu0 %v1092
      %2812 = vmatpush1.msra.mxu0 %v1091
      %2813 = vmatprep.subr.mxu0 %v1096
      %2814 = vmatpush1.msra.mxu0 %v1095
      %2815 = vmatprep.subr.mxu0 %v1100
      %2816 = vmatpush1.msra.mxu0 %v1099
      %2817 = vmatprep.subr.mxu0 %v1104
      %2818 = vmatpush1.msra.mxu0 %v1103
      %2819 = vmatprep.subr.mxu0 %v1108
      %2820 = vmatpush1.msra.mxu0 %v1107
      %2821 = vmatprep.subr.mxu0 %v1112
      %2822 = vmatpush1.msra.mxu0 %v1111
      %2823 = vmatprep.subr.mxu0 %v1116
      %2824 = vmatpush1.msra.mxu0 %v1115
      %2825 = vmatprep.subr.mxu0 %v1120
      %2826 = vmatpush1.msra.mxu0 %v1119
      %2827 = vmatprep.subr.mxu0 %v1124
      %2828 = vmatpush1.msra.mxu0 %v1123
      %2829 = vmatprep.subr.mxu0 %v1128
      %2830 = vmatpush1.msra.mxu0 %v1127
      %2831 = vmatprep.mubr.f32.mxu0 %v184
      %2832 = vmatmul.mubr.f32.gmra.mrb[0].mxu0 %v183
      %v2833 = vpop.f32.mrb[0].mxu0
      %v2834 = vadd.f32 %v2757, %v2833
      %v2835 = vpop.f32.mrb[0].mxu0
      %v2836 = vadd.f32 %v2759, %v2835
      %2837 = vmatprep.mubr.f32.mxu0 %v216
      %2838 = vmatmul.mubr.f32.gmra.mrb[0].mxu0 %v215
      %v2839 = vpop.f32.mrb[0].mxu0
      %v2840 = vadd.f32 %v2763, %v2839
      %v2841 = vpop.f32.mrb[0].mxu0
      %v2842 = vadd.f32 %v2765, %v2841
      %2843 = vdwg.mxu0
      %2844 = vmatprep.subr.mxu0 %v1132
      %2845 = vmatpush1.msra.mxu0 %v1131
      %2846 = vmatprep.subr.mxu0 %v1136
      %2847 = vmatpush1.msra.mxu0 %v1135
      %2848 = vmatprep.subr.mxu0 %v1140
      %2849 = vmatpush1.msra.mxu0 %v1139
      %2850 = vmatprep.subr.mxu0 %v1144
      %2851 = vmatpush1.msra.mxu0 %v1143
      %2852 = vmatprep.subr.mxu0 %v1148
      %2853 = vmatpush1.msra.mxu0 %v1147
      %2854 = vmatprep.subr.mxu0 %v1152
      %2855 = vmatpush1.msra.mxu0 %v1151
      %2856 = vmatprep.subr.mxu0 %v1156
      %2857 = vmatpush1.msra.mxu0 %v1155
      %2858 = vmatprep.subr.mxu0 %v1160
      %2859 = vmatpush1.msra.mxu0 %v1159
      %2860 = vmatprep.subr.mxu0 %v1164
      %2861 = vmatpush1.msra.mxu0 %v1163
      %2862 = vmatprep.subr.mxu0 %v1168
      %2863 = vmatpush1.msra.mxu0 %v1167
      %2864 = vmatprep.subr.mxu0 %v1172
      %2865 = vmatpush1.msra.mxu0 %v1171
      %2866 = vmatprep.subr.mxu0 %v1176
      %2867 = vmatpush1.msra.mxu0 %v1175
      %2868 = vmatprep.subr.mxu0 %v1180
      %2869 = vmatpush1.msra.mxu0 %v1179
      %2870 = vmatprep.subr.mxu0 %v1184
      %2871 = vmatpush1.msra.mxu0 %v1183
      %2872 = vmatprep.subr.mxu0 %v1188
      %2873 = vmatpush1.msra.mxu0 %v1187
      %2874 = vmatprep.subr.mxu0 %v1192
      %2875 = vmatpush1.msra.mxu0 %v1191
      %2876 = vmatprep.subr.mxu0 %v1196
      %2877 = vmatpush1.msra.mxu0 %v1195
      %2878 = vmatprep.subr.mxu0 %v1200
      %2879 = vmatpush1.msra.mxu0 %v1199
      %2880 = vmatprep.subr.mxu0 %v1204
      %2881 = vmatpush1.msra.mxu0 %v1203
      %2882 = vmatprep.subr.mxu0 %v1208
      %2883 = vmatpush1.msra.mxu0 %v1207
      %2884 = vmatprep.subr.mxu0 %v1212
      %2885 = vmatpush1.msra.mxu0 %v1211
      %2886 = vmatprep.subr.mxu0 %v1216
      %2887 = vmatpush1.msra.mxu0 %v1215
      %2888 = vmatprep.subr.mxu0 %v1220
      %2889 = vmatpush1.msra.mxu0 %v1219
      %2890 = vmatprep.subr.mxu0 %v1224
      %2891 = vmatpush1.msra.mxu0 %v1223
      %2892 = vmatprep.subr.mxu0 %v1228
      %2893 = vmatpush1.msra.mxu0 %v1227
      %2894 = vmatprep.subr.mxu0 %v1232
      %2895 = vmatpush1.msra.mxu0 %v1231
      %2896 = vmatprep.subr.mxu0 %v1236
      %2897 = vmatpush1.msra.mxu0 %v1235
      %2898 = vmatprep.subr.mxu0 %v1240
      %2899 = vmatpush1.msra.mxu0 %v1239
      %2900 = vmatprep.subr.mxu0 %v1244
      %2901 = vmatpush1.msra.mxu0 %v1243
      %2902 = vmatprep.subr.mxu0 %v1248
      %2903 = vmatpush1.msra.mxu0 %v1247
      %2904 = vmatprep.subr.mxu0 %v1252
      %2905 = vmatpush1.msra.mxu0 %v1251
      %2906 = vmatprep.subr.mxu0 %v1256
      %2907 = vmatpush1.msra.mxu0 %v1255
      %2908 = vmatprep.mubr.f32.mxu0 %v186
      %2909 = vmatmul.mubr.f32.gmra.mrb[0].mxu0 %v185
      %v2910 = vpop.f32.mrb[0].mxu0
      %v2911 = vadd.f32 %v2834, %v2910
      %v2912 = vpop.f32.mrb[0].mxu0
      %v2913 = vadd.f32 %v2836, %v2912
      %2914 = vmatprep.mubr.f32.mxu0 %v218
      %2915 = vmatmul.mubr.f32.gmra.mrb[0].mxu0 %v217
      %v2916 = vpop.f32.mrb[0].mxu0
      %v2917 = vadd.f32 %v2840, %v2916
      %v2918 = vpop.f32.mrb[0].mxu0
      %v2919 = vadd.f32 %v2842, %v2918
      %2920 = vdwg.mxu0
      %2921 = vmatprep.subr.mxu0 %v1260
      %2922 = vmatpush1.msra.mxu0 %v1259
      %2923 = vmatprep.subr.mxu0 %v1264
      %2924 = vmatpush1.msra.mxu0 %v1263
      %2925 = vmatprep.subr.mxu0 %v1268
      %2926 = vmatpush1.msra.mxu0 %v1267
      %2927 = vmatprep.subr.mxu0 %v1272
      %2928 = vmatpush1.msra.mxu0 %v1271
      %2929 = vmatprep.subr.mxu0 %v1276
      %2930 = vmatpush1.msra.mxu0 %v1275
      %2931 = vmatprep.subr.mxu0 %v1280
      %2932 = vmatpush1.msra.mxu0 %v1279
      %2933 = vmatprep.subr.mxu0 %v1284
      %2934 = vmatpush1.msra.mxu0 %v1283
      %2935 = vmatprep.subr.mxu0 %v1288
      %2936 = vmatpush1.msra.mxu0 %v1287
      %2937 = vmatprep.subr.mxu0 %v1292
      %2938 = vmatpush1.msra.mxu0 %v1291
      %2939 = vmatprep.subr.mxu0 %v1296
      %2940 = vmatpush1.msra.mxu0 %v1295
      %2941 = vmatprep.subr.mxu0 %v1300
      %2942 = vmatpush1.msra.mxu0 %v1299
      %2943 = vmatprep.subr.mxu0 %v1304
      %2944 = vmatpush1.msra.mxu0 %v1303
      %2945 = vmatprep.subr.mxu0 %v1308
      %2946 = vmatpush1.msra.mxu0 %v1307
      %2947 = vmatprep.subr.mxu0 %v1312
      %2948 = vmatpush1.msra.mxu0 %v1311
      %2949 = vmatprep.subr.mxu0 %v1316
      %2950 = vmatpush1.msra.mxu0 %v1315
      %2951 = vmatprep.subr.mxu0 %v1320
      %2952 = vmatpush1.msra.mxu0 %v1319
      %2953 = vmatprep.subr.mxu0 %v1324
      %2954 = vmatpush1.msra.mxu0 %v1323
      %2955 = vmatprep.subr.mxu0 %v1328
      %2956 = vmatpush1.msra.mxu0 %v1327
      %2957 = vmatprep.subr.mxu0 %v1332
      %2958 = vmatpush1.msra.mxu0 %v1331
      %2959 = vmatprep.subr.mxu0 %v1336
      %2960 = vmatpush1.msra.mxu0 %v1335
      %2961 = vmatprep.subr.mxu0 %v1340
      %2962 = vmatpush1.msra.mxu0 %v1339
      %2963 = vmatprep.subr.mxu0 %v1344
      %2964 = vmatpush1.msra.mxu0 %v1343
      %2965 = vmatprep.subr.mxu0 %v1348
      %2966 = vmatpush1.msra.mxu0 %v1347
      %2967 = vmatprep.subr.mxu0 %v1352
      %2968 = vmatpush1.msra.mxu0 %v1351
      %2969 = vmatprep.subr.mxu0 %v1356
      %2970 = vmatpush1.msra.mxu0 %v1355
      %2971 = vmatprep.subr.mxu0 %v1360
      %2972 = vmatpush1.msra.mxu0 %v1359
      %2973 = vmatprep.subr.mxu0 %v1364
      %2974 = vmatpush1.msra.mxu0 %v1363
      %2975 = vmatprep.subr.mxu0 %v1368
      %2976 = vmatpush1.msra.mxu0 %v1367
      %2977 = vmatprep.subr.mxu0 %v1372
      %2978 = vmatpush1.msra.mxu0 %v1371
      %2979 = vmatprep.subr.mxu0 %v1376
      %2980 = vmatpush1.msra.mxu0 %v1375
      %2981 = vmatprep.subr.mxu0 %v1380
      %2982 = vmatpush1.msra.mxu0 %v1379
      %2983 = vmatprep.subr.mxu0 %v1384
      %2984 = vmatpush1.msra.mxu0 %v1383
      %2985 = vmatprep.mubr.f32.mxu0 %v188
      %2986 = vmatmul.mubr.f32.gmra.mrb[0].mxu0 %v187
      %v2987 = vpop.f32.mrb[0].mxu0
      %v2988 = vadd.f32 %v2911, %v2987
      %v2989 = vpop.f32.mrb[0].mxu0
      %v2990 = vadd.f32 %v2913, %v2989
      %2991 = vmatprep.mubr.f32.mxu0 %v220
      %2992 = vmatmul.mubr.f32.gmra.mrb[0].mxu0 %v219
      %v2993 = vpop.f32.mrb[0].mxu0
      %v2994 = vadd.f32 %v2917, %v2993
      %v2995 = vpop.f32.mrb[0].mxu0
      %v2996 = vadd.f32 %v2919, %v2995
      %2997 = vdwg.mxu0
      %2998 = vmatprep.subr.mxu0 %v1388
      %2999 = vmatpush1.msra.mxu0 %v1387
      %3000 = vmatprep.subr.mxu0 %v1392
      %3001 = vmatpush1.msra.mxu0 %v1391
      %3002 = vmatprep.subr.mxu0 %v1396
      %3003 = vmatpush1.msra.mxu0 %v1395
      %3004 = vmatprep.subr.mxu0 %v1400
      %3005 = vmatpush1.msra.mxu0 %v1399
      %3006 = vmatprep.subr.mxu0 %v1404
      %3007 = vmatpush1.msra.mxu0 %v1403
      %3008 = vmatprep.subr.mxu0 %v1408
      %3009 = vmatpush1.msra.mxu0 %v1407
      %3010 = vmatprep.subr.mxu0 %v1412
      %3011 = vmatpush1.msra.mxu0 %v1411
      %3012 = vmatprep.subr.mxu0 %v1416
      %3013 = vmatpush1.msra.mxu0 %v1415
      %3014 = vmatprep.subr.mxu0 %v1420
      %3015 = vmatpush1.msra.mxu0 %v1419
      %3016 = vmatprep.subr.mxu0 %v1424
      %3017 = vmatpush1.msra.mxu0 %v1423
      %3018 = vmatprep.subr.mxu0 %v1428
      %3019 = vmatpush1.msra.mxu0 %v1427
      %3020 = vmatprep.subr.mxu0 %v1432
      %3021 = vmatpush1.msra.mxu0 %v1431
      %3022 = vmatprep.subr.mxu0 %v1436
      %3023 = vmatpush1.msra.mxu0 %v1435
      %3024 = vmatprep.subr.mxu0 %v1440
      %3025 = vmatpush1.msra.mxu0 %v1439
      %3026 = vmatprep.subr.mxu0 %v1444
      %3027 = vmatpush1.msra.mxu0 %v1443
      %3028 = vmatprep.subr.mxu0 %v1448
      %3029 = vmatpush1.msra.mxu0 %v1447
      %3030 = vmatprep.subr.mxu0 %v1452
      %3031 = vmatpush1.msra.mxu0 %v1451
      %3032 = vmatprep.subr.mxu0 %v1456
      %3033 = vmatpush1.msra.mxu0 %v1455
      %3034 = vmatprep.subr.mxu0 %v1460
      %3035 = vmatpush1.msra.mxu0 %v1459
      %3036 = vmatprep.subr.mxu0 %v1464
      %3037 = vmatpush1.msra.mxu0 %v1463
      %3038 = vmatprep.subr.mxu0 %v1468
      %3039 = vmatpush1.msra.mxu0 %v1467
      %3040 = vmatprep.subr.mxu0 %v1472
      %3041 = vmatpush1.msra.mxu0 %v1471
      %3042 = vmatprep.subr.mxu0 %v1476
      %3043 = vmatpush1.msra.mxu0 %v1475
      %3044 = vmatprep.subr.mxu0 %v1480
      %3045 = vmatpush1.msra.mxu0 %v1479
      %3046 = vmatprep.subr.mxu0 %v1484
      %3047 = vmatpush1.msra.mxu0 %v1483
      %3048 = vmatprep.subr.mxu0 %v1488
      %3049 = vmatpush1.msra.mxu0 %v1487
      %3050 = vmatprep.subr.mxu0 %v1492
      %3051 = vmatpush1.msra.mxu0 %v1491
      %3052 = vmatprep.subr.mxu0 %v1496
      %3053 = vmatpush1.msra.mxu0 %v1495
      %3054 = vmatprep.subr.mxu0 %v1500
      %3055 = vmatpush1.msra.mxu0 %v1499
      %3056 = vmatprep.subr.mxu0 %v1504
      %3057 = vmatpush1.msra.mxu0 %v1503
      %3058 = vmatprep.subr.mxu0 %v1508
      %3059 = vmatpush1.msra.mxu0 %v1507
      %3060 = vmatprep.subr.mxu0 %v1512
      %3061 = vmatpush1.msra.mxu0 %v1511
      %3062 = vmatprep.mubr.f32.mxu0 %v190
      %3063 = vmatmul.mubr.f32.gmra.mrb[0].mxu0 %v189
      %v3064 = vpop.f32.mrb[0].mxu0
      %v3065 = vadd.f32 %v2988, %v3064
      %v3066 = vpop.f32.mrb[0].mxu0
      %v3067 = vadd.f32 %v2990, %v3066
      %3068 = vmatprep.mubr.f32.mxu0 %v222
      %3069 = vmatmul.mubr.f32.gmra.mrb[0].mxu0 %v221
      %v3070 = vpop.f32.mrb[0].mxu0
      %v3071 = vadd.f32 %v2994, %v3070
      %v3072 = vpop.f32.mrb[0].mxu0
      %v3073 = vadd.f32 %v2996, %v3072
      %3074 = vdwg.mxu0
      %3075 = vmatprep.subr.mxu0 %v1516
      %3076 = vmatpush1.msra.mxu0 %v1515
      %3077 = vmatprep.subr.mxu0 %v1520
      %3078 = vmatpush1.msra.mxu0 %v1519
      %3079 = vmatprep.subr.mxu0 %v1524
      %3080 = vmatpush1.msra.mxu0 %v1523
      %3081 = vmatprep.subr.mxu0 %v1528
      %3082 = vmatpush1.msra.mxu0 %v1527
      %3083 = vmatprep.subr.mxu0 %v1532
      %3084 = vmatpush1.msra.mxu0 %v1531
      %3085 = vmatprep.subr.mxu0 %v1536
      %3086 = vmatpush1.msra.mxu0 %v1535
      %3087 = vmatprep.subr.mxu0 %v1540
      %3088 = vmatpush1.msra.mxu0 %v1539
      %3089 = vmatprep.subr.mxu0 %v1544
      %3090 = vmatpush1.msra.mxu0 %v1543
      %3091 = vmatprep.subr.mxu0 %v1548
      %3092 = vmatpush1.msra.mxu0 %v1547
      %3093 = vmatprep.subr.mxu0 %v1552
      %3094 = vmatpush1.msra.mxu0 %v1551
      %3095 = vmatprep.subr.mxu0 %v1556
      %3096 = vmatpush1.msra.mxu0 %v1555
      %3097 = vmatprep.subr.mxu0 %v1560
      %3098 = vmatpush1.msra.mxu0 %v1559
      %3099 = vmatprep.subr.mxu0 %v1564
      %3100 = vmatpush1.msra.mxu0 %v1563
      %3101 = vmatprep.subr.mxu0 %v1568
      %3102 = vmatpush1.msra.mxu0 %v1567
      %3103 = vmatprep.subr.mxu0 %v1572
      %3104 = vmatpush1.msra.mxu0 %v1571
      %3105 = vmatprep.subr.mxu0 %v1576
      %3106 = vmatpush1.msra.mxu0 %v1575
      %3107 = vmatprep.subr.mxu0 %v1580
      %3108 = vmatpush1.msra.mxu0 %v1579
      %3109 = vmatprep.subr.mxu0 %v1584
      %3110 = vmatpush1.msra.mxu0 %v1583
      %3111 = vmatprep.subr.mxu0 %v1588
      %3112 = vmatpush1.msra.mxu0 %v1587
      %3113 = vmatprep.subr.mxu0 %v1592
      %3114 = vmatpush1.msra.mxu0 %v1591
      %3115 = vmatprep.subr.mxu0 %v1596
      %3116 = vmatpush1.msra.mxu0 %v1595
      %3117 = vmatprep.subr.mxu0 %v1600
      %3118 = vmatpush1.msra.mxu0 %v1599
      %3119 = vmatprep.subr.mxu0 %v1604
      %3120 = vmatpush1.msra.mxu0 %v1603
      %3121 = vmatprep.subr.mxu0 %v1608
      %3122 = vmatpush1.msra.mxu0 %v1607
      %3123 = vmatprep.subr.mxu0 %v1612
      %3124 = vmatpush1.msra.mxu0 %v1611
      %3125 = vmatprep.subr.mxu0 %v1616
      %3126 = vmatpush1.msra.mxu0 %v1615
      %3127 = vmatprep.subr.mxu0 %v1620
      %3128 = vmatpush1.msra.mxu0 %v1619
      %3129 = vmatprep.subr.mxu0 %v1624
      %3130 = vmatpush1.msra.mxu0 %v1623
      %3131 = vmatprep.subr.mxu0 %v1628
      %3132 = vmatpush1.msra.mxu0 %v1627
      %3133 = vmatprep.subr.mxu0 %v1632
      %3134 = vmatpush1.msra.mxu0 %v1631
      %3135 = vmatprep.subr.mxu0 %v1636
      %3136 = vmatpush1.msra.mxu0 %v1635
      %3137 = vmatprep.subr.mxu0 %v1640
      %3138 = vmatpush1.msra.mxu0 %v1639
      %3139 = vmatprep.mubr.f32.mxu0 %v192
      %3140 = vmatmul.mubr.f32.gmra.mrb[0].mxu0 %v191
      %v3141 = vpop.f32.mrb[0].mxu0
      %v3142 = vadd.f32 %v3065, %v3141
      %v3143 = vpop.f32.mrb[0].mxu0
      %v3144 = vadd.f32 %v3067, %v3143
      %3145 = vmatprep.mubr.f32.mxu0 %v224
      %3146 = vmatmul.mubr.f32.gmra.mrb[0].mxu0 %v223
      %v3147 = vpop.f32.mrb[0].mxu0
      %v3148 = vadd.f32 %v3071, %v3147
      %v3149 = vpop.f32.mrb[0].mxu0
      %v3150 = vadd.f32 %v3073, %v3149
      %3151 = vdwg.mxu0
      %3152 = vmatprep.subr.mxu0 %v1644
      %3153 = vmatpush1.msra.mxu0 %v1643
      %3154 = vmatprep.subr.mxu0 %v1648
      %3155 = vmatpush1.msra.mxu0 %v1647
      %3156 = vmatprep.subr.mxu0 %v1652
      %3157 = vmatpush1.msra.mxu0 %v1651
      %3158 = vmatprep.subr.mxu0 %v1656
      %3159 = vmatpush1.msra.mxu0 %v1655
      %3160 = vmatprep.subr.mxu0 %v1660
      %3161 = vmatpush1.msra.mxu0 %v1659
      %3162 = vmatprep.subr.mxu0 %v1664
      %3163 = vmatpush1.msra.mxu0 %v1663
      %3164 = vmatprep.subr.mxu0 %v1668
      %3165 = vmatpush1.msra.mxu0 %v1667
      %3166 = vmatprep.subr.mxu0 %v1672
      %3167 = vmatpush1.msra.mxu0 %v1671
      %3168 = vmatprep.subr.mxu0 %v1676
      %3169 = vmatpush1.msra.mxu0 %v1675
      %3170 = vmatprep.subr.mxu0 %v1680
      %3171 = vmatpush1.msra.mxu0 %v1679
      %3172 = vmatprep.subr.mxu0 %v1684
      %3173 = vmatpush1.msra.mxu0 %v1683
      %3174 = vmatprep.subr.mxu0 %v1688
      %3175 = vmatpush1.msra.mxu0 %v1687
      %3176 = vmatprep.subr.mxu0 %v1692
      %3177 = vmatpush1.msra.mxu0 %v1691
      %3178 = vmatprep.subr.mxu0 %v1696
      %3179 = vmatpush1.msra.mxu0 %v1695
      %3180 = vmatprep.subr.mxu0 %v1700
      %3181 = vmatpush1.msra.mxu0 %v1699
      %3182 = vmatprep.subr.mxu0 %v1704
      %3183 = vmatpush1.msra.mxu0 %v1703
      %3184 = vmatprep.subr.mxu0 %v1708
      %3185 = vmatpush1.msra.mxu0 %v1707
      %3186 = vmatprep.subr.mxu0 %v1712
      %3187 = vmatpush1.msra.mxu0 %v1711
      %3188 = vmatprep.subr.mxu0 %v1716
      %3189 = vmatpush1.msra.mxu0 %v1715
      %3190 = vmatprep.subr.mxu0 %v1720
      %3191 = vmatpush1.msra.mxu0 %v1719
      %3192 = vmatprep.subr.mxu0 %v1724
      %3193 = vmatpush1.msra.mxu0 %v1723
      %3194 = vmatprep.subr.mxu0 %v1728
      %3195 = vmatpush1.msra.mxu0 %v1727
      %3196 = vmatprep.subr.mxu0 %v1732
      %3197 = vmatpush1.msra.mxu0 %v1731
      %3198 = vmatprep.subr.mxu0 %v1736
      %3199 = vmatpush1.msra.mxu0 %v1735
      %3200 = vmatprep.subr.mxu0 %v1740
      %3201 = vmatpush1.msra.mxu0 %v1739
      %3202 = vmatprep.subr.mxu0 %v1744
      %3203 = vmatpush1.msra.mxu0 %v1743
      %3204 = vmatprep.subr.mxu0 %v1748
      %3205 = vmatpush1.msra.mxu0 %v1747
      %3206 = vmatprep.subr.mxu0 %v1752
      %3207 = vmatpush1.msra.mxu0 %v1751
      %3208 = vmatprep.subr.mxu0 %v1756
      %3209 = vmatpush1.msra.mxu0 %v1755
      %3210 = vmatprep.subr.mxu0 %v1760
      %3211 = vmatpush1.msra.mxu0 %v1759
      %3212 = vmatprep.subr.mxu0 %v1764
      %3213 = vmatpush1.msra.mxu0 %v1763
      %3214 = vmatprep.subr.mxu0 %v1768
      %3215 = vmatpush1.msra.mxu0 %v1767
      %3216 = vmatprep.mubr.f32.mxu0 %v194
      %3217 = vmatmul.mubr.f32.gmra.mrb[0].mxu0 %v193
      %v3218 = vpop.f32.mrb[0].mxu0
      %v3219 = vadd.f32 %v3142, %v3218
      %v3220 = vpop.f32.mrb[0].mxu0
      %v3221 = vadd.f32 %v3144, %v3220
      %3222 = vmatprep.mubr.f32.mxu0 %v226
      %3223 = vmatmul.mubr.f32.gmra.mrb[0].mxu0 %v225
      %v3224 = vpop.f32.mrb[0].mxu0
      %v3225 = vadd.f32 %v3148, %v3224
      %v3226 = vpop.f32.mrb[0].mxu0
      %v3227 = vadd.f32 %v3150, %v3226
      %3228 = vdwg.mxu0
      %3229 = vmatprep.subr.mxu0 %v1772
      %3230 = vmatpush1.msra.mxu0 %v1771
      %3231 = vmatprep.subr.mxu0 %v1776
      %3232 = vmatpush1.msra.mxu0 %v1775
      %3233 = vmatprep.subr.mxu0 %v1780
      %3234 = vmatpush1.msra.mxu0 %v1779
      %3235 = vmatprep.subr.mxu0 %v1784
      %3236 = vmatpush1.msra.mxu0 %v1783
      %3237 = vmatprep.subr.mxu0 %v1788
      %3238 = vmatpush1.msra.mxu0 %v1787
      %3239 = vmatprep.subr.mxu0 %v1792
      %3240 = vmatpush1.msra.mxu0 %v1791
      %3241 = vmatprep.subr.mxu0 %v1796
      %3242 = vmatpush1.msra.mxu0 %v1795
      %3243 = vmatprep.subr.mxu0 %v1800
      %3244 = vmatpush1.msra.mxu0 %v1799
      %3245 = vmatprep.subr.mxu0 %v1804
      %3246 = vmatpush1.msra.mxu0 %v1803
      %3247 = vmatprep.subr.mxu0 %v1808
      %3248 = vmatpush1.msra.mxu0 %v1807
      %3249 = vmatprep.subr.mxu0 %v1812
      %3250 = vmatpush1.msra.mxu0 %v1811
      %3251 = vmatprep.subr.mxu0 %v1816
      %3252 = vmatpush1.msra.mxu0 %v1815
      %3253 = vmatprep.subr.mxu0 %v1820
      %3254 = vmatpush1.msra.mxu0 %v1819
      %3255 = vmatprep.subr.mxu0 %v1824
      %3256 = vmatpush1.msra.mxu0 %v1823
      %3257 = vmatprep.subr.mxu0 %v1828
      %3258 = vmatpush1.msra.mxu0 %v1827
      %3259 = vmatprep.subr.mxu0 %v1832
      %3260 = vmatpush1.msra.mxu0 %v1831
      %3261 = vmatprep.subr.mxu0 %v1836
      %3262 = vmatpush1.msra.mxu0 %v1835
      %3263 = vmatprep.subr.mxu0 %v1840
      %3264 = vmatpush1.msra.mxu0 %v1839
      %3265 = vmatprep.subr.mxu0 %v1844
      %3266 = vmatpush1.msra.mxu0 %v1843
      %3267 = vmatprep.subr.mxu0 %v1848
      %3268 = vmatpush1.msra.mxu0 %v1847
      %3269 = vmatprep.subr.mxu0 %v1852
      %3270 = vmatpush1.msra.mxu0 %v1851
      %3271 = vmatprep.subr.mxu0 %v1856
      %3272 = vmatpush1.msra.mxu0 %v1855
      %3273 = vmatprep.subr.mxu0 %v1860
      %3274 = vmatpush1.msra.mxu0 %v1859
      %3275 = vmatprep.subr.mxu0 %v1864
      %3276 = vmatpush1.msra.mxu0 %v1863
      %3277 = vmatprep.subr.mxu0 %v1868
      %3278 = vmatpush1.msra.mxu0 %v1867
      %3279 = vmatprep.subr.mxu0 %v1872
      %3280 = vmatpush1.msra.mxu0 %v1871
      %3281 = vmatprep.subr.mxu0 %v1876
      %3282 = vmatpush1.msra.mxu0 %v1875
      %3283 = vmatprep.subr.mxu0 %v1880
      %3284 = vmatpush1.msra.mxu0 %v1879
      %3285 = vmatprep.subr.mxu0 %v1884
      %3286 = vmatpush1.msra.mxu0 %v1883
      %3287 = vmatprep.subr.mxu0 %v1888
      %3288 = vmatpush1.msra.mxu0 %v1887
      %3289 = vmatprep.subr.mxu0 %v1892
      %3290 = vmatpush1.msra.mxu0 %v1891
      %3291 = vmatprep.subr.mxu0 %v1896
      %3292 = vmatpush1.msra.mxu0 %v1895
      %3293 = vmatprep.mubr.f32.mxu0 %v196
      %3294 = vmatmul.mubr.f32.gmra.mrb[0].mxu0 %v195
      %v3295 = vpop.f32.mrb[0].mxu0
      %v3296 = vadd.f32 %v3219, %v3295
      %v3297 = vpop.f32.mrb[0].mxu0
      %v3298 = vadd.f32 %v3221, %v3297
      %3299 = vmatprep.mubr.f32.mxu0 %v228
      %3300 = vmatmul.mubr.f32.gmra.mrb[0].mxu0 %v227
      %v3301 = vpop.f32.mrb[0].mxu0
      %v3302 = vadd.f32 %v3225, %v3301
      %v3303 = vpop.f32.mrb[0].mxu0
      %v3304 = vadd.f32 %v3227, %v3303
      %3305 = vdwg.mxu0
      %3306 = vmatprep.subr.mxu0 %v1900
      %3307 = vmatpush1.msra.mxu0 %v1899
      %3308 = vmatprep.subr.mxu0 %v1904
      %3309 = vmatpush1.msra.mxu0 %v1903
      %3310 = vmatprep.subr.mxu0 %v1908
      %3311 = vmatpush1.msra.mxu0 %v1907
      %3312 = vmatprep.subr.mxu0 %v1912
      %3313 = vmatpush1.msra.mxu0 %v1911
      %3314 = vmatprep.subr.mxu0 %v1916
      %3315 = vmatpush1.msra.mxu0 %v1915
      %3316 = vmatprep.subr.mxu0 %v1920
      %3317 = vmatpush1.msra.mxu0 %v1919
      %3318 = vmatprep.subr.mxu0 %v1924
      %3319 = vmatpush1.msra.mxu0 %v1923
      %3320 = vmatprep.subr.mxu0 %v1928
      %3321 = vmatpush1.msra.mxu0 %v1927
      %3322 = vmatprep.subr.mxu0 %v1932
      %3323 = vmatpush1.msra.mxu0 %v1931
      %3324 = vmatprep.subr.mxu0 %v1936
      %3325 = vmatpush1.msra.mxu0 %v1935
      %3326 = vmatprep.subr.mxu0 %v1940
      %3327 = vmatpush1.msra.mxu0 %v1939
      %3328 = vmatprep.subr.mxu0 %v1944
      %3329 = vmatpush1.msra.mxu0 %v1943
      %3330 = vmatprep.subr.mxu0 %v1948
      %3331 = vmatpush1.msra.mxu0 %v1947
      %3332 = vmatprep.subr.mxu0 %v1952
      %3333 = vmatpush1.msra.mxu0 %v1951
      %3334 = vmatprep.subr.mxu0 %v1956
      %3335 = vmatpush1.msra.mxu0 %v1955
      %3336 = vmatprep.subr.mxu0 %v1960
      %3337 = vmatpush1.msra.mxu0 %v1959
      %3338 = vmatprep.subr.mxu0 %v1964
      %3339 = vmatpush1.msra.mxu0 %v1963
      %3340 = vmatprep.subr.mxu0 %v1968
      %3341 = vmatpush1.msra.mxu0 %v1967
      %3342 = vmatprep.subr.mxu0 %v1972
      %3343 = vmatpush1.msra.mxu0 %v1971
      %3344 = vmatprep.subr.mxu0 %v1976
      %3345 = vmatpush1.msra.mxu0 %v1975
      %3346 = vmatprep.subr.mxu0 %v1980
      %3347 = vmatpush1.msra.mxu0 %v1979
      %3348 = vmatprep.subr.mxu0 %v1984
      %3349 = vmatpush1.msra.mxu0 %v1983
      %3350 = vmatprep.subr.mxu0 %v1988
      %3351 = vmatpush1.msra.mxu0 %v1987
      %3352 = vmatprep.subr.mxu0 %v1992
      %3353 = vmatpush1.msra.mxu0 %v1991
      %3354 = vmatprep.subr.mxu0 %v1996
      %3355 = vmatpush1.msra.mxu0 %v1995
      %3356 = vmatprep.subr.mxu0 %v2000
      %3357 = vmatpush1.msra.mxu0 %v1999
      %3358 = vmatprep.subr.mxu0 %v2004
      %3359 = vmatpush1.msra.mxu0 %v2003
      %3360 = vmatprep.subr.mxu0 %v2008
      %3361 = vmatpush1.msra.mxu0 %v2007
      %3362 = vmatprep.subr.mxu0 %v2012
      %3363 = vmatpush1.msra.mxu0 %v2011
      %3364 = vmatprep.subr.mxu0 %v2016
      %3365 = vmatpush1.msra.mxu0 %v2015
      %3366 = vmatprep.subr.mxu0 %v2020
      %3367 = vmatpush1.msra.mxu0 %v2019
      %3368 = vmatprep.subr.mxu0 %v2024
      %3369 = vmatpush1.msra.mxu0 %v2023
      %3370 = vmatprep.mubr.f32.mxu0 %v198
      %3371 = vmatmul.mubr.f32.gmra.mrb[0].mxu0 %v197
      %v3372 = vpop.f32.mrb[0].mxu0
      %v3373 = vadd.f32 %v3296, %v3372
      %v3374 = vpop.f32.mrb[0].mxu0
      %v3375 = vadd.f32 %v3298, %v3374
      %3376 = vmatprep.mubr.f32.mxu0 %v230
      %3377 = vmatmul.mubr.f32.gmra.mrb[0].mxu0 %v229
      %v3378 = vpop.f32.mrb[0].mxu0
      %v3379 = vadd.f32 %v3302, %v3378
      %v3380 = vpop.f32.mrb[0].mxu0
      %v3381 = vadd.f32 %v3304, %v3380
      %3382 = vdwg.mxu0
      %3383 = vmatprep.subr.mxu0 %v2028
      %3384 = vmatpush1.msra.mxu0 %v2027
      %3385 = vmatprep.subr.mxu0 %v2032
      %3386 = vmatpush1.msra.mxu0 %v2031
      %3387 = vmatprep.subr.mxu0 %v2036
      %3388 = vmatpush1.msra.mxu0 %v2035
      %3389 = vmatprep.subr.mxu0 %v2040
      %3390 = vmatpush1.msra.mxu0 %v2039
      %3391 = vmatprep.subr.mxu0 %v2044
      %3392 = vmatpush1.msra.mxu0 %v2043
      %3393 = vmatprep.subr.mxu0 %v2048
      %3394 = vmatpush1.msra.mxu0 %v2047
      %3395 = vmatprep.subr.mxu0 %v2052
      %3396 = vmatpush1.msra.mxu0 %v2051
      %3397 = vmatprep.subr.mxu0 %v2056
      %3398 = vmatpush1.msra.mxu0 %v2055
      %3399 = vmatprep.subr.mxu0 %v2060
      %3400 = vmatpush1.msra.mxu0 %v2059
      %3401 = vmatprep.subr.mxu0 %v2064
      %3402 = vmatpush1.msra.mxu0 %v2063
      %3403 = vmatprep.subr.mxu0 %v2068
      %3404 = vmatpush1.msra.mxu0 %v2067
      %3405 = vmatprep.subr.mxu0 %v2072
      %3406 = vmatpush1.msra.mxu0 %v2071
      %3407 = vmatprep.subr.mxu0 %v2076
      %3408 = vmatpush1.msra.mxu0 %v2075
      %3409 = vmatprep.subr.mxu0 %v2080
      %3410 = vmatpush1.msra.mxu0 %v2079
      %3411 = vmatprep.subr.mxu0 %v2084
      %3412 = vmatpush1.msra.mxu0 %v2083
      %3413 = vmatprep.subr.mxu0 %v2088
      %3414 = vmatpush1.msra.mxu0 %v2087
      %3415 = vmatprep.subr.mxu0 %v2092
      %3416 = vmatpush1.msra.mxu0 %v2091
      %3417 = vmatprep.subr.mxu0 %v2096
      %3418 = vmatpush1.msra.mxu0 %v2095
      %3419 = vmatprep.subr.mxu0 %v2100
      %3420 = vmatpush1.msra.mxu0 %v2099
      %3421 = vmatprep.subr.mxu0 %v2104
      %3422 = vmatpush1.msra.mxu0 %v2103
      %3423 = vmatprep.subr.mxu0 %v2108
      %3424 = vmatpush1.msra.mxu0 %v2107
      %3425 = vmatprep.subr.mxu0 %v2112
      %3426 = vmatpush1.msra.mxu0 %v2111
      %3427 = vmatprep.subr.mxu0 %v2116
      %3428 = vmatpush1.msra.mxu0 %v2115
      %3429 = vmatprep.subr.mxu0 %v2120
      %3430 = vmatpush1.msra.mxu0 %v2119
      %3431 = vmatprep.subr.mxu0 %v2124
      %3432 = vmatpush1.msra.mxu0 %v2123
      %3433 = vmatprep.subr.mxu0 %v2128
      %3434 = vmatpush1.msra.mxu0 %v2127
      %3435 = vmatprep.subr.mxu0 %v2132
      %3436 = vmatpush1.msra.mxu0 %v2131
      %3437 = vmatprep.subr.mxu0 %v2136
      %3438 = vmatpush1.msra.mxu0 %v2135
      %3439 = vmatprep.subr.mxu0 %v2140
      %3440 = vmatpush1.msra.mxu0 %v2139
      %3441 = vmatprep.subr.mxu0 %v2144
      %3442 = vmatpush1.msra.mxu0 %v2143
      %3443 = vmatprep.subr.mxu0 %v2148
      %3444 = vmatpush1.msra.mxu0 %v2147
      %3445 = vmatprep.subr.mxu0 %v2152
      %3446 = vmatpush1.msra.mxu0 %v2151
      %3447 = vmatprep.mubr.f32.mxu0 %v200
      %3448 = vmatmul.mubr.f32.gmra.mrb[0].mxu0 %v199
      %v3449 = vpop.f32.mrb[0].mxu0
      %v3450 = vadd.f32 %v3373, %v3449
      %v3451 = vpop.f32.mrb[0].mxu0
      %v3452 = vadd.f32 %v3375, %v3451
      %3453 = vmatprep.mubr.f32.mxu0 %v232
      %3454 = vmatmul.mubr.f32.gmra.mrb[0].mxu0 %v231
      %v3455 = vpop.f32.mrb[0].mxu0
      %v3456 = vadd.f32 %v3379, %v3455
      %v3457 = vpop.f32.mrb[0].mxu0
      %v3458 = vadd.f32 %v3381, %v3457
      %3459 = vdwg.mxu0
      %3460 = vmatprep.subr.mxu0 %v2156
      %3461 = vmatpush1.msra.mxu0 %v2155
      %3462 = vmatprep.subr.mxu0 %v2160
      %3463 = vmatpush1.msra.mxu0 %v2159
      %3464 = vmatprep.subr.mxu0 %v2164
      %3465 = vmatpush1.msra.mxu0 %v2163
      %3466 = vmatprep.subr.mxu0 %v2168
      %3467 = vmatpush1.msra.mxu0 %v2167
      %3468 = vmatprep.subr.mxu0 %v2172
      %3469 = vmatpush1.msra.mxu0 %v2171
      %3470 = vmatprep.subr.mxu0 %v2176
      %3471 = vmatpush1.msra.mxu0 %v2175
      %3472 = vmatprep.subr.mxu0 %v2180
      %3473 = vmatpush1.msra.mxu0 %v2179
      %3474 = vmatprep.subr.mxu0 %v2184
      %3475 = vmatpush1.msra.mxu0 %v2183
      %3476 = vmatprep.subr.mxu0 %v2188
      %3477 = vmatpush1.msra.mxu0 %v2187
      %3478 = vmatprep.subr.mxu0 %v2192
      %3479 = vmatpush1.msra.mxu0 %v2191
      %3480 = vmatprep.subr.mxu0 %v2196
      %3481 = vmatpush1.msra.mxu0 %v2195
      %3482 = vmatprep.subr.mxu0 %v2200
      %3483 = vmatpush1.msra.mxu0 %v2199
      %3484 = vmatprep.subr.mxu0 %v2204
      %3485 = vmatpush1.msra.mxu0 %v2203
      %3486 = vmatprep.subr.mxu0 %v2208
      %3487 = vmatpush1.msra.mxu0 %v2207
      %3488 = vmatprep.subr.mxu0 %v2212
      %3489 = vmatpush1.msra.mxu0 %v2211
      %3490 = vmatprep.subr.mxu0 %v2216
      %3491 = vmatpush1.msra.mxu0 %v2215
      %3492 = vmatprep.subr.mxu0 %v2220
      %3493 = vmatpush1.msra.mxu0 %v2219
      %3494 = vmatprep.subr.mxu0 %v2224
      %3495 = vmatpush1.msra.mxu0 %v2223
      %3496 = vmatprep.subr.mxu0 %v2228
      %3497 = vmatpush1.msra.mxu0 %v2227
      %3498 = vmatprep.subr.mxu0 %v2232
      %3499 = vmatpush1.msra.mxu0 %v2231
      %3500 = vmatprep.subr.mxu0 %v2236
      %3501 = vmatpush1.msra.mxu0 %v2235
      %3502 = vmatprep.subr.mxu0 %v2240
      %3503 = vmatpush1.msra.mxu0 %v2239
      %3504 = vmatprep.subr.mxu0 %v2244
      %3505 = vmatpush1.msra.mxu0 %v2243
      %3506 = vmatprep.subr.mxu0 %v2248
      %3507 = vmatpush1.msra.mxu0 %v2247
      %3508 = vmatprep.subr.mxu0 %v2252
      %3509 = vmatpush1.msra.mxu0 %v2251
      %3510 = vmatprep.subr.mxu0 %v2256
      %3511 = vmatpush1.msra.mxu0 %v2255
      %3512 = vmatprep.subr.mxu0 %v2260
      %3513 = vmatpush1.msra.mxu0 %v2259
      %3514 = vmatprep.subr.mxu0 %v2264
      %3515 = vmatpush1.msra.mxu0 %v2263
      %3516 = vmatprep.subr.mxu0 %v2268
      %3517 = vmatpush1.msra.mxu0 %v2267
      %3518 = vmatprep.subr.mxu0 %v2272
      %3519 = vmatpush1.msra.mxu0 %v2271
      %3520 = vmatprep.subr.mxu0 %v2276
      %3521 = vmatpush1.msra.mxu0 %v2275
      %3522 = vmatprep.subr.mxu0 %v2280
      %3523 = vmatpush1.msra.mxu0 %v2279
      %3524 = vmatprep.mubr.f32.mxu0 %v202
      %3525 = vmatmul.mubr.f32.gmra.mrb[0].mxu0 %v201
      %v3526 = vpop.f32.mrb[0].mxu0
      %v3527 = vadd.f32 %v3450, %v3526
      %v3528 = vpop.f32.mrb[0].mxu0
      %v3529 = vadd.f32 %v3452, %v3528
      %3530 = vmatprep.mubr.f32.mxu0 %v234
      %3531 = vmatmul.mubr.f32.gmra.mrb[0].mxu0 %v233
      %v3532 = vpop.f32.mrb[0].mxu0
      %v3533 = vadd.f32 %v3456, %v3532
      %v3534 = vpop.f32.mrb[0].mxu0
      %v3535 = vadd.f32 %v3458, %v3534
      %3536 = vdwg.mxu0
      %3537 = vmatprep.subr.mxu0 %v238
      %3538 = vmatpush1.msra.mxu0 %v237
      %3539 = vmatprep.subr.mxu0 %v242
      %3540 = vmatpush1.msra.mxu0 %v241
      %3541 = vmatprep.subr.mxu0 %v246
      %3542 = vmatpush1.msra.mxu0 %v245
      %3543 = vmatprep.subr.mxu0 %v250
      %3544 = vmatpush1.msra.mxu0 %v249
      %3545 = vmatprep.subr.mxu0 %v254
      %3546 = vmatpush1.msra.mxu0 %v253
      %3547 = vmatprep.subr.mxu0 %v258
      %3548 = vmatpush1.msra.mxu0 %v257
      %3549 = vmatprep.subr.mxu0 %v262
      %3550 = vmatpush1.msra.mxu0 %v261
      %3551 = vmatprep.subr.mxu0 %v266
      %3552 = vmatpush1.msra.mxu0 %v265
      %3553 = vmatprep.subr.mxu0 %v270
      %3554 = vmatpush1.msra.mxu0 %v269
      %3555 = vmatprep.subr.mxu0 %v274
      %3556 = vmatpush1.msra.mxu0 %v273
      %3557 = vmatprep.subr.mxu0 %v278
      %3558 = vmatpush1.msra.mxu0 %v277
      %3559 = vmatprep.subr.mxu0 %v282
      %3560 = vmatpush1.msra.mxu0 %v281
      %3561 = vmatprep.subr.mxu0 %v286
      %3562 = vmatpush1.msra.mxu0 %v285
      %3563 = vmatprep.subr.mxu0 %v290
      %3564 = vmatpush1.msra.mxu0 %v289
      %3565 = vmatprep.subr.mxu0 %v294
      %3566 = vmatpush1.msra.mxu0 %v293
      %3567 = vmatprep.subr.mxu0 %v298
      %3568 = vmatpush1.msra.mxu0 %v297
      %3569 = vmatprep.subr.mxu0 %v302
      %3570 = vmatpush1.msra.mxu0 %v301
      %3571 = vmatprep.subr.mxu0 %v306
      %3572 = vmatpush1.msra.mxu0 %v305
      %3573 = vmatprep.subr.mxu0 %v310
      %3574 = vmatpush1.msra.mxu0 %v309
      %3575 = vmatprep.subr.mxu0 %v314
      %3576 = vmatpush1.msra.mxu0 %v313
      %3577 = vmatprep.subr.mxu0 %v318
      %3578 = vmatpush1.msra.mxu0 %v317
      %3579 = vmatprep.subr.mxu0 %v322
      %3580 = vmatpush1.msra.mxu0 %v321
      %3581 = vmatprep.subr.mxu0 %v326
      %3582 = vmatpush1.msra.mxu0 %v325
      %3583 = vmatprep.subr.mxu0 %v330
      %3584 = vmatpush1.msra.mxu0 %v329
      %3585 = vmatprep.subr.mxu0 %v334
      %3586 = vmatpush1.msra.mxu0 %v333
      %3587 = vmatprep.subr.mxu0 %v338
      %3588 = vmatpush1.msra.mxu0 %v337
      %3589 = vmatprep.subr.mxu0 %v342
      %3590 = vmatpush1.msra.mxu0 %v341
      %3591 = vmatprep.subr.mxu0 %v346
      %3592 = vmatpush1.msra.mxu0 %v345
      %3593 = vmatprep.subr.mxu0 %v350
      %3594 = vmatpush1.msra.mxu0 %v349
      %3595 = vmatprep.subr.mxu0 %v354
      %3596 = vmatpush1.msra.mxu0 %v353
      %3597 = vmatprep.subr.mxu0 %v358
      %3598 = vmatpush1.msra.mxu0 %v357
      %3599 = vmatprep.subr.mxu0 %v362
      %3600 = vmatpush1.msra.mxu0 %v361
      %3601 = vmatprep.mubr.f32.mxu0 %v172
      %3602 = vmatmul.mubr.f32.gmra.mrb[0].mxu0 %v171
      %v3603 = vpop.f32.mrb[0].mxu0
      %v3604 = vadd.f32 %v2296, %v3603
      %v3605 = vpop.f32.mrb[0].mxu0
      %v3606 = vadd.f32 %v2300, %v3605
      %3607 = vmatprep.mubr.f32.mxu0 %v204
      %3608 = vmatmul.mubr.f32.gmra.mrb[0].mxu0 %v203
      %v3609 = vpop.f32.mrb[0].mxu0
      %v3610 = vadd.f32 %v2296, %v3609
      %v3611 = vpop.f32.mrb[0].mxu0
      %v3612 = vadd.f32 %v2300, %v3611
      %3613 = vdwg.mxu0
      %3614 = vmatprep.subr.mxu0 %v366
      %3615 = vmatpush1.msra.mxu0 %v365
      %3616 = vmatprep.subr.mxu0 %v370
      %3617 = vmatpush1.msra.mxu0 %v369
      %3618 = vmatprep.subr.mxu0 %v374
      %3619 = vmatpush1.msra.mxu0 %v373
      %3620 = vmatprep.subr.mxu0 %v378
      %3621 = vmatpush1.msra.mxu0 %v377
      %3622 = vmatprep.subr.mxu0 %v382
      %3623 = vmatpush1.msra.mxu0 %v381
      %3624 = vmatprep.subr.mxu0 %v386
      %3625 = vmatpush1.msra.mxu0 %v385
      %3626 = vmatprep.subr.mxu0 %v390
      %3627 = vmatpush1.msra.mxu0 %v389
      %3628 = vmatprep.subr.mxu0 %v394
      %3629 = vmatpush1.msra.mxu0 %v393
      %3630 = vmatprep.subr.mxu0 %v398
      %3631 = vmatpush1.msra.mxu0 %v397
      %3632 = vmatprep.subr.mxu0 %v402
      %3633 = vmatpush1.msra.mxu0 %v401
      %3634 = vmatprep.subr.mxu0 %v406
      %3635 = vmatpush1.msra.mxu0 %v405
      %3636 = vmatprep.subr.mxu0 %v410
      %3637 = vmatpush1.msra.mxu0 %v409
      %3638 = vmatprep.subr.mxu0 %v414
      %3639 = vmatpush1.msra.mxu0 %v413
      %3640 = vmatprep.subr.mxu0 %v418
      %3641 = vmatpush1.msra.mxu0 %v417
      %3642 = vmatprep.subr.mxu0 %v422
      %3643 = vmatpush1.msra.mxu0 %v421
      %3644 = vmatprep.subr.mxu0 %v426
      %3645 = vmatpush1.msra.mxu0 %v425
      %3646 = vmatprep.subr.mxu0 %v430
      %3647 = vmatpush1.msra.mxu0 %v429
      %3648 = vmatprep.subr.mxu0 %v434
      %3649 = vmatpush1.msra.mxu0 %v433
      %3650 = vmatprep.subr.mxu0 %v438
      %3651 = vmatpush1.msra.mxu0 %v437
      %3652 = vmatprep.subr.mxu0 %v442
      %3653 = vmatpush1.msra.mxu0 %v441
      %3654 = vmatprep.subr.mxu0 %v446
      %3655 = vmatpush1.msra.mxu0 %v445
      %3656 = vmatprep.subr.mxu0 %v450
      %3657 = vmatpush1.msra.mxu0 %v449
      %3658 = vmatprep.subr.mxu0 %v454
      %3659 = vmatpush1.msra.mxu0 %v453
      %3660 = vmatprep.subr.mxu0 %v458
      %3661 = vmatpush1.msra.mxu0 %v457
      %3662 = vmatprep.subr.mxu0 %v462
      %3663 = vmatpush1.msra.mxu0 %v461
      %3664 = vmatprep.subr.mxu0 %v466
      %3665 = vmatpush1.msra.mxu0 %v465
      %3666 = vmatprep.subr.mxu0 %v470
      %3667 = vmatpush1.msra.mxu0 %v469
      %3668 = vmatprep.subr.mxu0 %v474
      %3669 = vmatpush1.msra.mxu0 %v473
      %3670 = vmatprep.subr.mxu0 %v478
      %3671 = vmatpush1.msra.mxu0 %v477
      %3672 = vmatprep.subr.mxu0 %v482
      %3673 = vmatpush1.msra.mxu0 %v481
      %3674 = vmatprep.subr.mxu0 %v486
      %3675 = vmatpush1.msra.mxu0 %v485
      %3676 = vmatprep.subr.mxu0 %v490
      %3677 = vmatpush1.msra.mxu0 %v489
      %3678 = vmatprep.mubr.f32.mxu0 %v174
      %3679 = vmatmul.mubr.f32.gmra.mrb[0].mxu0 %v173
      %v3680 = vpop.f32.mrb[0].mxu0
      %v3681 = vadd.f32 %v3604, %v3680
      %v3682 = vpop.f32.mrb[0].mxu0
      %v3683 = vadd.f32 %v3606, %v3682
      %3684 = vmatprep.mubr.f32.mxu0 %v206
      %3685 = vmatmul.mubr.f32.gmra.mrb[0].mxu0 %v205
      %v3686 = vpop.f32.mrb[0].mxu0
      %v3687 = vadd.f32 %v3610, %v3686
      %v3688 = vpop.f32.mrb[0].mxu0
      %v3689 = vadd.f32 %v3612, %v3688
      %3690 = vdwg.mxu0
      %3691 = vmatprep.subr.mxu0 %v494
      %3692 = vmatpush1.msra.mxu0 %v493
      %3693 = vmatprep.subr.mxu0 %v498
      %3694 = vmatpush1.msra.mxu0 %v497
      %3695 = vmatprep.subr.mxu0 %v502
      %3696 = vmatpush1.msra.mxu0 %v501
      %3697 = vmatprep.subr.mxu0 %v506
      %3698 = vmatpush1.msra.mxu0 %v505
      %3699 = vmatprep.subr.mxu0 %v510
      %3700 = vmatpush1.msra.mxu0 %v509
      %3701 = vmatprep.subr.mxu0 %v514
      %3702 = vmatpush1.msra.mxu0 %v513
      %3703 = vmatprep.subr.mxu0 %v518
      %3704 = vmatpush1.msra.mxu0 %v517
      %3705 = vmatprep.subr.mxu0 %v522
      %3706 = vmatpush1.msra.mxu0 %v521
      %3707 = vmatprep.subr.mxu0 %v526
      %3708 = vmatpush1.msra.mxu0 %v525
      %3709 = vmatprep.subr.mxu0 %v530
      %3710 = vmatpush1.msra.mxu0 %v529
      %3711 = vmatprep.subr.mxu0 %v534
      %3712 = vmatpush1.msra.mxu0 %v533
      %3713 = vmatprep.subr.mxu0 %v538
      %3714 = vmatpush1.msra.mxu0 %v537
      %3715 = vmatprep.subr.mxu0 %v542
      %3716 = vmatpush1.msra.mxu0 %v541
      %3717 = vmatprep.subr.mxu0 %v546
      %3718 = vmatpush1.msra.mxu0 %v545
      %3719 = vmatprep.subr.mxu0 %v550
      %3720 = vmatpush1.msra.mxu0 %v549
      %3721 = vmatprep.subr.mxu0 %v554
      %3722 = vmatpush1.msra.mxu0 %v553
      %3723 = vmatprep.subr.mxu0 %v558
      %3724 = vmatpush1.msra.mxu0 %v557
      %3725 = vmatprep.subr.mxu0 %v562
      %3726 = vmatpush1.msra.mxu0 %v561
      %3727 = vmatprep.subr.mxu0 %v566
      %3728 = vmatpush1.msra.mxu0 %v565
      %3729 = vmatprep.subr.mxu0 %v570
      %3730 = vmatpush1.msra.mxu0 %v569
      %3731 = vmatprep.subr.mxu0 %v574
      %3732 = vmatpush1.msra.mxu0 %v573
      %3733 = vmatprep.subr.mxu0 %v578
      %3734 = vmatpush1.msra.mxu0 %v577
      %3735 = vmatprep.subr.mxu0 %v582
      %3736 = vmatpush1.msra.mxu0 %v581
      %3737 = vmatprep.subr.mxu0 %v586
      %3738 = vmatpush1.msra.mxu0 %v585
      %3739 = vmatprep.subr.mxu0 %v590
      %3740 = vmatpush1.msra.mxu0 %v589
      %3741 = vmatprep.subr.mxu0 %v594
      %3742 = vmatpush1.msra.mxu0 %v593
      %3743 = vmatprep.subr.mxu0 %v598
      %3744 = vmatpush1.msra.mxu0 %v597
      %3745 = vmatprep.subr.mxu0 %v602
      %3746 = vmatpush1.msra.mxu0 %v601
      %3747 = vmatprep.subr.mxu0 %v606
      %3748 = vmatpush1.msra.mxu0 %v605
      %3749 = vmatprep.subr.mxu0 %v610
      %3750 = vmatpush1.msra.mxu0 %v609
      %3751 = vmatprep.subr.mxu0 %v614
      %3752 = vmatpush1.msra.mxu0 %v613
      %3753 = vmatprep.subr.mxu0 %v618
      %3754 = vmatpush1.msra.mxu0 %v617
      %3755 = vmatprep.mubr.f32.mxu0 %v176
      %3756 = vmatmul.mubr.f32.gmra.mrb[0].mxu0 %v175
      %v3757 = vpop.f32.mrb[0].mxu0
      %v3758 = vadd.f32 %v3681, %v3757
      %v3759 = vpop.f32.mrb[0].mxu0
      %v3760 = vadd.f32 %v3683, %v3759
      %3761 = vmatprep.mubr.f32.mxu0 %v208
      %3762 = vmatmul.mubr.f32.gmra.mrb[0].mxu0 %v207
      %v3763 = vpop.f32.mrb[0].mxu0
      %v3764 = vadd.f32 %v3687, %v3763
      %v3765 = vpop.f32.mrb[0].mxu0
      %v3766 = vadd.f32 %v3689, %v3765
      %3767 = vdwg.mxu0
      %3768 = vmatprep.subr.mxu0 %v622
      %3769 = vmatpush1.msra.mxu0 %v621
      %3770 = vmatprep.subr.mxu0 %v626
      %3771 = vmatpush1.msra.mxu0 %v625
      %3772 = vmatprep.subr.mxu0 %v630
      %3773 = vmatpush1.msra.mxu0 %v629
      %3774 = vmatprep.subr.mxu0 %v634
      %3775 = vmatpush1.msra.mxu0 %v633
      %3776 = vmatprep.subr.mxu0 %v638
      %3777 = vmatpush1.msra.mxu0 %v637
      %3778 = vmatprep.subr.mxu0 %v642
      %3779 = vmatpush1.msra.mxu0 %v641
      %3780 = vmatprep.subr.mxu0 %v646
      %3781 = vmatpush1.msra.mxu0 %v645
      %3782 = vmatprep.subr.mxu0 %v650
      %3783 = vmatpush1.msra.mxu0 %v649
      %3784 = vmatprep.subr.mxu0 %v654
      %3785 = vmatpush1.msra.mxu0 %v653
      %3786 = vmatprep.subr.mxu0 %v658
      %3787 = vmatpush1.msra.mxu0 %v657
      %3788 = vmatprep.subr.mxu0 %v662
      %3789 = vmatpush1.msra.mxu0 %v661
      %3790 = vmatprep.subr.mxu0 %v666
      %3791 = vmatpush1.msra.mxu0 %v665
      %3792 = vmatprep.subr.mxu0 %v670
      %3793 = vmatpush1.msra.mxu0 %v669
      %3794 = vmatprep.subr.mxu0 %v674
      %3795 = vmatpush1.msra.mxu0 %v673
      %3796 = vmatprep.subr.mxu0 %v678
      %3797 = vmatpush1.msra.mxu0 %v677
      %3798 = vmatprep.subr.mxu0 %v682
      %3799 = vmatpush1.msra.mxu0 %v681
      %3800 = vmatprep.subr.mxu0 %v686
      %3801 = vmatpush1.msra.mxu0 %v685
      %3802 = vmatprep.subr.mxu0 %v690
      %3803 = vmatpush1.msra.mxu0 %v689
      %3804 = vmatprep.subr.mxu0 %v694
      %3805 = vmatpush1.msra.mxu0 %v693
      %3806 = vmatprep.subr.mxu0 %v698
      %3807 = vmatpush1.msra.mxu0 %v697
      %3808 = vmatprep.subr.mxu0 %v702
      %3809 = vmatpush1.msra.mxu0 %v701
      %3810 = vmatprep.subr.mxu0 %v706
      %3811 = vmatpush1.msra.mxu0 %v705
      %3812 = vmatprep.subr.mxu0 %v710
      %3813 = vmatpush1.msra.mxu0 %v709
      %3814 = vmatprep.subr.mxu0 %v714
      %3815 = vmatpush1.msra.mxu0 %v713
      %3816 = vmatprep.subr.mxu0 %v718
      %3817 = vmatpush1.msra.mxu0 %v717
      %3818 = vmatprep.subr.mxu0 %v722
      %3819 = vmatpush1.msra.mxu0 %v721
      %3820 = vmatprep.subr.mxu0 %v726
      %3821 = vmatpush1.msra.mxu0 %v725
      %3822 = vmatprep.subr.mxu0 %v730
      %3823 = vmatpush1.msra.mxu0 %v729
      %3824 = vmatprep.subr.mxu0 %v734
      %3825 = vmatpush1.msra.mxu0 %v733
      %3826 = vmatprep.subr.mxu0 %v738
      %3827 = vmatpush1.msra.mxu0 %v737
      %3828 = vmatprep.subr.mxu0 %v742
      %3829 = vmatpush1.msra.mxu0 %v741
      %3830 = vmatprep.subr.mxu0 %v746
      %3831 = vmatpush1.msra.mxu0 %v745
      %3832 = vmatprep.mubr.f32.mxu0 %v178
      %3833 = vmatmul.mubr.f32.gmra.mrb[0].mxu0 %v177
      %v3834 = vpop.f32.mrb[0].mxu0
      %v3835 = vadd.f32 %v3758, %v3834
      %v3836 = vpop.f32.mrb[0].mxu0
      %v3837 = vadd.f32 %v3760, %v3836
      %3838 = vmatprep.mubr.f32.mxu0 %v210
      %3839 = vmatmul.mubr.f32.gmra.mrb[0].mxu0 %v209
      %v3840 = vpop.f32.mrb[0].mxu0
      %v3841 = vadd.f32 %v3764, %v3840
      %v3842 = vpop.f32.mrb[0].mxu0
      %v3843 = vadd.f32 %v3766, %v3842
      %3844 = vdwg.mxu0
      %3845 = vmatprep.subr.mxu0 %v750
      %3846 = vmatpush1.msra.mxu0 %v749
      %3847 = vmatprep.subr.mxu0 %v754
      %3848 = vmatpush1.msra.mxu0 %v753
      %3849 = vmatprep.subr.mxu0 %v758
      %3850 = vmatpush1.msra.mxu0 %v757
      %3851 = vmatprep.subr.mxu0 %v762
      %3852 = vmatpush1.msra.mxu0 %v761
      %3853 = vmatprep.subr.mxu0 %v766
      %3854 = vmatpush1.msra.mxu0 %v765
      %3855 = vmatprep.subr.mxu0 %v770
      %3856 = vmatpush1.msra.mxu0 %v769
      %3857 = vmatprep.subr.mxu0 %v774
      %3858 = vmatpush1.msra.mxu0 %v773
      %3859 = vmatprep.subr.mxu0 %v778
      %3860 = vmatpush1.msra.mxu0 %v777
      %3861 = vmatprep.subr.mxu0 %v782
      %3862 = vmatpush1.msra.mxu0 %v781
      %3863 = vmatprep.subr.mxu0 %v786
      %3864 = vmatpush1.msra.mxu0 %v785
      %3865 = vmatprep.subr.mxu0 %v790
      %3866 = vmatpush1.msra.mxu0 %v789
      %3867 = vmatprep.subr.mxu0 %v794
      %3868 = vmatpush1.msra.mxu0 %v793
      %3869 = vmatprep.subr.mxu0 %v798
      %3870 = vmatpush1.msra.mxu0 %v797
      %3871 = vmatprep.subr.mxu0 %v802
      %3872 = vmatpush1.msra.mxu0 %v801
      %3873 = vmatprep.subr.mxu0 %v806
      %3874 = vmatpush1.msra.mxu0 %v805
      %3875 = vmatprep.subr.mxu0 %v810
      %3876 = vmatpush1.msra.mxu0 %v809
      %3877 = vmatprep.subr.mxu0 %v814
      %3878 = vmatpush1.msra.mxu0 %v813
      %3879 = vmatprep.subr.mxu0 %v818
      %3880 = vmatpush1.msra.mxu0 %v817
      %3881 = vmatprep.subr.mxu0 %v822
      %3882 = vmatpush1.msra.mxu0 %v821
      %3883 = vmatprep.subr.mxu0 %v826
      %3884 = vmatpush1.msra.mxu0 %v825
      %3885 = vmatprep.subr.mxu0 %v830
      %3886 = vmatpush1.msra.mxu0 %v829
      %3887 = vmatprep.subr.mxu0 %v834
      %3888 = vmatpush1.msra.mxu0 %v833
      %3889 = vmatprep.subr.mxu0 %v838
      %3890 = vmatpush1.msra.mxu0 %v837
      %3891 = vmatprep.subr.mxu0 %v842
      %3892 = vmatpush1.msra.mxu0 %v841
      %3893 = vmatprep.subr.mxu0 %v846
      %3894 = vmatpush1.msra.mxu0 %v845
      %3895 = vmatprep.subr.mxu0 %v850
      %3896 = vmatpush1.msra.mxu0 %v849
      %3897 = vmatprep.subr.mxu0 %v854
      %3898 = vmatpush1.msra.mxu0 %v853
      %3899 = vmatprep.subr.mxu0 %v858
      %3900 = vmatpush1.msra.mxu0 %v857
      %3901 = vmatprep.subr.mxu0 %v862
      %3902 = vmatpush1.msra.mxu0 %v861
      %3903 = vmatprep.subr.mxu0 %v866
      %3904 = vmatpush1.msra.mxu0 %v865
      %3905 = vmatprep.subr.mxu0 %v870
      %3906 = vmatpush1.msra.mxu0 %v869
      %3907 = vmatprep.subr.mxu0 %v874
      %3908 = vmatpush1.msra.mxu0 %v873
      %3909 = vmatprep.mubr.f32.mxu0 %v180
      %3910 = vmatmul.mubr.f32.gmra.mrb[0].mxu0 %v179
      %v3911 = vpop.f32.mrb[0].mxu0
      %v3912 = vadd.f32 %v3835, %v3911
      %v3913 = vpop.f32.mrb[0].mxu0
      %v3914 = vadd.f32 %v3837, %v3913
      %3915 = vmatprep.mubr.f32.mxu0 %v212
      %3916 = vmatmul.mubr.f32.gmra.mrb[0].mxu0 %v211
      %v3917 = vpop.f32.mrb[0].mxu0
      %v3918 = vadd.f32 %v3841, %v3917
      %v3919 = vpop.f32.mrb[0].mxu0
      %v3920 = vadd.f32 %v3843, %v3919
      %3921 = vdwg.mxu0
      %3922 = vmatprep.subr.mxu0 %v878
      %3923 = vmatpush1.msra.mxu0 %v877
      %3924 = vmatprep.subr.mxu0 %v882
      %3925 = vmatpush1.msra.mxu0 %v881
      %3926 = vmatprep.subr.mxu0 %v886
      %3927 = vmatpush1.msra.mxu0 %v885
      %3928 = vmatprep.subr.mxu0 %v890
      %3929 = vmatpush1.msra.mxu0 %v889
      %3930 = vmatprep.subr.mxu0 %v894
      %3931 = vmatpush1.msra.mxu0 %v893
      %3932 = vmatprep.subr.mxu0 %v898
      %3933 = vmatpush1.msra.mxu0 %v897
      %3934 = vmatprep.subr.mxu0 %v902
      %3935 = vmatpush1.msra.mxu0 %v901
      %3936 = vmatprep.subr.mxu0 %v906
      %3937 = vmatpush1.msra.mxu0 %v905
      %3938 = vmatprep.subr.mxu0 %v910
      %3939 = vmatpush1.msra.mxu0 %v909
      %3940 = vmatprep.subr.mxu0 %v914
      %3941 = vmatpush1.msra.mxu0 %v913
      %3942 = vmatprep.subr.mxu0 %v918
      %3943 = vmatpush1.msra.mxu0 %v917
      %3944 = vmatprep.subr.mxu0 %v922
      %3945 = vmatpush1.msra.mxu0 %v921
      %3946 = vmatprep.subr.mxu0 %v926
      %3947 = vmatpush1.msra.mxu0 %v925
      %3948 = vmatprep.subr.mxu0 %v930
      %3949 = vmatpush1.msra.mxu0 %v929
      %3950 = vmatprep.subr.mxu0 %v934
      %3951 = vmatpush1.msra.mxu0 %v933
      %3952 = vmatprep.subr.mxu0 %v938
      %3953 = vmatpush1.msra.mxu0 %v937
      %3954 = vmatprep.subr.mxu0 %v942
      %3955 = vmatpush1.msra.mxu0 %v941
      %3956 = vmatprep.subr.mxu0 %v946
      %3957 = vmatpush1.msra.mxu0 %v945
      %3958 = vmatprep.subr.mxu0 %v950
      %3959 = vmatpush1.msra.mxu0 %v949
      %3960 = vmatprep.subr.mxu0 %v954
      %3961 = vmatpush1.msra.mxu0 %v953
      %3962 = vmatprep.subr.mxu0 %v958
      %3963 = vmatpush1.msra.mxu0 %v957
      %3964 = vmatprep.subr.mxu0 %v962
      %3965 = vmatpush1.msra.mxu0 %v961
      %3966 = vmatprep.subr.mxu0 %v966
      %3967 = vmatpush1.msra.mxu0 %v965
      %3968 = vmatprep.subr.mxu0 %v970
      %3969 = vmatpush1.msra.mxu0 %v969
      %3970 = vmatprep.subr.mxu0 %v974
      %3971 = vmatpush1.msra.mxu0 %v973
      %3972 = vmatprep.subr.mxu0 %v978
      %3973 = vmatpush1.msra.mxu0 %v977
      %3974 = vmatprep.subr.mxu0 %v982
      %3975 = vmatpush1.msra.mxu0 %v981
      %3976 = vmatprep.subr.mxu0 %v986
      %3977 = vmatpush1.msra.mxu0 %v985
      %3978 = vmatprep.subr.mxu0 %v990
      %3979 = vmatpush1.msra.mxu0 %v989
      %3980 = vmatprep.subr.mxu0 %v994
      %3981 = vmatpush1.msra.mxu0 %v993
      %3982 = vmatprep.subr.mxu0 %v998
      %3983 = vmatpush1.msra.mxu0 %v997
      %3984 = vmatprep.subr.mxu0 %v1002
      %3985 = vmatpush1.msra.mxu0 %v1001
      %3986 = vmatprep.mubr.f32.mxu0 %v182
      %3987 = vmatmul.mubr.f32.gmra.mrb[0].mxu0 %v181
      %v3988 = vpop.f32.mrb[0].mxu0
      %v3989 = vadd.f32 %v3912, %v3988
      %v3990 = vpop.f32.mrb[0].mxu0
      %v3991 = vadd.f32 %v3914, %v3990
      %3992 = vmatprep.mubr.f32.mxu0 %v214
      %3993 = vmatmul.mubr.f32.gmra.mrb[0].mxu0 %v213
      %v3994 = vpop.f32.mrb[0].mxu0
      %v3995 = vadd.f32 %v3918, %v3994
      %v3996 = vpop.f32.mrb[0].mxu0
      %v3997 = vadd.f32 %v3920, %v3996
      %3998 = vdwg.mxu0
      %3999 = vmatprep.subr.mxu0 %v1006
      %4000 = vmatpush1.msra.mxu0 %v1005
      %4001 = vmatprep.subr.mxu0 %v1010
      %4002 = vmatpush1.msra.mxu0 %v1009
      %4003 = vmatprep.subr.mxu0 %v1014
      %4004 = vmatpush1.msra.mxu0 %v1013
      %4005 = vmatprep.subr.mxu0 %v1018
      %4006 = vmatpush1.msra.mxu0 %v1017
      %4007 = vmatprep.subr.mxu0 %v1022
      %4008 = vmatpush1.msra.mxu0 %v1021
      %4009 = vmatprep.subr.mxu0 %v1026
      %4010 = vmatpush1.msra.mxu0 %v1025
      %4011 = vmatprep.subr.mxu0 %v1030
      %4012 = vmatpush1.msra.mxu0 %v1029
      %4013 = vmatprep.subr.mxu0 %v1034
      %4014 = vmatpush1.msra.mxu0 %v1033
      %4015 = vmatprep.subr.mxu0 %v1038
      %4016 = vmatpush1.msra.mxu0 %v1037
      %4017 = vmatprep.subr.mxu0 %v1042
      %4018 = vmatpush1.msra.mxu0 %v1041
      %4019 = vmatprep.subr.mxu0 %v1046
      %4020 = vmatpush1.msra.mxu0 %v1045
      %4021 = vmatprep.subr.mxu0 %v1050
      %4022 = vmatpush1.msra.mxu0 %v1049
      %4023 = vmatprep.subr.mxu0 %v1054
      %4024 = vmatpush1.msra.mxu0 %v1053
      %4025 = vmatprep.subr.mxu0 %v1058
      %4026 = vmatpush1.msra.mxu0 %v1057
      %4027 = vmatprep.subr.mxu0 %v1062
      %4028 = vmatpush1.msra.mxu0 %v1061
      %4029 = vmatprep.subr.mxu0 %v1066
      %4030 = vmatpush1.msra.mxu0 %v1065
      %4031 = vmatprep.subr.mxu0 %v1070
      %4032 = vmatpush1.msra.mxu0 %v1069
      %4033 = vmatprep.subr.mxu0 %v1074
      %4034 = vmatpush1.msra.mxu0 %v1073
      %4035 = vmatprep.subr.mxu0 %v1078
      %4036 = vmatpush1.msra.mxu0 %v1077
      %4037 = vmatprep.subr.mxu0 %v1082
      %4038 = vmatpush1.msra.mxu0 %v1081
      %4039 = vmatprep.subr.mxu0 %v1086
      %4040 = vmatpush1.msra.mxu0 %v1085
      %4041 = vmatprep.subr.mxu0 %v1090
      %4042 = vmatpush1.msra.mxu0 %v1089
      %4043 = vmatprep.subr.mxu0 %v1094
      %4044 = vmatpush1.msra.mxu0 %v1093
      %4045 = vmatprep.subr.mxu0 %v1098
      %4046 = vmatpush1.msra.mxu0 %v1097
      %4047 = vmatprep.subr.mxu0 %v1102
      %4048 = vmatpush1.msra.mxu0 %v1101
      %4049 = vmatprep.subr.mxu0 %v1106
      %4050 = vmatpush1.msra.mxu0 %v1105
      %4051 = vmatprep.subr.mxu0 %v1110
      %4052 = vmatpush1.msra.mxu0 %v1109
      %4053 = vmatprep.subr.mxu0 %v1114
      %4054 = vmatpush1.msra.mxu0 %v1113
      %4055 = vmatprep.subr.mxu0 %v1118
      %4056 = vmatpush1.msra.mxu0 %v1117
      %4057 = vmatprep.subr.mxu0 %v1122
      %4058 = vmatpush1.msra.mxu0 %v1121
      %4059 = vmatprep.subr.mxu0 %v1126
      %4060 = vmatpush1.msra.mxu0 %v1125
      %4061 = vmatprep.subr.mxu0 %v1130
      %4062 = vmatpush1.msra.mxu0 %v1129
      %4063 = vmatprep.mubr.f32.mxu0 %v184
      %4064 = vmatmul.mubr.f32.gmra.mrb[0].mxu0 %v183
      %v4065 = vpop.f32.mrb[0].mxu0
      %v4066 = vadd.f32 %v3989, %v4065
      %v4067 = vpop.f32.mrb[0].mxu0
      %v4068 = vadd.f32 %v3991, %v4067
      %4069 = vmatprep.mubr.f32.mxu0 %v216
      %4070 = vmatmul.mubr.f32.gmra.mrb[0].mxu0 %v215
      %v4071 = vpop.f32.mrb[0].mxu0
      %v4072 = vadd.f32 %v3995, %v4071
      %v4073 = vpop.f32.mrb[0].mxu0
      %v4074 = vadd.f32 %v3997, %v4073
      %4075 = vdwg.mxu0
      %4076 = vmatprep.subr.mxu0 %v1134
      %4077 = vmatpush1.msra.mxu0 %v1133
      %4078 = vmatprep.subr.mxu0 %v1138
      %4079 = vmatpush1.msra.mxu0 %v1137
      %4080 = vmatprep.subr.mxu0 %v1142
      %4081 = vmatpush1.msra.mxu0 %v1141
      %4082 = vmatprep.subr.mxu0 %v1146
      %4083 = vmatpush1.msra.mxu0 %v1145
      %4084 = vmatprep.subr.mxu0 %v1150
      %4085 = vmatpush1.msra.mxu0 %v1149
      %4086 = vmatprep.subr.mxu0 %v1154
      %4087 = vmatpush1.msra.mxu0 %v1153
      %4088 = vmatprep.subr.mxu0 %v1158
      %4089 = vmatpush1.msra.mxu0 %v1157
      %4090 = vmatprep.subr.mxu0 %v1162
      %4091 = vmatpush1.msra.mxu0 %v1161
      %4092 = vmatprep.subr.mxu0 %v1166
      %4093 = vmatpush1.msra.mxu0 %v1165
      %4094 = vmatprep.subr.mxu0 %v1170
      %4095 = vmatpush1.msra.mxu0 %v1169
      %4096 = vmatprep.subr.mxu0 %v1174
      %4097 = vmatpush1.msra.mxu0 %v1173
      %4098 = vmatprep.subr.mxu0 %v1178
      %4099 = vmatpush1.msra.mxu0 %v1177
      %4100 = vmatprep.subr.mxu0 %v1182
      %4101 = vmatpush1.msra.mxu0 %v1181
      %4102 = vmatprep.subr.mxu0 %v1186
      %4103 = vmatpush1.msra.mxu0 %v1185
      %4104 = vmatprep.subr.mxu0 %v1190
      %4105 = vmatpush1.msra.mxu0 %v1189
      %4106 = vmatprep.subr.mxu0 %v1194
      %4107 = vmatpush1.msra.mxu0 %v1193
      %4108 = vmatprep.subr.mxu0 %v1198
      %4109 = vmatpush1.msra.mxu0 %v1197
      %4110 = vmatprep.subr.mxu0 %v1202
      %4111 = vmatpush1.msra.mxu0 %v1201
      %4112 = vmatprep.subr.mxu0 %v1206
      %4113 = vmatpush1.msra.mxu0 %v1205
      %4114 = vmatprep.subr.mxu0 %v1210
      %4115 = vmatpush1.msra.mxu0 %v1209
      %4116 = vmatprep.subr.mxu0 %v1214
      %4117 = vmatpush1.msra.mxu0 %v1213
      %4118 = vmatprep.subr.mxu0 %v1218
      %4119 = vmatpush1.msra.mxu0 %v1217
      %4120 = vmatprep.subr.mxu0 %v1222
      %4121 = vmatpush1.msra.mxu0 %v1221
      %4122 = vmatprep.subr.mxu0 %v1226
      %4123 = vmatpush1.msra.mxu0 %v1225
      %4124 = vmatprep.subr.mxu0 %v1230
      %4125 = vmatpush1.msra.mxu0 %v1229
      %4126 = vmatprep.subr.mxu0 %v1234
      %4127 = vmatpush1.msra.mxu0 %v1233
      %4128 = vmatprep.subr.mxu0 %v1238
      %4129 = vmatpush1.msra.mxu0 %v1237
      %4130 = vmatprep.subr.mxu0 %v1242
      %4131 = vmatpush1.msra.mxu0 %v1241
      %4132 = vmatprep.subr.mxu0 %v1246
      %4133 = vmatpush1.msra.mxu0 %v1245
      %4134 = vmatprep.subr.mxu0 %v1250
      %4135 = vmatpush1.msra.mxu0 %v1249
      %4136 = vmatprep.subr.mxu0 %v1254
      %4137 = vmatpush1.msra.mxu0 %v1253
      %4138 = vmatprep.subr.mxu0 %v1258
      %4139 = vmatpush1.msra.mxu0 %v1257
      %4140 = vmatprep.mubr.f32.mxu0 %v186
      %4141 = vmatmul.mubr.f32.gmra.mrb[0].mxu0 %v185
      %v4142 = vpop.f32.mrb[0].mxu0
      %v4143 = vadd.f32 %v4066, %v4142
      %v4144 = vpop.f32.mrb[0].mxu0
      %v4145 = vadd.f32 %v4068, %v4144
      %4146 = vmatprep.mubr.f32.mxu0 %v218
      %4147 = vmatmul.mubr.f32.gmra.mrb[0].mxu0 %v217
      %v4148 = vpop.f32.mrb[0].mxu0
      %v4149 = vadd.f32 %v4072, %v4148
      %v4150 = vpop.f32.mrb[0].mxu0
      %v4151 = vadd.f32 %v4074, %v4150
      %4152 = vdwg.mxu0
      %4153 = vmatprep.subr.mxu0 %v1262
      %4154 = vmatpush1.msra.mxu0 %v1261
      %4155 = vmatprep.subr.mxu0 %v1266
      %4156 = vmatpush1.msra.mxu0 %v1265
      %4157 = vmatprep.subr.mxu0 %v1270
      %4158 = vmatpush1.msra.mxu0 %v1269
      %4159 = vmatprep.subr.mxu0 %v1274
      %4160 = vmatpush1.msra.mxu0 %v1273
      %4161 = vmatprep.subr.mxu0 %v1278
      %4162 = vmatpush1.msra.mxu0 %v1277
      %4163 = vmatprep.subr.mxu0 %v1282
      %4164 = vmatpush1.msra.mxu0 %v1281
      %4165 = vmatprep.subr.mxu0 %v1286
      %4166 = vmatpush1.msra.mxu0 %v1285
      %4167 = vmatprep.subr.mxu0 %v1290
      %4168 = vmatpush1.msra.mxu0 %v1289
      %4169 = vmatprep.subr.mxu0 %v1294
      %4170 = vmatpush1.msra.mxu0 %v1293
      %4171 = vmatprep.subr.mxu0 %v1298
      %4172 = vmatpush1.msra.mxu0 %v1297
      %4173 = vmatprep.subr.mxu0 %v1302
      %4174 = vmatpush1.msra.mxu0 %v1301
      %4175 = vmatprep.subr.mxu0 %v1306
      %4176 = vmatpush1.msra.mxu0 %v1305
      %4177 = vmatprep.subr.mxu0 %v1310
      %4178 = vmatpush1.msra.mxu0 %v1309
      %4179 = vmatprep.subr.mxu0 %v1314
      %4180 = vmatpush1.msra.mxu0 %v1313
      %4181 = vmatprep.subr.mxu0 %v1318
      %4182 = vmatpush1.msra.mxu0 %v1317
      %4183 = vmatprep.subr.mxu0 %v1322
      %4184 = vmatpush1.msra.mxu0 %v1321
      %4185 = vmatprep.subr.mxu0 %v1326
      %4186 = vmatpush1.msra.mxu0 %v1325
      %4187 = vmatprep.subr.mxu0 %v1330
      %4188 = vmatpush1.msra.mxu0 %v1329
      %4189 = vmatprep.subr.mxu0 %v1334
      %4190 = vmatpush1.msra.mxu0 %v1333
      %4191 = vmatprep.subr.mxu0 %v1338
      %4192 = vmatpush1.msra.mxu0 %v1337
      %4193 = vmatprep.subr.mxu0 %v1342
      %4194 = vmatpush1.msra.mxu0 %v1341
      %4195 = vmatprep.subr.mxu0 %v1346
      %4196 = vmatpush1.msra.mxu0 %v1345
      %4197 = vmatprep.subr.mxu0 %v1350
      %4198 = vmatpush1.msra.mxu0 %v1349
      %4199 = vmatprep.subr.mxu0 %v1354
      %4200 = vmatpush1.msra.mxu0 %v1353
      %4201 = vmatprep.subr.mxu0 %v1358
      %4202 = vmatpush1.msra.mxu0 %v1357
      %4203 = vmatprep.subr.mxu0 %v1362
      %4204 = vmatpush1.msra.mxu0 %v1361
      %4205 = vmatprep.subr.mxu0 %v1366
      %4206 = vmatpush1.msra.mxu0 %v1365
      %4207 = vmatprep.subr.mxu0 %v1370
      %4208 = vmatpush1.msra.mxu0 %v1369
      %4209 = vmatprep.subr.mxu0 %v1374
      %4210 = vmatpush1.msra.mxu0 %v1373
      %4211 = vmatprep.subr.mxu0 %v1378
      %4212 = vmatpush1.msra.mxu0 %v1377
      %4213 = vmatprep.subr.mxu0 %v1382
      %4214 = vmatpush1.msra.mxu0 %v1381
      %4215 = vmatprep.subr.mxu0 %v1386
      %4216 = vmatpush1.msra.mxu0 %v1385
      %4217 = vmatprep.mubr.f32.mxu0 %v188
      %4218 = vmatmul.mubr.f32.gmra.mrb[0].mxu0 %v187
      %v4219 = vpop.f32.mrb[0].mxu0
      %v4220 = vadd.f32 %v4143, %v4219
      %v4221 = vpop.f32.mrb[0].mxu0
      %v4222 = vadd.f32 %v4145, %v4221
      %4223 = vmatprep.mubr.f32.mxu0 %v220
      %4224 = vmatmul.mubr.f32.gmra.mrb[0].mxu0 %v219
      %v4225 = vpop.f32.mrb[0].mxu0
      %v4226 = vadd.f32 %v4149, %v4225
      %v4227 = vpop.f32.mrb[0].mxu0
      %v4228 = vadd.f32 %v4151, %v4227
      %4229 = vdwg.mxu0
      %4230 = vmatprep.subr.mxu0 %v1390
      %4231 = vmatpush1.msra.mxu0 %v1389
      %4232 = vmatprep.subr.mxu0 %v1394
      %4233 = vmatpush1.msra.mxu0 %v1393
      %4234 = vmatprep.subr.mxu0 %v1398
      %4235 = vmatpush1.msra.mxu0 %v1397
      %4236 = vmatprep.subr.mxu0 %v1402
      %4237 = vmatpush1.msra.mxu0 %v1401
      %4238 = vmatprep.subr.mxu0 %v1406
      %4239 = vmatpush1.msra.mxu0 %v1405
      %4240 = vmatprep.subr.mxu0 %v1410
      %4241 = vmatpush1.msra.mxu0 %v1409
      %4242 = vmatprep.subr.mxu0 %v1414
      %4243 = vmatpush1.msra.mxu0 %v1413
      %4244 = vmatprep.subr.mxu0 %v1418
      %4245 = vmatpush1.msra.mxu0 %v1417
      %4246 = vmatprep.subr.mxu0 %v1422
      %4247 = vmatpush1.msra.mxu0 %v1421
      %4248 = vmatprep.subr.mxu0 %v1426
      %4249 = vmatpush1.msra.mxu0 %v1425
      %4250 = vmatprep.subr.mxu0 %v1430
      %4251 = vmatpush1.msra.mxu0 %v1429
      %4252 = vmatprep.subr.mxu0 %v1434
      %4253 = vmatpush1.msra.mxu0 %v1433
      %4254 = vmatprep.subr.mxu0 %v1438
      %4255 = vmatpush1.msra.mxu0 %v1437
      %4256 = vmatprep.subr.mxu0 %v1442
      %4257 = vmatpush1.msra.mxu0 %v1441
      %4258 = vmatprep.subr.mxu0 %v1446
      %4259 = vmatpush1.msra.mxu0 %v1445
      %4260 = vmatprep.subr.mxu0 %v1450
      %4261 = vmatpush1.msra.mxu0 %v1449
      %4262 = vmatprep.subr.mxu0 %v1454
      %4263 = vmatpush1.msra.mxu0 %v1453
      %4264 = vmatprep.subr.mxu0 %v1458
      %4265 = vmatpush1.msra.mxu0 %v1457
      %4266 = vmatprep.subr.mxu0 %v1462
      %4267 = vmatpush1.msra.mxu0 %v1461
      %4268 = vmatprep.subr.mxu0 %v1466
      %4269 = vmatpush1.msra.mxu0 %v1465
      %4270 = vmatprep.subr.mxu0 %v1470
      %4271 = vmatpush1.msra.mxu0 %v1469
      %4272 = vmatprep.subr.mxu0 %v1474
      %4273 = vmatpush1.msra.mxu0 %v1473
      %4274 = vmatprep.subr.mxu0 %v1478
      %4275 = vmatpush1.msra.mxu0 %v1477
      %4276 = vmatprep.subr.mxu0 %v1482
      %4277 = vmatpush1.msra.mxu0 %v1481
      %4278 = vmatprep.subr.mxu0 %v1486
      %4279 = vmatpush1.msra.mxu0 %v1485
      %4280 = vmatprep.subr.mxu0 %v1490
      %4281 = vmatpush1.msra.mxu0 %v1489
      %4282 = vmatprep.subr.mxu0 %v1494
      %4283 = vmatpush1.msra.mxu0 %v1493
      %4284 = vmatprep.subr.mxu0 %v1498
      %4285 = vmatpush1.msra.mxu0 %v1497
      %4286 = vmatprep.subr.mxu0 %v1502
      %4287 = vmatpush1.msra.mxu0 %v1501
      %4288 = vmatprep.subr.mxu0 %v1506
      %4289 = vmatpush1.msra.mxu0 %v1505
      %4290 = vmatprep.subr.mxu0 %v1510
      %4291 = vmatpush1.msra.mxu0 %v1509
      %4292 = vmatprep.subr.mxu0 %v1514
      %4293 = vmatpush1.msra.mxu0 %v1513
      %4294 = vmatprep.mubr.f32.mxu0 %v190
      %4295 = vmatmul.mubr.f32.gmra.mrb[0].mxu0 %v189
      %v4296 = vpop.f32.mrb[0].mxu0
      %v4297 = vadd.f32 %v4220, %v4296
      %v4298 = vpop.f32.mrb[0].mxu0
      %v4299 = vadd.f32 %v4222, %v4298
      %4300 = vmatprep.mubr.f32.mxu0 %v222
      %4301 = vmatmul.mubr.f32.gmra.mrb[0].mxu0 %v221
      %v4302 = vpop.f32.mrb[0].mxu0
      %v4303 = vadd.f32 %v4226, %v4302
      %v4304 = vpop.f32.mrb[0].mxu0
      %v4305 = vadd.f32 %v4228, %v4304
      %4306 = vdwg.mxu0
      %4307 = vmatprep.subr.mxu0 %v1518
      %4308 = vmatpush1.msra.mxu0 %v1517
      %4309 = vmatprep.subr.mxu0 %v1522
      %4310 = vmatpush1.msra.mxu0 %v1521
      %4311 = vmatprep.subr.mxu0 %v1526
      %4312 = vmatpush1.msra.mxu0 %v1525
      %4313 = vmatprep.subr.mxu0 %v1530
      %4314 = vmatpush1.msra.mxu0 %v1529
      %4315 = vmatprep.subr.mxu0 %v1534
      %4316 = vmatpush1.msra.mxu0 %v1533
      %4317 = vmatprep.subr.mxu0 %v1538
      %4318 = vmatpush1.msra.mxu0 %v1537
      %4319 = vmatprep.subr.mxu0 %v1542
      %4320 = vmatpush1.msra.mxu0 %v1541
      %4321 = vmatprep.subr.mxu0 %v1546
      %4322 = vmatpush1.msra.mxu0 %v1545
      %4323 = vmatprep.subr.mxu0 %v1550
      %4324 = vmatpush1.msra.mxu0 %v1549
      %4325 = vmatprep.subr.mxu0 %v1554
      %4326 = vmatpush1.msra.mxu0 %v1553
      %4327 = vmatprep.subr.mxu0 %v1558
      %4328 = vmatpush1.msra.mxu0 %v1557
      %4329 = vmatprep.subr.mxu0 %v1562
      %4330 = vmatpush1.msra.mxu0 %v1561
      %4331 = vmatprep.subr.mxu0 %v1566
      %4332 = vmatpush1.msra.mxu0 %v1565
      %4333 = vmatprep.subr.mxu0 %v1570
      %4334 = vmatpush1.msra.mxu0 %v1569
      %4335 = vmatprep.subr.mxu0 %v1574
      %4336 = vmatpush1.msra.mxu0 %v1573
      %4337 = vmatprep.subr.mxu0 %v1578
      %4338 = vmatpush1.msra.mxu0 %v1577
      %4339 = vmatprep.subr.mxu0 %v1582
      %4340 = vmatpush1.msra.mxu0 %v1581
      %4341 = vmatprep.subr.mxu0 %v1586
      %4342 = vmatpush1.msra.mxu0 %v1585
      %4343 = vmatprep.subr.mxu0 %v1590
      %4344 = vmatpush1.msra.mxu0 %v1589
      %4345 = vmatprep.subr.mxu0 %v1594
      %4346 = vmatpush1.msra.mxu0 %v1593
      %4347 = vmatprep.subr.mxu0 %v1598
      %4348 = vmatpush1.msra.mxu0 %v1597
      %4349 = vmatprep.subr.mxu0 %v1602
      %4350 = vmatpush1.msra.mxu0 %v1601
      %4351 = vmatprep.subr.mxu0 %v1606
      %4352 = vmatpush1.msra.mxu0 %v1605
      %4353 = vmatprep.subr.mxu0 %v1610
      %4354 = vmatpush1.msra.mxu0 %v1609
      %4355 = vmatprep.subr.mxu0 %v1614
      %4356 = vmatpush1.msra.mxu0 %v1613
      %4357 = vmatprep.subr.mxu0 %v1618
      %4358 = vmatpush1.msra.mxu0 %v1617
      %4359 = vmatprep.subr.mxu0 %v1622
      %4360 = vmatpush1.msra.mxu0 %v1621
      %4361 = vmatprep.subr.mxu0 %v1626
      %4362 = vmatpush1.msra.mxu0 %v1625
      %4363 = vmatprep.subr.mxu0 %v1630
      %4364 = vmatpush1.msra.mxu0 %v1629
      %4365 = vmatprep.subr.mxu0 %v1634
      %4366 = vmatpush1.msra.mxu0 %v1633
      %4367 = vmatprep.subr.mxu0 %v1638
      %4368 = vmatpush1.msra.mxu0 %v1637
      %4369 = vmatprep.subr.mxu0 %v1642
      %4370 = vmatpush1.msra.mxu0 %v1641
      %4371 = vmatprep.mubr.f32.mxu0 %v192
      %4372 = vmatmul.mubr.f32.gmra.mrb[0].mxu0 %v191
      %v4373 = vpop.f32.mrb[0].mxu0
      %v4374 = vadd.f32 %v4297, %v4373
      %v4375 = vpop.f32.mrb[0].mxu0
      %v4376 = vadd.f32 %v4299, %v4375
      %4377 = vmatprep.mubr.f32.mxu0 %v224
      %4378 = vmatmul.mubr.f32.gmra.mrb[0].mxu0 %v223
      %v4379 = vpop.f32.mrb[0].mxu0
      %v4380 = vadd.f32 %v4303, %v4379
      %v4381 = vpop.f32.mrb[0].mxu0
      %v4382 = vadd.f32 %v4305, %v4381
      %4383 = vdwg.mxu0
      %4384 = vmatprep.subr.mxu0 %v1646
      %4385 = vmatpush1.msra.mxu0 %v1645
      %4386 = vmatprep.subr.mxu0 %v1650
      %4387 = vmatpush1.msra.mxu0 %v1649
      %4388 = vmatprep.subr.mxu0 %v1654
      %4389 = vmatpush1.msra.mxu0 %v1653
      %4390 = vmatprep.subr.mxu0 %v1658
      %4391 = vmatpush1.msra.mxu0 %v1657
      %4392 = vmatprep.subr.mxu0 %v1662
      %4393 = vmatpush1.msra.mxu0 %v1661
      %4394 = vmatprep.subr.mxu0 %v1666
      %4395 = vmatpush1.msra.mxu0 %v1665
      %4396 = vmatprep.subr.mxu0 %v1670
      %4397 = vmatpush1.msra.mxu0 %v1669
      %4398 = vmatprep.subr.mxu0 %v1674
      %4399 = vmatpush1.msra.mxu0 %v1673
      %4400 = vmatprep.subr.mxu0 %v1678
      %4401 = vmatpush1.msra.mxu0 %v1677
      %4402 = vmatprep.subr.mxu0 %v1682
      %4403 = vmatpush1.msra.mxu0 %v1681
      %4404 = vmatprep.subr.mxu0 %v1686
      %4405 = vmatpush1.msra.mxu0 %v1685
      %4406 = vmatprep.subr.mxu0 %v1690
      %4407 = vmatpush1.msra.mxu0 %v1689
      %4408 = vmatprep.subr.mxu0 %v1694
      %4409 = vmatpush1.msra.mxu0 %v1693
      %4410 = vmatprep.subr.mxu0 %v1698
      %4411 = vmatpush1.msra.mxu0 %v1697
      %4412 = vmatprep.subr.mxu0 %v1702
      %4413 = vmatpush1.msra.mxu0 %v1701
      %4414 = vmatprep.subr.mxu0 %v1706
      %4415 = vmatpush1.msra.mxu0 %v1705
      %4416 = vmatprep.subr.mxu0 %v1710
      %4417 = vmatpush1.msra.mxu0 %v1709
      %4418 = vmatprep.subr.mxu0 %v1714
      %4419 = vmatpush1.msra.mxu0 %v1713
      %4420 = vmatprep.subr.mxu0 %v1718
      %4421 = vmatpush1.msra.mxu0 %v1717
      %4422 = vmatprep.subr.mxu0 %v1722
      %4423 = vmatpush1.msra.mxu0 %v1721
      %4424 = vmatprep.subr.mxu0 %v1726
      %4425 = vmatpush1.msra.mxu0 %v1725
      %4426 = vmatprep.subr.mxu0 %v1730
      %4427 = vmatpush1.msra.mxu0 %v1729
      %4428 = vmatprep.subr.mxu0 %v1734
      %4429 = vmatpush1.msra.mxu0 %v1733
      %4430 = vmatprep.subr.mxu0 %v1738
      %4431 = vmatpush1.msra.mxu0 %v1737
      %4432 = vmatprep.subr.mxu0 %v1742
      %4433 = vmatpush1.msra.mxu0 %v1741
      %4434 = vmatprep.subr.mxu0 %v1746
      %4435 = vmatpush1.msra.mxu0 %v1745
      %4436 = vmatprep.subr.mxu0 %v1750
      %4437 = vmatpush1.msra.mxu0 %v1749
      %4438 = vmatprep.subr.mxu0 %v1754
      %4439 = vmatpush1.msra.mxu0 %v1753
      %4440 = vmatprep.subr.mxu0 %v1758
      %4441 = vmatpush1.msra.mxu0 %v1757
      %4442 = vmatprep.subr.mxu0 %v1762
      %4443 = vmatpush1.msra.mxu0 %v1761
      %4444 = vmatprep.subr.mxu0 %v1766
      %4445 = vmatpush1.msra.mxu0 %v1765
      %4446 = vmatprep.subr.mxu0 %v1770
      %4447 = vmatpush1.msra.mxu0 %v1769
      %4448 = vmatprep.mubr.f32.mxu0 %v194
      %4449 = vmatmul.mubr.f32.gmra.mrb[0].mxu0 %v193
      %v4450 = vpop.f32.mrb[0].mxu0
      %v4451 = vadd.f32 %v4374, %v4450
      %v4452 = vpop.f32.mrb[0].mxu0
      %v4453 = vadd.f32 %v4376, %v4452
      %4454 = vmatprep.mubr.f32.mxu0 %v226
      %4455 = vmatmul.mubr.f32.gmra.mrb[0].mxu0 %v225
      %v4456 = vpop.f32.mrb[0].mxu0
      %v4457 = vadd.f32 %v4380, %v4456
      %v4458 = vpop.f32.mrb[0].mxu0
      %v4459 = vadd.f32 %v4382, %v4458
      %4460 = vdwg.mxu0
      %4461 = vmatprep.subr.mxu0 %v1774
      %4462 = vmatpush1.msra.mxu0 %v1773
      %4463 = vmatprep.subr.mxu0 %v1778
      %4464 = vmatpush1.msra.mxu0 %v1777
      %4465 = vmatprep.subr.mxu0 %v1782
      %4466 = vmatpush1.msra.mxu0 %v1781
      %4467 = vmatprep.subr.mxu0 %v1786
      %4468 = vmatpush1.msra.mxu0 %v1785
      %4469 = vmatprep.subr.mxu0 %v1790
      %4470 = vmatpush1.msra.mxu0 %v1789
      %4471 = vmatprep.subr.mxu0 %v1794
      %4472 = vmatpush1.msra.mxu0 %v1793
      %4473 = vmatprep.subr.mxu0 %v1798
      %4474 = vmatpush1.msra.mxu0 %v1797
      %4475 = vmatprep.subr.mxu0 %v1802
      %4476 = vmatpush1.msra.mxu0 %v1801
      %4477 = vmatprep.subr.mxu0 %v1806
      %4478 = vmatpush1.msra.mxu0 %v1805
      %4479 = vmatprep.subr.mxu0 %v1810
      %4480 = vmatpush1.msra.mxu0 %v1809
      %4481 = vmatprep.subr.mxu0 %v1814
      %4482 = vmatpush1.msra.mxu0 %v1813
      %4483 = vmatprep.subr.mxu0 %v1818
      %4484 = vmatpush1.msra.mxu0 %v1817
      %4485 = vmatprep.subr.mxu0 %v1822
      %4486 = vmatpush1.msra.mxu0 %v1821
      %4487 = vmatprep.subr.mxu0 %v1826
      %4488 = vmatpush1.msra.mxu0 %v1825
      %4489 = vmatprep.subr.mxu0 %v1830
      %4490 = vmatpush1.msra.mxu0 %v1829
      %4491 = vmatprep.subr.mxu0 %v1834
      %4492 = vmatpush1.msra.mxu0 %v1833
      %4493 = vmatprep.subr.mxu0 %v1838
      %4494 = vmatpush1.msra.mxu0 %v1837
      %4495 = vmatprep.subr.mxu0 %v1842
      %4496 = vmatpush1.msra.mxu0 %v1841
      %4497 = vmatprep.subr.mxu0 %v1846
      %4498 = vmatpush1.msra.mxu0 %v1845
      %4499 = vmatprep.subr.mxu0 %v1850
      %4500 = vmatpush1.msra.mxu0 %v1849
      %4501 = vmatprep.subr.mxu0 %v1854
      %4502 = vmatpush1.msra.mxu0 %v1853
      %4503 = vmatprep.subr.mxu0 %v1858
      %4504 = vmatpush1.msra.mxu0 %v1857
      %4505 = vmatprep.subr.mxu0 %v1862
      %4506 = vmatpush1.msra.mxu0 %v1861
      %4507 = vmatprep.subr.mxu0 %v1866
      %4508 = vmatpush1.msra.mxu0 %v1865
      %4509 = vmatprep.subr.mxu0 %v1870
      %4510 = vmatpush1.msra.mxu0 %v1869
      %4511 = vmatprep.subr.mxu0 %v1874
      %4512 = vmatpush1.msra.mxu0 %v1873
      %4513 = vmatprep.subr.mxu0 %v1878
      %4514 = vmatpush1.msra.mxu0 %v1877
      %4515 = vmatprep.subr.mxu0 %v1882
      %4516 = vmatpush1.msra.mxu0 %v1881
      %4517 = vmatprep.subr.mxu0 %v1886
      %4518 = vmatpush1.msra.mxu0 %v1885
      %4519 = vmatprep.subr.mxu0 %v1890
      %4520 = vmatpush1.msra.mxu0 %v1889
      %4521 = vmatprep.subr.mxu0 %v1894
      %4522 = vmatpush1.msra.mxu0 %v1893
      %4523 = vmatprep.subr.mxu0 %v1898
      %4524 = vmatpush1.msra.mxu0 %v1897
      %4525 = vmatprep.mubr.f32.mxu0 %v196
      %4526 = vmatmul.mubr.f32.gmra.mrb[0].mxu0 %v195
      %v4527 = vpop.f32.mrb[0].mxu0
      %v4528 = vadd.f32 %v4451, %v4527
      %v4529 = vpop.f32.mrb[0].mxu0
      %v4530 = vadd.f32 %v4453, %v4529
      %4531 = vmatprep.mubr.f32.mxu0 %v228
      %4532 = vmatmul.mubr.f32.gmra.mrb[0].mxu0 %v227
      %v4533 = vpop.f32.mrb[0].mxu0
      %v4534 = vadd.f32 %v4457, %v4533
      %v4535 = vpop.f32.mrb[0].mxu0
      %v4536 = vadd.f32 %v4459, %v4535
      %4537 = vdwg.mxu0
      %4538 = vmatprep.subr.mxu0 %v1902
      %4539 = vmatpush1.msra.mxu0 %v1901
      %4540 = vmatprep.subr.mxu0 %v1906
      %4541 = vmatpush1.msra.mxu0 %v1905
      %4542 = vmatprep.subr.mxu0 %v1910
      %4543 = vmatpush1.msra.mxu0 %v1909
      %4544 = vmatprep.subr.mxu0 %v1914
      %4545 = vmatpush1.msra.mxu0 %v1913
      %4546 = vmatprep.subr.mxu0 %v1918
      %4547 = vmatpush1.msra.mxu0 %v1917
      %4548 = vmatprep.subr.mxu0 %v1922
      %4549 = vmatpush1.msra.mxu0 %v1921
      %4550 = vmatprep.subr.mxu0 %v1926
      %4551 = vmatpush1.msra.mxu0 %v1925
      %4552 = vmatprep.subr.mxu0 %v1930
      %4553 = vmatpush1.msra.mxu0 %v1929
      %4554 = vmatprep.subr.mxu0 %v1934
      %4555 = vmatpush1.msra.mxu0 %v1933
      %4556 = vmatprep.subr.mxu0 %v1938
      %4557 = vmatpush1.msra.mxu0 %v1937
      %4558 = vmatprep.subr.mxu0 %v1942
      %4559 = vmatpush1.msra.mxu0 %v1941
      %4560 = vmatprep.subr.mxu0 %v1946
      %4561 = vmatpush1.msra.mxu0 %v1945
      %4562 = vmatprep.subr.mxu0 %v1950
      %4563 = vmatpush1.msra.mxu0 %v1949
      %4564 = vmatprep.subr.mxu0 %v1954
      %4565 = vmatpush1.msra.mxu0 %v1953
      %4566 = vmatprep.subr.mxu0 %v1958
      %4567 = vmatpush1.msra.mxu0 %v1957
      %4568 = vmatprep.subr.mxu0 %v1962
      %4569 = vmatpush1.msra.mxu0 %v1961
      %4570 = vmatprep.subr.mxu0 %v1966
      %4571 = vmatpush1.msra.mxu0 %v1965
      %4572 = vmatprep.subr.mxu0 %v1970
      %4573 = vmatpush1.msra.mxu0 %v1969
      %4574 = vmatprep.subr.mxu0 %v1974
      %4575 = vmatpush1.msra.mxu0 %v1973
      %4576 = vmatprep.subr.mxu0 %v1978
      %4577 = vmatpush1.msra.mxu0 %v1977
      %4578 = vmatprep.subr.mxu0 %v1982
      %4579 = vmatpush1.msra.mxu0 %v1981
      %4580 = vmatprep.subr.mxu0 %v1986
      %4581 = vmatpush1.msra.mxu0 %v1985
      %4582 = vmatprep.subr.mxu0 %v1990
      %4583 = vmatpush1.msra.mxu0 %v1989
      %4584 = vmatprep.subr.mxu0 %v1994
      %4585 = vmatpush1.msra.mxu0 %v1993
      %4586 = vmatprep.subr.mxu0 %v1998
      %4587 = vmatpush1.msra.mxu0 %v1997
      %4588 = vmatprep.subr.mxu0 %v2002
      %4589 = vmatpush1.msra.mxu0 %v2001
      %4590 = vmatprep.subr.mxu0 %v2006
      %4591 = vmatpush1.msra.mxu0 %v2005
      %4592 = vmatprep.subr.mxu0 %v2010
      %4593 = vmatpush1.msra.mxu0 %v2009
      %4594 = vmatprep.subr.mxu0 %v2014
      %4595 = vmatpush1.msra.mxu0 %v2013
      %4596 = vmatprep.subr.mxu0 %v2018
      %4597 = vmatpush1.msra.mxu0 %v2017
      %4598 = vmatprep.subr.mxu0 %v2022
      %4599 = vmatpush1.msra.mxu0 %v2021
      %4600 = vmatprep.subr.mxu0 %v2026
      %4601 = vmatpush1.msra.mxu0 %v2025
      %4602 = vmatprep.mubr.f32.mxu0 %v198
      %4603 = vmatmul.mubr.f32.gmra.mrb[0].mxu0 %v197
      %v4604 = vpop.f32.mrb[0].mxu0
      %v4605 = vadd.f32 %v4528, %v4604
      %v4606 = vpop.f32.mrb[0].mxu0
      %v4607 = vadd.f32 %v4530, %v4606
      %4608 = vmatprep.mubr.f32.mxu0 %v230
      %4609 = vmatmul.mubr.f32.gmra.mrb[0].mxu0 %v229
      %v4610 = vpop.f32.mrb[0].mxu0
      %v4611 = vadd.f32 %v4534, %v4610
      %v4612 = vpop.f32.mrb[0].mxu0
      %v4613 = vadd.f32 %v4536, %v4612
      %4614 = vdwg.mxu0
      %4615 = vmatprep.subr.mxu0 %v2030
      %4616 = vmatpush1.msra.mxu0 %v2029
      %4617 = vmatprep.subr.mxu0 %v2034
      %4618 = vmatpush1.msra.mxu0 %v2033
      %4619 = vmatprep.subr.mxu0 %v2038
      %4620 = vmatpush1.msra.mxu0 %v2037
      %4621 = vmatprep.subr.mxu0 %v2042
      %4622 = vmatpush1.msra.mxu0 %v2041
      %4623 = vmatprep.subr.mxu0 %v2046
      %4624 = vmatpush1.msra.mxu0 %v2045
      %4625 = vmatprep.subr.mxu0 %v2050
      %4626 = vmatpush1.msra.mxu0 %v2049
      %4627 = vmatprep.subr.mxu0 %v2054
      %4628 = vmatpush1.msra.mxu0 %v2053
      %4629 = vmatprep.subr.mxu0 %v2058
      %4630 = vmatpush1.msra.mxu0 %v2057
      %4631 = vmatprep.subr.mxu0 %v2062
      %4632 = vmatpush1.msra.mxu0 %v2061
      %4633 = vmatprep.subr.mxu0 %v2066
      %4634 = vmatpush1.msra.mxu0 %v2065
      %4635 = vmatprep.subr.mxu0 %v2070
      %4636 = vmatpush1.msra.mxu0 %v2069
      %4637 = vmatprep.subr.mxu0 %v2074
      %4638 = vmatpush1.msra.mxu0 %v2073
      %4639 = vmatprep.subr.mxu0 %v2078
      %4640 = vmatpush1.msra.mxu0 %v2077
      %4641 = vmatprep.subr.mxu0 %v2082
      %4642 = vmatpush1.msra.mxu0 %v2081
      %4643 = vmatprep.subr.mxu0 %v2086
      %4644 = vmatpush1.msra.mxu0 %v2085
      %4645 = vmatprep.subr.mxu0 %v2090
      %4646 = vmatpush1.msra.mxu0 %v2089
      %4647 = vmatprep.subr.mxu0 %v2094
      %4648 = vmatpush1.msra.mxu0 %v2093
      %4649 = vmatprep.subr.mxu0 %v2098
      %4650 = vmatpush1.msra.mxu0 %v2097
      %4651 = vmatprep.subr.mxu0 %v2102
      %4652 = vmatpush1.msra.mxu0 %v2101
      %4653 = vmatprep.subr.mxu0 %v2106
      %4654 = vmatpush1.msra.mxu0 %v2105
      %4655 = vmatprep.subr.mxu0 %v2110
      %4656 = vmatpush1.msra.mxu0 %v2109
      %4657 = vmatprep.subr.mxu0 %v2114
      %4658 = vmatpush1.msra.mxu0 %v2113
      %4659 = vmatprep.subr.mxu0 %v2118
      %4660 = vmatpush1.msra.mxu0 %v2117
      %4661 = vmatprep.subr.mxu0 %v2122
      %4662 = vmatpush1.msra.mxu0 %v2121
      %4663 = vmatprep.subr.mxu0 %v2126
      %4664 = vmatpush1.msra.mxu0 %v2125
      %4665 = vmatprep.subr.mxu0 %v2130
      %4666 = vmatpush1.msra.mxu0 %v2129
      %4667 = vmatprep.subr.mxu0 %v2134
      %4668 = vmatpush1.msra.mxu0 %v2133
      %4669 = vmatprep.subr.mxu0 %v2138
      %4670 = vmatpush1.msra.mxu0 %v2137
      %4671 = vmatprep.subr.mxu0 %v2142
      %4672 = vmatpush1.msra.mxu0 %v2141
      %4673 = vmatprep.subr.mxu0 %v2146
      %4674 = vmatpush1.msra.mxu0 %v2145
      %4675 = vmatprep.subr.mxu0 %v2150
      %4676 = vmatpush1.msra.mxu0 %v2149
      %4677 = vmatprep.subr.mxu0 %v2154
      %4678 = vmatpush1.msra.mxu0 %v2153
      %4679 = vmatprep.mubr.f32.mxu0 %v200
      %4680 = vmatmul.mubr.f32.gmra.mrb[0].mxu0 %v199
      %v4681 = vpop.f32.mrb[0].mxu0
      %v4682 = vadd.f32 %v4605, %v4681
      %v4683 = vpop.f32.mrb[0].mxu0
      %v4684 = vadd.f32 %v4607, %v4683
      %4685 = vmatprep.mubr.f32.mxu0 %v232
      %4686 = vmatmul.mubr.f32.gmra.mrb[0].mxu0 %v231
      %v4687 = vpop.f32.mrb[0].mxu0
      %v4688 = vadd.f32 %v4611, %v4687
      %v4689 = vpop.f32.mrb[0].mxu0
      %v4690 = vadd.f32 %v4613, %v4689
      %4691 = vdwg.mxu0
      %4692 = vmatprep.subr.mxu0 %v2158
      %4693 = vmatpush1.msra.mxu0 %v2157
      %4694 = vmatprep.subr.mxu0 %v2162
      %4695 = vmatpush1.msra.mxu0 %v2161
      %4696 = vmatprep.subr.mxu0 %v2166
      %4697 = vmatpush1.msra.mxu0 %v2165
      %4698 = vmatprep.subr.mxu0 %v2170
      %4699 = vmatpush1.msra.mxu0 %v2169
      %4700 = vmatprep.subr.mxu0 %v2174
      %4701 = vmatpush1.msra.mxu0 %v2173
      %4702 = vmatprep.subr.mxu0 %v2178
      %4703 = vmatpush1.msra.mxu0 %v2177
      %4704 = vmatprep.subr.mxu0 %v2182
      %4705 = vmatpush1.msra.mxu0 %v2181
      %4706 = vmatprep.subr.mxu0 %v2186
      %4707 = vmatpush1.msra.mxu0 %v2185
      %4708 = vmatprep.subr.mxu0 %v2190
      %4709 = vmatpush1.msra.mxu0 %v2189
      %4710 = vmatprep.subr.mxu0 %v2194
      %4711 = vmatpush1.msra.mxu0 %v2193
      %4712 = vmatprep.subr.mxu0 %v2198
      %4713 = vmatpush1.msra.mxu0 %v2197
      %4714 = vmatprep.subr.mxu0 %v2202
      %4715 = vmatpush1.msra.mxu0 %v2201
      %4716 = vmatprep.subr.mxu0 %v2206
      %4717 = vmatpush1.msra.mxu0 %v2205
      %4718 = vmatprep.subr.mxu0 %v2210
      %4719 = vmatpush1.msra.mxu0 %v2209
      %4720 = vmatprep.subr.mxu0 %v2214
      %4721 = vmatpush1.msra.mxu0 %v2213
      %4722 = vmatprep.subr.mxu0 %v2218
      %4723 = vmatpush1.msra.mxu0 %v2217
      %4724 = vmatprep.subr.mxu0 %v2222
      %4725 = vmatpush1.msra.mxu0 %v2221
      %4726 = vmatprep.subr.mxu0 %v2226
      %4727 = vmatpush1.msra.mxu0 %v2225
      %4728 = vmatprep.subr.mxu0 %v2230
      %4729 = vmatpush1.msra.mxu0 %v2229
      %4730 = vmatprep.subr.mxu0 %v2234
      %4731 = vmatpush1.msra.mxu0 %v2233
      %4732 = vmatprep.subr.mxu0 %v2238
      %4733 = vmatpush1.msra.mxu0 %v2237
      %4734 = vmatprep.subr.mxu0 %v2242
      %4735 = vmatpush1.msra.mxu0 %v2241
      %4736 = vmatprep.subr.mxu0 %v2246
      %4737 = vmatpush1.msra.mxu0 %v2245
      %4738 = vmatprep.subr.mxu0 %v2250
      %4739 = vmatpush1.msra.mxu0 %v2249
      %4740 = vmatprep.subr.mxu0 %v2254
      %4741 = vmatpush1.msra.mxu0 %v2253
      %4742 = vmatprep.subr.mxu0 %v2258
      %4743 = vmatpush1.msra.mxu0 %v2257
      %4744 = vmatprep.subr.mxu0 %v2262
      %4745 = vmatpush1.msra.mxu0 %v2261
      %4746 = vmatprep.subr.mxu0 %v2266
      %4747 = vmatpush1.msra.mxu0 %v2265
      %4748 = vmatprep.subr.mxu0 %v2270
      %4749 = vmatpush1.msra.mxu0 %v2269
      %4750 = vmatprep.subr.mxu0 %v2274
      %4751 = vmatpush1.msra.mxu0 %v2273
      %4752 = vmatprep.subr.mxu0 %v2278
      %4753 = vmatpush1.msra.mxu0 %v2277
      %4754 = vmatprep.subr.mxu0 %v2282
      %4755 = vmatpush1.msra.mxu0 %v2281
      %4756 = vmatprep.mubr.f32.mxu0 %v202
      %4757 = vmatmul.mubr.f32.gmra.mrb[0].mxu0 %v201
      %v4758 = vpop.f32.mrb[0].mxu0
      %v4759 = vadd.f32 %v4682, %v4758
      %v4760 = vpop.f32.mrb[0].mxu0
      %v4761 = vadd.f32 %v4684, %v4760
      %4762 = vmatprep.mubr.f32.mxu0 %v234
      %4763 = vmatmul.mubr.f32.gmra.mrb[0].mxu0 %v233
      %v4764 = vpop.f32.mrb[0].mxu0
      %v4765 = vadd.f32 %v4688, %v4764
      %v4766 = vpop.f32.mrb[0].mxu0
      %v4767 = vadd.f32 %v4690, %v4766
      %4768 = vdwg.mxu0
      %vm4769 = vcmask 1040384
      %v4770 = vsel %vm4769, %v3533, 0.0
      %v4771 = vadd.f32 %v3527, %v4770
      %v4772 = vrot.slane %v4771, 4
      %v4773 = vadd.f32 %v4771, %v4772
      %v4774 = vrot.slane %v4773, 2
      %v4775 = vadd.f32 %v4773, %v4774
      %v4776 = vrot.slane %v4775, 1
      %v4777 = vadd.f32 %v4775, %v4776
      %v4778 = vsel %vm4769, %v3535, 0.0
      %v4779 = vadd.f32 %v3529, %v4778
      %v4780 = vrot.slane %v4779, 4
      %v4781 = vadd.f32 %v4779, %v4780
      %v4782 = vrot.slane %v4781, 2
      %v4783 = vadd.f32 %v4781, %v4782
      %v4784 = vrot.slane %v4783, 1
      %v4785 = vadd.f32 %v4783, %v4784
      %v4786 = vsel %vm4769, %v4765, 0.0
      %v4787 = vadd.f32 %v4759, %v4786
      %v4788 = vrot.slane %v4787, 4
      %v4789 = vadd.f32 %v4787, %v4788
      %v4790 = vrot.slane %v4789, 2
      %v4791 = vadd.f32 %v4789, %v4790
      %v4792 = vrot.slane %v4791, 1
      %v4793 = vadd.f32 %v4791, %v4792
      %v4794 = vsel %vm4769, %v4767, 0.0
      %v4795 = vadd.f32 %v4761, %v4794
      %v4796 = vrot.slane %v4795, 4
      %v4797 = vadd.f32 %v4795, %v4796
      %v4798 = vrot.slane %v4797, 2
      %v4799 = vadd.f32 %v4797, %v4798
      %v4800 = vrot.slane %v4799, 1
      %v4801 = vadd.f32 %v4799, %v4800
      %v4802 = vrcp.pop 9.0
      %v4803 = vmul.f32 %v4777, %v4802
      %v4804 = vmul.f32 %v4785, %v4802
      %v4805 = vmul.f32 %v4793, %v4802
      %v4806 = vmul.f32 %v4801, %v4802
      %v4807 = vsub.f32 %v3527, %v4803
      %v4808 = vsub.f32 %v3529, %v4804
      %v4809 = vsub.f32 %v4759, %v4805
      %v4810 = vsub.f32 %v4761, %v4806
      %v4811 = vsub.f32 %v3533, %v4803
      %v4812 = vsub.f32 %v3535, %v4804
      %v4813 = vsub.f32 %v4765, %v4805
      %v4814 = vsub.f32 %v4767, %v4806
      %v4815 = vmul.f32 %v4807, %v4807
      %v4816 = vmul.f32 %v4808, %v4808
      %v4817 = vmul.f32 %v4809, %v4809
      %v4818 = vmul.f32 %v4810, %v4810
      %v4819 = vmul.f32 %v4811, %v4811
      %v4820 = vmul.f32 %v4812, %v4812
      %v4821 = vmul.f32 %v4813, %v4813
      %v4822 = vmul.f32 %v4814, %v4814
      %v4823 = vsel %vm4769, %v4819, 0.0
      %v4824 = vadd.f32 %v4815, %v4823
      %v4825 = vrot.slane %v4824, 4
      %v4826 = vadd.f32 %v4824, %v4825
      %v4827 = vrot.slane %v4826, 2
      %v4828 = vadd.f32 %v4826, %v4827
      %v4829 = vrot.slane %v4828, 1
      %v4830 = vadd.f32 %v4828, %v4829
      %v4831 = vsel %vm4769, %v4820, 0.0
      %v4832 = vadd.f32 %v4816, %v4831
      %v4833 = vrot.slane %v4832, 4
      %v4834 = vadd.f32 %v4832, %v4833
      %v4835 = vrot.slane %v4834, 2
      %v4836 = vadd.f32 %v4834, %v4835
      %v4837 = vrot.slane %v4836, 1
      %v4838 = vadd.f32 %v4836, %v4837
      %v4839 = vsel %vm4769, %v4821, 0.0
      %v4840 = vadd.f32 %v4817, %v4839
      %v4841 = vrot.slane %v4840, 4
      %v4842 = vadd.f32 %v4840, %v4841
      %v4843 = vrot.slane %v4842, 2
      %v4844 = vadd.f32 %v4842, %v4843
      %v4845 = vrot.slane %v4844, 1
      %v4846 = vadd.f32 %v4844, %v4845
      %v4847 = vsel %vm4769, %v4822, 0.0
      %v4848 = vadd.f32 %v4818, %v4847
      %v4849 = vrot.slane %v4848, 4
      %v4850 = vadd.f32 %v4848, %v4849
      %v4851 = vrot.slane %v4850, 2
      %v4852 = vadd.f32 %v4850, %v4851
      %v4853 = vrot.slane %v4852, 1
      %v4854 = vadd.f32 %v4852, %v4853
      %v4855 = vmul.f32 %v4830, %v4802
      %v4856 = vmul.f32 %v4838, %v4802
      %v4857 = vmul.f32 %v4846, %v4802
      %v4858 = vmul.f32 %v4854, %v4802
      %v4859 = vadd.f32 %v4855, 1e-05
      %v4860 = vadd.f32 %v4856, 1e-05
      %v4861 = vadd.f32 %v4857, 1e-05
      %v4862 = vadd.f32 %v4858, 1e-05
      %v4863 = vrsqrt.pop %v4859
      %v4864 = vrsqrt.pop %v4860
      %v4865 = vrsqrt.pop %v4861
      %v4866 = vrsqrt.pop %v4862
      %v4867 = vmul.f32 %v4807, %v4863
      %v4868 = vmul.f32 %v4808, %v4864
      %v4869 = vmul.f32 %v4809, %v4865
      %v4870 = vmul.f32 %v4810, %v4866
      %v4871 = vmul.f32 %v4811, %v4863
      %v4872 = vmul.f32 %v4812, %v4864
      %v4873 = vmul.f32 %v4813, %v4865
      %v4874 = vmul.f32 %v4814, %v4866
      %vm4875 = vcmp.ge.f32.partialorder %v4867, 0.0
      %vm4876 = vcmp.ge.f32.partialorder %v4868, 0.0
      %vm4877 = vcmp.ge.f32.partialorder %v4869, 0.0
      %vm4878 = vcmp.ge.f32.partialorder %v4870, 0.0
      %vm4879 = vcmp.ge.f32.partialorder %v4871, 0.0
      %vm4880 = vcmp.ge.f32.partialorder %v4872, 0.0
      %vm4881 = vcmp.ge.f32.partialorder %v4873, 0.0
      %vm4882 = vcmp.ge.f32.partialorder %v4874, 0.0
      %v4883 = vmul.f32 %v4867, 0.2
      %v4884 = vmul.f32 %v4868, 0.2
      %v4885 = vmul.f32 %v4869, 0.2
      %v4886 = vmul.f32 %v4870, 0.2
      %v4887 = vmul.f32 %v4871, 0.2
      %v4888 = vmul.f32 %v4872, 0.2
      %v4889 = vmul.f32 %v4873, 0.2
      %v4890 = vmul.f32 %v4874, 0.2
      %v4891 = vsel %vm4875, %v4867, %v4883
      %v4892 = vsel %vm4876, %v4868, %v4884
      %v4893 = vsel %vm4877, %v4869, %v4885
      %v4894 = vsel %vm4878, %v4870, %v4886
      %v4895 = vsel %vm4879, %v4871, %v4887
      %v4896 = vsel %vm4880, %v4872, %v4888
      %v4897 = vsel %vm4881, %v4873, %v4889
      %v4898 = vsel %vm4882, %v4874, %v4890
      %4899 = vst [vmem:[%s170] sm:$0xff] %v4891
      %4900 = vst [vmem:[%s170 + $0x8] sm:$0xff] %v4892
      %4901 = vst [vmem:[%s170 + $0x10] sm:$0xff] %v4893
      %4902 = vst [vmem:[%s170 + $0x18] sm:$0xff] %v4894
      %4903 = vst [vmem:[%s170 + $0x20] sm:$0x1] %v4895
      %4904 = vst [vmem:[%s170 + $0x28] sm:$0x1] %v4896
      %4905 = vst [vmem:[%s170 + $0x30] sm:$0x1] %v4897
      %4906 = vst [vmem:[%s170 + $0x38] sm:$0x1] %v4898
      %p4907 = scmp.lt.s32.totalorder %s14, 1
      %s4908 = scalar_select %p4907, %s14, 1
      %s4909 = smul.addr %s4908, 8
      %s4910 = smul.addr %s4909, 8
      %s4911 = scalar_lea.vmem %s3, %s4910
      // Predicated region
      $region33: #{discriminator_forward.8} parent=31 // pred_check
        %p4912 = pneg %p100
      $region34: #{discriminator_forward.8} parent=31 // pred_check_branch
        %4914 = sbr.rel (%p4912) target = $region36
      $region35: #{discriminator_forward.8} parent=31 // pred_region
        _
      $region36: #{discriminator_forward.8} parent=31 // pred_fallthru
        _
    $region32: #{discriminator_forward.8} parent=5 // pred_fallthru
      _
    %p4915 = scmp.le.s32.totalorder 2, %s9
    // Predicated region
    $region37: #{discriminator_forward.8} parent=5 // pred_check
      %p4916 = pneg %p4915
    $region38: #{discriminator_forward.8} parent=5 // pred_check_branch
      %4918 = sbr.rel (%p4916) target = $region40
    $region39: #{discriminator_forward.8} parent=5 // pred_region
      %s4919 = ssub.s32 %s9, 2
      // Predicated region
      $region41: #{discriminator_forward.8} parent=39 // pred_check
        %p4920 = pneg %p106
      $region42: #{discriminator_forward.8} parent=39 // pred_check_branch
        %4922 = sbr.rel (%p4920) target = $region44
      $region43: #{discriminator_forward.8} parent=39 // pred_region
        %p4923 = scmp.lt.s32.totalorder %s15, 1
        %s4924 = scalar_select %p4923, %s15, 1
        %s4925 = smul.addr %s4924, 8
        %s4926 = smul.addr %s4925, 8
        %s4927 = scalar_lea.vmem %s3, %s4926
      $region44: #{discriminator_forward.8} parent=39 // pred_fallthru
        _
    $region40: #{discriminator_forward.8} parent=5 // pred_fallthru
      _
  $region6: #{discriminator_forward.8} parent=0 // loop_footer
    %s13 = sadd.s32 1, %s9
  $region7: #{discriminator_forward.8} parent=0 // loop_footer_branch
    %8 = sbr.rel target = $region3
  $region8: #{discriminator_forward.8} parent=0 // loop_exit
    _

</llo_original>
